<compile_context>
chip_gen: v5e
topology: v5e:2x2
jax: 0.10.0
libtpu: 0.0.40
codegen_flags: <defaults>
</compile_context>

<pallas_src>
import jax
import jax.numpy as jnp
from jax import lax
from jax.experimental import pallas as pl
from jax.experimental.pallas import tpu as pltpu

HIDDEN = 256       # LSTM hidden size (matches nn.Linear(256, nb_classes))
EMBED = 128        # embedding dim (backbone hyperparameter; lane-aligned)
VOCAB = 128        # synthetic vocab size
NB_CLASSES = 4     # number of review classes
SUBLANE = 8


def lstm_classifier_kernel(x_ref, len_ref, wih_ref, whh_ref, b_ref,
                           wc_ref, bc_ref, out_ref, gx_ref, h_ref, c_ref):
    """Masked LSTM recurrence + classifier for one (batch tile, T chunk).

    x_ref   : [Tc, Bt, E]   bf16  time-major embedded inputs (this chunk)
    len_ref : [Bt, 1]       i32   valid sequence length per example
    wih_ref : [E, 4H]       bf16
    whh_ref : [H, 4H]       bf16
    b_ref   : [1, 4H]       f32   (b_ih + b_hh folded)
    wc_ref  : [H, Cp]       bf16  (lane-padded classifier weight)
    bc_ref  : [1, Cp]       f32
    out_ref : [Bt, Cp]      f32   logits (written on the last chunk only)
    gx_ref  : [Tc*Bt, 4H]   bf16  scratch: hoisted input projection
    h_ref   : [Bt, H]       f32   scratch: recurrent state (persists across chunks)
    c_ref   : [Bt, H]       f32   scratch: cell state     (persists across chunks)
    """
    Tc, Bt, E = x_ref.shape
    H = whh_ref.shape[0]
    tc = pl.program_id(1)
    last_tc = pl.num_programs(1) - 1

    # Recurrent state lives in VMEM, not in a vreg loop carry: avoids the
    # full-register-file blowup of f32 (h, c) at Bt=128/256 and carries the
    # state across the "arbitrary" T-chunk grid axis.
    @pl.when(tc == 0)
    def _init():
        h_ref[...] = jnp.zeros_like(h_ref)
        c_ref[...] = jnp.zeros_like(c_ref)

    # Hoisted input projection for the whole chunk: one bulk bf16 MXU matmul
    # with f32 accumulation, bias folded in, stored as bf16 (halves the
    # scratch footprint and the per-step VMEM load vs f32).
    x_flat = x_ref[...].reshape(Tc * Bt, E)
    gx_ref[...] = (jnp.dot(x_flat, wih_ref[...],
                           preferred_element_type=jnp.float32)
                   + b_ref[...]).astype(jnp.bfloat16)

    lens = len_ref[...]                     # i32 [Bt, 1]
    t_base = tc * Tc                        # global time offset of this chunk

    # Two independent batch half-tiles per step (when Bt allows) give the
    # scheduler two MXU -> EUP -> VPU chains to interleave; within one chain
    # adjacent steps cannot overlap because h_t feeds h_{t+1}.
    Bh = Bt // 2 if Bt % 16 == 0 else Bt

    def half_step(t, b_off):
        h = h_ref[b_off:b_off + Bh, :]                       # f32 [Bh, H]
        c = c_ref[b_off:b_off + Bh, :]
        g_start = pl.multiple_of(t * Bt + b_off, 8)
        g_x = gx_ref[pl.ds(g_start, Bh), :].astype(jnp.float32)
        gates = g_x + jnp.dot(h.astype(jnp.bfloat16), whh_ref[...],
                              preferred_element_type=jnp.float32)
        i_g = jax.nn.sigmoid(gates[:, 0:H])
        f_g = jax.nn.sigmoid(gates[:, H:2 * H])
        g_g = jnp.tanh(gates[:, 2 * H:3 * H])
        o_g = jax.nn.sigmoid(gates[:, 3 * H:4 * H])
        c_new = f_g * c + i_g * g_g
        h_new = o_g * jnp.tanh(c_new)
        # Padded timesteps keep the previous state: single VPU select,
        # robust to anything that isn't strictly {0,1}.
        valid = (t_base + t) < lens[b_off:b_off + Bh, :]     # bool [Bh, 1]
        h_ref[b_off:b_off + Bh, :] = jnp.where(valid, h_new, h)
        c_ref[b_off:b_off + Bh, :] = jnp.where(valid, c_new, c)

    def step(t, carry):
        for b_off in range(0, Bt, Bh):
            half_step(t, b_off)
        return carry

    # Modest unroll: keeps LLO scheduling visibility without instruction /
    # live-range blowup at realistic chunk lengths.
    lax.fori_loop(0, Tc, step, 0, unroll=min(Tc, 8))

    @pl.when(tc == last_tc)
    def _classify():
        out_ref[...] = (jnp.dot(h_ref[...].astype(jnp.bfloat16), wc_ref[...],
                                preferred_element_type=jnp.float32)
                        + bc_ref[...])


def review_classifier_forward(input_ids, attention_mask, params,
                              batch_tile_cap=128, t_chunk_cap=64):
    """input_ids, attention_mask: [B, T] int32. Returns logits [B, C] f32."""
    B, T = input_ids.shape
    H = HIDDEN
    E = params["embedding"].shape[1]
    C = params["w_cls"].shape[1]
    C_pad = ((C + 127) // 128) * 128            # lane-dense classifier output

    # Batch padding / tiling. TODO(synk): raise batch_tile_cap to 256 on
    # v6e/v7x to fill the 256-row MXU once real batch sizes are used.
    B_pad = max(SUBLANE, ((B + SUBLANE - 1) // SUBLANE) * SUBLANE)
    Bt = min(B_pad, batch_tile_cap)
    B_pad = ((B_pad + Bt - 1) // Bt) * Bt
    n_tiles = B_pad // Bt

    # Sequence chunking: largest divisor of T that is <= t_chunk_cap.
    Tc = 1
    for d in range(min(T, t_chunk_cap), 0, -1):
        if T % d == 0:
            Tc = d
            break
    n_tc = T // Tc

    # Glue: embedding gather (data-dependent) stays in XLA; the time-major
    # transpose is fused into the gather and x is fed to the kernel as bf16.
    x = jnp.take(params["embedding"], input_ids.T, axis=0)          # [T, B, E]
    x = x.astype(jnp.bfloat16)
    x = jnp.pad(x, ((0, 0), (0, B_pad - B), (0, 0)))                # [T, Bp, E]

    # Attention masks are prefix (padding) masks -> per-example lengths.
    lengths = jnp.sum(attention_mask, axis=1).astype(jnp.int32)     # [B]
    lengths = jnp.pad(lengths, (0, B_pad - B))[:, None]             # [Bp, 1]

    # Lane-pad the tiny classifier so the output store is unmasked.
    w_cls_p = jnp.pad(params["w_cls"], ((0, 0), (0, C_pad - C)))
    b_cls_p = jnp.pad(params["b_cls"], ((0, 0), (0, C_pad - C)))

    # NOTE: the weight index_maps are constant, so the pipeline does not
    # re-DMA them per chunk; pipeline_mode=pl.Buffered(1) would additionally
    # drop their second VMEM buffer (left as a TODO above).
    grid_spec = pltpu.PrefetchScalarGridSpec(
        num_scalar_prefetch=0,
        grid=(n_tiles, n_tc),
        in_specs=[
            pl.BlockSpec((Tc, Bt, E), lambda i, t: (t, i, 0)),       # x chunk
            pl.BlockSpec((Bt, 1), lambda i, t: (i, 0)),              # lengths
            pl.BlockSpec((E, 4 * H), lambda i, t: (0, 0)),           # W_ih
            pl.BlockSpec((H, 4 * H), lambda i, t: (0, 0)),           # W_hh
            pl.BlockSpec((1, 4 * H), lambda i, t: (0, 0)),           # b
            pl.BlockSpec((H, C_pad), lambda i, t: (0, 0)),           # W_cls
            pl.BlockSpec((1, C_pad), lambda i, t: (0, 0)),           # b_cls
        ],
        out_specs=pl.BlockSpec((Bt, C_pad), lambda i, t: (i, 0)),
        scratch_shapes=[
            pltpu.VMEM((Tc * Bt, 4 * H), jnp.bfloat16),   # gx (hoisted proj)
            pltpu.VMEM((Bt, H), jnp.float32),             # h state
            pltpu.VMEM((Bt, H), jnp.float32),             # c state
        ],
    )

    logits_pad = pl.pallas_call(
        lstm_classifier_kernel,
        out_shape=jax.ShapeDtypeStruct((B_pad, C_pad), jnp.float32),
        grid_spec=grid_spec,
        compiler_params=pltpu.CompilerParams(
            # Batch tiles are independent (megacore / 2-TC shard); the
            # T-chunk axis carries h/c state and the resident output block.
            dimension_semantics=("parallel", "arbitrary"),
            # 48 MiB is safe on v7x (64 MiB physical); v5e/v6e (128 MiB) can
            # raise this toward ~96 MiB for larger T chunks.
            vmem_limit_bytes=48 * 1024 * 1024,
        ),
    )(x, lengths,
      params["w_ih"], params["w_hh"], params["b_lstm"],
      w_cls_p, b_cls_p)
    return logits_pad[:B, :C]


def reference_forward(input_ids, attention_mask, params):
    """Pure-JAX fp32 reference of the same forward pass."""
    x = jnp.take(params["embedding"], input_ids, axis=0).astype(jnp.float32)
    wih = params["w_ih"].astype(jnp.float32)
    whh = params["w_hh"].astype(jnp.float32)
    b = params["b_lstm"].astype(jnp.float32)
    B, T, _ = x.shape
    H = HIDDEN
    h = jnp.zeros((B, H), jnp.float32)
    c = jnp.zeros((B, H), jnp.float32)
    for t in range(T):
        gates = x[:, t, :] @ wih + h @ whh + b
        i_g = jax.nn.sigmoid(gates[:, 0:H])
        f_g = jax.nn.sigmoid(gates[:, H:2 * H])
        g_g = jnp.tanh(gates[:, 2 * H:3 * H])
        o_g = jax.nn.sigmoid(gates[:, 3 * H:4 * H])
        c_new = f_g * c + i_g * g_g
        h_new = o_g * jnp.tanh(c_new)
        m = attention_mask[:, t:t + 1].astype(jnp.float32)
        h = m * h_new + (1.0 - m) * h
        c = m * c_new + (1.0 - m) * c
    return h @ params["w_cls"].astype(jnp.float32) + params["b_cls"]


def init_params(key):
    ks = jax.random.split(key, 6)
    scale = 0.05

    def nrm(k, shape):
        return scale * jax.random.normal(k, shape, jnp.float32)

    return {
        "embedding": nrm(ks[0], (VOCAB, EMBED)),                       # f32
        # PyTorch LSTM weights are [4H, E] / [4H, H]; stored transposed for
        # x @ W and cast to bf16 (native MXU input dtype). Biases stay f32.
        # Gate order assumed [i|f|g|o] (PyTorch convention).
        "w_ih": nrm(ks[1], (EMBED, 4 * HIDDEN)).astype(jnp.bfloat16),
        "w_hh": nrm(ks[2], (HIDDEN, 4 * HIDDEN)).astype(jnp.bfloat16),
        "b_lstm": nrm(ks[3], (1, 4 * HIDDEN)),                         # f32
        "w_cls": nrm(ks[4], (HIDDEN, NB_CLASSES)).astype(jnp.bfloat16),
        "b_cls": nrm(ks[5], (1, NB_CLASSES)),                          # f32
    }


if __name__ == "__main__":
    key = jax.random.PRNGKey(0)
    pkey, ikey = jax.random.split(key)
    params = init_params(pkey)

    B, T = 2, 8
    input_ids = jax.random.randint(ikey, (B, T), 0, VOCAB, dtype=jnp.int32)
    # last two tokens of example 1 are padding
    attention_mask = jnp.array(
        [[1, 1, 1, 1, 1, 1, 1, 1],
         [1, 1, 1, 1, 1, 1, 0, 0]], dtype=jnp.int32)

    logits = review_classifier_forward(input_ids, attention_mask, params)
    jax.block_until_ready(logits)
    assert logits.shape == (B, NB_CLASSES)

    ref = reference_forward(input_ids, attention_mask, params)
    assert jnp.allclose(logits, ref, rtol=2e-2, atol=2e-2)
    print("KERNEL_OK")
</pallas_src>

<mosaic_0001>
module attributes {stable_mosaic.version = 11 : i64} {
  func.func @lstm_classifier_kernel(%arg0: i32, %arg1: i32, %arg2: memref<8x8x128xbf16, #tpu.memory_space<vmem>>, %arg3: memref<8x1xi32, #tpu.memory_space<vmem>>, %arg4: memref<128x1024xbf16, #tpu.memory_space<vmem>>, %arg5: memref<256x1024xbf16, #tpu.memory_space<vmem>>, %arg6: memref<1x1024xf32, #tpu.memory_space<vmem>>, %arg7: memref<256x128xbf16, #tpu.memory_space<vmem>>, %arg8: memref<1x128xf32, #tpu.memory_space<vmem>>, %arg9: memref<8x128xf32, #tpu.memory_space<vmem>>, %arg10: memref<64x1024xbf16, #tpu.memory_space<vmem>>, %arg11: memref<8x256xf32, #tpu.memory_space<vmem>>, %arg12: memref<8x256xf32, #tpu.memory_space<vmem>>) attributes {dimension_semantics = [#tpu.dimension_semantics<parallel>, #tpu.dimension_semantics<arbitrary>], iteration_bounds = array<i64: 1, 1>, scalar_prefetch = 0 : i64, scratch_operands = 3 : i64, tpu.core_type = #tpu.core_type<tc>, window_params = [{transform_indices = @transform_0, window_bounds = array<i64: 8, 8, 128>}, {transform_indices = @transform_1, window_bounds = array<i64: 8, 1>}, {pipeline_mode = #tpu.pipeline_mode<synchronous>, transform_indices = @transform_2, window_bounds = array<i64: 128, 1024>}, {pipeline_mode = #tpu.pipeline_mode<synchronous>, transform_indices = @transform_3, window_bounds = array<i64: 256, 1024>}, {pipeline_mode = #tpu.pipeline_mode<synchronous>, transform_indices = @transform_4, window_bounds = array<i64: 1, 1024>}, {pipeline_mode = #tpu.pipeline_mode<synchronous>, transform_indices = @transform_5, window_bounds = array<i64: 256, 128>}, {pipeline_mode = #tpu.pipeline_mode<synchronous>, transform_indices = @transform_6, window_bounds = array<i64: 1, 128>}, {transform_indices = @transform_7, window_bounds = array<i64: 8, 128>}]} {
    %c0_i32 = arith.constant 0 : i32
    %0 = arith.cmpi eq, %arg1, %c0_i32 : i32
    %1 = arith.extui %0 : i1 to i32
    %c0_i32_0 = arith.constant 0 : i32
    %2 = arith.cmpi ne, %1, %c0_i32_0 : i32
    scf.if %2 {
      %cst_151 = arith.constant 0.000000e+00 : f32
      %401 = vector.broadcast %cst_151 : f32 to vector<8x256xf32>
      %c0_152 = arith.constant 0 : index
      %c0_153 = arith.constant 0 : index
      %402 = vector.load %arg11[%c0_152, %c0_153] : memref<8x256xf32, #tpu.memory_space<vmem>>, vector<8x256xf32>
      tpu.vector_store %arg11[%c0_152, %c0_153], %401 {strides = array<i32>} : memref<8x256xf32, #tpu.memory_space<vmem>>, vector<8x256xf32>,
      %cst_154 = arith.constant 0.000000e+00 : f32
      %403 = vector.broadcast %cst_154 : f32 to vector<8x256xf32>
      %c0_155 = arith.constant 0 : index
      %c0_156 = arith.constant 0 : index
      %404 = vector.load %arg12[%c0_155, %c0_156] : memref<8x256xf32, #tpu.memory_space<vmem>>, vector<8x256xf32>
      tpu.vector_store %arg12[%c0_155, %c0_156], %403 {strides = array<i32>} : memref<8x256xf32, #tpu.memory_space<vmem>>, vector<8x256xf32>,
    } else {
    }
    %c0 = arith.constant 0 : index
    %c0_1 = arith.constant 0 : index
    %c0_2 = arith.constant 0 : index
    %3 = vector.load %arg2[%c0, %c0_1, %c0_2] : memref<8x8x128xbf16, #tpu.memory_space<vmem>>, vector<8x8x128xbf16>
    %4 = vector.shape_cast %3 : vector<8x8x128xbf16> to vector<64x128xbf16>
    %c0_3 = arith.constant 0 : index
    %c0_4 = arith.constant 0 : index
    %5 = vector.load %arg4[%c0_3, %c0_4] : memref<128x1024xbf16, #tpu.memory_space<vmem>>, vector<128x1024xbf16>
    %cst = arith.constant dense<0.000000e+00> : vector<64x1024xf32>
    %6 = tpu.matmul %4, %5, %cst {dimension_numbers = #tpu.dot_dimension_numbers<[1], [0], [0], [1], [0, 0, 1, 1], [], []>} : vector<64x128xbf16>, vector<128x1024xbf16>, vector<64x1024xf32> -> vector<64x1024xf32>
    %c0_5 = arith.constant 0 : index
    %c0_6 = arith.constant 0 : index
    %7 = vector.load %arg6[%c0_5, %c0_6] : memref<1x1024xf32, #tpu.memory_space<vmem>>, vector<1x1024xf32>
    %8 = vector.broadcast %7 : vector<1x1024xf32> to vector<64x1024xf32>
    %9 = arith.addf %6, %8 : vector<64x1024xf32>
    %10 = arith.truncf %9 : vector<64x1024xf32> to vector<64x1024xbf16>
    %c0_7 = arith.constant 0 : index
    %c0_8 = arith.constant 0 : index
    %11 = vector.load %arg10[%c0_7, %c0_8] : memref<64x1024xbf16, #tpu.memory_space<vmem>>, vector<64x1024xbf16>
    tpu.vector_store %arg10[%c0_7, %c0_8], %10 {strides = array<i32>} : memref<64x1024xbf16, #tpu.memory_space<vmem>>, vector<64x1024xbf16>,
    %c0_9 = arith.constant 0 : index
    %c0_10 = arith.constant 0 : index
    %12 = vector.load %arg3[%c0_9, %c0_10] : memref<8x1xi32, #tpu.memory_space<vmem>>, vector<8x1xi32>
    %c8_i32 = arith.constant 8 : i32
    %13 = arith.muli %arg1, %c8_i32 : i32
    %c0_i32_11 = arith.constant 0 : i32
    %c0_12 = arith.constant 0 : index
    %c0_13 = arith.constant 0 : index
    %14 = vector.load %arg11[%c0_12, %c0_13] : memref<8x256xf32, #tpu.memory_space<vmem>>, vector<8x256xf32>
    %c0_14 = arith.constant 0 : index
    %c0_15 = arith.constant 0 : index
    %15 = vector.load %arg12[%c0_14, %c0_15] : memref<8x256xf32, #tpu.memory_space<vmem>>, vector<8x256xf32>
    %c8_i32_16 = arith.constant 8 : i32
    %16 = arith.muli %c0_i32_11, %c8_i32_16 : i32
    %c0_i32_17 = arith.constant 0 : i32
    %17 = arith.addi %16, %c0_i32_17 : i32
    %18 = tpu.assume_multiple %17, 8 : i32
    %19 = arith.index_cast %18 : i32 to index
    %c0_18 = arith.constant 0 : index
    %20 = vector.load %arg10[%19, %c0_18] : memref<64x1024xbf16, #tpu.memory_space<vmem>>, vector<8x1024xbf16>
    %21 = arith.extf %20 : vector<8x1024xbf16> to vector<8x1024xf32>
    %22 = arith.truncf %14 : vector<8x256xf32> to vector<8x256xbf16>
    %c0_19 = arith.constant 0 : index
    %c0_20 = arith.constant 0 : index
    %23 = vector.load %arg5[%c0_19, %c0_20] : memref<256x1024xbf16, #tpu.memory_space<vmem>>, vector<256x1024xbf16>
    %cst_21 = arith.constant dense<0.000000e+00> : vector<8x1024xf32>
    %24 = tpu.matmul %22, %23, %cst_21 {dimension_numbers = #tpu.dot_dimension_numbers<[1], [0], [0], [1], [0, 0, 1, 1], [], []>} : vector<8x256xbf16>, vector<256x1024xbf16>, vector<8x1024xf32> -> vector<8x1024xf32>
    %25 = arith.addf %21, %24 : vector<8x1024xf32>
    %26 = vector.extract_strided_slice %25 {offsets = [0, 0], sizes = [8, 256], strides = [1, 1]} : vector<8x1024xf32> to vector<8x256xf32>
    %27 = arith.negf %26 : vector<8x256xf32>
    %28 = math.exp %27 : vector<8x256xf32>
    %cst_22 = arith.constant 1.000000e+00 : f32
    %29 = vector.broadcast %cst_22 : f32 to vector<8x256xf32>
    %30 = arith.addf %29, %28 : vector<8x256xf32>
    %31 = arith.divf %29, %30 : vector<8x256xf32>
    %32 = vector.extract_strided_slice %25 {offsets = [0, 256], sizes = [8, 256], strides = [1, 1]} : vector<8x1024xf32> to vector<8x256xf32>
    %33 = arith.negf %32 : vector<8x256xf32>
    %34 = math.exp %33 : vector<8x256xf32>
    %cst_23 = arith.constant 1.000000e+00 : f32
    %35 = vector.broadcast %cst_23 : f32 to vector<8x256xf32>
    %36 = arith.addf %35, %34 : vector<8x256xf32>
    %37 = arith.divf %35, %36 : vector<8x256xf32>
    %38 = vector.extract_strided_slice %25 {offsets = [0, 512], sizes = [8, 256], strides = [1, 1]} : vector<8x1024xf32> to vector<8x256xf32>
    %39 = math.tanh %38 : vector<8x256xf32>
    %40 = vector.extract_strided_slice %25 {offsets = [0, 768], sizes = [8, 256], strides = [1, 1]} : vector<8x1024xf32> to vector<8x256xf32>
    %41 = arith.negf %40 : vector<8x256xf32>
    %42 = math.exp %41 : vector<8x256xf32>
    %cst_24 = arith.constant 1.000000e+00 : f32
    %43 = vector.broadcast %cst_24 : f32 to vector<8x256xf32>
    %44 = arith.addf %43, %42 : vector<8x256xf32>
    %45 = arith.divf %43, %44 : vector<8x256xf32>
    %46 = arith.mulf %37, %15 : vector<8x256xf32>
    %47 = arith.mulf %31, %39 : vector<8x256xf32>
    %48 = arith.addf %46, %47 : vector<8x256xf32>
    %49 = math.tanh %48 : vector<8x256xf32>
    %50 = arith.mulf %45, %49 : vector<8x256xf32>
    %51 = arith.addi %13, %c0_i32_11 : i32
    %52 = vector.broadcast %51 : i32 to vector<8x1xi32>
    %53 = arith.cmpi slt, %52, %12 : vector<8x1xi32>
    %54 = vector.shape_cast %53 : vector<8x1xi1> to vector<8x1xi1>
    %55 = vector.broadcast %54 : vector<8x1xi1> to vector<8x256xi1>
    %56 = arith.select %55, %50, %14 : vector<8x256xi1>, vector<8x256xf32>
    %c0_25 = arith.constant 0 : index
    %c0_26 = arith.constant 0 : index
    %57 = vector.load %arg11[%c0_25, %c0_26] : memref<8x256xf32, #tpu.memory_space<vmem>>, vector<8x256xf32>
    tpu.vector_store %arg11[%c0_25, %c0_26], %56 {strides = array<i32>} : memref<8x256xf32, #tpu.memory_space<vmem>>, vector<8x256xf32>,
    %58 = vector.shape_cast %53 : vector<8x1xi1> to vector<8x1xi1>
    %59 = vector.broadcast %58 : vector<8x1xi1> to vector<8x256xi1>
    %60 = arith.select %59, %48, %15 : vector<8x256xi1>, vector<8x256xf32>
    %c0_27 = arith.constant 0 : index
    %c0_28 = arith.constant 0 : index
    %61 = vector.load %arg12[%c0_27, %c0_28] : memref<8x256xf32, #tpu.memory_space<vmem>>, vector<8x256xf32>
    tpu.vector_store %arg12[%c0_27, %c0_28], %60 {strides = array<i32>} : memref<8x256xf32, #tpu.memory_space<vmem>>, vector<8x256xf32>,
    %c1_i32 = arith.constant 1 : i32
    %c0_29 = arith.constant 0 : index
    %c0_30 = arith.constant 0 : index
    %62 = vector.load %arg11[%c0_29, %c0_30] : memref<8x256xf32, #tpu.memory_space<vmem>>, vector<8x256xf32>
    %c0_31 = arith.constant 0 : index
    %c0_32 = arith.constant 0 : index
    %63 = vector.load %arg12[%c0_31, %c0_32] : memref<8x256xf32, #tpu.memory_space<vmem>>, vector<8x256xf32>
    %c8_i32_33 = arith.constant 8 : i32
    %64 = arith.muli %c1_i32, %c8_i32_33 : i32
    %c0_i32_34 = arith.constant 0 : i32
    %65 = arith.addi %64, %c0_i32_34 : i32
    %66 = tpu.assume_multiple %65, 8 : i32
    %67 = arith.index_cast %66 : i32 to index
    %c0_35 = arith.constant 0 : index
    %68 = vector.load %arg10[%67, %c0_35] : memref<64x1024xbf16, #tpu.memory_space<vmem>>, vector<8x1024xbf16>
    %69 = arith.extf %68 : vector<8x1024xbf16> to vector<8x1024xf32>
    %70 = arith.truncf %62 : vector<8x256xf32> to vector<8x256xbf16>
    %c0_36 = arith.constant 0 : index
    %c0_37 = arith.constant 0 : index
    %71 = vector.load %arg5[%c0_36, %c0_37] : memref<256x1024xbf16, #tpu.memory_space<vmem>>, vector<256x1024xbf16>
    %cst_38 = arith.constant dense<0.000000e+00> : vector<8x1024xf32>
    %72 = tpu.matmul %70, %71, %cst_38 {dimension_numbers = #tpu.dot_dimension_numbers<[1], [0], [0], [1], [0, 0, 1, 1], [], []>} : vector<8x256xbf16>, vector<256x1024xbf16>, vector<8x1024xf32> -> vector<8x1024xf32>
    %73 = arith.addf %69, %72 : vector<8x1024xf32>
    %74 = vector.extract_strided_slice %73 {offsets = [0, 0], sizes = [8, 256], strides = [1, 1]} : vector<8x1024xf32> to vector<8x256xf32>
    %75 = arith.negf %74 : vector<8x256xf32>
    %76 = math.exp %75 : vector<8x256xf32>
    %cst_39 = arith.constant 1.000000e+00 : f32
    %77 = vector.broadcast %cst_39 : f32 to vector<8x256xf32>
    %78 = arith.addf %77, %76 : vector<8x256xf32>
    %79 = arith.divf %77, %78 : vector<8x256xf32>
    %80 = vector.extract_strided_slice %73 {offsets = [0, 256], sizes = [8, 256], strides = [1, 1]} : vector<8x1024xf32> to vector<8x256xf32>
    %81 = arith.negf %80 : vector<8x256xf32>
    %82 = math.exp %81 : vector<8x256xf32>
    %cst_40 = arith.constant 1.000000e+00 : f32
    %83 = vector.broadcast %cst_40 : f32 to vector<8x256xf32>
    %84 = arith.addf %83, %82 : vector<8x256xf32>
    %85 = arith.divf %83, %84 : vector<8x256xf32>
    %86 = vector.extract_strided_slice %73 {offsets = [0, 512], sizes = [8, 256], strides = [1, 1]} : vector<8x1024xf32> to vector<8x256xf32>
    %87 = math.tanh %86 : vector<8x256xf32>
    %88 = vector.extract_strided_slice %73 {offsets = [0, 768], sizes = [8, 256], strides = [1, 1]} : vector<8x1024xf32> to vector<8x256xf32>
    %89 = arith.negf %88 : vector<8x256xf32>
    %90 = math.exp %89 : vector<8x256xf32>
    %cst_41 = arith.constant 1.000000e+00 : f32
    %91 = vector.broadcast %cst_41 : f32 to vector<8x256xf32>
    %92 = arith.addf %91, %90 : vector<8x256xf32>
    %93 = arith.divf %91, %92 : vector<8x256xf32>
    %94 = arith.mulf %85, %63 : vector<8x256xf32>
    %95 = arith.mulf %79, %87 : vector<8x256xf32>
    %96 = arith.addf %94, %95 : vector<8x256xf32>
    %97 = math.tanh %96 : vector<8x256xf32>
    %98 = arith.mulf %93, %97 : vector<8x256xf32>
    %99 = arith.addi %13, %c1_i32 : i32
    %100 = vector.broadcast %99 : i32 to vector<8x1xi32>
    %101 = arith.cmpi slt, %100, %12 : vector<8x1xi32>
    %102 = vector.shape_cast %101 : vector<8x1xi1> to vector<8x1xi1>
    %103 = vector.broadcast %102 : vector<8x1xi1> to vector<8x256xi1>
    %104 = arith.select %103, %98, %62 : vector<8x256xi1>, vector<8x256xf32>
    %c0_42 = arith.constant 0 : index
    %c0_43 = arith.constant 0 : index
    %105 = vector.load %arg11[%c0_42, %c0_43] : memref<8x256xf32, #tpu.memory_space<vmem>>, vector<8x256xf32>
    tpu.vector_store %arg11[%c0_42, %c0_43], %104 {strides = array<i32>} : memref<8x256xf32, #tpu.memory_space<vmem>>, vector<8x256xf32>,
    %106 = vector.shape_cast %101 : vector<8x1xi1> to vector<8x1xi1>
    %107 = vector.broadcast %106 : vector<8x1xi1> to vector<8x256xi1>
    %108 = arith.select %107, %96, %63 : vector<8x256xi1>, vector<8x256xf32>
    %c0_44 = arith.constant 0 : index
    %c0_45 = arith.constant 0 : index
    %109 = vector.load %arg12[%c0_44, %c0_45] : memref<8x256xf32, #tpu.memory_space<vmem>>, vector<8x256xf32>
    tpu.vector_store %arg12[%c0_44, %c0_45], %108 {strides = array<i32>} : memref<8x256xf32, #tpu.memory_space<vmem>>, vector<8x256xf32>,
    %c2_i32 = arith.constant 2 : i32
    %c0_46 = arith.constant 0 : index
    %c0_47 = arith.constant 0 : index
    %110 = vector.load %arg11[%c0_46, %c0_47] : memref<8x256xf32, #tpu.memory_space<vmem>>, vector<8x256xf32>
    %c0_48 = arith.constant 0 : index
    %c0_49 = arith.constant 0 : index
    %111 = vector.load %arg12[%c0_48, %c0_49] : memref<8x256xf32, #tpu.memory_space<vmem>>, vector<8x256xf32>
    %c8_i32_50 = arith.constant 8 : i32
    %112 = arith.muli %c2_i32, %c8_i32_50 : i32
    %c0_i32_51 = arith.constant 0 : i32
    %113 = arith.addi %112, %c0_i32_51 : i32
    %114 = tpu.assume_multiple %113, 8 : i32
    %115 = arith.index_cast %114 : i32 to index
    %c0_52 = arith.constant 0 : index
    %116 = vector.load %arg10[%115, %c0_52] : memref<64x1024xbf16, #tpu.memory_space<vmem>>, vector<8x1024xbf16>
    %117 = arith.extf %116 : vector<8x1024xbf16> to vector<8x1024xf32>
    %118 = arith.truncf %110 : vector<8x256xf32> to vector<8x256xbf16>
    %c0_53 = arith.constant 0 : index
    %c0_54 = arith.constant 0 : index
    %119 = vector.load %arg5[%c0_53, %c0_54] : memref<256x1024xbf16, #tpu.memory_space<vmem>>, vector<256x1024xbf16>
    %cst_55 = arith.constant dense<0.000000e+00> : vector<8x1024xf32>
    %120 = tpu.matmul %118, %119, %cst_55 {dimension_numbers = #tpu.dot_dimension_numbers<[1], [0], [0], [1], [0, 0, 1, 1], [], []>} : vector<8x256xbf16>, vector<256x1024xbf16>, vector<8x1024xf32> -> vector<8x1024xf32>
    %121 = arith.addf %117, %120 : vector<8x1024xf32>
    %122 = vector.extract_strided_slice %121 {offsets = [0, 0], sizes = [8, 256], strides = [1, 1]} : vector<8x1024xf32> to vector<8x256xf32>
    %123 = arith.negf %122 : vector<8x256xf32>
    %124 = math.exp %123 : vector<8x256xf32>
    %cst_56 = arith.constant 1.000000e+00 : f32
    %125 = vector.broadcast %cst_56 : f32 to vector<8x256xf32>
    %126 = arith.addf %125, %124 : vector<8x256xf32>
    %127 = arith.divf %125, %126 : vector<8x256xf32>
    %128 = vector.extract_strided_slice %121 {offsets = [0, 256], sizes = [8, 256], strides = [1, 1]} : vector<8x1024xf32> to vector<8x256xf32>
    %129 = arith.negf %128 : vector<8x256xf32>
    %130 = math.exp %129 : vector<8x256xf32>
    %cst_57 = arith.constant 1.000000e+00 : f32
    %131 = vector.broadcast %cst_57 : f32 to vector<8x256xf32>
    %132 = arith.addf %131, %130 : vector<8x256xf32>
    %133 = arith.divf %131, %132 : vector<8x256xf32>
    %134 = vector.extract_strided_slice %121 {offsets = [0, 512], sizes = [8, 256], strides = [1, 1]} : vector<8x1024xf32> to vector<8x256xf32>
    %135 = math.tanh %134 : vector<8x256xf32>
    %136 = vector.extract_strided_slice %121 {offsets = [0, 768], sizes = [8, 256], strides = [1, 1]} : vector<8x1024xf32> to vector<8x256xf32>
    %137 = arith.negf %136 : vector<8x256xf32>
    %138 = math.exp %137 : vector<8x256xf32>
    %cst_58 = arith.constant 1.000000e+00 : f32
    %139 = vector.broadcast %cst_58 : f32 to vector<8x256xf32>
    %140 = arith.addf %139, %138 : vector<8x256xf32>
    %141 = arith.divf %139, %140 : vector<8x256xf32>
    %142 = arith.mulf %133, %111 : vector<8x256xf32>
    %143 = arith.mulf %127, %135 : vector<8x256xf32>
    %144 = arith.addf %142, %143 : vector<8x256xf32>
    %145 = math.tanh %144 : vector<8x256xf32>
    %146 = arith.mulf %141, %145 : vector<8x256xf32>
    %147 = arith.addi %13, %c2_i32 : i32
    %148 = vector.broadcast %147 : i32 to vector<8x1xi32>
    %149 = arith.cmpi slt, %148, %12 : vector<8x1xi32>
    %150 = vector.shape_cast %149 : vector<8x1xi1> to vector<8x1xi1>
    %151 = vector.broadcast %150 : vector<8x1xi1> to vector<8x256xi1>
    %152 = arith.select %151, %146, %110 : vector<8x256xi1>, vector<8x256xf32>
    %c0_59 = arith.constant 0 : index
    %c0_60 = arith.constant 0 : index
    %153 = vector.load %arg11[%c0_59, %c0_60] : memref<8x256xf32, #tpu.memory_space<vmem>>, vector<8x256xf32>
    tpu.vector_store %arg11[%c0_59, %c0_60], %152 {strides = array<i32>} : memref<8x256xf32, #tpu.memory_space<vmem>>, vector<8x256xf32>,
    %154 = vector.shape_cast %149 : vector<8x1xi1> to vector<8x1xi1>
    %155 = vector.broadcast %154 : vector<8x1xi1> to vector<8x256xi1>
    %156 = arith.select %155, %144, %111 : vector<8x256xi1>, vector<8x256xf32>
    %c0_61 = arith.constant 0 : index
    %c0_62 = arith.constant 0 : index
    %157 = vector.load %arg12[%c0_61, %c0_62] : memref<8x256xf32, #tpu.memory_space<vmem>>, vector<8x256xf32>
    tpu.vector_store %arg12[%c0_61, %c0_62], %156 {strides = array<i32>} : memref<8x256xf32, #tpu.memory_space<vmem>>, vector<8x256xf32>,
    %c3_i32 = arith.constant 3 : i32
    %c0_63 = arith.constant 0 : index
    %c0_64 = arith.constant 0 : index
    %158 = vector.load %arg11[%c0_63, %c0_64] : memref<8x256xf32, #tpu.memory_space<vmem>>, vector<8x256xf32>
    %c0_65 = arith.constant 0 : index
    %c0_66 = arith.constant 0 : index
    %159 = vector.load %arg12[%c0_65, %c0_66] : memref<8x256xf32, #tpu.memory_space<vmem>>, vector<8x256xf32>
    %c8_i32_67 = arith.constant 8 : i32
    %160 = arith.muli %c3_i32, %c8_i32_67 : i32
    %c0_i32_68 = arith.constant 0 : i32
    %161 = arith.addi %160, %c0_i32_68 : i32
    %162 = tpu.assume_multiple %161, 8 : i32
    %163 = arith.index_cast %162 : i32 to index
    %c0_69 = arith.constant 0 : index
    %164 = vector.load %arg10[%163, %c0_69] : memref<64x1024xbf16, #tpu.memory_space<vmem>>, vector<8x1024xbf16>
    %165 = arith.extf %164 : vector<8x1024xbf16> to vector<8x1024xf32>
    %166 = arith.truncf %158 : vector<8x256xf32> to vector<8x256xbf16>
    %c0_70 = arith.constant 0 : index
    %c0_71 = arith.constant 0 : index
    %167 = vector.load %arg5[%c0_70, %c0_71] : memref<256x1024xbf16, #tpu.memory_space<vmem>>, vector<256x1024xbf16>
    %cst_72 = arith.constant dense<0.000000e+00> : vector<8x1024xf32>
    %168 = tpu.matmul %166, %167, %cst_72 {dimension_numbers = #tpu.dot_dimension_numbers<[1], [0], [0], [1], [0, 0, 1, 1], [], []>} : vector<8x256xbf16>, vector<256x1024xbf16>, vector<8x1024xf32> -> vector<8x1024xf32>
    %169 = arith.addf %165, %168 : vector<8x1024xf32>
    %170 = vector.extract_strided_slice %169 {offsets = [0, 0], sizes = [8, 256], strides = [1, 1]} : vector<8x1024xf32> to vector<8x256xf32>
    %171 = arith.negf %170 : vector<8x256xf32>
    %172 = math.exp %171 : vector<8x256xf32>
    %cst_73 = arith.constant 1.000000e+00 : f32
    %173 = vector.broadcast %cst_73 : f32 to vector<8x256xf32>
    %174 = arith.addf %173, %172 : vector<8x256xf32>
    %175 = arith.divf %173, %174 : vector<8x256xf32>
    %176 = vector.extract_strided_slice %169 {offsets = [0, 256], sizes = [8, 256], strides = [1, 1]} : vector<8x1024xf32> to vector<8x256xf32>
    %177 = arith.negf %176 : vector<8x256xf32>
    %178 = math.exp %177 : vector<8x256xf32>
    %cst_74 = arith.constant 1.000000e+00 : f32
    %179 = vector.broadcast %cst_74 : f32 to vector<8x256xf32>
    %180 = arith.addf %179, %178 : vector<8x256xf32>
    %181 = arith.divf %179, %180 : vector<8x256xf32>
    %182 = vector.extract_strided_slice %169 {offsets = [0, 512], sizes = [8, 256], strides = [1, 1]} : vector<8x1024xf32> to vector<8x256xf32>
    %183 = math.tanh %182 : vector<8x256xf32>
    %184 = vector.extract_strided_slice %169 {offsets = [0, 768], sizes = [8, 256], strides = [1, 1]} : vector<8x1024xf32> to vector<8x256xf32>
    %185 = arith.negf %184 : vector<8x256xf32>
    %186 = math.exp %185 : vector<8x256xf32>
    %cst_75 = arith.constant 1.000000e+00 : f32
    %187 = vector.broadcast %cst_75 : f32 to vector<8x256xf32>
    %188 = arith.addf %187, %186 : vector<8x256xf32>
    %189 = arith.divf %187, %188 : vector<8x256xf32>
    %190 = arith.mulf %181, %159 : vector<8x256xf32>
    %191 = arith.mulf %175, %183 : vector<8x256xf32>
    %192 = arith.addf %190, %191 : vector<8x256xf32>
    %193 = math.tanh %192 : vector<8x256xf32>
    %194 = arith.mulf %189, %193 : vector<8x256xf32>
    %195 = arith.addi %13, %c3_i32 : i32
    %196 = vector.broadcast %195 : i32 to vector<8x1xi32>
    %197 = arith.cmpi slt, %196, %12 : vector<8x1xi32>
    %198 = vector.shape_cast %197 : vector<8x1xi1> to vector<8x1xi1>
    %199 = vector.broadcast %198 : vector<8x1xi1> to vector<8x256xi1>
    %200 = arith.select %199, %194, %158 : vector<8x256xi1>, vector<8x256xf32>
    %c0_76 = arith.constant 0 : index
    %c0_77 = arith.constant 0 : index
    %201 = vector.load %arg11[%c0_76, %c0_77] : memref<8x256xf32, #tpu.memory_space<vmem>>, vector<8x256xf32>
    tpu.vector_store %arg11[%c0_76, %c0_77], %200 {strides = array<i32>} : memref<8x256xf32, #tpu.memory_space<vmem>>, vector<8x256xf32>,
    %202 = vector.shape_cast %197 : vector<8x1xi1> to vector<8x1xi1>
    %203 = vector.broadcast %202 : vector<8x1xi1> to vector<8x256xi1>
    %204 = arith.select %203, %192, %159 : vector<8x256xi1>, vector<8x256xf32>
    %c0_78 = arith.constant 0 : index
    %c0_79 = arith.constant 0 : index
    %205 = vector.load %arg12[%c0_78, %c0_79] : memref<8x256xf32, #tpu.memory_space<vmem>>, vector<8x256xf32>
    tpu.vector_store %arg12[%c0_78, %c0_79], %204 {strides = array<i32>} : memref<8x256xf32, #tpu.memory_space<vmem>>, vector<8x256xf32>,
    %c4_i32 = arith.constant 4 : i32
    %c0_80 = arith.constant 0 : index
    %c0_81 = arith.constant 0 : index
    %206 = vector.load %arg11[%c0_80, %c0_81] : memref<8x256xf32, #tpu.memory_space<vmem>>, vector<8x256xf32>
    %c0_82 = arith.constant 0 : index
    %c0_83 = arith.constant 0 : index
    %207 = vector.load %arg12[%c0_82, %c0_83] : memref<8x256xf32, #tpu.memory_space<vmem>>, vector<8x256xf32>
    %c8_i32_84 = arith.constant 8 : i32
    %208 = arith.muli %c4_i32, %c8_i32_84 : i32
    %c0_i32_85 = arith.constant 0 : i32
    %209 = arith.addi %208, %c0_i32_85 : i32
    %210 = tpu.assume_multiple %209, 8 : i32
    %211 = arith.index_cast %210 : i32 to index
    %c0_86 = arith.constant 0 : index
    %212 = vector.load %arg10[%211, %c0_86] : memref<64x1024xbf16, #tpu.memory_space<vmem>>, vector<8x1024xbf16>
    %213 = arith.extf %212 : vector<8x1024xbf16> to vector<8x1024xf32>
    %214 = arith.truncf %206 : vector<8x256xf32> to vector<8x256xbf16>
    %c0_87 = arith.constant 0 : index
    %c0_88 = arith.constant 0 : index
    %215 = vector.load %arg5[%c0_87, %c0_88] : memref<256x1024xbf16, #tpu.memory_space<vmem>>, vector<256x1024xbf16>
    %cst_89 = arith.constant dense<0.000000e+00> : vector<8x1024xf32>
    %216 = tpu.matmul %214, %215, %cst_89 {dimension_numbers = #tpu.dot_dimension_numbers<[1], [0], [0], [1], [0, 0, 1, 1], [], []>} : vector<8x256xbf16>, vector<256x1024xbf16>, vector<8x1024xf32> -> vector<8x1024xf32>
    %217 = arith.addf %213, %216 : vector<8x1024xf32>
    %218 = vector.extract_strided_slice %217 {offsets = [0, 0], sizes = [8, 256], strides = [1, 1]} : vector<8x1024xf32> to vector<8x256xf32>
    %219 = arith.negf %218 : vector<8x256xf32>
    %220 = math.exp %219 : vector<8x256xf32>
    %cst_90 = arith.constant 1.000000e+00 : f32
    %221 = vector.broadcast %cst_90 : f32 to vector<8x256xf32>
    %222 = arith.addf %221, %220 : vector<8x256xf32>
    %223 = arith.divf %221, %222 : vector<8x256xf32>
    %224 = vector.extract_strided_slice %217 {offsets = [0, 256], sizes = [8, 256], strides = [1, 1]} : vector<8x1024xf32> to vector<8x256xf32>
    %225 = arith.negf %224 : vector<8x256xf32>
    %226 = math.exp %225 : vector<8x256xf32>
    %cst_91 = arith.constant 1.000000e+00 : f32
    %227 = vector.broadcast %cst_91 : f32 to vector<8x256xf32>
    %228 = arith.addf %227, %226 : vector<8x256xf32>
    %229 = arith.divf %227, %228 : vector<8x256xf32>
    %230 = vector.extract_strided_slice %217 {offsets = [0, 512], sizes = [8, 256], strides = [1, 1]} : vector<8x1024xf32> to vector<8x256xf32>
    %231 = math.tanh %230 : vector<8x256xf32>
    %232 = vector.extract_strided_slice %217 {offsets = [0, 768], sizes = [8, 256], strides = [1, 1]} : vector<8x1024xf32> to vector<8x256xf32>
    %233 = arith.negf %232 : vector<8x256xf32>
    %234 = math.exp %233 : vector<8x256xf32>
    %cst_92 = arith.constant 1.000000e+00 : f32
    %235 = vector.broadcast %cst_92 : f32 to vector<8x256xf32>
    %236 = arith.addf %235, %234 : vector<8x256xf32>
    %237 = arith.divf %235, %236 : vector<8x256xf32>
    %238 = arith.mulf %229, %207 : vector<8x256xf32>
    %239 = arith.mulf %223, %231 : vector<8x256xf32>
    %240 = arith.addf %238, %239 : vector<8x256xf32>
    %241 = math.tanh %240 : vector<8x256xf32>
    %242 = arith.mulf %237, %241 : vector<8x256xf32>
    %243 = arith.addi %13, %c4_i32 : i32
    %244 = vector.broadcast %243 : i32 to vector<8x1xi32>
    %245 = arith.cmpi slt, %244, %12 : vector<8x1xi32>
    %246 = vector.shape_cast %245 : vector<8x1xi1> to vector<8x1xi1>
    %247 = vector.broadcast %246 : vector<8x1xi1> to vector<8x256xi1>
    %248 = arith.select %247, %242, %206 : vector<8x256xi1>, vector<8x256xf32>
    %c0_93 = arith.constant 0 : index
    %c0_94 = arith.constant 0 : index
    %249 = vector.load %arg11[%c0_93, %c0_94] : memref<8x256xf32, #tpu.memory_space<vmem>>, vector<8x256xf32>
    tpu.vector_store %arg11[%c0_93, %c0_94], %248 {strides = array<i32>} : memref<8x256xf32, #tpu.memory_space<vmem>>, vector<8x256xf32>,
    %250 = vector.shape_cast %245 : vector<8x1xi1> to vector<8x1xi1>
    %251 = vector.broadcast %250 : vector<8x1xi1> to vector<8x256xi1>
    %252 = arith.select %251, %240, %207 : vector<8x256xi1>, vector<8x256xf32>
    %c0_95 = arith.constant 0 : index
    %c0_96 = arith.constant 0 : index
    %253 = vector.load %arg12[%c0_95, %c0_96] : memref<8x256xf32, #tpu.memory_space<vmem>>, vector<8x256xf32>
    tpu.vector_store %arg12[%c0_95, %c0_96], %252 {strides = array<i32>} : memref<8x256xf32, #tpu.memory_space<vmem>>, vector<8x256xf32>,
    %c5_i32 = arith.constant 5 : i32
    %c0_97 = arith.constant 0 : index
    %c0_98 = arith.constant 0 : index
    %254 = vector.load %arg11[%c0_97, %c0_98] : memref<8x256xf32, #tpu.memory_space<vmem>>, vector<8x256xf32>
    %c0_99 = arith.constant 0 : index
    %c0_100 = arith.constant 0 : index
    %255 = vector.load %arg12[%c0_99, %c0_100] : memref<8x256xf32, #tpu.memory_space<vmem>>, vector<8x256xf32>
    %c8_i32_101 = arith.constant 8 : i32
    %256 = arith.muli %c5_i32, %c8_i32_101 : i32
    %c0_i32_102 = arith.constant 0 : i32
    %257 = arith.addi %256, %c0_i32_102 : i32
    %258 = tpu.assume_multiple %257, 8 : i32
    %259 = arith.index_cast %258 : i32 to index
    %c0_103 = arith.constant 0 : index
    %260 = vector.load %arg10[%259, %c0_103] : memref<64x1024xbf16, #tpu.memory_space<vmem>>, vector<8x1024xbf16>
    %261 = arith.extf %260 : vector<8x1024xbf16> to vector<8x1024xf32>
    %262 = arith.truncf %254 : vector<8x256xf32> to vector<8x256xbf16>
    %c0_104 = arith.constant 0 : index
    %c0_105 = arith.constant 0 : index
    %263 = vector.load %arg5[%c0_104, %c0_105] : memref<256x1024xbf16, #tpu.memory_space<vmem>>, vector<256x1024xbf16>
    %cst_106 = arith.constant dense<0.000000e+00> : vector<8x1024xf32>
    %264 = tpu.matmul %262, %263, %cst_106 {dimension_numbers = #tpu.dot_dimension_numbers<[1], [0], [0], [1], [0, 0, 1, 1], [], []>} : vector<8x256xbf16>, vector<256x1024xbf16>, vector<8x1024xf32> -> vector<8x1024xf32>
    %265 = arith.addf %261, %264 : vector<8x1024xf32>
    %266 = vector.extract_strided_slice %265 {offsets = [0, 0], sizes = [8, 256], strides = [1, 1]} : vector<8x1024xf32> to vector<8x256xf32>
    %267 = arith.negf %266 : vector<8x256xf32>
    %268 = math.exp %267 : vector<8x256xf32>
    %cst_107 = arith.constant 1.000000e+00 : f32
    %269 = vector.broadcast %cst_107 : f32 to vector<8x256xf32>
    %270 = arith.addf %269, %268 : vector<8x256xf32>
    %271 = arith.divf %269, %270 : vector<8x256xf32>
    %272 = vector.extract_strided_slice %265 {offsets = [0, 256], sizes = [8, 256], strides = [1, 1]} : vector<8x1024xf32> to vector<8x256xf32>
    %273 = arith.negf %272 : vector<8x256xf32>
    %274 = math.exp %273 : vector<8x256xf32>
    %cst_108 = arith.constant 1.000000e+00 : f32
    %275 = vector.broadcast %cst_108 : f32 to vector<8x256xf32>
    %276 = arith.addf %275, %274 : vector<8x256xf32>
    %277 = arith.divf %275, %276 : vector<8x256xf32>
    %278 = vector.extract_strided_slice %265 {offsets = [0, 512], sizes = [8, 256], strides = [1, 1]} : vector<8x1024xf32> to vector<8x256xf32>
    %279 = math.tanh %278 : vector<8x256xf32>
    %280 = vector.extract_strided_slice %265 {offsets = [0, 768], sizes = [8, 256], strides = [1, 1]} : vector<8x1024xf32> to vector<8x256xf32>
    %281 = arith.negf %280 : vector<8x256xf32>
    %282 = math.exp %281 : vector<8x256xf32>
    %cst_109 = arith.constant 1.000000e+00 : f32
    %283 = vector.broadcast %cst_109 : f32 to vector<8x256xf32>
    %284 = arith.addf %283, %282 : vector<8x256xf32>
    %285 = arith.divf %283, %284 : vector<8x256xf32>
    %286 = arith.mulf %277, %255 : vector<8x256xf32>
    %287 = arith.mulf %271, %279 : vector<8x256xf32>
    %288 = arith.addf %286, %287 : vector<8x256xf32>
    %289 = math.tanh %288 : vector<8x256xf32>
    %290 = arith.mulf %285, %289 : vector<8x256xf32>
    %291 = arith.addi %13, %c5_i32 : i32
    %292 = vector.broadcast %291 : i32 to vector<8x1xi32>
    %293 = arith.cmpi slt, %292, %12 : vector<8x1xi32>
    %294 = vector.shape_cast %293 : vector<8x1xi1> to vector<8x1xi1>
    %295 = vector.broadcast %294 : vector<8x1xi1> to vector<8x256xi1>
    %296 = arith.select %295, %290, %254 : vector<8x256xi1>, vector<8x256xf32>
    %c0_110 = arith.constant 0 : index
    %c0_111 = arith.constant 0 : index
    %297 = vector.load %arg11[%c0_110, %c0_111] : memref<8x256xf32, #tpu.memory_space<vmem>>, vector<8x256xf32>
    tpu.vector_store %arg11[%c0_110, %c0_111], %296 {strides = array<i32>} : memref<8x256xf32, #tpu.memory_space<vmem>>, vector<8x256xf32>,
    %298 = vector.shape_cast %293 : vector<8x1xi1> to vector<8x1xi1>
    %299 = vector.broadcast %298 : vector<8x1xi1> to vector<8x256xi1>
    %300 = arith.select %299, %288, %255 : vector<8x256xi1>, vector<8x256xf32>
    %c0_112 = arith.constant 0 : index
    %c0_113 = arith.constant 0 : index
    %301 = vector.load %arg12[%c0_112, %c0_113] : memref<8x256xf32, #tpu.memory_space<vmem>>, vector<8x256xf32>
    tpu.vector_store %arg12[%c0_112, %c0_113], %300 {strides = array<i32>} : memref<8x256xf32, #tpu.memory_space<vmem>>, vector<8x256xf32>,
    %c6_i32 = arith.constant 6 : i32
    %c0_114 = arith.constant 0 : index
    %c0_115 = arith.constant 0 : index
    %302 = vector.load %arg11[%c0_114, %c0_115] : memref<8x256xf32, #tpu.memory_space<vmem>>, vector<8x256xf32>
    %c0_116 = arith.constant 0 : index
    %c0_117 = arith.constant 0 : index
    %303 = vector.load %arg12[%c0_116, %c0_117] : memref<8x256xf32, #tpu.memory_space<vmem>>, vector<8x256xf32>
    %c8_i32_118 = arith.constant 8 : i32
    %304 = arith.muli %c6_i32, %c8_i32_118 : i32
    %c0_i32_119 = arith.constant 0 : i32
    %305 = arith.addi %304, %c0_i32_119 : i32
    %306 = tpu.assume_multiple %305, 8 : i32
    %307 = arith.index_cast %306 : i32 to index
    %c0_120 = arith.constant 0 : index
    %308 = vector.load %arg10[%307, %c0_120] : memref<64x1024xbf16, #tpu.memory_space<vmem>>, vector<8x1024xbf16>
    %309 = arith.extf %308 : vector<8x1024xbf16> to vector<8x1024xf32>
    %310 = arith.truncf %302 : vector<8x256xf32> to vector<8x256xbf16>
    %c0_121 = arith.constant 0 : index
    %c0_122 = arith.constant 0 : index
    %311 = vector.load %arg5[%c0_121, %c0_122] : memref<256x1024xbf16, #tpu.memory_space<vmem>>, vector<256x1024xbf16>
    %cst_123 = arith.constant dense<0.000000e+00> : vector<8x1024xf32>
    %312 = tpu.matmul %310, %311, %cst_123 {dimension_numbers = #tpu.dot_dimension_numbers<[1], [0], [0], [1], [0, 0, 1, 1], [], []>} : vector<8x256xbf16>, vector<256x1024xbf16>, vector<8x1024xf32> -> vector<8x1024xf32>
    %313 = arith.addf %309, %312 : vector<8x1024xf32>
    %314 = vector.extract_strided_slice %313 {offsets = [0, 0], sizes = [8, 256], strides = [1, 1]} : vector<8x1024xf32> to vector<8x256xf32>
    %315 = arith.negf %314 : vector<8x256xf32>
    %316 = math.exp %315 : vector<8x256xf32>
    %cst_124 = arith.constant 1.000000e+00 : f32
    %317 = vector.broadcast %cst_124 : f32 to vector<8x256xf32>
    %318 = arith.addf %317, %316 : vector<8x256xf32>
    %319 = arith.divf %317, %318 : vector<8x256xf32>
    %320 = vector.extract_strided_slice %313 {offsets = [0, 256], sizes = [8, 256], strides = [1, 1]} : vector<8x1024xf32> to vector<8x256xf32>
    %321 = arith.negf %320 : vector<8x256xf32>
    %322 = math.exp %321 : vector<8x256xf32>
    %cst_125 = arith.constant 1.000000e+00 : f32
    %323 = vector.broadcast %cst_125 : f32 to vector<8x256xf32>
    %324 = arith.addf %323, %322 : vector<8x256xf32>
    %325 = arith.divf %323, %324 : vector<8x256xf32>
    %326 = vector.extract_strided_slice %313 {offsets = [0, 512], sizes = [8, 256], strides = [1, 1]} : vector<8x1024xf32> to vector<8x256xf32>
    %327 = math.tanh %326 : vector<8x256xf32>
    %328 = vector.extract_strided_slice %313 {offsets = [0, 768], sizes = [8, 256], strides = [1, 1]} : vector<8x1024xf32> to vector<8x256xf32>
    %329 = arith.negf %328 : vector<8x256xf32>
    %330 = math.exp %329 : vector<8x256xf32>
    %cst_126 = arith.constant 1.000000e+00 : f32
    %331 = vector.broadcast %cst_126 : f32 to vector<8x256xf32>
    %332 = arith.addf %331, %330 : vector<8x256xf32>
    %333 = arith.divf %331, %332 : vector<8x256xf32>
    %334 = arith.mulf %325, %303 : vector<8x256xf32>
    %335 = arith.mulf %319, %327 : vector<8x256xf32>
    %336 = arith.addf %334, %335 : vector<8x256xf32>
    %337 = math.tanh %336 : vector<8x256xf32>
    %338 = arith.mulf %333, %337 : vector<8x256xf32>
    %339 = arith.addi %13, %c6_i32 : i32
    %340 = vector.broadcast %339 : i32 to vector<8x1xi32>
    %341 = arith.cmpi slt, %340, %12 : vector<8x1xi32>
    %342 = vector.shape_cast %341 : vector<8x1xi1> to vector<8x1xi1>
    %343 = vector.broadcast %342 : vector<8x1xi1> to vector<8x256xi1>
    %344 = arith.select %343, %338, %302 : vector<8x256xi1>, vector<8x256xf32>
    %c0_127 = arith.constant 0 : index
    %c0_128 = arith.constant 0 : index
    %345 = vector.load %arg11[%c0_127, %c0_128] : memref<8x256xf32, #tpu.memory_space<vmem>>, vector<8x256xf32>
    tpu.vector_store %arg11[%c0_127, %c0_128], %344 {strides = array<i32>} : memref<8x256xf32, #tpu.memory_space<vmem>>, vector<8x256xf32>,
    %346 = vector.shape_cast %341 : vector<8x1xi1> to vector<8x1xi1>
    %347 = vector.broadcast %346 : vector<8x1xi1> to vector<8x256xi1>
    %348 = arith.select %347, %336, %303 : vector<8x256xi1>, vector<8x256xf32>
    %c0_129 = arith.constant 0 : index
    %c0_130 = arith.constant 0 : index
    %349 = vector.load %arg12[%c0_129, %c0_130] : memref<8x256xf32, #tpu.memory_space<vmem>>, vector<8x256xf32>
    tpu.vector_store %arg12[%c0_129, %c0_130], %348 {strides = array<i32>} : memref<8x256xf32, #tpu.memory_space<vmem>>, vector<8x256xf32>,
    %c7_i32 = arith.constant 7 : i32
    %c0_131 = arith.constant 0 : index
    %c0_132 = arith.constant 0 : index
    %350 = vector.load %arg11[%c0_131, %c0_132] : memref<8x256xf32, #tpu.memory_space<vmem>>, vector<8x256xf32>
    %c0_133 = arith.constant 0 : index
    %c0_134 = arith.constant 0 : index
    %351 = vector.load %arg12[%c0_133, %c0_134] : memref<8x256xf32, #tpu.memory_space<vmem>>, vector<8x256xf32>
    %c8_i32_135 = arith.constant 8 : i32
    %352 = arith.muli %c7_i32, %c8_i32_135 : i32
    %c0_i32_136 = arith.constant 0 : i32
    %353 = arith.addi %352, %c0_i32_136 : i32
    %354 = tpu.assume_multiple %353, 8 : i32
    %355 = arith.index_cast %354 : i32 to index
    %c0_137 = arith.constant 0 : index
    %356 = vector.load %arg10[%355, %c0_137] : memref<64x1024xbf16, #tpu.memory_space<vmem>>, vector<8x1024xbf16>
    %357 = arith.extf %356 : vector<8x1024xbf16> to vector<8x1024xf32>
    %358 = arith.truncf %350 : vector<8x256xf32> to vector<8x256xbf16>
    %c0_138 = arith.constant 0 : index
    %c0_139 = arith.constant 0 : index
    %359 = vector.load %arg5[%c0_138, %c0_139] : memref<256x1024xbf16, #tpu.memory_space<vmem>>, vector<256x1024xbf16>
    %cst_140 = arith.constant dense<0.000000e+00> : vector<8x1024xf32>
    %360 = tpu.matmul %358, %359, %cst_140 {dimension_numbers = #tpu.dot_dimension_numbers<[1], [0], [0], [1], [0, 0, 1, 1], [], []>} : vector<8x256xbf16>, vector<256x1024xbf16>, vector<8x1024xf32> -> vector<8x1024xf32>
    %361 = arith.addf %357, %360 : vector<8x1024xf32>
    %362 = vector.extract_strided_slice %361 {offsets = [0, 0], sizes = [8, 256], strides = [1, 1]} : vector<8x1024xf32> to vector<8x256xf32>
    %363 = arith.negf %362 : vector<8x256xf32>
    %364 = math.exp %363 : vector<8x256xf32>
    %cst_141 = arith.constant 1.000000e+00 : f32
    %365 = vector.broadcast %cst_141 : f32 to vector<8x256xf32>
    %366 = arith.addf %365, %364 : vector<8x256xf32>
    %367 = arith.divf %365, %366 : vector<8x256xf32>
    %368 = vector.extract_strided_slice %361 {offsets = [0, 256], sizes = [8, 256], strides = [1, 1]} : vector<8x1024xf32> to vector<8x256xf32>
    %369 = arith.negf %368 : vector<8x256xf32>
    %370 = math.exp %369 : vector<8x256xf32>
    %cst_142 = arith.constant 1.000000e+00 : f32
    %371 = vector.broadcast %cst_142 : f32 to vector<8x256xf32>
    %372 = arith.addf %371, %370 : vector<8x256xf32>
    %373 = arith.divf %371, %372 : vector<8x256xf32>
    %374 = vector.extract_strided_slice %361 {offsets = [0, 512], sizes = [8, 256], strides = [1, 1]} : vector<8x1024xf32> to vector<8x256xf32>
    %375 = math.tanh %374 : vector<8x256xf32>
    %376 = vector.extract_strided_slice %361 {offsets = [0, 768], sizes = [8, 256], strides = [1, 1]} : vector<8x1024xf32> to vector<8x256xf32>
    %377 = arith.negf %376 : vector<8x256xf32>
    %378 = math.exp %377 : vector<8x256xf32>
    %cst_143 = arith.constant 1.000000e+00 : f32
    %379 = vector.broadcast %cst_143 : f32 to vector<8x256xf32>
    %380 = arith.addf %379, %378 : vector<8x256xf32>
    %381 = arith.divf %379, %380 : vector<8x256xf32>
    %382 = arith.mulf %373, %351 : vector<8x256xf32>
    %383 = arith.mulf %367, %375 : vector<8x256xf32>
    %384 = arith.addf %382, %383 : vector<8x256xf32>
    %385 = math.tanh %384 : vector<8x256xf32>
    %386 = arith.mulf %381, %385 : vector<8x256xf32>
    %387 = arith.addi %13, %c7_i32 : i32
    %388 = vector.broadcast %387 : i32 to vector<8x1xi32>
    %389 = arith.cmpi slt, %388, %12 : vector<8x1xi32>
    %390 = vector.shape_cast %389 : vector<8x1xi1> to vector<8x1xi1>
    %391 = vector.broadcast %390 : vector<8x1xi1> to vector<8x256xi1>
    %392 = arith.select %391, %386, %350 : vector<8x256xi1>, vector<8x256xf32>
    %c0_144 = arith.constant 0 : index
    %c0_145 = arith.constant 0 : index
    %393 = vector.load %arg11[%c0_144, %c0_145] : memref<8x256xf32, #tpu.memory_space<vmem>>, vector<8x256xf32>
    tpu.vector_store %arg11[%c0_144, %c0_145], %392 {strides = array<i32>} : memref<8x256xf32, #tpu.memory_space<vmem>>, vector<8x256xf32>,
    %394 = vector.shape_cast %389 : vector<8x1xi1> to vector<8x1xi1>
    %395 = vector.broadcast %394 : vector<8x1xi1> to vector<8x256xi1>
    %396 = arith.select %395, %384, %351 : vector<8x256xi1>, vector<8x256xf32>
    %c0_146 = arith.constant 0 : index
    %c0_147 = arith.constant 0 : index
    %397 = vector.load %arg12[%c0_146, %c0_147] : memref<8x256xf32, #tpu.memory_space<vmem>>, vector<8x256xf32>
    tpu.vector_store %arg12[%c0_146, %c0_147], %396 {strides = array<i32>} : memref<8x256xf32, #tpu.memory_space<vmem>>, vector<8x256xf32>,
    %c8_i32_148 = arith.constant 8 : i32
    %c0_i32_149 = arith.constant 0 : i32
    %398 = arith.cmpi eq, %arg1, %c0_i32_149 : i32
    %399 = arith.extui %398 : i1 to i32
    %c0_i32_150 = arith.constant 0 : i32
    %400 = arith.cmpi ne, %399, %c0_i32_150 : i32
    scf.if %400 {
      %c0_151 = arith.constant 0 : index
      %c0_152 = arith.constant 0 : index
      %401 = vector.load %arg11[%c0_151, %c0_152] : memref<8x256xf32, #tpu.memory_space<vmem>>, vector<8x256xf32>
      %402 = arith.truncf %401 : vector<8x256xf32> to vector<8x256xbf16>
      %c0_153 = arith.constant 0 : index
      %c0_154 = arith.constant 0 : index
      %403 = vector.load %arg7[%c0_153, %c0_154] : memref<256x128xbf16, #tpu.memory_space<vmem>>, vector<256x128xbf16>
      %cst_155 = arith.constant dense<0.000000e+00> : vector<8x128xf32>
      %404 = tpu.matmul %402, %403, %cst_155 {dimension_numbers = #tpu.dot_dimension_numbers<[1], [0], [0], [1], [0, 0, 1, 1], [], []>} : vector<8x256xbf16>, vector<256x128xbf16>, vector<8x128xf32> -> vector<8x128xf32>
      %c0_156 = arith.constant 0 : index
      %c0_157 = arith.constant 0 : index
      %405 = vector.load %arg8[%c0_156, %c0_157] : memref<1x128xf32, #tpu.memory_space<vmem>>, vector<1x128xf32>
      %406 = vector.broadcast %405 : vector<1x128xf32> to vector<8x128xf32>
      %407 = arith.addf %404, %406 : vector<8x128xf32>
      %c0_158 = arith.constant 0 : index
      %c0_159 = arith.constant 0 : index
      %408 = vector.load %arg9[%c0_158, %c0_159] : memref<8x128xf32, #tpu.memory_space<vmem>>, vector<8x128xf32>
      tpu.vector_store %arg9[%c0_158, %c0_159], %407 {strides = array<i32>} : memref<8x128xf32, #tpu.memory_space<vmem>>, vector<8x128xf32>,
    } else {
    }
    return
  }
  func.func @transform_0(%arg0: i32, %arg1: i32) -> (i32, i32, i32) {
    %c0_i32 = arith.constant 0 : i32
    %c0_i32_0 = arith.constant 0 : i32
    return %arg1, %arg0, %c0_i32 : i32, i32, i32
  }
  func.func @transform_1(%arg0: i32, %arg1: i32) -> (i32, i32) {
    %c0_i32 = arith.constant 0 : i32
    %c0_i32_0 = arith.constant 0 : i32
    return %arg0, %c0_i32 : i32, i32
  }
  func.func @transform_2(%arg0: i32, %arg1: i32) -> (i32, i32) {
    %c0_i32 = arith.constant 0 : i32
    %c0_i32_0 = arith.constant 0 : i32
    %c0_i32_1 = arith.constant 0 : i32
    return %c0_i32, %c0_i32_0 : i32, i32
  }
  func.func @transform_3(%arg0: i32, %arg1: i32) -> (i32, i32) {
    %c0_i32 = arith.constant 0 : i32
    %c0_i32_0 = arith.constant 0 : i32
    %c0_i32_1 = arith.constant 0 : i32
    return %c0_i32, %c0_i32_0 : i32, i32
  }
  func.func @transform_4(%arg0: i32, %arg1: i32) -> (i32, i32) {
    %c0_i32 = arith.constant 0 : i32
    %c0_i32_0 = arith.constant 0 : i32
    %c0_i32_1 = arith.constant 0 : i32
    return %c0_i32, %c0_i32_0 : i32, i32
  }
  func.func @transform_5(%arg0: i32, %arg1: i32) -> (i32, i32) {
    %c0_i32 = arith.constant 0 : i32
    %c0_i32_0 = arith.constant 0 : i32
    %c0_i32_1 = arith.constant 0 : i32
    return %c0_i32, %c0_i32_0 : i32, i32
  }
  func.func @transform_6(%arg0: i32, %arg1: i32) -> (i32, i32) {
    %c0_i32 = arith.constant 0 : i32
    %c0_i32_0 = arith.constant 0 : i32
    %c0_i32_1 = arith.constant 0 : i32
    return %c0_i32, %c0_i32_0 : i32, i32
  }
  func.func @transform_7(%arg0: i32, %arg1: i32) -> (i32, i32) {
    %c0_i32 = arith.constant 0 : i32
    %c0_i32_0 = arith.constant 0 : i32
    return %arg0, %c0_i32 : i32, i32
  }
}

</mosaic_0001>

<llo_original>
// kernel: tpu_custom_call.1
$region0: #{tpu_custom_call.1}
  #allocation0 [shape = 'u32[]', space=smem, size = 0x4, offset = 0x4, fixed_abs, tag = 'smem constant byte address 0x4 - core index']
  #allocation1 [shape = 'u32[72,128]{1,0:T(1,128)}', space=vmem, size = 0x9000, scoped, tag = 'internal scratch']
  #allocation2 [shape = 'bf16[64,1024]{1,0:T(8,128)(2,1)}', space=vmem, size = 0x20000, scoped, tag = 'scratch operand']
  #allocation3 [shape = 'f32[8,256]{1,0:T(8,128)}', space=vmem, size = 0x2000, scoped, tag = 'scratch operand']
  #allocation4 [shape = 'f32[8,256]{1,0:T(8,128)}', space=vmem, size = 0x2000, scoped, tag = 'scratch operand']
  %s0 = inlined_call_operand.hbm [shape: bf16[8,8,128], index: 0, kind: input, shape index: {}]
  %s1 = inlined_call_operand.vmem [shape: s32[8,1], index: 1, kind: input, shape index: {}]
  %s2 = inlined_call_operand.hbm [shape: bf16[128,1024], index: 2, kind: input, shape index: {}]
  %s3 = inlined_call_operand.hbm [shape: bf16[256,1024], index: 3, kind: input, shape index: {}]
  %s4 = inlined_call_operand.vmem [shape: f32[1,1024], index: 4, kind: input, shape index: {}]
  %s5 = inlined_call_operand.hbm [shape: bf16[256,128], index: 5, kind: input, shape index: {}]
  %s6 = inlined_call_operand.vmem [shape: f32[1,128], index: 6, kind: input, shape index: {}]
  %s7 = inlined_call_operand.hbm [shape: f32[8,128], index: 7, kind: output, shape index: {}]
  %s8 = sld [smem:[#allocation0]]
  $region62: #{tpu_custom_call.1} parent=0
    _
  %s10 = ssub.s32 1, %s8
  %s11 = scalar_select 0, %s10, %s8
  $region1: #{tpu_custom_call.1} parent=0
    #allocation5 [shape = 'u8[16384]{0}', space=vmem, size = 0x4000, scoped, tag = 'input window, operand 0, single buffered']
    #allocation6 [shape = 's32[1]{0}', space=sflag, size = 0x4, scoped, tag = 'scoped memory for tpu_custom_call.1']
    #allocation7 [shape = 's32[1]{0}', space=sflag, size = 0x4, scoped, tag = 'scoped memory for tpu_custom_call.1']
    #allocation8 [shape = 'u8[262144]{0}', space=vmem, size = 0x40000, scoped, tag = 'input window, operand 2, single buffered']
    #allocation9 [shape = 's32[1]{0}', space=sflag, size = 0x4, scoped, tag = 'scoped memory for tpu_custom_call.1']
    #allocation10 [shape = 'u8[524288]{0}', space=vmem, size = 0x80000, scoped, tag = 'input window, operand 3, single buffered']
    #allocation11 [shape = 'u8[65536]{0}', space=vmem, size = 0x10000, scoped, tag = 'input window, operand 5, single buffered']
    #allocation12 [shape = 's32[1]{0}', space=sflag, size = 0x4, scoped, tag = 'scoped memory for tpu_custom_call.1']
    #allocation13 [shape = 'u8[4096]{0}', space=vmem, size = 0x1000, scoped, tag = 'output window, operand 0, single buffered']
    %12 = vsyncpa [#allocation6], 0
    %13 = vsyncpa [#allocation9], 0
    %14 = vsyncpa [#allocation12], 0
    %15 = vsyncpa [#allocation7], 0
    // Predicated region
    $region2: #{tpu_custom_call.1} parent=1 // pred_check
      _
    $region3: #{tpu_custom_call.1} parent=1 // pred_check_branch
      %17 = sbr.rel (0) target = $region5
    $region4: #{tpu_custom_call.1} parent=1 // pred_region
      %19 = vsyncadd [#allocation6], 0
      %s20 = sshll.u32 %s0, 4
      %s21 = int_to_ptr.hbm [resolvable:$true] %s20
      %s22 = sshll.u32 [#allocation5], 4
      %s23 = int_to_ptr.vmem [resolvable:$true] %s22
      %28 = dma.hbm_to_vmem [thread:$0]  %s21, 512, %s23, [#allocation6], 64, 64, 4
    $region5: #{tpu_custom_call.1} parent=1 // pred_fallthru
      _
    // Predicated region
    $region6: #{tpu_custom_call.1} parent=1 // pred_check
      _
    $region7: #{tpu_custom_call.1} parent=1 // pred_check_branch
      %30 = sbr.rel (0) target = $region9
    $region8: #{tpu_custom_call.1} parent=1 // pred_region
      _
    $region9: #{tpu_custom_call.1} parent=1 // pred_fallthru
      _
    // Predicated region
    $region10: #{tpu_custom_call.1} parent=1 // pred_check
      _
    $region11: #{tpu_custom_call.1} parent=1 // pred_check_branch
      %32 = sbr.rel (0) target = $region13
    $region12: #{tpu_custom_call.1} parent=1 // pred_region
      %34 = vsyncadd [#allocation9], 0
      %s35 = sshll.u32 %s2, 4
      %s36 = int_to_ptr.hbm [resolvable:$true] %s35
      %s37 = sshll.u32 [#allocation8], 4
      %s38 = int_to_ptr.vmem [resolvable:$true] %s37
      %43 = dma.hbm_to_vmem [thread:$0]  %s36, 8192, %s38, [#allocation9], 512, 512, 32
    $region13: #{tpu_custom_call.1} parent=1 // pred_fallthru
      _
    // Predicated region
    $region14: #{tpu_custom_call.1} parent=1 // pred_check
      _
    $region15: #{tpu_custom_call.1} parent=1 // pred_check_branch
      %45 = sbr.rel (0) target = $region17
    $region16: #{tpu_custom_call.1} parent=1 // pred_region
      %47 = vsyncadd [#allocation9], 0
      %s48 = sshll.u32 %s3, 4
      %s49 = int_to_ptr.hbm [resolvable:$true] %s48
      %s50 = sshll.u32 [#allocation10], 4
      %s51 = int_to_ptr.vmem [resolvable:$true] %s50
      %56 = dma.hbm_to_vmem [thread:$0]  %s49, 16384, %s51, [#allocation9], 512, 512, 32
    $region17: #{tpu_custom_call.1} parent=1 // pred_fallthru
      _
    // Predicated region
    $region18: #{tpu_custom_call.1} parent=1 // pred_check
      _
    $region19: #{tpu_custom_call.1} parent=1 // pred_check_branch
      %58 = sbr.rel (0) target = $region21
    $region20: #{tpu_custom_call.1} parent=1 // pred_region
      _
    $region21: #{tpu_custom_call.1} parent=1 // pred_fallthru
      _
    // Predicated region
    $region22: #{tpu_custom_call.1} parent=1 // pred_check
      _
    $region23: #{tpu_custom_call.1} parent=1 // pred_check_branch
      %60 = sbr.rel (0) target = $region25
    $region24: #{tpu_custom_call.1} parent=1 // pred_region
      %62 = vsyncadd [#allocation12], 0
      %s63 = sshll.u32 %s5, 4
      %s64 = int_to_ptr.hbm [resolvable:$true] %s63
      %s65 = sshll.u32 [#allocation11], 4
      %s66 = int_to_ptr.vmem [resolvable:$true] %s65
      %71 = dma.hbm_to_vmem [thread:$0]  %s64, 2048, %s66, [#allocation12], 64, 64, 4
    $region25: #{tpu_custom_call.1} parent=1 // pred_fallthru
      _
    // Predicated region
    $region26: #{tpu_custom_call.1} parent=1 // pred_check
      _
    $region27: #{tpu_custom_call.1} parent=1 // pred_check_branch
      %73 = sbr.rel (0) target = $region29
    $region28: #{tpu_custom_call.1} parent=1 // pred_region
      _
    $region29: #{tpu_custom_call.1} parent=1 // pred_fallthru
      _
    // Predicated region
    $region30: #{tpu_custom_call.1} parent=1 // pred_check
      _
    $region31: #{tpu_custom_call.1} parent=1 // pred_check_branch
      %75 = sbr.rel (0) target = $region33
    $region32: #{tpu_custom_call.1} parent=1 // pred_region
      %77 = dma.done [#allocation6], 512
    $region33: #{tpu_custom_call.1} parent=1 // pred_fallthru
      _
    // Predicated region
    $region34: #{tpu_custom_call.1} parent=1 // pred_check
      _
    $region35: #{tpu_custom_call.1} parent=1 // pred_check_branch
      %79 = sbr.rel (0) target = $region37
    $region36: #{tpu_custom_call.1} parent=1 // pred_region
      %81 = dma.done [#allocation9], 8192
    $region37: #{tpu_custom_call.1} parent=1 // pred_fallthru
      _
    // Predicated region
    $region38: #{tpu_custom_call.1} parent=1 // pred_check
      _
    $region39: #{tpu_custom_call.1} parent=1 // pred_check_branch
      %83 = sbr.rel (0) target = $region41
    $region40: #{tpu_custom_call.1} parent=1 // pred_region
      %85 = dma.done [#allocation9], 16384
    $region41: #{tpu_custom_call.1} parent=1 // pred_fallthru
      _
    // Predicated region
    $region42: #{tpu_custom_call.1} parent=1 // pred_check
      _
    $region43: #{tpu_custom_call.1} parent=1 // pred_check_branch
      %87 = sbr.rel (0) target = $region45
    $region44: #{tpu_custom_call.1} parent=1 // pred_region
      %89 = dma.done [#allocation12], 2048
    $region45: #{tpu_custom_call.1} parent=1 // pred_fallthru
      _
    %p90 = scmp.eq.s32.totalorder 0, 0
    // Predicated region
    $region46: #{tpu_custom_call.1} parent=1 // pred_check
      %p91 = pneg %p90
    $region47: #{tpu_custom_call.1} parent=1 // pred_check_branch
      %93 = sbr.rel (%p91) target = $region49
    $region48: #{tpu_custom_call.1} parent=1 // pred_region
      %94 = vst [vmem:[#allocation3] sm:$0xff] 0.0
      %95 = vst [vmem:[#allocation3 + $0x8] sm:$0xff] 0.0
      %96 = vst [vmem:[#allocation4] sm:$0xff] 0.0
      %97 = vst [vmem:[#allocation4 + $0x8] sm:$0xff] 0.0
    $region49: #{tpu_custom_call.1} parent=1 // pred_fallthru
      _
    %v98 = vld [vmem:[#allocation5] sm:$0xf]
    %v99 = vld [vmem:[#allocation5 + $0x4] sm:$0xf]
    %v100 = vld [vmem:[#allocation5 + $0x8] sm:$0xf]
    %v101 = vld [vmem:[#allocation5 + $0xc] sm:$0xf]
    %v102 = vld [vmem:[#allocation5 + $0x10] sm:$0xf]
    %v103 = vld [vmem:[#allocation5 + $0x14] sm:$0xf]
    %v104 = vld [vmem:[#allocation5 + $0x18] sm:$0xf]
    %v105 = vld [vmem:[#allocation5 + $0x1c] sm:$0xf]
    %v106 = vld [vmem:[#allocation8] sm:$0xff]
    %v107 = vld [vmem:[#allocation8 + $0x8] sm:$0xff]
    %v108 = vld [vmem:[#allocation8 + $0x10] sm:$0xff]
    %v109 = vld [vmem:[#allocation8 + $0x18] sm:$0xff]
    %v110 = vld [vmem:[#allocation8 + $0x20] sm:$0xff]
    %v111 = vld [vmem:[#allocation8 + $0x28] sm:$0xff]
    %v112 = vld [vmem:[#allocation8 + $0x30] sm:$0xff]
    %v113 = vld [vmem:[#allocation8 + $0x38] sm:$0xff]
    %v114 = vld [vmem:[#allocation8 + $0x40] sm:$0xff]
    %v115 = vld [vmem:[#allocation8 + $0x48] sm:$0xff]
    %v116 = vld [vmem:[#allocation8 + $0x50] sm:$0xff]
    %v117 = vld [vmem:[#allocation8 + $0x58] sm:$0xff]
    %v118 = vld [vmem:[#allocation8 + $0x60] sm:$0xff]
    %v119 = vld [vmem:[#allocation8 + $0x68] sm:$0xff]
    %v120 = vld [vmem:[#allocation8 + $0x70] sm:$0xff]
    %v121 = vld [vmem:[#allocation8 + $0x78] sm:$0xff]
    %v122 = vld [vmem:[#allocation8 + $0x80] sm:$0xff]
    %v123 = vld [vmem:[#allocation8 + $0x88] sm:$0xff]
    %v124 = vld [vmem:[#allocation8 + $0x90] sm:$0xff]
    %v125 = vld [vmem:[#allocation8 + $0x98] sm:$0xff]
    %v126 = vld [vmem:[#allocation8 + $0xa0] sm:$0xff]
    %v127 = vld [vmem:[#allocation8 + $0xa8] sm:$0xff]
    %v128 = vld [vmem:[#allocation8 + $0xb0] sm:$0xff]
    %v129 = vld [vmem:[#allocation8 + $0xb8] sm:$0xff]
    %v130 = vld [vmem:[#allocation8 + $0xc0] sm:$0xff]
    %v131 = vld [vmem:[#allocation8 + $0xc8] sm:$0xff]
    %v132 = vld [vmem:[#allocation8 + $0xd0] sm:$0xff]
    %v133 = vld [vmem:[#allocation8 + $0xd8] sm:$0xff]
    %v134 = vld [vmem:[#allocation8 + $0xe0] sm:$0xff]
    %v135 = vld [vmem:[#allocation8 + $0xe8] sm:$0xff]
    %v136 = vld [vmem:[#allocation8 + $0xf0] sm:$0xff]
    %v137 = vld [vmem:[#allocation8 + $0xf8] sm:$0xff]
    %v138 = vld [vmem:[#allocation8 + $0x100] sm:$0xff]
    %v139 = vld [vmem:[#allocation8 + $0x108] sm:$0xff]
    %v140 = vld [vmem:[#allocation8 + $0x110] sm:$0xff]
    %v141 = vld [vmem:[#allocation8 + $0x118] sm:$0xff]
    %v142 = vld [vmem:[#allocation8 + $0x120] sm:$0xff]
    %v143 = vld [vmem:[#allocation8 + $0x128] sm:$0xff]
    %v144 = vld [vmem:[#allocation8 + $0x130] sm:$0xff]
    %v145 = vld [vmem:[#allocation8 + $0x138] sm:$0xff]
    %v146 = vld [vmem:[#allocation8 + $0x140] sm:$0xff]
    %v147 = vld [vmem:[#allocation8 + $0x148] sm:$0xff]
    %v148 = vld [vmem:[#allocation8 + $0x150] sm:$0xff]
    %v149 = vld [vmem:[#allocation8 + $0x158] sm:$0xff]
    %v150 = vld [vmem:[#allocation8 + $0x160] sm:$0xff]
    %v151 = vld [vmem:[#allocation8 + $0x168] sm:$0xff]
    %v152 = vld [vmem:[#allocation8 + $0x170] sm:$0xff]
    %v153 = vld [vmem:[#allocation8 + $0x178] sm:$0xff]
    %v154 = vld [vmem:[#allocation8 + $0x180] sm:$0xff]
    %v155 = vld [vmem:[#allocation8 + $0x188] sm:$0xff]
    %v156 = vld [vmem:[#allocation8 + $0x190] sm:$0xff]
    %v157 = vld [vmem:[#allocation8 + $0x198] sm:$0xff]
    %v158 = vld [vmem:[#allocation8 + $0x1a0] sm:$0xff]
    %v159 = vld [vmem:[#allocation8 + $0x1a8] sm:$0xff]
    %v160 = vld [vmem:[#allocation8 + $0x1b0] sm:$0xff]
    %v161 = vld [vmem:[#allocation8 + $0x1b8] sm:$0xff]
    %v162 = vld [vmem:[#allocation8 + $0x1c0] sm:$0xff]
    %v163 = vld [vmem:[#allocation8 + $0x1c8] sm:$0xff]
    %v164 = vld [vmem:[#allocation8 + $0x1d0] sm:$0xff]
    %v165 = vld [vmem:[#allocation8 + $0x1d8] sm:$0xff]
    %v166 = vld [vmem:[#allocation8 + $0x1e0] sm:$0xff]
    %v167 = vld [vmem:[#allocation8 + $0x1e8] sm:$0xff]
    %v168 = vld [vmem:[#allocation8 + $0x1f0] sm:$0xff]
    %v169 = vld [vmem:[#allocation8 + $0x1f8] sm:$0xff]
    %v170 = vld [vmem:[%s4] sm:$0xff]
    %v172 = vperm.slane %v170, 0
    %v173 = vperm.slane %v170, 1
    %v174 = vperm.slane %v170, 2
    %v175 = vperm.slane %v170, 3
    %v176 = vperm.slane %v170, 4
    %v177 = vperm.slane %v170, 5
    %v178 = vperm.slane %v170, 6
    %v179 = vperm.slane %v170, 7
    %v196 = vunpack.c.l.b16 %v98
    %v197 = vunpack.c.l.b16 %v99
    %v198 = vunpack.c.l.b16 %v100
    %v199 = vunpack.c.l.b16 %v101
    %v200 = vunpack.c.l.b16 %v102
    %v201 = vunpack.c.l.b16 %v103
    %v202 = vunpack.c.l.b16 %v104
    %v203 = vunpack.c.l.b16 %v105
    %v204 = vpack.c.b16 %v197, %v196
    %v205 = vpack.c.b16 %v199, %v198
    %v206 = vpack.c.b16 %v201, %v200
    %v207 = vpack.c.b16 %v203, %v202
    %v276 = vunpack.c.l.b16 %v106
    %v277 = vunpack.c.h.b16 %v106
    %v278 = vunpack.c.l.b16 %v107
    %v279 = vunpack.c.h.b16 %v107
    %v280 = vunpack.c.l.b16 %v108
    %v281 = vunpack.c.h.b16 %v108
    %v282 = vunpack.c.l.b16 %v109
    %v283 = vunpack.c.h.b16 %v109
    %v284 = vunpack.c.l.b16 %v110
    %v285 = vunpack.c.h.b16 %v110
    %v286 = vunpack.c.l.b16 %v111
    %v287 = vunpack.c.h.b16 %v111
    %v288 = vunpack.c.l.b16 %v112
    %v289 = vunpack.c.h.b16 %v112
    %v290 = vunpack.c.l.b16 %v113
    %v291 = vunpack.c.h.b16 %v113
    %v292 = vunpack.c.l.b16 %v114
    %v293 = vunpack.c.h.b16 %v114
    %v294 = vunpack.c.l.b16 %v115
    %v295 = vunpack.c.h.b16 %v115
    %v296 = vunpack.c.l.b16 %v116
    %v297 = vunpack.c.h.b16 %v116
    %v298 = vunpack.c.l.b16 %v117
    %v299 = vunpack.c.h.b16 %v117
    %v300 = vunpack.c.l.b16 %v118
    %v301 = vunpack.c.h.b16 %v118
    %v302 = vunpack.c.l.b16 %v119
    %v303 = vunpack.c.h.b16 %v119
    %v304 = vunpack.c.l.b16 %v120
    %v305 = vunpack.c.h.b16 %v120
    %v306 = vunpack.c.l.b16 %v121
    %v307 = vunpack.c.h.b16 %v121
    %v308 = vunpack.c.l.b16 %v122
    %v309 = vunpack.c.h.b16 %v122
    %v310 = vunpack.c.l.b16 %v123
    %v311 = vunpack.c.h.b16 %v123
    %v312 = vunpack.c.l.b16 %v124
    %v313 = vunpack.c.h.b16 %v124
    %v314 = vunpack.c.l.b16 %v125
    %v315 = vunpack.c.h.b16 %v125
    %v316 = vunpack.c.l.b16 %v126
    %v317 = vunpack.c.h.b16 %v126
    %v318 = vunpack.c.l.b16 %v127
    %v319 = vunpack.c.h.b16 %v127
    %v320 = vunpack.c.l.b16 %v128
    %v321 = vunpack.c.h.b16 %v128
    %v322 = vunpack.c.l.b16 %v129
    %v323 = vunpack.c.h.b16 %v129
    %v324 = vunpack.c.l.b16 %v130
    %v325 = vunpack.c.h.b16 %v130
    %v326 = vunpack.c.l.b16 %v131
    %v327 = vunpack.c.h.b16 %v131
    %v328 = vunpack.c.l.b16 %v132
    %v329 = vunpack.c.h.b16 %v132
    %v330 = vunpack.c.l.b16 %v133
    %v331 = vunpack.c.h.b16 %v133
    %v332 = vunpack.c.l.b16 %v134
    %v333 = vunpack.c.h.b16 %v134
    %v334 = vunpack.c.l.b16 %v135
    %v335 = vunpack.c.h.b16 %v135
    %v336 = vunpack.c.l.b16 %v136
    %v337 = vunpack.c.h.b16 %v136
    %v338 = vunpack.c.l.b16 %v137
    %v339 = vunpack.c.h.b16 %v137
    %v340 = vunpack.c.l.b16 %v138
    %v341 = vunpack.c.h.b16 %v138
    %v342 = vunpack.c.l.b16 %v139
    %v343 = vunpack.c.h.b16 %v139
    %v344 = vunpack.c.l.b16 %v140
    %v345 = vunpack.c.h.b16 %v140
    %v346 = vunpack.c.l.b16 %v141
    %v347 = vunpack.c.h.b16 %v141
    %v348 = vunpack.c.l.b16 %v142
    %v349 = vunpack.c.h.b16 %v142
    %v350 = vunpack.c.l.b16 %v143
    %v351 = vunpack.c.h.b16 %v143
    %v352 = vunpack.c.l.b16 %v144
    %v353 = vunpack.c.h.b16 %v144
    %v354 = vunpack.c.l.b16 %v145
    %v355 = vunpack.c.h.b16 %v145
    %v356 = vunpack.c.l.b16 %v146
    %v357 = vunpack.c.h.b16 %v146
    %v358 = vunpack.c.l.b16 %v147
    %v359 = vunpack.c.h.b16 %v147
    %v360 = vunpack.c.l.b16 %v148
    %v361 = vunpack.c.h.b16 %v148
    %v362 = vunpack.c.l.b16 %v149
    %v363 = vunpack.c.h.b16 %v149
    %v364 = vunpack.c.l.b16 %v150
    %v365 = vunpack.c.h.b16 %v150
    %v366 = vunpack.c.l.b16 %v151
    %v367 = vunpack.c.h.b16 %v151
    %v368 = vunpack.c.l.b16 %v152
    %v369 = vunpack.c.h.b16 %v152
    %v370 = vunpack.c.l.b16 %v153
    %v371 = vunpack.c.h.b16 %v153
    %v372 = vunpack.c.l.b16 %v154
    %v373 = vunpack.c.h.b16 %v154
    %v374 = vunpack.c.l.b16 %v155
    %v375 = vunpack.c.h.b16 %v155
    %v376 = vunpack.c.l.b16 %v156
    %v377 = vunpack.c.h.b16 %v156
    %v378 = vunpack.c.l.b16 %v157
    %v379 = vunpack.c.h.b16 %v157
    %v380 = vunpack.c.l.b16 %v158
    %v381 = vunpack.c.h.b16 %v158
    %v382 = vunpack.c.l.b16 %v159
    %v383 = vunpack.c.h.b16 %v159
    %v384 = vunpack.c.l.b16 %v160
    %v385 = vunpack.c.h.b16 %v160
    %v386 = vunpack.c.l.b16 %v161
    %v387 = vunpack.c.h.b16 %v161
    %v388 = vunpack.c.l.b16 %v162
    %v389 = vunpack.c.h.b16 %v162
    %v390 = vunpack.c.l.b16 %v163
    %v391 = vunpack.c.h.b16 %v163
    %v392 = vunpack.c.l.b16 %v164
    %v393 = vunpack.c.h.b16 %v164
    %v394 = vunpack.c.l.b16 %v165
    %v395 = vunpack.c.h.b16 %v165
    %v396 = vunpack.c.l.b16 %v166
    %v397 = vunpack.c.h.b16 %v166
    %v398 = vunpack.c.l.b16 %v167
    %v399 = vunpack.c.h.b16 %v167
    %v400 = vunpack.c.l.b16 %v168
    %v401 = vunpack.c.h.b16 %v168
    %v402 = vunpack.c.l.b16 %v169
    %v403 = vunpack.c.h.b16 %v169
    %v404 = vpack.c.b16 %v284, %v276
    %v405 = vpack.c.b16 %v285, %v277
    %v406 = vpack.c.b16 %v286, %v278
    %v407 = vpack.c.b16 %v287, %v279
    %v408 = vpack.c.b16 %v288, %v280
    %v409 = vpack.c.b16 %v289, %v281
    %v410 = vpack.c.b16 %v290, %v282
    %v411 = vpack.c.b16 %v291, %v283
    %v412 = vpack.c.b16 %v300, %v292
    %v413 = vpack.c.b16 %v301, %v293
    %v414 = vpack.c.b16 %v302, %v294
    %v415 = vpack.c.b16 %v303, %v295
    %v416 = vpack.c.b16 %v304, %v296
    %v417 = vpack.c.b16 %v305, %v297
    %v418 = vpack.c.b16 %v306, %v298
    %v419 = vpack.c.b16 %v307, %v299
    %v420 = vpack.c.b16 %v316, %v308
    %v421 = vpack.c.b16 %v317, %v309
    %v422 = vpack.c.b16 %v318, %v310
    %v423 = vpack.c.b16 %v319, %v311
    %v424 = vpack.c.b16 %v320, %v312
    %v425 = vpack.c.b16 %v321, %v313
    %v426 = vpack.c.b16 %v322, %v314
    %v427 = vpack.c.b16 %v323, %v315
    %v428 = vpack.c.b16 %v332, %v324
    %v429 = vpack.c.b16 %v333, %v325
    %v430 = vpack.c.b16 %v334, %v326
    %v431 = vpack.c.b16 %v335, %v327
    %v432 = vpack.c.b16 %v336, %v328
    %v433 = vpack.c.b16 %v337, %v329
    %v434 = vpack.c.b16 %v338, %v330
    %v435 = vpack.c.b16 %v339, %v331
    %v436 = vpack.c.b16 %v348, %v340
    %v437 = vpack.c.b16 %v349, %v341
    %v438 = vpack.c.b16 %v350, %v342
    %v439 = vpack.c.b16 %v351, %v343
    %v440 = vpack.c.b16 %v352, %v344
    %v441 = vpack.c.b16 %v353, %v345
    %v442 = vpack.c.b16 %v354, %v346
    %v443 = vpack.c.b16 %v355, %v347
    %v444 = vpack.c.b16 %v364, %v356
    %v445 = vpack.c.b16 %v365, %v357
    %v446 = vpack.c.b16 %v366, %v358
    %v447 = vpack.c.b16 %v367, %v359
    %v448 = vpack.c.b16 %v368, %v360
    %v449 = vpack.c.b16 %v369, %v361
    %v450 = vpack.c.b16 %v370, %v362
    %v451 = vpack.c.b16 %v371, %v363
    %v452 = vpack.c.b16 %v380, %v372
    %v453 = vpack.c.b16 %v381, %v373
    %v454 = vpack.c.b16 %v382, %v374
    %v455 = vpack.c.b16 %v383, %v375
    %v456 = vpack.c.b16 %v384, %v376
    %v457 = vpack.c.b16 %v385, %v377
    %v458 = vpack.c.b16 %v386, %v378
    %v459 = vpack.c.b16 %v387, %v379
    %v460 = vpack.c.b16 %v396, %v388
    %v461 = vpack.c.b16 %v397, %v389
    %v462 = vpack.c.b16 %v398, %v390
    %v463 = vpack.c.b16 %v399, %v391
    %v464 = vpack.c.b16 %v400, %v392
    %v465 = vpack.c.b16 %v401, %v393
    %v466 = vpack.c.b16 %v402, %v394
    %v467 = vpack.c.b16 %v403, %v395
    %532 = vmatpush.bf16.msra.mxu0 %v460
    %533 = vmatpush.bf16.msra.mxu0 %v452
    %534 = vmatpush.bf16.msra.mxu0 %v444
    %535 = vmatpush.bf16.msra.mxu0 %v436
    %536 = vmatpush.bf16.msra.mxu0 %v428
    %537 = vmatpush.bf16.msra.mxu0 %v420
    %538 = vmatpush.bf16.msra.mxu0 %v412
    %539 = vmatpush.bf16.msra.mxu0 %v404
    %540 = vmatmul.bf16.gmra.mxu0 %v204
    %v541 = vpop.f32.mrf.mxu0
    %v542 = vadd.f32 %v172, %v541
    %v543 = vpop.f32.mrf.mxu0
    %v544 = vadd.f32 %v172, %v543
    %545 = vmatmul.bf16.gmra.mxu0 %v205
    %v546 = vpop.f32.mrf.mxu0
    %v547 = vadd.f32 %v172, %v546
    %v548 = vpop.f32.mrf.mxu0
    %v549 = vadd.f32 %v172, %v548
    %550 = vmatmul.bf16.gmra.mxu0 %v206
    %v551 = vpop.f32.mrf.mxu0
    %v552 = vadd.f32 %v172, %v551
    %v553 = vpop.f32.mrf.mxu0
    %v554 = vadd.f32 %v172, %v553
    %555 = vmatmul.bf16.gmra.mxu0 %v207
    %v556 = vpop.f32.mrf.mxu0
    %v557 = vadd.f32 %v172, %v556
    %v558 = vpop.f32.mrf.mxu0
    %v559 = vadd.f32 %v172, %v558
    %560 = vdwg.mxu0
    %561 = vmatpush.bf16.msra.mxu0 %v461
    %562 = vmatpush.bf16.msra.mxu0 %v453
    %563 = vmatpush.bf16.msra.mxu0 %v445
    %564 = vmatpush.bf16.msra.mxu0 %v437
    %565 = vmatpush.bf16.msra.mxu0 %v429
    %566 = vmatpush.bf16.msra.mxu0 %v421
    %567 = vmatpush.bf16.msra.mxu0 %v413
    %568 = vmatpush.bf16.msra.mxu0 %v405
    %569 = vmatmul.bf16.gmra.mxu0 %v204
    %v570 = vpop.f32.mrf.mxu0
    %v571 = vadd.f32 %v173, %v570
    %v572 = vpop.f32.mrf.mxu0
    %v573 = vadd.f32 %v173, %v572
    %574 = vmatmul.bf16.gmra.mxu0 %v205
    %v575 = vpop.f32.mrf.mxu0
    %v576 = vadd.f32 %v173, %v575
    %v577 = vpop.f32.mrf.mxu0
    %v578 = vadd.f32 %v173, %v577
    %579 = vmatmul.bf16.gmra.mxu0 %v206
    %v580 = vpop.f32.mrf.mxu0
    %v581 = vadd.f32 %v173, %v580
    %v582 = vpop.f32.mrf.mxu0
    %v583 = vadd.f32 %v173, %v582
    %584 = vmatmul.bf16.gmra.mxu0 %v207
    %v585 = vpop.f32.mrf.mxu0
    %v586 = vadd.f32 %v173, %v585
    %v587 = vpop.f32.mrf.mxu0
    %v588 = vadd.f32 %v173, %v587
    %589 = vdwg.mxu0
    %590 = vmatpush.bf16.msra.mxu0 %v462
    %591 = vmatpush.bf16.msra.mxu0 %v454
    %592 = vmatpush.bf16.msra.mxu0 %v446
    %593 = vmatpush.bf16.msra.mxu0 %v438
    %594 = vmatpush.bf16.msra.mxu0 %v430
    %595 = vmatpush.bf16.msra.mxu0 %v422
    %596 = vmatpush.bf16.msra.mxu0 %v414
    %597 = vmatpush.bf16.msra.mxu0 %v406
    %598 = vmatmul.bf16.gmra.mxu0 %v204
    %v599 = vpop.f32.mrf.mxu0
    %v600 = vadd.f32 %v174, %v599
    %v601 = vpop.f32.mrf.mxu0
    %v602 = vadd.f32 %v174, %v601
    %603 = vmatmul.bf16.gmra.mxu0 %v205
    %v604 = vpop.f32.mrf.mxu0
    %v605 = vadd.f32 %v174, %v604
    %v606 = vpop.f32.mrf.mxu0
    %v607 = vadd.f32 %v174, %v606
    %608 = vmatmul.bf16.gmra.mxu0 %v206
    %v609 = vpop.f32.mrf.mxu0
    %v610 = vadd.f32 %v174, %v609
    %v611 = vpop.f32.mrf.mxu0
    %v612 = vadd.f32 %v174, %v611
    %613 = vmatmul.bf16.gmra.mxu0 %v207
    %v614 = vpop.f32.mrf.mxu0
    %v615 = vadd.f32 %v174, %v614
    %v616 = vpop.f32.mrf.mxu0
    %v617 = vadd.f32 %v174, %v616
    %618 = vdwg.mxu0
    %619 = vmatpush.bf16.msra.mxu0 %v463
    %620 = vmatpush.bf16.msra.mxu0 %v455
    %621 = vmatpush.bf16.msra.mxu0 %v447
    %622 = vmatpush.bf16.msra.mxu0 %v439
    %623 = vmatpush.bf16.msra.mxu0 %v431
    %624 = vmatpush.bf16.msra.mxu0 %v423
    %625 = vmatpush.bf16.msra.mxu0 %v415
    %626 = vmatpush.bf16.msra.mxu0 %v407
    %627 = vmatmul.bf16.gmra.mxu0 %v204
    %v628 = vpop.f32.mrf.mxu0
    %v629 = vadd.f32 %v175, %v628
    %v630 = vpop.f32.mrf.mxu0
    %v631 = vadd.f32 %v175, %v630
    %632 = vmatmul.bf16.gmra.mxu0 %v205
    %v633 = vpop.f32.mrf.mxu0
    %v634 = vadd.f32 %v175, %v633
    %v635 = vpop.f32.mrf.mxu0
    %v636 = vadd.f32 %v175, %v635
    %637 = vmatmul.bf16.gmra.mxu0 %v206
    %v638 = vpop.f32.mrf.mxu0
    %v639 = vadd.f32 %v175, %v638
    %v640 = vpop.f32.mrf.mxu0
    %v641 = vadd.f32 %v175, %v640
    %642 = vmatmul.bf16.gmra.mxu0 %v207
    %v643 = vpop.f32.mrf.mxu0
    %v644 = vadd.f32 %v175, %v643
    %v645 = vpop.f32.mrf.mxu0
    %v646 = vadd.f32 %v175, %v645
    %647 = vdwg.mxu0
    %648 = vmatpush.bf16.msra.mxu0 %v464
    %649 = vmatpush.bf16.msra.mxu0 %v456
    %650 = vmatpush.bf16.msra.mxu0 %v448
    %651 = vmatpush.bf16.msra.mxu0 %v440
    %652 = vmatpush.bf16.msra.mxu0 %v432
    %653 = vmatpush.bf16.msra.mxu0 %v424
    %654 = vmatpush.bf16.msra.mxu0 %v416
    %655 = vmatpush.bf16.msra.mxu0 %v408
    %656 = vmatmul.bf16.gmra.mxu0 %v204
    %v657 = vpop.f32.mrf.mxu0
    %v658 = vadd.f32 %v176, %v657
    %v659 = vpop.f32.mrf.mxu0
    %v660 = vadd.f32 %v176, %v659
    %661 = vmatmul.bf16.gmra.mxu0 %v205
    %v662 = vpop.f32.mrf.mxu0
    %v663 = vadd.f32 %v176, %v662
    %v664 = vpop.f32.mrf.mxu0
    %v665 = vadd.f32 %v176, %v664
    %666 = vmatmul.bf16.gmra.mxu0 %v206
    %v667 = vpop.f32.mrf.mxu0
    %v668 = vadd.f32 %v176, %v667
    %v669 = vpop.f32.mrf.mxu0
    %v670 = vadd.f32 %v176, %v669
    %671 = vmatmul.bf16.gmra.mxu0 %v207
    %v672 = vpop.f32.mrf.mxu0
    %v673 = vadd.f32 %v176, %v672
    %v674 = vpop.f32.mrf.mxu0
    %v675 = vadd.f32 %v176, %v674
    %676 = vdwg.mxu0
    %677 = vmatpush.bf16.msra.mxu0 %v465
    %678 = vmatpush.bf16.msra.mxu0 %v457
    %679 = vmatpush.bf16.msra.mxu0 %v449
    %680 = vmatpush.bf16.msra.mxu0 %v441
    %681 = vmatpush.bf16.msra.mxu0 %v433
    %682 = vmatpush.bf16.msra.mxu0 %v425
    %683 = vmatpush.bf16.msra.mxu0 %v417
    %684 = vmatpush.bf16.msra.mxu0 %v409
    %685 = vmatmul.bf16.gmra.mxu0 %v204
    %v686 = vpop.f32.mrf.mxu0
    %v687 = vadd.f32 %v177, %v686
    %v688 = vpop.f32.mrf.mxu0
    %v689 = vadd.f32 %v177, %v688
    %690 = vmatmul.bf16.gmra.mxu0 %v205
    %v691 = vpop.f32.mrf.mxu0
    %v692 = vadd.f32 %v177, %v691
    %v693 = vpop.f32.mrf.mxu0
    %v694 = vadd.f32 %v177, %v693
    %695 = vmatmul.bf16.gmra.mxu0 %v206
    %v696 = vpop.f32.mrf.mxu0
    %v697 = vadd.f32 %v177, %v696
    %v698 = vpop.f32.mrf.mxu0
    %v699 = vadd.f32 %v177, %v698
    %700 = vmatmul.bf16.gmra.mxu0 %v207
    %v701 = vpop.f32.mrf.mxu0
    %v702 = vadd.f32 %v177, %v701
    %v703 = vpop.f32.mrf.mxu0
    %v704 = vadd.f32 %v177, %v703
    %705 = vdwg.mxu0
    %706 = vmatpush.bf16.msra.mxu0 %v466
    %707 = vmatpush.bf16.msra.mxu0 %v458
    %708 = vmatpush.bf16.msra.mxu0 %v450
    %709 = vmatpush.bf16.msra.mxu0 %v442
    %710 = vmatpush.bf16.msra.mxu0 %v434
    %711 = vmatpush.bf16.msra.mxu0 %v426
    %712 = vmatpush.bf16.msra.mxu0 %v418
    %713 = vmatpush.bf16.msra.mxu0 %v410
    %714 = vmatmul.bf16.gmra.mxu0 %v204
    %v715 = vpop.f32.mrf.mxu0
    %v716 = vadd.f32 %v178, %v715
    %v717 = vpop.f32.mrf.mxu0
    %v718 = vadd.f32 %v178, %v717
    %719 = vmatmul.bf16.gmra.mxu0 %v205
    %v720 = vpop.f32.mrf.mxu0
    %v721 = vadd.f32 %v178, %v720
    %v722 = vpop.f32.mrf.mxu0
    %v723 = vadd.f32 %v178, %v722
    %724 = vmatmul.bf16.gmra.mxu0 %v206
    %v725 = vpop.f32.mrf.mxu0
    %v726 = vadd.f32 %v178, %v725
    %v727 = vpop.f32.mrf.mxu0
    %v728 = vadd.f32 %v178, %v727
    %729 = vmatmul.bf16.gmra.mxu0 %v207
    %v730 = vpop.f32.mrf.mxu0
    %v731 = vadd.f32 %v178, %v730
    %v732 = vpop.f32.mrf.mxu0
    %v733 = vadd.f32 %v178, %v732
    %734 = vdwg.mxu0
    %735 = vmatpush.bf16.msra.mxu0 %v467
    %736 = vmatpush.bf16.msra.mxu0 %v459
    %737 = vmatpush.bf16.msra.mxu0 %v451
    %738 = vmatpush.bf16.msra.mxu0 %v443
    %739 = vmatpush.bf16.msra.mxu0 %v435
    %740 = vmatpush.bf16.msra.mxu0 %v427
    %741 = vmatpush.bf16.msra.mxu0 %v419
    %742 = vmatpush.bf16.msra.mxu0 %v411
    %743 = vmatmul.bf16.gmra.mxu0 %v204
    %v744 = vpop.f32.mrf.mxu0
    %v745 = vadd.f32 %v179, %v744
    %v746 = vpop.f32.mrf.mxu0
    %v747 = vadd.f32 %v179, %v746
    %748 = vmatmul.bf16.gmra.mxu0 %v205
    %v749 = vpop.f32.mrf.mxu0
    %v750 = vadd.f32 %v179, %v749
    %v751 = vpop.f32.mrf.mxu0
    %v752 = vadd.f32 %v179, %v751
    %753 = vmatmul.bf16.gmra.mxu0 %v206
    %v754 = vpop.f32.mrf.mxu0
    %v755 = vadd.f32 %v179, %v754
    %v756 = vpop.f32.mrf.mxu0
    %v757 = vadd.f32 %v179, %v756
    %758 = vmatmul.bf16.gmra.mxu0 %v207
    %v759 = vpop.f32.mrf.mxu0
    %v760 = vadd.f32 %v179, %v759
    %v761 = vpop.f32.mrf.mxu0
    %v762 = vadd.f32 %v179, %v761
    %763 = vdwg.mxu0
    %v764 = vpack.c.bf16 %v571, %v542
    %v765 = vpack.c.bf16 %v629, %v600
    %v766 = vpack.c.bf16 %v687, %v658
    %v767 = vpack.c.bf16 %v745, %v716
    %v768 = vpack.c.bf16 %v573, %v544
    %v769 = vpack.c.bf16 %v631, %v602
    %v770 = vpack.c.bf16 %v689, %v660
    %v771 = vpack.c.bf16 %v747, %v718
    %v772 = vpack.c.bf16 %v576, %v547
    %v773 = vpack.c.bf16 %v634, %v605
    %v774 = vpack.c.bf16 %v692, %v663
    %v775 = vpack.c.bf16 %v750, %v721
    %v776 = vpack.c.bf16 %v578, %v549
    %v777 = vpack.c.bf16 %v636, %v607
    %v778 = vpack.c.bf16 %v694, %v665
    %v779 = vpack.c.bf16 %v752, %v723
    %v780 = vpack.c.bf16 %v581, %v552
    %v781 = vpack.c.bf16 %v639, %v610
    %v782 = vpack.c.bf16 %v697, %v668
    %v783 = vpack.c.bf16 %v755, %v726
    %v784 = vpack.c.bf16 %v583, %v554
    %v785 = vpack.c.bf16 %v641, %v612
    %v786 = vpack.c.bf16 %v699, %v670
    %v787 = vpack.c.bf16 %v757, %v728
    %v788 = vpack.c.bf16 %v586, %v557
    %v789 = vpack.c.bf16 %v644, %v615
    %v790 = vpack.c.bf16 %v702, %v673
    %v791 = vpack.c.bf16 %v760, %v731
    %v792 = vpack.c.bf16 %v588, %v559
    %v793 = vpack.c.bf16 %v646, %v617
    %v794 = vpack.c.bf16 %v704, %v675
    %v795 = vpack.c.bf16 %v762, %v733
    %796 = vst [vmem:[#allocation2] sm:$0xff] %v764
    %797 = vst [vmem:[#allocation2 + $0x8] sm:$0xff] %v765
    %798 = vst [vmem:[#allocation2 + $0x10] sm:$0xff] %v766
    %799 = vst [vmem:[#allocation2 + $0x18] sm:$0xff] %v767
    %800 = vst [vmem:[#allocation2 + $0x20] sm:$0xff] %v768
    %801 = vst [vmem:[#allocation2 + $0x28] sm:$0xff] %v769
    %802 = vst [vmem:[#allocation2 + $0x30] sm:$0xff] %v770
    %803 = vst [vmem:[#allocation2 + $0x38] sm:$0xff] %v771
    %804 = vst [vmem:[#allocation2 + $0x40] sm:$0xff] %v772
    %805 = vst [vmem:[#allocation2 + $0x48] sm:$0xff] %v773
    %806 = vst [vmem:[#allocation2 + $0x50] sm:$0xff] %v774
    %807 = vst [vmem:[#allocation2 + $0x58] sm:$0xff] %v775
    %808 = vst [vmem:[#allocation2 + $0x60] sm:$0xff] %v776
    %809 = vst [vmem:[#allocation2 + $0x68] sm:$0xff] %v777
    %810 = vst [vmem:[#allocation2 + $0x70] sm:$0xff] %v778
    %811 = vst [vmem:[#allocation2 + $0x78] sm:$0xff] %v779
    %812 = vst [vmem:[#allocation2 + $0x80] sm:$0xff] %v780
    %813 = vst [vmem:[#allocation2 + $0x88] sm:$0xff] %v781
    %814 = vst [vmem:[#allocation2 + $0x90] sm:$0xff] %v782
    %815 = vst [vmem:[#allocation2 + $0x98] sm:$0xff] %v783
    %816 = vst [vmem:[#allocation2 + $0xa0] sm:$0xff] %v784
    %817 = vst [vmem:[#allocation2 + $0xa8] sm:$0xff] %v785
    %818 = vst [vmem:[#allocation2 + $0xb0] sm:$0xff] %v786
    %819 = vst [vmem:[#allocation2 + $0xb8] sm:$0xff] %v787
    %820 = vst [vmem:[#allocation2 + $0xc0] sm:$0xff] %v788
    %821 = vst [vmem:[#allocation2 + $0xc8] sm:$0xff] %v789
    %822 = vst [vmem:[#allocation2 + $0xd0] sm:$0xff] %v790
    %823 = vst [vmem:[#allocation2 + $0xd8] sm:$0xff] %v791
    %824 = vst [vmem:[#allocation2 + $0xe0] sm:$0xff] %v792
    %825 = vst [vmem:[#allocation2 + $0xe8] sm:$0xff] %v793
    %826 = vst [vmem:[#allocation2 + $0xf0] sm:$0xff] %v794
    %827 = vst [vmem:[#allocation2 + $0xf8] sm:$0xff] %v795
    %v828 = vld [vmem:[%s1] sm:$0xff]
    %s829 = smul.u32 0, 8
    %v830 = vld [vmem:[#allocation3] sm:$0xff]
    %v831 = vld [vmem:[#allocation3 + $0x8] sm:$0xff]
    %v832 = vld [vmem:[#allocation4] sm:$0xff]
    %v833 = vld [vmem:[#allocation4 + $0x8] sm:$0xff]
    %s834 = smul.u32 0, 8
    %s835 = smul.addr %s834, 4
    %s836 = scalar_lea.vmem [#allocation2], %s835
    %v837 = vld [vmem:[%s836] sm:$0xff]
    %v838 = vld [vmem:[%s836 + $0x8] sm:$0xff]
    %v839 = vld [vmem:[%s836 + $0x10] sm:$0xff]
    %v840 = vld [vmem:[%s836 + $0x18] sm:$0xff]
    %v841 = vunpack.c.l.bf16 %v837
    %v842 = vunpack.c.h.bf16 %v837
    %v843 = vunpack.c.l.bf16 %v838
    %v844 = vunpack.c.h.bf16 %v838
    %v845 = vunpack.c.l.bf16 %v839
    %v846 = vunpack.c.h.bf16 %v839
    %v847 = vunpack.c.l.bf16 %v840
    %v848 = vunpack.c.h.bf16 %v840
    %v849 = vpack.c.bf16 %v830, %v830
    %v850 = vpack.c.bf16 %v831, %v831
    %v851 = vld [vmem:[#allocation10] sm:$0xff]
    %v852 = vld [vmem:[#allocation10 + $0x8] sm:$0xff]
    %v853 = vld [vmem:[#allocation10 + $0x10] sm:$0xff]
    %v854 = vld [vmem:[#allocation10 + $0x18] sm:$0xff]
    %v855 = vld [vmem:[#allocation10 + $0x20] sm:$0xff]
    %v856 = vld [vmem:[#allocation10 + $0x28] sm:$0xff]
    %v857 = vld [vmem:[#allocation10 + $0x30] sm:$0xff]
    %v858 = vld [vmem:[#allocation10 + $0x38] sm:$0xff]
    %v859 = vld [vmem:[#allocation10 + $0x40] sm:$0xff]
    %v860 = vld [vmem:[#allocation10 + $0x48] sm:$0xff]
    %v861 = vld [vmem:[#allocation10 + $0x50] sm:$0xff]
    %v862 = vld [vmem:[#allocation10 + $0x58] sm:$0xff]
    %v863 = vld [vmem:[#allocation10 + $0x60] sm:$0xff]
    %v864 = vld [vmem:[#allocation10 + $0x68] sm:$0xff]
    %v865 = vld [vmem:[#allocation10 + $0x70] sm:$0xff]
    %v866 = vld [vmem:[#allocation10 + $0x78] sm:$0xff]
    %v867 = vld [vmem:[#allocation10 + $0x80] sm:$0xff]
    %v868 = vld [vmem:[#allocation10 + $0x88] sm:$0xff]
    %v869 = vld [vmem:[#allocation10 + $0x90] sm:$0xff]
    %v870 = vld [vmem:[#allocation10 + $0x98] sm:$0xff]
    %v871 = vld [vmem:[#allocation10 + $0xa0] sm:$0xff]
    %v872 = vld [vmem:[#allocation10 + $0xa8] sm:$0xff]
    %v873 = vld [vmem:[#allocation10 + $0xb0] sm:$0xff]
    %v874 = vld [vmem:[#allocation10 + $0xb8] sm:$0xff]
    %v875 = vld [vmem:[#allocation10 + $0xc0] sm:$0xff]
    %v876 = vld [vmem:[#allocation10 + $0xc8] sm:$0xff]
    %v877 = vld [vmem:[#allocation10 + $0xd0] sm:$0xff]
    %v878 = vld [vmem:[#allocation10 + $0xd8] sm:$0xff]
    %v879 = vld [vmem:[#allocation10 + $0xe0] sm:$0xff]
    %v880 = vld [vmem:[#allocation10 + $0xe8] sm:$0xff]
    %v881 = vld [vmem:[#allocation10 + $0xf0] sm:$0xff]
    %v882 = vld [vmem:[#allocation10 + $0xf8] sm:$0xff]
    %v883 = vld [vmem:[#allocation10 + $0x100] sm:$0xff]
    %v884 = vld [vmem:[#allocation10 + $0x108] sm:$0xff]
    %v885 = vld [vmem:[#allocation10 + $0x110] sm:$0xff]
    %v886 = vld [vmem:[#allocation10 + $0x118] sm:$0xff]
    %v887 = vld [vmem:[#allocation10 + $0x120] sm:$0xff]
    %v888 = vld [vmem:[#allocation10 + $0x128] sm:$0xff]
    %v889 = vld [vmem:[#allocation10 + $0x130] sm:$0xff]
    %v890 = vld [vmem:[#allocation10 + $0x138] sm:$0xff]
    %v891 = vld [vmem:[#allocation10 + $0x140] sm:$0xff]
    %v892 = vld [vmem:[#allocation10 + $0x148] sm:$0xff]
    %v893 = vld [vmem:[#allocation10 + $0x150] sm:$0xff]
    %v894 = vld [vmem:[#allocation10 + $0x158] sm:$0xff]
    %v895 = vld [vmem:[#allocation10 + $0x160] sm:$0xff]
    %v896 = vld [vmem:[#allocation10 + $0x168] sm:$0xff]
    %v897 = vld [vmem:[#allocation10 + $0x170] sm:$0xff]
    %v898 = vld [vmem:[#allocation10 + $0x178] sm:$0xff]
    %v899 = vld [vmem:[#allocation10 + $0x180] sm:$0xff]
    %v900 = vld [vmem:[#allocation10 + $0x188] sm:$0xff]
    %v901 = vld [vmem:[#allocation10 + $0x190] sm:$0xff]
    %v902 = vld [vmem:[#allocation10 + $0x198] sm:$0xff]
    %v903 = vld [vmem:[#allocation10 + $0x1a0] sm:$0xff]
    %v904 = vld [vmem:[#allocation10 + $0x1a8] sm:$0xff]
    %v905 = vld [vmem:[#allocation10 + $0x1b0] sm:$0xff]
    %v906 = vld [vmem:[#allocation10 + $0x1b8] sm:$0xff]
    %v907 = vld [vmem:[#allocation10 + $0x1c0] sm:$0xff]
    %v908 = vld [vmem:[#allocation10 + $0x1c8] sm:$0xff]
    %v909 = vld [vmem:[#allocation10 + $0x1d0] sm:$0xff]
    %v910 = vld [vmem:[#allocation10 + $0x1d8] sm:$0xff]
    %v911 = vld [vmem:[#allocation10 + $0x1e0] sm:$0xff]
    %v912 = vld [vmem:[#allocation10 + $0x1e8] sm:$0xff]
    %v913 = vld [vmem:[#allocation10 + $0x1f0] sm:$0xff]
    %v914 = vld [vmem:[#allocation10 + $0x1f8] sm:$0xff]
    %v915 = vld [vmem:[#allocation10 + $0x200] sm:$0xff]
    %v916 = vld [vmem:[#allocation10 + $0x208] sm:$0xff]
    %v917 = vld [vmem:[#allocation10 + $0x210] sm:$0xff]
    %v918 = vld [vmem:[#allocation10 + $0x218] sm:$0xff]
    %v919 = vld [vmem:[#allocation10 + $0x220] sm:$0xff]
    %v920 = vld [vmem:[#allocation10 + $0x228] sm:$0xff]
    %v921 = vld [vmem:[#allocation10 + $0x230] sm:$0xff]
    %v922 = vld [vmem:[#allocation10 + $0x238] sm:$0xff]
    %v923 = vld [vmem:[#allocation10 + $0x240] sm:$0xff]
    %v924 = vld [vmem:[#allocation10 + $0x248] sm:$0xff]
    %v925 = vld [vmem:[#allocation10 + $0x250] sm:$0xff]
    %v926 = vld [vmem:[#allocation10 + $0x258] sm:$0xff]
    %v927 = vld [vmem:[#allocation10 + $0x260] sm:$0xff]
    %v928 = vld [vmem:[#allocation10 + $0x268] sm:$0xff]
    %v929 = vld [vmem:[#allocation10 + $0x270] sm:$0xff]
    %v930 = vld [vmem:[#allocation10 + $0x278] sm:$0xff]
    %v931 = vld [vmem:[#allocation10 + $0x280] sm:$0xff]
    %v932 = vld [vmem:[#allocation10 + $0x288] sm:$0xff]
    %v933 = vld [vmem:[#allocation10 + $0x290] sm:$0xff]
    %v934 = vld [vmem:[#allocation10 + $0x298] sm:$0xff]
    %v935 = vld [vmem:[#allocation10 + $0x2a0] sm:$0xff]
    %v936 = vld [vmem:[#allocation10 + $0x2a8] sm:$0xff]
    %v937 = vld [vmem:[#allocation10 + $0x2b0] sm:$0xff]
    %v938 = vld [vmem:[#allocation10 + $0x2b8] sm:$0xff]
    %v939 = vld [vmem:[#allocation10 + $0x2c0] sm:$0xff]
    %v940 = vld [vmem:[#allocation10 + $0x2c8] sm:$0xff]
    %v941 = vld [vmem:[#allocation10 + $0x2d0] sm:$0xff]
    %v942 = vld [vmem:[#allocation10 + $0x2d8] sm:$0xff]
    %v943 = vld [vmem:[#allocation10 + $0x2e0] sm:$0xff]
    %v944 = vld [vmem:[#allocation10 + $0x2e8] sm:$0xff]
    %v945 = vld [vmem:[#allocation10 + $0x2f0] sm:$0xff]
    %v946 = vld [vmem:[#allocation10 + $0x2f8] sm:$0xff]
    %v947 = vld [vmem:[#allocation10 + $0x300] sm:$0xff]
    %v948 = vld [vmem:[#allocation10 + $0x308] sm:$0xff]
    %v949 = vld [vmem:[#allocation10 + $0x310] sm:$0xff]
    %v950 = vld [vmem:[#allocation10 + $0x318] sm:$0xff]
    %v951 = vld [vmem:[#allocation10 + $0x320] sm:$0xff]
    %v952 = vld [vmem:[#allocation10 + $0x328] sm:$0xff]
    %v953 = vld [vmem:[#allocation10 + $0x330] sm:$0xff]
    %v954 = vld [vmem:[#allocation10 + $0x338] sm:$0xff]
    %v955 = vld [vmem:[#allocation10 + $0x340] sm:$0xff]
    %v956 = vld [vmem:[#allocation10 + $0x348] sm:$0xff]
    %v957 = vld [vmem:[#allocation10 + $0x350] sm:$0xff]
    %v958 = vld [vmem:[#allocation10 + $0x358] sm:$0xff]
    %v959 = vld [vmem:[#allocation10 + $0x360] sm:$0xff]
    %v960 = vld [vmem:[#allocation10 + $0x368] sm:$0xff]
    %v961 = vld [vmem:[#allocation10 + $0x370] sm:$0xff]
    %v962 = vld [vmem:[#allocation10 + $0x378] sm:$0xff]
    %v963 = vld [vmem:[#allocation10 + $0x380] sm:$0xff]
    %v964 = vld [vmem:[#allocation10 + $0x388] sm:$0xff]
    %v965 = vld [vmem:[#allocation10 + $0x390] sm:$0xff]
    %v966 = vld [vmem:[#allocation10 + $0x398] sm:$0xff]
    %v967 = vld [vmem:[#allocation10 + $0x3a0] sm:$0xff]
    %v968 = vld [vmem:[#allocation10 + $0x3a8] sm:$0xff]
    %v969 = vld [vmem:[#allocation10 + $0x3b0] sm:$0xff]
    %v970 = vld [vmem:[#allocation10 + $0x3b8] sm:$0xff]
    %v971 = vld [vmem:[#allocation10 + $0x3c0] sm:$0xff]
    %v972 = vld [vmem:[#allocation10 + $0x3c8] sm:$0xff]
    %v973 = vld [vmem:[#allocation10 + $0x3d0] sm:$0xff]
    %v974 = vld [vmem:[#allocation10 + $0x3d8] sm:$0xff]
    %v975 = vld [vmem:[#allocation10 + $0x3e0] sm:$0xff]
    %v976 = vld [vmem:[#allocation10 + $0x3e8] sm:$0xff]
    %v977 = vld [vmem:[#allocation10 + $0x3f0] sm:$0xff]
    %v978 = vld [vmem:[#allocation10 + $0x3f8] sm:$0xff]
    %v1107 = vunpack.c.l.b16 %v851
    %v1108 = vunpack.c.h.b16 %v851
    %v1109 = vunpack.c.l.b16 %v852
    %v1110 = vunpack.c.h.b16 %v852
    %v1111 = vunpack.c.l.b16 %v853
    %v1112 = vunpack.c.h.b16 %v853
    %v1113 = vunpack.c.l.b16 %v854
    %v1114 = vunpack.c.h.b16 %v854
    %v1115 = vunpack.c.l.b16 %v855
    %v1116 = vunpack.c.h.b16 %v855
    %v1117 = vunpack.c.l.b16 %v856
    %v1118 = vunpack.c.h.b16 %v856
    %v1119 = vunpack.c.l.b16 %v857
    %v1120 = vunpack.c.h.b16 %v857
    %v1121 = vunpack.c.l.b16 %v858
    %v1122 = vunpack.c.h.b16 %v858
    %v1123 = vunpack.c.l.b16 %v859
    %v1124 = vunpack.c.h.b16 %v859
    %v1125 = vunpack.c.l.b16 %v860
    %v1126 = vunpack.c.h.b16 %v860
    %v1127 = vunpack.c.l.b16 %v861
    %v1128 = vunpack.c.h.b16 %v861
    %v1129 = vunpack.c.l.b16 %v862
    %v1130 = vunpack.c.h.b16 %v862
    %v1131 = vunpack.c.l.b16 %v863
    %v1132 = vunpack.c.h.b16 %v863
    %v1133 = vunpack.c.l.b16 %v864
    %v1134 = vunpack.c.h.b16 %v864
    %v1135 = vunpack.c.l.b16 %v865
    %v1136 = vunpack.c.h.b16 %v865
    %v1137 = vunpack.c.l.b16 %v866
    %v1138 = vunpack.c.h.b16 %v866
    %v1139 = vunpack.c.l.b16 %v867
    %v1140 = vunpack.c.h.b16 %v867
    %v1141 = vunpack.c.l.b16 %v868
    %v1142 = vunpack.c.h.b16 %v868
    %v1143 = vunpack.c.l.b16 %v869
    %v1144 = vunpack.c.h.b16 %v869
    %v1145 = vunpack.c.l.b16 %v870
    %v1146 = vunpack.c.h.b16 %v870
    %v1147 = vunpack.c.l.b16 %v871
    %v1148 = vunpack.c.h.b16 %v871
    %v1149 = vunpack.c.l.b16 %v872
    %v1150 = vunpack.c.h.b16 %v872
    %v1151 = vunpack.c.l.b16 %v873
    %v1152 = vunpack.c.h.b16 %v873
    %v1153 = vunpack.c.l.b16 %v874
    %v1154 = vunpack.c.h.b16 %v874
    %v1155 = vunpack.c.l.b16 %v875
    %v1156 = vunpack.c.h.b16 %v875
    %v1157 = vunpack.c.l.b16 %v876
    %v1158 = vunpack.c.h.b16 %v876
    %v1159 = vunpack.c.l.b16 %v877
    %v1160 = vunpack.c.h.b16 %v877
    %v1161 = vunpack.c.l.b16 %v878
    %v1162 = vunpack.c.h.b16 %v878
    %v1163 = vunpack.c.l.b16 %v879
    %v1164 = vunpack.c.h.b16 %v879
    %v1165 = vunpack.c.l.b16 %v880
    %v1166 = vunpack.c.h.b16 %v880
    %v1167 = vunpack.c.l.b16 %v881
    %v1168 = vunpack.c.h.b16 %v881
    %v1169 = vunpack.c.l.b16 %v882
    %v1170 = vunpack.c.h.b16 %v882
    %v1171 = vunpack.c.l.b16 %v883
    %v1172 = vunpack.c.h.b16 %v883
    %v1173 = vunpack.c.l.b16 %v884
    %v1174 = vunpack.c.h.b16 %v884
    %v1175 = vunpack.c.l.b16 %v885
    %v1176 = vunpack.c.h.b16 %v885
    %v1177 = vunpack.c.l.b16 %v886
    %v1178 = vunpack.c.h.b16 %v886
    %v1179 = vunpack.c.l.b16 %v887
    %v1180 = vunpack.c.h.b16 %v887
    %v1181 = vunpack.c.l.b16 %v888
    %v1182 = vunpack.c.h.b16 %v888
    %v1183 = vunpack.c.l.b16 %v889
    %v1184 = vunpack.c.h.b16 %v889
    %v1185 = vunpack.c.l.b16 %v890
    %v1186 = vunpack.c.h.b16 %v890
    %v1187 = vunpack.c.l.b16 %v891
    %v1188 = vunpack.c.h.b16 %v891
    %v1189 = vunpack.c.l.b16 %v892
    %v1190 = vunpack.c.h.b16 %v892
    %v1191 = vunpack.c.l.b16 %v893
    %v1192 = vunpack.c.h.b16 %v893
    %v1193 = vunpack.c.l.b16 %v894
    %v1194 = vunpack.c.h.b16 %v894
    %v1195 = vunpack.c.l.b16 %v895
    %v1196 = vunpack.c.h.b16 %v895
    %v1197 = vunpack.c.l.b16 %v896
    %v1198 = vunpack.c.h.b16 %v896
    %v1199 = vunpack.c.l.b16 %v897
    %v1200 = vunpack.c.h.b16 %v897
    %v1201 = vunpack.c.l.b16 %v898
    %v1202 = vunpack.c.h.b16 %v898
    %v1203 = vunpack.c.l.b16 %v899
    %v1204 = vunpack.c.h.b16 %v899
    %v1205 = vunpack.c.l.b16 %v900
    %v1206 = vunpack.c.h.b16 %v900
    %v1207 = vunpack.c.l.b16 %v901
    %v1208 = vunpack.c.h.b16 %v901
    %v1209 = vunpack.c.l.b16 %v902
    %v1210 = vunpack.c.h.b16 %v902
    %v1211 = vunpack.c.l.b16 %v903
    %v1212 = vunpack.c.h.b16 %v903
    %v1213 = vunpack.c.l.b16 %v904
    %v1214 = vunpack.c.h.b16 %v904
    %v1215 = vunpack.c.l.b16 %v905
    %v1216 = vunpack.c.h.b16 %v905
    %v1217 = vunpack.c.l.b16 %v906
    %v1218 = vunpack.c.h.b16 %v906
    %v1219 = vunpack.c.l.b16 %v907
    %v1220 = vunpack.c.h.b16 %v907
    %v1221 = vunpack.c.l.b16 %v908
    %v1222 = vunpack.c.h.b16 %v908
    %v1223 = vunpack.c.l.b16 %v909
    %v1224 = vunpack.c.h.b16 %v909
    %v1225 = vunpack.c.l.b16 %v910
    %v1226 = vunpack.c.h.b16 %v910
    %v1227 = vunpack.c.l.b16 %v911
    %v1228 = vunpack.c.h.b16 %v911
    %v1229 = vunpack.c.l.b16 %v912
    %v1230 = vunpack.c.h.b16 %v912
    %v1231 = vunpack.c.l.b16 %v913
    %v1232 = vunpack.c.h.b16 %v913
    %v1233 = vunpack.c.l.b16 %v914
    %v1234 = vunpack.c.h.b16 %v914
    %v1235 = vunpack.c.l.b16 %v915
    %v1236 = vunpack.c.h.b16 %v915
    %v1237 = vunpack.c.l.b16 %v916
    %v1238 = vunpack.c.h.b16 %v916
    %v1239 = vunpack.c.l.b16 %v917
    %v1240 = vunpack.c.h.b16 %v917
    %v1241 = vunpack.c.l.b16 %v918
    %v1242 = vunpack.c.h.b16 %v918
    %v1243 = vunpack.c.l.b16 %v919
    %v1244 = vunpack.c.h.b16 %v919
    %v1245 = vunpack.c.l.b16 %v920
    %v1246 = vunpack.c.h.b16 %v920
    %v1247 = vunpack.c.l.b16 %v921
    %v1248 = vunpack.c.h.b16 %v921
    %v1249 = vunpack.c.l.b16 %v922
    %v1250 = vunpack.c.h.b16 %v922
    %v1251 = vunpack.c.l.b16 %v923
    %v1252 = vunpack.c.h.b16 %v923
    %v1253 = vunpack.c.l.b16 %v924
    %v1254 = vunpack.c.h.b16 %v924
    %v1255 = vunpack.c.l.b16 %v925
    %v1256 = vunpack.c.h.b16 %v925
    %v1257 = vunpack.c.l.b16 %v926
    %v1258 = vunpack.c.h.b16 %v926
    %v1259 = vunpack.c.l.b16 %v927
    %v1260 = vunpack.c.h.b16 %v927
    %v1261 = vunpack.c.l.b16 %v928
    %v1262 = vunpack.c.h.b16 %v928
    %v1263 = vunpack.c.l.b16 %v929
    %v1264 = vunpack.c.h.b16 %v929
    %v1265 = vunpack.c.l.b16 %v930
    %v1266 = vunpack.c.h.b16 %v930
    %v1267 = vunpack.c.l.b16 %v931
    %v1268 = vunpack.c.h.b16 %v931
    %v1269 = vunpack.c.l.b16 %v932
    %v1270 = vunpack.c.h.b16 %v932
    %v1271 = vunpack.c.l.b16 %v933
    %v1272 = vunpack.c.h.b16 %v933
    %v1273 = vunpack.c.l.b16 %v934
    %v1274 = vunpack.c.h.b16 %v934
    %v1275 = vunpack.c.l.b16 %v935
    %v1276 = vunpack.c.h.b16 %v935
    %v1277 = vunpack.c.l.b16 %v936
    %v1278 = vunpack.c.h.b16 %v936
    %v1279 = vunpack.c.l.b16 %v937
    %v1280 = vunpack.c.h.b16 %v937
    %v1281 = vunpack.c.l.b16 %v938
    %v1282 = vunpack.c.h.b16 %v938
    %v1283 = vunpack.c.l.b16 %v939
    %v1284 = vunpack.c.h.b16 %v939
    %v1285 = vunpack.c.l.b16 %v940
    %v1286 = vunpack.c.h.b16 %v940
    %v1287 = vunpack.c.l.b16 %v941
    %v1288 = vunpack.c.h.b16 %v941
    %v1289 = vunpack.c.l.b16 %v942
    %v1290 = vunpack.c.h.b16 %v942
    %v1291 = vunpack.c.l.b16 %v943
    %v1292 = vunpack.c.h.b16 %v943
    %v1293 = vunpack.c.l.b16 %v944
    %v1294 = vunpack.c.h.b16 %v944
    %v1295 = vunpack.c.l.b16 %v945
    %v1296 = vunpack.c.h.b16 %v945
    %v1297 = vunpack.c.l.b16 %v946
    %v1298 = vunpack.c.h.b16 %v946
    %v1299 = vunpack.c.l.b16 %v947
    %v1300 = vunpack.c.h.b16 %v947
    %v1301 = vunpack.c.l.b16 %v948
    %v1302 = vunpack.c.h.b16 %v948
    %v1303 = vunpack.c.l.b16 %v949
    %v1304 = vunpack.c.h.b16 %v949
    %v1305 = vunpack.c.l.b16 %v950
    %v1306 = vunpack.c.h.b16 %v950
    %v1307 = vunpack.c.l.b16 %v951
    %v1308 = vunpack.c.h.b16 %v951
    %v1309 = vunpack.c.l.b16 %v952
    %v1310 = vunpack.c.h.b16 %v952
    %v1311 = vunpack.c.l.b16 %v953
    %v1312 = vunpack.c.h.b16 %v953
    %v1313 = vunpack.c.l.b16 %v954
    %v1314 = vunpack.c.h.b16 %v954
    %v1315 = vunpack.c.l.b16 %v955
    %v1316 = vunpack.c.h.b16 %v955
    %v1317 = vunpack.c.l.b16 %v956
    %v1318 = vunpack.c.h.b16 %v956
    %v1319 = vunpack.c.l.b16 %v957
    %v1320 = vunpack.c.h.b16 %v957
    %v1321 = vunpack.c.l.b16 %v958
    %v1322 = vunpack.c.h.b16 %v958
    %v1323 = vunpack.c.l.b16 %v959
    %v1324 = vunpack.c.h.b16 %v959
    %v1325 = vunpack.c.l.b16 %v960
    %v1326 = vunpack.c.h.b16 %v960
    %v1327 = vunpack.c.l.b16 %v961
    %v1328 = vunpack.c.h.b16 %v961
    %v1329 = vunpack.c.l.b16 %v962
    %v1330 = vunpack.c.h.b16 %v962
    %v1331 = vunpack.c.l.b16 %v963
    %v1332 = vunpack.c.h.b16 %v963
    %v1333 = vunpack.c.l.b16 %v964
    %v1334 = vunpack.c.h.b16 %v964
    %v1335 = vunpack.c.l.b16 %v965
    %v1336 = vunpack.c.h.b16 %v965
    %v1337 = vunpack.c.l.b16 %v966
    %v1338 = vunpack.c.h.b16 %v966
    %v1339 = vunpack.c.l.b16 %v967
    %v1340 = vunpack.c.h.b16 %v967
    %v1341 = vunpack.c.l.b16 %v968
    %v1342 = vunpack.c.h.b16 %v968
    %v1343 = vunpack.c.l.b16 %v969
    %v1344 = vunpack.c.h.b16 %v969
    %v1345 = vunpack.c.l.b16 %v970
    %v1346 = vunpack.c.h.b16 %v970
    %v1347 = vunpack.c.l.b16 %v971
    %v1348 = vunpack.c.h.b16 %v971
    %v1349 = vunpack.c.l.b16 %v972
    %v1350 = vunpack.c.h.b16 %v972
    %v1351 = vunpack.c.l.b16 %v973
    %v1352 = vunpack.c.h.b16 %v973
    %v1353 = vunpack.c.l.b16 %v974
    %v1354 = vunpack.c.h.b16 %v974
    %v1355 = vunpack.c.l.b16 %v975
    %v1356 = vunpack.c.h.b16 %v975
    %v1357 = vunpack.c.l.b16 %v976
    %v1358 = vunpack.c.h.b16 %v976
    %v1359 = vunpack.c.l.b16 %v977
    %v1360 = vunpack.c.h.b16 %v977
    %v1361 = vunpack.c.l.b16 %v978
    %v1362 = vunpack.c.h.b16 %v978
    %v1363 = vpack.c.b16 %v1115, %v1107
    %v1364 = vpack.c.b16 %v1116, %v1108
    %v1365 = vpack.c.b16 %v1117, %v1109
    %v1366 = vpack.c.b16 %v1118, %v1110
    %v1367 = vpack.c.b16 %v1119, %v1111
    %v1368 = vpack.c.b16 %v1120, %v1112
    %v1369 = vpack.c.b16 %v1121, %v1113
    %v1370 = vpack.c.b16 %v1122, %v1114
    %v1371 = vpack.c.b16 %v1131, %v1123
    %v1372 = vpack.c.b16 %v1132, %v1124
    %v1373 = vpack.c.b16 %v1133, %v1125
    %v1374 = vpack.c.b16 %v1134, %v1126
    %v1375 = vpack.c.b16 %v1135, %v1127
    %v1376 = vpack.c.b16 %v1136, %v1128
    %v1377 = vpack.c.b16 %v1137, %v1129
    %v1378 = vpack.c.b16 %v1138, %v1130
    %v1379 = vpack.c.b16 %v1147, %v1139
    %v1380 = vpack.c.b16 %v1148, %v1140
    %v1381 = vpack.c.b16 %v1149, %v1141
    %v1382 = vpack.c.b16 %v1150, %v1142
    %v1383 = vpack.c.b16 %v1151, %v1143
    %v1384 = vpack.c.b16 %v1152, %v1144
    %v1385 = vpack.c.b16 %v1153, %v1145
    %v1386 = vpack.c.b16 %v1154, %v1146
    %v1387 = vpack.c.b16 %v1163, %v1155
    %v1388 = vpack.c.b16 %v1164, %v1156
    %v1389 = vpack.c.b16 %v1165, %v1157
    %v1390 = vpack.c.b16 %v1166, %v1158
    %v1391 = vpack.c.b16 %v1167, %v1159
    %v1392 = vpack.c.b16 %v1168, %v1160
    %v1393 = vpack.c.b16 %v1169, %v1161
    %v1394 = vpack.c.b16 %v1170, %v1162
    %v1395 = vpack.c.b16 %v1179, %v1171
    %v1396 = vpack.c.b16 %v1180, %v1172
    %v1397 = vpack.c.b16 %v1181, %v1173
    %v1398 = vpack.c.b16 %v1182, %v1174
    %v1399 = vpack.c.b16 %v1183, %v1175
    %v1400 = vpack.c.b16 %v1184, %v1176
    %v1401 = vpack.c.b16 %v1185, %v1177
    %v1402 = vpack.c.b16 %v1186, %v1178
    %v1403 = vpack.c.b16 %v1195, %v1187
    %v1404 = vpack.c.b16 %v1196, %v1188
    %v1405 = vpack.c.b16 %v1197, %v1189
    %v1406 = vpack.c.b16 %v1198, %v1190
    %v1407 = vpack.c.b16 %v1199, %v1191
    %v1408 = vpack.c.b16 %v1200, %v1192
    %v1409 = vpack.c.b16 %v1201, %v1193
    %v1410 = vpack.c.b16 %v1202, %v1194
    %v1411 = vpack.c.b16 %v1211, %v1203
    %v1412 = vpack.c.b16 %v1212, %v1204
    %v1413 = vpack.c.b16 %v1213, %v1205
    %v1414 = vpack.c.b16 %v1214, %v1206
    %v1415 = vpack.c.b16 %v1215, %v1207
    %v1416 = vpack.c.b16 %v1216, %v1208
    %v1417 = vpack.c.b16 %v1217, %v1209
    %v1418 = vpack.c.b16 %v1218, %v1210
    %v1419 = vpack.c.b16 %v1227, %v1219
    %v1420 = vpack.c.b16 %v1228, %v1220
    %v1421 = vpack.c.b16 %v1229, %v1221
    %v1422 = vpack.c.b16 %v1230, %v1222
    %v1423 = vpack.c.b16 %v1231, %v1223
    %v1424 = vpack.c.b16 %v1232, %v1224
    %v1425 = vpack.c.b16 %v1233, %v1225
    %v1426 = vpack.c.b16 %v1234, %v1226
    %v1427 = vpack.c.b16 %v1243, %v1235
    %v1428 = vpack.c.b16 %v1244, %v1236
    %v1429 = vpack.c.b16 %v1245, %v1237
    %v1430 = vpack.c.b16 %v1246, %v1238
    %v1431 = vpack.c.b16 %v1247, %v1239
    %v1432 = vpack.c.b16 %v1248, %v1240
    %v1433 = vpack.c.b16 %v1249, %v1241
    %v1434 = vpack.c.b16 %v1250, %v1242
    %v1435 = vpack.c.b16 %v1259, %v1251
    %v1436 = vpack.c.b16 %v1260, %v1252
    %v1437 = vpack.c.b16 %v1261, %v1253
    %v1438 = vpack.c.b16 %v1262, %v1254
    %v1439 = vpack.c.b16 %v1263, %v1255
    %v1440 = vpack.c.b16 %v1264, %v1256
    %v1441 = vpack.c.b16 %v1265, %v1257
    %v1442 = vpack.c.b16 %v1266, %v1258
    %v1443 = vpack.c.b16 %v1275, %v1267
    %v1444 = vpack.c.b16 %v1276, %v1268
    %v1445 = vpack.c.b16 %v1277, %v1269
    %v1446 = vpack.c.b16 %v1278, %v1270
    %v1447 = vpack.c.b16 %v1279, %v1271
    %v1448 = vpack.c.b16 %v1280, %v1272
    %v1449 = vpack.c.b16 %v1281, %v1273
    %v1450 = vpack.c.b16 %v1282, %v1274
    %v1451 = vpack.c.b16 %v1291, %v1283
    %v1452 = vpack.c.b16 %v1292, %v1284
    %v1453 = vpack.c.b16 %v1293, %v1285
    %v1454 = vpack.c.b16 %v1294, %v1286
    %v1455 = vpack.c.b16 %v1295, %v1287
    %v1456 = vpack.c.b16 %v1296, %v1288
    %v1457 = vpack.c.b16 %v1297, %v1289
    %v1458 = vpack.c.b16 %v1298, %v1290
    %v1459 = vpack.c.b16 %v1307, %v1299
    %v1460 = vpack.c.b16 %v1308, %v1300
    %v1461 = vpack.c.b16 %v1309, %v1301
    %v1462 = vpack.c.b16 %v1310, %v1302
    %v1463 = vpack.c.b16 %v1311, %v1303
    %v1464 = vpack.c.b16 %v1312, %v1304
    %v1465 = vpack.c.b16 %v1313, %v1305
    %v1466 = vpack.c.b16 %v1314, %v1306
    %v1467 = vpack.c.b16 %v1323, %v1315
    %v1468 = vpack.c.b16 %v1324, %v1316
    %v1469 = vpack.c.b16 %v1325, %v1317
    %v1470 = vpack.c.b16 %v1326, %v1318
    %v1471 = vpack.c.b16 %v1327, %v1319
    %v1472 = vpack.c.b16 %v1328, %v1320
    %v1473 = vpack.c.b16 %v1329, %v1321
    %v1474 = vpack.c.b16 %v1330, %v1322
    %v1475 = vpack.c.b16 %v1339, %v1331
    %v1476 = vpack.c.b16 %v1340, %v1332
    %v1477 = vpack.c.b16 %v1341, %v1333
    %v1478 = vpack.c.b16 %v1342, %v1334
    %v1479 = vpack.c.b16 %v1343, %v1335
    %v1480 = vpack.c.b16 %v1344, %v1336
    %v1481 = vpack.c.b16 %v1345, %v1337
    %v1482 = vpack.c.b16 %v1346, %v1338
    %v1483 = vpack.c.b16 %v1355, %v1347
    %v1484 = vpack.c.b16 %v1356, %v1348
    %v1485 = vpack.c.b16 %v1357, %v1349
    %v1486 = vpack.c.b16 %v1358, %v1350
    %v1487 = vpack.c.b16 %v1359, %v1351
    %v1488 = vpack.c.b16 %v1360, %v1352
    %v1489 = vpack.c.b16 %v1361, %v1353
    %v1490 = vpack.c.b16 %v1362, %v1354
    %1619 = vmatpush.bf16.msra.mxu0 %v1419
    %1620 = vmatpush.bf16.msra.mxu0 %v1411
    %1621 = vmatpush.bf16.msra.mxu0 %v1403
    %1622 = vmatpush.bf16.msra.mxu0 %v1395
    %1623 = vmatpush.bf16.msra.mxu0 %v1387
    %1624 = vmatpush.bf16.msra.mxu0 %v1379
    %1625 = vmatpush.bf16.msra.mxu0 %v1371
    %1626 = vmatpush.bf16.msra.mxu0 %v1363
    %1627 = vmatmul.bf16.gmra.mxu0 %v849
    %v1628 = vpop.f32.mrf.mxu0
    %v1629 = vadd.f32 0.0, %v1628
    %v1630 = vpop.f32.mrf.mxu0
    %1631 = vdwg.mxu0
    %1632 = vmatpush.bf16.msra.mxu0 %v1483
    %1633 = vmatpush.bf16.msra.mxu0 %v1475
    %1634 = vmatpush.bf16.msra.mxu0 %v1467
    %1635 = vmatpush.bf16.msra.mxu0 %v1459
    %1636 = vmatpush.bf16.msra.mxu0 %v1451
    %1637 = vmatpush.bf16.msra.mxu0 %v1443
    %1638 = vmatpush.bf16.msra.mxu0 %v1435
    %1639 = vmatpush.bf16.msra.mxu0 %v1427
    %1640 = vmatmul.bf16.gmra.mxu0 %v850
    %v1641 = vpop.f32.mrf.mxu0
    %v1642 = vadd.f32 %v1629, %v1641
    %v1643 = vpop.f32.mrf.mxu0
    %1644 = vdwg.mxu0
    %1645 = vmatpush.bf16.msra.mxu0 %v1420
    %1646 = vmatpush.bf16.msra.mxu0 %v1412
    %1647 = vmatpush.bf16.msra.mxu0 %v1404
    %1648 = vmatpush.bf16.msra.mxu0 %v1396
    %1649 = vmatpush.bf16.msra.mxu0 %v1388
    %1650 = vmatpush.bf16.msra.mxu0 %v1380
    %1651 = vmatpush.bf16.msra.mxu0 %v1372
    %1652 = vmatpush.bf16.msra.mxu0 %v1364
    %1653 = vmatmul.bf16.gmra.mxu0 %v849
    %v1654 = vpop.f32.mrf.mxu0
    %v1655 = vadd.f32 0.0, %v1654
    %v1656 = vpop.f32.mrf.mxu0
    %1657 = vdwg.mxu0
    %1658 = vmatpush.bf16.msra.mxu0 %v1484
    %1659 = vmatpush.bf16.msra.mxu0 %v1476
    %1660 = vmatpush.bf16.msra.mxu0 %v1468
    %1661 = vmatpush.bf16.msra.mxu0 %v1460
    %1662 = vmatpush.bf16.msra.mxu0 %v1452
    %1663 = vmatpush.bf16.msra.mxu0 %v1444
    %1664 = vmatpush.bf16.msra.mxu0 %v1436
    %1665 = vmatpush.bf16.msra.mxu0 %v1428
    %1666 = vmatmul.bf16.gmra.mxu0 %v850
    %v1667 = vpop.f32.mrf.mxu0
    %v1668 = vadd.f32 %v1655, %v1667
    %v1669 = vpop.f32.mrf.mxu0
    %1670 = vdwg.mxu0
    %1671 = vmatpush.bf16.msra.mxu0 %v1421
    %1672 = vmatpush.bf16.msra.mxu0 %v1413
    %1673 = vmatpush.bf16.msra.mxu0 %v1405
    %1674 = vmatpush.bf16.msra.mxu0 %v1397
    %1675 = vmatpush.bf16.msra.mxu0 %v1389
    %1676 = vmatpush.bf16.msra.mxu0 %v1381
    %1677 = vmatpush.bf16.msra.mxu0 %v1373
    %1678 = vmatpush.bf16.msra.mxu0 %v1365
    %1679 = vmatmul.bf16.gmra.mxu0 %v849
    %v1680 = vpop.f32.mrf.mxu0
    %v1681 = vadd.f32 0.0, %v1680
    %v1682 = vpop.f32.mrf.mxu0
    %1683 = vdwg.mxu0
    %1684 = vmatpush.bf16.msra.mxu0 %v1485
    %1685 = vmatpush.bf16.msra.mxu0 %v1477
    %1686 = vmatpush.bf16.msra.mxu0 %v1469
    %1687 = vmatpush.bf16.msra.mxu0 %v1461
    %1688 = vmatpush.bf16.msra.mxu0 %v1453
    %1689 = vmatpush.bf16.msra.mxu0 %v1445
    %1690 = vmatpush.bf16.msra.mxu0 %v1437
    %1691 = vmatpush.bf16.msra.mxu0 %v1429
    %1692 = vmatmul.bf16.gmra.mxu0 %v850
    %v1693 = vpop.f32.mrf.mxu0
    %v1694 = vadd.f32 %v1681, %v1693
    %v1695 = vpop.f32.mrf.mxu0
    %1696 = vdwg.mxu0
    %1697 = vmatpush.bf16.msra.mxu0 %v1422
    %1698 = vmatpush.bf16.msra.mxu0 %v1414
    %1699 = vmatpush.bf16.msra.mxu0 %v1406
    %1700 = vmatpush.bf16.msra.mxu0 %v1398
    %1701 = vmatpush.bf16.msra.mxu0 %v1390
    %1702 = vmatpush.bf16.msra.mxu0 %v1382
    %1703 = vmatpush.bf16.msra.mxu0 %v1374
    %1704 = vmatpush.bf16.msra.mxu0 %v1366
    %1705 = vmatmul.bf16.gmra.mxu0 %v849
    %v1706 = vpop.f32.mrf.mxu0
    %v1707 = vadd.f32 0.0, %v1706
    %v1708 = vpop.f32.mrf.mxu0
    %1709 = vdwg.mxu0
    %1710 = vmatpush.bf16.msra.mxu0 %v1486
    %1711 = vmatpush.bf16.msra.mxu0 %v1478
    %1712 = vmatpush.bf16.msra.mxu0 %v1470
    %1713 = vmatpush.bf16.msra.mxu0 %v1462
    %1714 = vmatpush.bf16.msra.mxu0 %v1454
    %1715 = vmatpush.bf16.msra.mxu0 %v1446
    %1716 = vmatpush.bf16.msra.mxu0 %v1438
    %1717 = vmatpush.bf16.msra.mxu0 %v1430
    %1718 = vmatmul.bf16.gmra.mxu0 %v850
    %v1719 = vpop.f32.mrf.mxu0
    %v1720 = vadd.f32 %v1707, %v1719
    %v1721 = vpop.f32.mrf.mxu0
    %1722 = vdwg.mxu0
    %1723 = vmatpush.bf16.msra.mxu0 %v1423
    %1724 = vmatpush.bf16.msra.mxu0 %v1415
    %1725 = vmatpush.bf16.msra.mxu0 %v1407
    %1726 = vmatpush.bf16.msra.mxu0 %v1399
    %1727 = vmatpush.bf16.msra.mxu0 %v1391
    %1728 = vmatpush.bf16.msra.mxu0 %v1383
    %1729 = vmatpush.bf16.msra.mxu0 %v1375
    %1730 = vmatpush.bf16.msra.mxu0 %v1367
    %1731 = vmatmul.bf16.gmra.mxu0 %v849
    %v1732 = vpop.f32.mrf.mxu0
    %v1733 = vadd.f32 0.0, %v1732
    %v1734 = vpop.f32.mrf.mxu0
    %1735 = vdwg.mxu0
    %1736 = vmatpush.bf16.msra.mxu0 %v1487
    %1737 = vmatpush.bf16.msra.mxu0 %v1479
    %1738 = vmatpush.bf16.msra.mxu0 %v1471
    %1739 = vmatpush.bf16.msra.mxu0 %v1463
    %1740 = vmatpush.bf16.msra.mxu0 %v1455
    %1741 = vmatpush.bf16.msra.mxu0 %v1447
    %1742 = vmatpush.bf16.msra.mxu0 %v1439
    %1743 = vmatpush.bf16.msra.mxu0 %v1431
    %1744 = vmatmul.bf16.gmra.mxu0 %v850
    %v1745 = vpop.f32.mrf.mxu0
    %v1746 = vadd.f32 %v1733, %v1745
    %v1747 = vpop.f32.mrf.mxu0
    %1748 = vdwg.mxu0
    %1749 = vmatpush.bf16.msra.mxu0 %v1424
    %1750 = vmatpush.bf16.msra.mxu0 %v1416
    %1751 = vmatpush.bf16.msra.mxu0 %v1408
    %1752 = vmatpush.bf16.msra.mxu0 %v1400
    %1753 = vmatpush.bf16.msra.mxu0 %v1392
    %1754 = vmatpush.bf16.msra.mxu0 %v1384
    %1755 = vmatpush.bf16.msra.mxu0 %v1376
    %1756 = vmatpush.bf16.msra.mxu0 %v1368
    %1757 = vmatmul.bf16.gmra.mxu0 %v849
    %v1758 = vpop.f32.mrf.mxu0
    %v1759 = vadd.f32 0.0, %v1758
    %v1760 = vpop.f32.mrf.mxu0
    %1761 = vdwg.mxu0
    %1762 = vmatpush.bf16.msra.mxu0 %v1488
    %1763 = vmatpush.bf16.msra.mxu0 %v1480
    %1764 = vmatpush.bf16.msra.mxu0 %v1472
    %1765 = vmatpush.bf16.msra.mxu0 %v1464
    %1766 = vmatpush.bf16.msra.mxu0 %v1456
    %1767 = vmatpush.bf16.msra.mxu0 %v1448
    %1768 = vmatpush.bf16.msra.mxu0 %v1440
    %1769 = vmatpush.bf16.msra.mxu0 %v1432
    %1770 = vmatmul.bf16.gmra.mxu0 %v850
    %v1771 = vpop.f32.mrf.mxu0
    %v1772 = vadd.f32 %v1759, %v1771
    %v1773 = vpop.f32.mrf.mxu0
    %1774 = vdwg.mxu0
    %1775 = vmatpush.bf16.msra.mxu0 %v1425
    %1776 = vmatpush.bf16.msra.mxu0 %v1417
    %1777 = vmatpush.bf16.msra.mxu0 %v1409
    %1778 = vmatpush.bf16.msra.mxu0 %v1401
    %1779 = vmatpush.bf16.msra.mxu0 %v1393
    %1780 = vmatpush.bf16.msra.mxu0 %v1385
    %1781 = vmatpush.bf16.msra.mxu0 %v1377
    %1782 = vmatpush.bf16.msra.mxu0 %v1369
    %1783 = vmatmul.bf16.gmra.mxu0 %v849
    %v1784 = vpop.f32.mrf.mxu0
    %v1785 = vadd.f32 0.0, %v1784
    %v1786 = vpop.f32.mrf.mxu0
    %1787 = vdwg.mxu0
    %1788 = vmatpush.bf16.msra.mxu0 %v1489
    %1789 = vmatpush.bf16.msra.mxu0 %v1481
    %1790 = vmatpush.bf16.msra.mxu0 %v1473
    %1791 = vmatpush.bf16.msra.mxu0 %v1465
    %1792 = vmatpush.bf16.msra.mxu0 %v1457
    %1793 = vmatpush.bf16.msra.mxu0 %v1449
    %1794 = vmatpush.bf16.msra.mxu0 %v1441
    %1795 = vmatpush.bf16.msra.mxu0 %v1433
    %1796 = vmatmul.bf16.gmra.mxu0 %v850
    %v1797 = vpop.f32.mrf.mxu0
    %v1798 = vadd.f32 %v1785, %v1797
    %v1799 = vpop.f32.mrf.mxu0
    %1800 = vdwg.mxu0
    %1801 = vmatpush.bf16.msra.mxu0 %v1426
    %1802 = vmatpush.bf16.msra.mxu0 %v1418
    %1803 = vmatpush.bf16.msra.mxu0 %v1410
    %1804 = vmatpush.bf16.msra.mxu0 %v1402
    %1805 = vmatpush.bf16.msra.mxu0 %v1394
    %1806 = vmatpush.bf16.msra.mxu0 %v1386
    %1807 = vmatpush.bf16.msra.mxu0 %v1378
    %1808 = vmatpush.bf16.msra.mxu0 %v1370
    %1809 = vmatmul.bf16.gmra.mxu0 %v849
    %v1810 = vpop.f32.mrf.mxu0
    %v1811 = vadd.f32 0.0, %v1810
    %v1812 = vpop.f32.mrf.mxu0
    %1813 = vdwg.mxu0
    %1814 = vmatpush.bf16.msra.mxu0 %v1490
    %1815 = vmatpush.bf16.msra.mxu0 %v1482
    %1816 = vmatpush.bf16.msra.mxu0 %v1474
    %1817 = vmatpush.bf16.msra.mxu0 %v1466
    %1818 = vmatpush.bf16.msra.mxu0 %v1458
    %1819 = vmatpush.bf16.msra.mxu0 %v1450
    %1820 = vmatpush.bf16.msra.mxu0 %v1442
    %1821 = vmatpush.bf16.msra.mxu0 %v1434
    %1822 = vmatmul.bf16.gmra.mxu0 %v850
    %v1823 = vpop.f32.mrf.mxu0
    %v1824 = vadd.f32 %v1811, %v1823
    %v1825 = vpop.f32.mrf.mxu0
    %1826 = vdwg.mxu0
    %v1827 = vadd.f32 %v841, %v1642
    %v1828 = vadd.f32 %v842, %v1668
    %v1829 = vadd.f32 %v843, %v1694
    %v1830 = vadd.f32 %v844, %v1720
    %v1831 = vadd.f32 %v845, %v1746
    %v1832 = vadd.f32 %v846, %v1772
    %v1833 = vadd.f32 %v847, %v1798
    %v1834 = vadd.f32 %v848, %v1824
    %v1835 = vxor.u32 %v1827, 2147483648
    %v1836 = vxor.u32 %v1828, 2147483648
    %v1837 = vmul.f32 %v1835, 1.442695
    %v1838 = vpow.pop %v1837
    %v1839 = vmul.f32 %v1836, 1.442695
    %v1840 = vpow.pop %v1839
    %v1841 = vadd.f32 %v1838, 1.0
    %v1842 = vadd.f32 %v1840, 1.0
    %v1843 = vrcp.pop %v1841
    %v1844 = vmul.f32 %v1841, %v1843
    %v1845 = vsub.f32 1.0, %v1844
    %v1846 = vmul.f32 %v1843, %v1845
    %v1847 = vadd.f32 %v1843, %v1846
    %vm1848 = vweird.f32 %v1841
    %vm1849 = vweird.f32 %v1843
    %vm1850 = vmor %vm1848, %vm1849
    %v1851 = vsel %vm1850, %v1843, %v1847
    %v1852 = vand.u32 2147483647, %v1841
    %vm1853 = vcmp.eq.f32.partialorder %v1852, 8.507059e+37
    %v1854 = vand.u32 %v1841, 2147483648
    %v1855 = vor.u32 1.1754944e-38, %v1854
    %v1856 = vsel %vm1853, %v1855, %v1851
    %v1857 = vmul.f32 1.0, %v1856
    %v1858 = vrcp.pop %v1842
    %v1859 = vmul.f32 %v1842, %v1858
    %v1860 = vsub.f32 1.0, %v1859
    %v1861 = vmul.f32 %v1858, %v1860
    %v1862 = vadd.f32 %v1858, %v1861
    %vm1863 = vweird.f32 %v1842
    %vm1864 = vweird.f32 %v1858
    %vm1865 = vmor %vm1863, %vm1864
    %v1866 = vsel %vm1865, %v1858, %v1862
    %v1867 = vand.u32 2147483647, %v1842
    %vm1868 = vcmp.eq.f32.partialorder %v1867, 8.507059e+37
    %v1869 = vand.u32 %v1842, 2147483648
    %v1870 = vor.u32 1.1754944e-38, %v1869
    %v1871 = vsel %vm1868, %v1870, %v1866
    %v1872 = vmul.f32 1.0, %v1871
    %v1873 = vxor.u32 %v1829, 2147483648
    %v1874 = vxor.u32 %v1830, 2147483648
    %v1875 = vmul.f32 %v1873, 1.442695
    %v1876 = vpow.pop %v1875
    %v1877 = vmul.f32 %v1874, 1.442695
    %v1878 = vpow.pop %v1877
    %v1879 = vadd.f32 %v1876, 1.0
    %v1880 = vadd.f32 %v1878, 1.0
    %v1881 = vrcp.pop %v1879
    %v1882 = vmul.f32 %v1879, %v1881
    %v1883 = vsub.f32 1.0, %v1882
    %v1884 = vmul.f32 %v1881, %v1883
    %v1885 = vadd.f32 %v1881, %v1884
    %vm1886 = vweird.f32 %v1879
    %vm1887 = vweird.f32 %v1881
    %vm1888 = vmor %vm1886, %vm1887
    %v1889 = vsel %vm1888, %v1881, %v1885
    %v1890 = vand.u32 2147483647, %v1879
    %vm1891 = vcmp.eq.f32.partialorder %v1890, 8.507059e+37
    %v1892 = vand.u32 %v1879, 2147483648
    %v1893 = vor.u32 1.1754944e-38, %v1892
    %v1894 = vsel %vm1891, %v1893, %v1889
    %v1895 = vmul.f32 1.0, %v1894
    %v1896 = vrcp.pop %v1880
    %v1897 = vmul.f32 %v1880, %v1896
    %v1898 = vsub.f32 1.0, %v1897
    %v1899 = vmul.f32 %v1896, %v1898
    %v1900 = vadd.f32 %v1896, %v1899
    %vm1901 = vweird.f32 %v1880
    %vm1902 = vweird.f32 %v1896
    %vm1903 = vmor %vm1901, %vm1902
    %v1904 = vsel %vm1903, %v1896, %v1900
    %v1905 = vand.u32 2147483647, %v1880
    %vm1906 = vcmp.eq.f32.partialorder %v1905, 8.507059e+37
    %v1907 = vand.u32 %v1880, 2147483648
    %v1908 = vor.u32 1.1754944e-38, %v1907
    %v1909 = vsel %vm1906, %v1908, %v1904
    %v1910 = vmul.f32 1.0, %v1909
    %v1911 = vtanh.pop %v1831
    %v1912 = vtanh.pop %v1832
    %v1913 = vxor.u32 %v1833, 2147483648
    %v1914 = vxor.u32 %v1834, 2147483648
    %v1915 = vmul.f32 %v1913, 1.442695
    %v1916 = vpow.pop %v1915
    %v1917 = vmul.f32 %v1914, 1.442695
    %v1918 = vpow.pop %v1917
    %v1919 = vadd.f32 %v1916, 1.0
    %v1920 = vadd.f32 %v1918, 1.0
    %v1921 = vrcp.pop %v1919
    %v1922 = vmul.f32 %v1919, %v1921
    %v1923 = vsub.f32 1.0, %v1922
    %v1924 = vmul.f32 %v1921, %v1923
    %v1925 = vadd.f32 %v1921, %v1924
    %vm1926 = vweird.f32 %v1919
    %vm1927 = vweird.f32 %v1921
    %vm1928 = vmor %vm1926, %vm1927
    %v1929 = vsel %vm1928, %v1921, %v1925
    %v1930 = vand.u32 2147483647, %v1919
    %vm1931 = vcmp.eq.f32.partialorder %v1930, 8.507059e+37
    %v1932 = vand.u32 %v1919, 2147483648
    %v1933 = vor.u32 1.1754944e-38, %v1932
    %v1934 = vsel %vm1931, %v1933, %v1929
    %v1935 = vmul.f32 1.0, %v1934
    %v1936 = vrcp.pop %v1920
    %v1937 = vmul.f32 %v1920, %v1936
    %v1938 = vsub.f32 1.0, %v1937
    %v1939 = vmul.f32 %v1936, %v1938
    %v1940 = vadd.f32 %v1936, %v1939
    %vm1941 = vweird.f32 %v1920
    %vm1942 = vweird.f32 %v1936
    %vm1943 = vmor %vm1941, %vm1942
    %v1944 = vsel %vm1943, %v1936, %v1940
    %v1945 = vand.u32 2147483647, %v1920
    %vm1946 = vcmp.eq.f32.partialorder %v1945, 8.507059e+37
    %v1947 = vand.u32 %v1920, 2147483648
    %v1948 = vor.u32 1.1754944e-38, %v1947
    %v1949 = vsel %vm1946, %v1948, %v1944
    %v1950 = vmul.f32 1.0, %v1949
    %v1951 = vmul.f32 %v1895, %v832
    %v1952 = vmul.f32 %v1910, %v833
    %v1953 = vmul.f32 %v1857, %v1911
    %v1954 = vmul.f32 %v1872, %v1912
    %v1955 = vadd.f32 %v1951, %v1953
    %v1956 = vadd.f32 %v1952, %v1954
    %v1957 = vtanh.pop %v1955
    %v1958 = vtanh.pop %v1956
    %v1959 = vmul.f32 %v1935, %v1957
    %v1960 = vmul.f32 %v1950, %v1958
    %v1961 = vstv %s829
    %vm1962 = vcmp.lt.s32.totalorder %v1961, %v828
    %v1963 = vsel %vm1962, 1, 0
    %1964 = vset.pattern.permute.xlu0 0
    %1965 = vperm.xlu0 %1964, %v1963
    %v1966 = vpop.permute.xlu0 %1965
    %vm1967 = vcmp.eq.s32.totalorder %v1966, 1
    %v1968 = vsel %vm1967, %v1959, %v830
    %v1969 = vsel %vm1967, %v1960, %v831
    %1970 = vst [vmem:[#allocation3] sm:$0xff] %v1968
    %1971 = vst [vmem:[#allocation3 + $0x8] sm:$0xff] %v1969
    %v1972 = vsel %vm1967, %v1955, %v832
    %v1973 = vsel %vm1967, %v1956, %v833
    %1974 = vst [vmem:[#allocation4] sm:$0xff] %v1972
    %1975 = vst [vmem:[#allocation4 + $0x8] sm:$0xff] %v1973
    %v1976 = vld [vmem:[#allocation3] sm:$0xff]
    %v1977 = vld [vmem:[#allocation3 + $0x8] sm:$0xff]
    %v1978 = vld [vmem:[#allocation4] sm:$0xff]
    %v1979 = vld [vmem:[#allocation4 + $0x8] sm:$0xff]
    %s1980 = smul.u32 1, 8
    %s1981 = smul.addr %s1980, 4
    %s1982 = scalar_lea.vmem [#allocation2], %s1981
    %v1983 = vld [vmem:[%s1982] sm:$0xff]
    %v1984 = vld [vmem:[%s1982 + $0x8] sm:$0xff]
    %v1985 = vld [vmem:[%s1982 + $0x10] sm:$0xff]
    %v1986 = vld [vmem:[%s1982 + $0x18] sm:$0xff]
    %v1987 = vunpack.c.l.bf16 %v1983
    %v1988 = vunpack.c.h.bf16 %v1983
    %v1989 = vunpack.c.l.bf16 %v1984
    %v1990 = vunpack.c.h.bf16 %v1984
    %v1991 = vunpack.c.l.bf16 %v1985
    %v1992 = vunpack.c.h.bf16 %v1985
    %v1993 = vunpack.c.l.bf16 %v1986
    %v1994 = vunpack.c.h.bf16 %v1986
    %v1995 = vpack.c.bf16 %v1976, %v1976
    %v1996 = vpack.c.bf16 %v1977, %v1977
    %v1997 = vld [vmem:[#allocation10] sm:$0xff]
    %v1998 = vld [vmem:[#allocation10 + $0x8] sm:$0xff]
    %v1999 = vld [vmem:[#allocation10 + $0x10] sm:$0xff]
    %v2000 = vld [vmem:[#allocation10 + $0x18] sm:$0xff]
    %v2001 = vld [vmem:[#allocation10 + $0x20] sm:$0xff]
    %v2002 = vld [vmem:[#allocation10 + $0x28] sm:$0xff]
    %v2003 = vld [vmem:[#allocation10 + $0x30] sm:$0xff]
    %v2004 = vld [vmem:[#allocation10 + $0x38] sm:$0xff]
    %v2005 = vld [vmem:[#allocation10 + $0x40] sm:$0xff]
    %v2006 = vld [vmem:[#allocation10 + $0x48] sm:$0xff]
    %v2007 = vld [vmem:[#allocation10 + $0x50] sm:$0xff]
    %v2008 = vld [vmem:[#allocation10 + $0x58] sm:$0xff]
    %v2009 = vld [vmem:[#allocation10 + $0x60] sm:$0xff]
    %v2010 = vld [vmem:[#allocation10 + $0x68] sm:$0xff]
    %v2011 = vld [vmem:[#allocation10 + $0x70] sm:$0xff]
    %v2012 = vld [vmem:[#allocation10 + $0x78] sm:$0xff]
    %v2013 = vld [vmem:[#allocation10 + $0x80] sm:$0xff]
    %v2014 = vld [vmem:[#allocation10 + $0x88] sm:$0xff]
    %v2015 = vld [vmem:[#allocation10 + $0x90] sm:$0xff]
    %v2016 = vld [vmem:[#allocation10 + $0x98] sm:$0xff]
    %v2017 = vld [vmem:[#allocation10 + $0xa0] sm:$0xff]
    %v2018 = vld [vmem:[#allocation10 + $0xa8] sm:$0xff]
    %v2019 = vld [vmem:[#allocation10 + $0xb0] sm:$0xff]
    %v2020 = vld [vmem:[#allocation10 + $0xb8] sm:$0xff]
    %v2021 = vld [vmem:[#allocation10 + $0xc0] sm:$0xff]
    %v2022 = vld [vmem:[#allocation10 + $0xc8] sm:$0xff]
    %v2023 = vld [vmem:[#allocation10 + $0xd0] sm:$0xff]
    %v2024 = vld [vmem:[#allocation10 + $0xd8] sm:$0xff]
    %v2025 = vld [vmem:[#allocation10 + $0xe0] sm:$0xff]
    %v2026 = vld [vmem:[#allocation10 + $0xe8] sm:$0xff]
    %v2027 = vld [vmem:[#allocation10 + $0xf0] sm:$0xff]
    %v2028 = vld [vmem:[#allocation10 + $0xf8] sm:$0xff]
    %v2029 = vld [vmem:[#allocation10 + $0x100] sm:$0xff]
    %v2030 = vld [vmem:[#allocation10 + $0x108] sm:$0xff]
    %v2031 = vld [vmem:[#allocation10 + $0x110] sm:$0xff]
    %v2032 = vld [vmem:[#allocation10 + $0x118] sm:$0xff]
    %v2033 = vld [vmem:[#allocation10 + $0x120] sm:$0xff]
    %v2034 = vld [vmem:[#allocation10 + $0x128] sm:$0xff]
    %v2035 = vld [vmem:[#allocation10 + $0x130] sm:$0xff]
    %v2036 = vld [vmem:[#allocation10 + $0x138] sm:$0xff]
    %v2037 = vld [vmem:[#allocation10 + $0x140] sm:$0xff]
    %v2038 = vld [vmem:[#allocation10 + $0x148] sm:$0xff]
    %v2039 = vld [vmem:[#allocation10 + $0x150] sm:$0xff]
    %v2040 = vld [vmem:[#allocation10 + $0x158] sm:$0xff]
    %v2041 = vld [vmem:[#allocation10 + $0x160] sm:$0xff]
    %v2042 = vld [vmem:[#allocation10 + $0x168] sm:$0xff]
    %v2043 = vld [vmem:[#allocation10 + $0x170] sm:$0xff]
    %v2044 = vld [vmem:[#allocation10 + $0x178] sm:$0xff]
    %v2045 = vld [vmem:[#allocation10 + $0x180] sm:$0xff]
    %v2046 = vld [vmem:[#allocation10 + $0x188] sm:$0xff]
    %v2047 = vld [vmem:[#allocation10 + $0x190] sm:$0xff]
    %v2048 = vld [vmem:[#allocation10 + $0x198] sm:$0xff]
    %v2049 = vld [vmem:[#allocation10 + $0x1a0] sm:$0xff]
    %v2050 = vld [vmem:[#allocation10 + $0x1a8] sm:$0xff]
    %v2051 = vld [vmem:[#allocation10 + $0x1b0] sm:$0xff]
    %v2052 = vld [vmem:[#allocation10 + $0x1b8] sm:$0xff]
    %v2053 = vld [vmem:[#allocation10 + $0x1c0] sm:$0xff]
    %v2054 = vld [vmem:[#allocation10 + $0x1c8] sm:$0xff]
    %v2055 = vld [vmem:[#allocation10 + $0x1d0] sm:$0xff]
    %v2056 = vld [vmem:[#allocation10 + $0x1d8] sm:$0xff]
    %v2057 = vld [vmem:[#allocation10 + $0x1e0] sm:$0xff]
    %v2058 = vld [vmem:[#allocation10 + $0x1e8] sm:$0xff]
    %v2059 = vld [vmem:[#allocation10 + $0x1f0] sm:$0xff]
    %v2060 = vld [vmem:[#allocation10 + $0x1f8] sm:$0xff]
    %v2061 = vld [vmem:[#allocation10 + $0x200] sm:$0xff]
    %v2062 = vld [vmem:[#allocation10 + $0x208] sm:$0xff]
    %v2063 = vld [vmem:[#allocation10 + $0x210] sm:$0xff]
    %v2064 = vld [vmem:[#allocation10 + $0x218] sm:$0xff]
    %v2065 = vld [vmem:[#allocation10 + $0x220] sm:$0xff]
    %v2066 = vld [vmem:[#allocation10 + $0x228] sm:$0xff]
    %v2067 = vld [vmem:[#allocation10 + $0x230] sm:$0xff]
    %v2068 = vld [vmem:[#allocation10 + $0x238] sm:$0xff]
    %v2069 = vld [vmem:[#allocation10 + $0x240] sm:$0xff]
    %v2070 = vld [vmem:[#allocation10 + $0x248] sm:$0xff]
    %v2071 = vld [vmem:[#allocation10 + $0x250] sm:$0xff]
    %v2072 = vld [vmem:[#allocation10 + $0x258] sm:$0xff]
    %v2073 = vld [vmem:[#allocation10 + $0x260] sm:$0xff]
    %v2074 = vld [vmem:[#allocation10 + $0x268] sm:$0xff]
    %v2075 = vld [vmem:[#allocation10 + $0x270] sm:$0xff]
    %v2076 = vld [vmem:[#allocation10 + $0x278] sm:$0xff]
    %v2077 = vld [vmem:[#allocation10 + $0x280] sm:$0xff]
    %v2078 = vld [vmem:[#allocation10 + $0x288] sm:$0xff]
    %v2079 = vld [vmem:[#allocation10 + $0x290] sm:$0xff]
    %v2080 = vld [vmem:[#allocation10 + $0x298] sm:$0xff]
    %v2081 = vld [vmem:[#allocation10 + $0x2a0] sm:$0xff]
    %v2082 = vld [vmem:[#allocation10 + $0x2a8] sm:$0xff]
    %v2083 = vld [vmem:[#allocation10 + $0x2b0] sm:$0xff]
    %v2084 = vld [vmem:[#allocation10 + $0x2b8] sm:$0xff]
    %v2085 = vld [vmem:[#allocation10 + $0x2c0] sm:$0xff]
    %v2086 = vld [vmem:[#allocation10 + $0x2c8] sm:$0xff]
    %v2087 = vld [vmem:[#allocation10 + $0x2d0] sm:$0xff]
    %v2088 = vld [vmem:[#allocation10 + $0x2d8] sm:$0xff]
    %v2089 = vld [vmem:[#allocation10 + $0x2e0] sm:$0xff]
    %v2090 = vld [vmem:[#allocation10 + $0x2e8] sm:$0xff]
    %v2091 = vld [vmem:[#allocation10 + $0x2f0] sm:$0xff]
    %v2092 = vld [vmem:[#allocation10 + $0x2f8] sm:$0xff]
    %v2093 = vld [vmem:[#allocation10 + $0x300] sm:$0xff]
    %v2094 = vld [vmem:[#allocation10 + $0x308] sm:$0xff]
    %v2095 = vld [vmem:[#allocation10 + $0x310] sm:$0xff]
    %v2096 = vld [vmem:[#allocation10 + $0x318] sm:$0xff]
    %v2097 = vld [vmem:[#allocation10 + $0x320] sm:$0xff]
    %v2098 = vld [vmem:[#allocation10 + $0x328] sm:$0xff]
    %v2099 = vld [vmem:[#allocation10 + $0x330] sm:$0xff]
    %v2100 = vld [vmem:[#allocation10 + $0x338] sm:$0xff]
    %v2101 = vld [vmem:[#allocation10 + $0x340] sm:$0xff]
    %v2102 = vld [vmem:[#allocation10 + $0x348] sm:$0xff]
    %v2103 = vld [vmem:[#allocation10 + $0x350] sm:$0xff]
    %v2104 = vld [vmem:[#allocation10 + $0x358] sm:$0xff]
    %v2105 = vld [vmem:[#allocation10 + $0x360] sm:$0xff]
    %v2106 = vld [vmem:[#allocation10 + $0x368] sm:$0xff]
    %v2107 = vld [vmem:[#allocation10 + $0x370] sm:$0xff]
    %v2108 = vld [vmem:[#allocation10 + $0x378] sm:$0xff]
    %v2109 = vld [vmem:[#allocation10 + $0x380] sm:$0xff]
    %v2110 = vld [vmem:[#allocation10 + $0x388] sm:$0xff]
    %v2111 = vld [vmem:[#allocation10 + $0x390] sm:$0xff]
    %v2112 = vld [vmem:[#allocation10 + $0x398] sm:$0xff]
    %v2113 = vld [vmem:[#allocation10 + $0x3a0] sm:$0xff]
    %v2114 = vld [vmem:[#allocation10 + $0x3a8] sm:$0xff]
    %v2115 = vld [vmem:[#allocation10 + $0x3b0] sm:$0xff]
    %v2116 = vld [vmem:[#allocation10 + $0x3b8] sm:$0xff]
    %v2117 = vld [vmem:[#allocation10 + $0x3c0] sm:$0xff]
    %v2118 = vld [vmem:[#allocation10 + $0x3c8] sm:$0xff]
    %v2119 = vld [vmem:[#allocation10 + $0x3d0] sm:$0xff]
    %v2120 = vld [vmem:[#allocation10 + $0x3d8] sm:$0xff]
    %v2121 = vld [vmem:[#allocation10 + $0x3e0] sm:$0xff]
    %v2122 = vld [vmem:[#allocation10 + $0x3e8] sm:$0xff]
    %v2123 = vld [vmem:[#allocation10 + $0x3f0] sm:$0xff]
    %v2124 = vld [vmem:[#allocation10 + $0x3f8] sm:$0xff]
    %v2253 = vunpack.c.l.b16 %v1997
    %v2254 = vunpack.c.h.b16 %v1997
    %v2255 = vunpack.c.l.b16 %v1998
    %v2256 = vunpack.c.h.b16 %v1998
    %v2257 = vunpack.c.l.b16 %v1999
    %v2258 = vunpack.c.h.b16 %v1999
    %v2259 = vunpack.c.l.b16 %v2000
    %v2260 = vunpack.c.h.b16 %v2000
    %v2261 = vunpack.c.l.b16 %v2001
    %v2262 = vunpack.c.h.b16 %v2001
    %v2263 = vunpack.c.l.b16 %v2002
    %v2264 = vunpack.c.h.b16 %v2002
    %v2265 = vunpack.c.l.b16 %v2003
    %v2266 = vunpack.c.h.b16 %v2003
    %v2267 = vunpack.c.l.b16 %v2004
    %v2268 = vunpack.c.h.b16 %v2004
    %v2269 = vunpack.c.l.b16 %v2005
    %v2270 = vunpack.c.h.b16 %v2005
    %v2271 = vunpack.c.l.b16 %v2006
    %v2272 = vunpack.c.h.b16 %v2006
    %v2273 = vunpack.c.l.b16 %v2007
    %v2274 = vunpack.c.h.b16 %v2007
    %v2275 = vunpack.c.l.b16 %v2008
    %v2276 = vunpack.c.h.b16 %v2008
    %v2277 = vunpack.c.l.b16 %v2009
    %v2278 = vunpack.c.h.b16 %v2009
    %v2279 = vunpack.c.l.b16 %v2010
    %v2280 = vunpack.c.h.b16 %v2010
    %v2281 = vunpack.c.l.b16 %v2011
    %v2282 = vunpack.c.h.b16 %v2011
    %v2283 = vunpack.c.l.b16 %v2012
    %v2284 = vunpack.c.h.b16 %v2012
    %v2285 = vunpack.c.l.b16 %v2013
    %v2286 = vunpack.c.h.b16 %v2013
    %v2287 = vunpack.c.l.b16 %v2014
    %v2288 = vunpack.c.h.b16 %v2014
    %v2289 = vunpack.c.l.b16 %v2015
    %v2290 = vunpack.c.h.b16 %v2015
    %v2291 = vunpack.c.l.b16 %v2016
    %v2292 = vunpack.c.h.b16 %v2016
    %v2293 = vunpack.c.l.b16 %v2017
    %v2294 = vunpack.c.h.b16 %v2017
    %v2295 = vunpack.c.l.b16 %v2018
    %v2296 = vunpack.c.h.b16 %v2018
    %v2297 = vunpack.c.l.b16 %v2019
    %v2298 = vunpack.c.h.b16 %v2019
    %v2299 = vunpack.c.l.b16 %v2020
    %v2300 = vunpack.c.h.b16 %v2020
    %v2301 = vunpack.c.l.b16 %v2021
    %v2302 = vunpack.c.h.b16 %v2021
    %v2303 = vunpack.c.l.b16 %v2022
    %v2304 = vunpack.c.h.b16 %v2022
    %v2305 = vunpack.c.l.b16 %v2023
    %v2306 = vunpack.c.h.b16 %v2023
    %v2307 = vunpack.c.l.b16 %v2024
    %v2308 = vunpack.c.h.b16 %v2024
    %v2309 = vunpack.c.l.b16 %v2025
    %v2310 = vunpack.c.h.b16 %v2025
    %v2311 = vunpack.c.l.b16 %v2026
    %v2312 = vunpack.c.h.b16 %v2026
    %v2313 = vunpack.c.l.b16 %v2027
    %v2314 = vunpack.c.h.b16 %v2027
    %v2315 = vunpack.c.l.b16 %v2028
    %v2316 = vunpack.c.h.b16 %v2028
    %v2317 = vunpack.c.l.b16 %v2029
    %v2318 = vunpack.c.h.b16 %v2029
    %v2319 = vunpack.c.l.b16 %v2030
    %v2320 = vunpack.c.h.b16 %v2030
    %v2321 = vunpack.c.l.b16 %v2031
    %v2322 = vunpack.c.h.b16 %v2031
    %v2323 = vunpack.c.l.b16 %v2032
    %v2324 = vunpack.c.h.b16 %v2032
    %v2325 = vunpack.c.l.b16 %v2033
    %v2326 = vunpack.c.h.b16 %v2033
    %v2327 = vunpack.c.l.b16 %v2034
    %v2328 = vunpack.c.h.b16 %v2034
    %v2329 = vunpack.c.l.b16 %v2035
    %v2330 = vunpack.c.h.b16 %v2035
    %v2331 = vunpack.c.l.b16 %v2036
    %v2332 = vunpack.c.h.b16 %v2036
    %v2333 = vunpack.c.l.b16 %v2037
    %v2334 = vunpack.c.h.b16 %v2037
    %v2335 = vunpack.c.l.b16 %v2038
    %v2336 = vunpack.c.h.b16 %v2038
    %v2337 = vunpack.c.l.b16 %v2039
    %v2338 = vunpack.c.h.b16 %v2039
    %v2339 = vunpack.c.l.b16 %v2040
    %v2340 = vunpack.c.h.b16 %v2040
    %v2341 = vunpack.c.l.b16 %v2041
    %v2342 = vunpack.c.h.b16 %v2041
    %v2343 = vunpack.c.l.b16 %v2042
    %v2344 = vunpack.c.h.b16 %v2042
    %v2345 = vunpack.c.l.b16 %v2043
    %v2346 = vunpack.c.h.b16 %v2043
    %v2347 = vunpack.c.l.b16 %v2044
    %v2348 = vunpack.c.h.b16 %v2044
    %v2349 = vunpack.c.l.b16 %v2045
    %v2350 = vunpack.c.h.b16 %v2045
    %v2351 = vunpack.c.l.b16 %v2046
    %v2352 = vunpack.c.h.b16 %v2046
    %v2353 = vunpack.c.l.b16 %v2047
    %v2354 = vunpack.c.h.b16 %v2047
    %v2355 = vunpack.c.l.b16 %v2048
    %v2356 = vunpack.c.h.b16 %v2048
    %v2357 = vunpack.c.l.b16 %v2049
    %v2358 = vunpack.c.h.b16 %v2049
    %v2359 = vunpack.c.l.b16 %v2050
    %v2360 = vunpack.c.h.b16 %v2050
    %v2361 = vunpack.c.l.b16 %v2051
    %v2362 = vunpack.c.h.b16 %v2051
    %v2363 = vunpack.c.l.b16 %v2052
    %v2364 = vunpack.c.h.b16 %v2052
    %v2365 = vunpack.c.l.b16 %v2053
    %v2366 = vunpack.c.h.b16 %v2053
    %v2367 = vunpack.c.l.b16 %v2054
    %v2368 = vunpack.c.h.b16 %v2054
    %v2369 = vunpack.c.l.b16 %v2055
    %v2370 = vunpack.c.h.b16 %v2055
    %v2371 = vunpack.c.l.b16 %v2056
    %v2372 = vunpack.c.h.b16 %v2056
    %v2373 = vunpack.c.l.b16 %v2057
    %v2374 = vunpack.c.h.b16 %v2057
    %v2375 = vunpack.c.l.b16 %v2058
    %v2376 = vunpack.c.h.b16 %v2058
    %v2377 = vunpack.c.l.b16 %v2059
    %v2378 = vunpack.c.h.b16 %v2059
    %v2379 = vunpack.c.l.b16 %v2060
    %v2380 = vunpack.c.h.b16 %v2060
    %v2381 = vunpack.c.l.b16 %v2061
    %v2382 = vunpack.c.h.b16 %v2061
    %v2383 = vunpack.c.l.b16 %v2062
    %v2384 = vunpack.c.h.b16 %v2062
    %v2385 = vunpack.c.l.b16 %v2063
    %v2386 = vunpack.c.h.b16 %v2063
    %v2387 = vunpack.c.l.b16 %v2064
    %v2388 = vunpack.c.h.b16 %v2064
    %v2389 = vunpack.c.l.b16 %v2065
    %v2390 = vunpack.c.h.b16 %v2065
    %v2391 = vunpack.c.l.b16 %v2066
    %v2392 = vunpack.c.h.b16 %v2066
    %v2393 = vunpack.c.l.b16 %v2067
    %v2394 = vunpack.c.h.b16 %v2067
    %v2395 = vunpack.c.l.b16 %v2068
    %v2396 = vunpack.c.h.b16 %v2068
    %v2397 = vunpack.c.l.b16 %v2069
    %v2398 = vunpack.c.h.b16 %v2069
    %v2399 = vunpack.c.l.b16 %v2070
    %v2400 = vunpack.c.h.b16 %v2070
    %v2401 = vunpack.c.l.b16 %v2071
    %v2402 = vunpack.c.h.b16 %v2071
    %v2403 = vunpack.c.l.b16 %v2072
    %v2404 = vunpack.c.h.b16 %v2072
    %v2405 = vunpack.c.l.b16 %v2073
    %v2406 = vunpack.c.h.b16 %v2073
    %v2407 = vunpack.c.l.b16 %v2074
    %v2408 = vunpack.c.h.b16 %v2074
    %v2409 = vunpack.c.l.b16 %v2075
    %v2410 = vunpack.c.h.b16 %v2075
    %v2411 = vunpack.c.l.b16 %v2076
    %v2412 = vunpack.c.h.b16 %v2076
    %v2413 = vunpack.c.l.b16 %v2077
    %v2414 = vunpack.c.h.b16 %v2077
    %v2415 = vunpack.c.l.b16 %v2078
    %v2416 = vunpack.c.h.b16 %v2078
    %v2417 = vunpack.c.l.b16 %v2079
    %v2418 = vunpack.c.h.b16 %v2079
    %v2419 = vunpack.c.l.b16 %v2080
    %v2420 = vunpack.c.h.b16 %v2080
    %v2421 = vunpack.c.l.b16 %v2081
    %v2422 = vunpack.c.h.b16 %v2081
    %v2423 = vunpack.c.l.b16 %v2082
    %v2424 = vunpack.c.h.b16 %v2082
    %v2425 = vunpack.c.l.b16 %v2083
    %v2426 = vunpack.c.h.b16 %v2083
    %v2427 = vunpack.c.l.b16 %v2084
    %v2428 = vunpack.c.h.b16 %v2084
    %v2429 = vunpack.c.l.b16 %v2085
    %v2430 = vunpack.c.h.b16 %v2085
    %v2431 = vunpack.c.l.b16 %v2086
    %v2432 = vunpack.c.h.b16 %v2086
    %v2433 = vunpack.c.l.b16 %v2087
    %v2434 = vunpack.c.h.b16 %v2087
    %v2435 = vunpack.c.l.b16 %v2088
    %v2436 = vunpack.c.h.b16 %v2088
    %v2437 = vunpack.c.l.b16 %v2089
    %v2438 = vunpack.c.h.b16 %v2089
    %v2439 = vunpack.c.l.b16 %v2090
    %v2440 = vunpack.c.h.b16 %v2090
    %v2441 = vunpack.c.l.b16 %v2091
    %v2442 = vunpack.c.h.b16 %v2091
    %v2443 = vunpack.c.l.b16 %v2092
    %v2444 = vunpack.c.h.b16 %v2092
    %v2445 = vunpack.c.l.b16 %v2093
    %v2446 = vunpack.c.h.b16 %v2093
    %v2447 = vunpack.c.l.b16 %v2094
    %v2448 = vunpack.c.h.b16 %v2094
    %v2449 = vunpack.c.l.b16 %v2095
    %v2450 = vunpack.c.h.b16 %v2095
    %v2451 = vunpack.c.l.b16 %v2096
    %v2452 = vunpack.c.h.b16 %v2096
    %v2453 = vunpack.c.l.b16 %v2097
    %v2454 = vunpack.c.h.b16 %v2097
    %v2455 = vunpack.c.l.b16 %v2098
    %v2456 = vunpack.c.h.b16 %v2098
    %v2457 = vunpack.c.l.b16 %v2099
    %v2458 = vunpack.c.h.b16 %v2099
    %v2459 = vunpack.c.l.b16 %v2100
    %v2460 = vunpack.c.h.b16 %v2100
    %v2461 = vunpack.c.l.b16 %v2101
    %v2462 = vunpack.c.h.b16 %v2101
    %v2463 = vunpack.c.l.b16 %v2102
    %v2464 = vunpack.c.h.b16 %v2102
    %v2465 = vunpack.c.l.b16 %v2103
    %v2466 = vunpack.c.h.b16 %v2103
    %v2467 = vunpack.c.l.b16 %v2104
    %v2468 = vunpack.c.h.b16 %v2104
    %v2469 = vunpack.c.l.b16 %v2105
    %v2470 = vunpack.c.h.b16 %v2105
    %v2471 = vunpack.c.l.b16 %v2106
    %v2472 = vunpack.c.h.b16 %v2106
    %v2473 = vunpack.c.l.b16 %v2107
    %v2474 = vunpack.c.h.b16 %v2107
    %v2475 = vunpack.c.l.b16 %v2108
    %v2476 = vunpack.c.h.b16 %v2108
    %v2477 = vunpack.c.l.b16 %v2109
    %v2478 = vunpack.c.h.b16 %v2109
    %v2479 = vunpack.c.l.b16 %v2110
    %v2480 = vunpack.c.h.b16 %v2110
    %v2481 = vunpack.c.l.b16 %v2111
    %v2482 = vunpack.c.h.b16 %v2111
    %v2483 = vunpack.c.l.b16 %v2112
    %v2484 = vunpack.c.h.b16 %v2112
    %v2485 = vunpack.c.l.b16 %v2113
    %v2486 = vunpack.c.h.b16 %v2113
    %v2487 = vunpack.c.l.b16 %v2114
    %v2488 = vunpack.c.h.b16 %v2114
    %v2489 = vunpack.c.l.b16 %v2115
    %v2490 = vunpack.c.h.b16 %v2115
    %v2491 = vunpack.c.l.b16 %v2116
    %v2492 = vunpack.c.h.b16 %v2116
    %v2493 = vunpack.c.l.b16 %v2117
    %v2494 = vunpack.c.h.b16 %v2117
    %v2495 = vunpack.c.l.b16 %v2118
    %v2496 = vunpack.c.h.b16 %v2118
    %v2497 = vunpack.c.l.b16 %v2119
    %v2498 = vunpack.c.h.b16 %v2119
    %v2499 = vunpack.c.l.b16 %v2120
    %v2500 = vunpack.c.h.b16 %v2120
    %v2501 = vunpack.c.l.b16 %v2121
    %v2502 = vunpack.c.h.b16 %v2121
    %v2503 = vunpack.c.l.b16 %v2122
    %v2504 = vunpack.c.h.b16 %v2122
    %v2505 = vunpack.c.l.b16 %v2123
    %v2506 = vunpack.c.h.b16 %v2123
    %v2507 = vunpack.c.l.b16 %v2124
    %v2508 = vunpack.c.h.b16 %v2124
    %v2509 = vpack.c.b16 %v2261, %v2253
    %v2510 = vpack.c.b16 %v2262, %v2254
    %v2511 = vpack.c.b16 %v2263, %v2255
    %v2512 = vpack.c.b16 %v2264, %v2256
    %v2513 = vpack.c.b16 %v2265, %v2257
    %v2514 = vpack.c.b16 %v2266, %v2258
    %v2515 = vpack.c.b16 %v2267, %v2259
    %v2516 = vpack.c.b16 %v2268, %v2260
    %v2517 = vpack.c.b16 %v2277, %v2269
    %v2518 = vpack.c.b16 %v2278, %v2270
    %v2519 = vpack.c.b16 %v2279, %v2271
    %v2520 = vpack.c.b16 %v2280, %v2272
    %v2521 = vpack.c.b16 %v2281, %v2273
    %v2522 = vpack.c.b16 %v2282, %v2274
    %v2523 = vpack.c.b16 %v2283, %v2275
    %v2524 = vpack.c.b16 %v2284, %v2276
    %v2525 = vpack.c.b16 %v2293, %v2285
    %v2526 = vpack.c.b16 %v2294, %v2286
    %v2527 = vpack.c.b16 %v2295, %v2287
    %v2528 = vpack.c.b16 %v2296, %v2288
    %v2529 = vpack.c.b16 %v2297, %v2289
    %v2530 = vpack.c.b16 %v2298, %v2290
    %v2531 = vpack.c.b16 %v2299, %v2291
    %v2532 = vpack.c.b16 %v2300, %v2292
    %v2533 = vpack.c.b16 %v2309, %v2301
    %v2534 = vpack.c.b16 %v2310, %v2302
    %v2535 = vpack.c.b16 %v2311, %v2303
    %v2536 = vpack.c.b16 %v2312, %v2304
    %v2537 = vpack.c.b16 %v2313, %v2305
    %v2538 = vpack.c.b16 %v2314, %v2306
    %v2539 = vpack.c.b16 %v2315, %v2307
    %v2540 = vpack.c.b16 %v2316, %v2308
    %v2541 = vpack.c.b16 %v2325, %v2317
    %v2542 = vpack.c.b16 %v2326, %v2318
    %v2543 = vpack.c.b16 %v2327, %v2319
    %v2544 = vpack.c.b16 %v2328, %v2320
    %v2545 = vpack.c.b16 %v2329, %v2321
    %v2546 = vpack.c.b16 %v2330, %v2322
    %v2547 = vpack.c.b16 %v2331, %v2323
    %v2548 = vpack.c.b16 %v2332, %v2324
    %v2549 = vpack.c.b16 %v2341, %v2333
    %v2550 = vpack.c.b16 %v2342, %v2334
    %v2551 = vpack.c.b16 %v2343, %v2335
    %v2552 = vpack.c.b16 %v2344, %v2336
    %v2553 = vpack.c.b16 %v2345, %v2337
    %v2554 = vpack.c.b16 %v2346, %v2338
    %v2555 = vpack.c.b16 %v2347, %v2339
    %v2556 = vpack.c.b16 %v2348, %v2340
    %v2557 = vpack.c.b16 %v2357, %v2349
    %v2558 = vpack.c.b16 %v2358, %v2350
    %v2559 = vpack.c.b16 %v2359, %v2351
    %v2560 = vpack.c.b16 %v2360, %v2352
    %v2561 = vpack.c.b16 %v2361, %v2353
    %v2562 = vpack.c.b16 %v2362, %v2354
    %v2563 = vpack.c.b16 %v2363, %v2355
    %v2564 = vpack.c.b16 %v2364, %v2356
    %v2565 = vpack.c.b16 %v2373, %v2365
    %v2566 = vpack.c.b16 %v2374, %v2366
    %v2567 = vpack.c.b16 %v2375, %v2367
    %v2568 = vpack.c.b16 %v2376, %v2368
    %v2569 = vpack.c.b16 %v2377, %v2369
    %v2570 = vpack.c.b16 %v2378, %v2370
    %v2571 = vpack.c.b16 %v2379, %v2371
    %v2572 = vpack.c.b16 %v2380, %v2372
    %v2573 = vpack.c.b16 %v2389, %v2381
    %v2574 = vpack.c.b16 %v2390, %v2382
    %v2575 = vpack.c.b16 %v2391, %v2383
    %v2576 = vpack.c.b16 %v2392, %v2384
    %v2577 = vpack.c.b16 %v2393, %v2385
    %v2578 = vpack.c.b16 %v2394, %v2386
    %v2579 = vpack.c.b16 %v2395, %v2387
    %v2580 = vpack.c.b16 %v2396, %v2388
    %v2581 = vpack.c.b16 %v2405, %v2397
    %v2582 = vpack.c.b16 %v2406, %v2398
    %v2583 = vpack.c.b16 %v2407, %v2399
    %v2584 = vpack.c.b16 %v2408, %v2400
    %v2585 = vpack.c.b16 %v2409, %v2401
    %v2586 = vpack.c.b16 %v2410, %v2402
    %v2587 = vpack.c.b16 %v2411, %v2403
    %v2588 = vpack.c.b16 %v2412, %v2404
    %v2589 = vpack.c.b16 %v2421, %v2413
    %v2590 = vpack.c.b16 %v2422, %v2414
    %v2591 = vpack.c.b16 %v2423, %v2415
    %v2592 = vpack.c.b16 %v2424, %v2416
    %v2593 = vpack.c.b16 %v2425, %v2417
    %v2594 = vpack.c.b16 %v2426, %v2418
    %v2595 = vpack.c.b16 %v2427, %v2419
    %v2596 = vpack.c.b16 %v2428, %v2420
    %v2597 = vpack.c.b16 %v2437, %v2429
    %v2598 = vpack.c.b16 %v2438, %v2430
    %v2599 = vpack.c.b16 %v2439, %v2431
    %v2600 = vpack.c.b16 %v2440, %v2432
    %v2601 = vpack.c.b16 %v2441, %v2433
    %v2602 = vpack.c.b16 %v2442, %v2434
    %v2603 = vpack.c.b16 %v2443, %v2435
    %v2604 = vpack.c.b16 %v2444, %v2436
    %v2605 = vpack.c.b16 %v2453, %v2445
    %v2606 = vpack.c.b16 %v2454, %v2446
    %v2607 = vpack.c.b16 %v2455, %v2447
    %v2608 = vpack.c.b16 %v2456, %v2448
    %v2609 = vpack.c.b16 %v2457, %v2449
    %v2610 = vpack.c.b16 %v2458, %v2450
    %v2611 = vpack.c.b16 %v2459, %v2451
    %v2612 = vpack.c.b16 %v2460, %v2452
    %v2613 = vpack.c.b16 %v2469, %v2461
    %v2614 = vpack.c.b16 %v2470, %v2462
    %v2615 = vpack.c.b16 %v2471, %v2463
    %v2616 = vpack.c.b16 %v2472, %v2464
    %v2617 = vpack.c.b16 %v2473, %v2465
    %v2618 = vpack.c.b16 %v2474, %v2466
    %v2619 = vpack.c.b16 %v2475, %v2467
    %v2620 = vpack.c.b16 %v2476, %v2468
    %v2621 = vpack.c.b16 %v2485, %v2477
    %v2622 = vpack.c.b16 %v2486, %v2478
    %v2623 = vpack.c.b16 %v2487, %v2479
    %v2624 = vpack.c.b16 %v2488, %v2480
    %v2625 = vpack.c.b16 %v2489, %v2481
    %v2626 = vpack.c.b16 %v2490, %v2482
    %v2627 = vpack.c.b16 %v2491, %v2483
    %v2628 = vpack.c.b16 %v2492, %v2484
    %v2629 = vpack.c.b16 %v2501, %v2493
    %v2630 = vpack.c.b16 %v2502, %v2494
    %v2631 = vpack.c.b16 %v2503, %v2495
    %v2632 = vpack.c.b16 %v2504, %v2496
    %v2633 = vpack.c.b16 %v2505, %v2497
    %v2634 = vpack.c.b16 %v2506, %v2498
    %v2635 = vpack.c.b16 %v2507, %v2499
    %v2636 = vpack.c.b16 %v2508, %v2500
    %2765 = vmatpush.bf16.msra.mxu0 %v2565
    %2766 = vmatpush.bf16.msra.mxu0 %v2557
    %2767 = vmatpush.bf16.msra.mxu0 %v2549
    %2768 = vmatpush.bf16.msra.mxu0 %v2541
    %2769 = vmatpush.bf16.msra.mxu0 %v2533
    %2770 = vmatpush.bf16.msra.mxu0 %v2525
    %2771 = vmatpush.bf16.msra.mxu0 %v2517
    %2772 = vmatpush.bf16.msra.mxu0 %v2509
    %2773 = vmatmul.bf16.gmra.mxu0 %v1995
    %v2774 = vpop.f32.mrf.mxu0
    %v2775 = vadd.f32 0.0, %v2774
    %v2776 = vpop.f32.mrf.mxu0
    %2777 = vdwg.mxu0
    %2778 = vmatpush.bf16.msra.mxu0 %v2629
    %2779 = vmatpush.bf16.msra.mxu0 %v2621
    %2780 = vmatpush.bf16.msra.mxu0 %v2613
    %2781 = vmatpush.bf16.msra.mxu0 %v2605
    %2782 = vmatpush.bf16.msra.mxu0 %v2597
    %2783 = vmatpush.bf16.msra.mxu0 %v2589
    %2784 = vmatpush.bf16.msra.mxu0 %v2581
    %2785 = vmatpush.bf16.msra.mxu0 %v2573
    %2786 = vmatmul.bf16.gmra.mxu0 %v1996
    %v2787 = vpop.f32.mrf.mxu0
    %v2788 = vadd.f32 %v2775, %v2787
    %v2789 = vpop.f32.mrf.mxu0
    %2790 = vdwg.mxu0
    %2791 = vmatpush.bf16.msra.mxu0 %v2566
    %2792 = vmatpush.bf16.msra.mxu0 %v2558
    %2793 = vmatpush.bf16.msra.mxu0 %v2550
    %2794 = vmatpush.bf16.msra.mxu0 %v2542
    %2795 = vmatpush.bf16.msra.mxu0 %v2534
    %2796 = vmatpush.bf16.msra.mxu0 %v2526
    %2797 = vmatpush.bf16.msra.mxu0 %v2518
    %2798 = vmatpush.bf16.msra.mxu0 %v2510
    %2799 = vmatmul.bf16.gmra.mxu0 %v1995
    %v2800 = vpop.f32.mrf.mxu0
    %v2801 = vadd.f32 0.0, %v2800
    %v2802 = vpop.f32.mrf.mxu0
    %2803 = vdwg.mxu0
    %2804 = vmatpush.bf16.msra.mxu0 %v2630
    %2805 = vmatpush.bf16.msra.mxu0 %v2622
    %2806 = vmatpush.bf16.msra.mxu0 %v2614
    %2807 = vmatpush.bf16.msra.mxu0 %v2606
    %2808 = vmatpush.bf16.msra.mxu0 %v2598
    %2809 = vmatpush.bf16.msra.mxu0 %v2590
    %2810 = vmatpush.bf16.msra.mxu0 %v2582
    %2811 = vmatpush.bf16.msra.mxu0 %v2574
    %2812 = vmatmul.bf16.gmra.mxu0 %v1996
    %v2813 = vpop.f32.mrf.mxu0
    %v2814 = vadd.f32 %v2801, %v2813
    %v2815 = vpop.f32.mrf.mxu0
    %2816 = vdwg.mxu0
    %2817 = vmatpush.bf16.msra.mxu0 %v2567
    %2818 = vmatpush.bf16.msra.mxu0 %v2559
    %2819 = vmatpush.bf16.msra.mxu0 %v2551
    %2820 = vmatpush.bf16.msra.mxu0 %v2543
    %2821 = vmatpush.bf16.msra.mxu0 %v2535
    %2822 = vmatpush.bf16.msra.mxu0 %v2527
    %2823 = vmatpush.bf16.msra.mxu0 %v2519
    %2824 = vmatpush.bf16.msra.mxu0 %v2511
    %2825 = vmatmul.bf16.gmra.mxu0 %v1995
    %v2826 = vpop.f32.mrf.mxu0
    %v2827 = vadd.f32 0.0, %v2826
    %v2828 = vpop.f32.mrf.mxu0
    %2829 = vdwg.mxu0
    %2830 = vmatpush.bf16.msra.mxu0 %v2631
    %2831 = vmatpush.bf16.msra.mxu0 %v2623
    %2832 = vmatpush.bf16.msra.mxu0 %v2615
    %2833 = vmatpush.bf16.msra.mxu0 %v2607
    %2834 = vmatpush.bf16.msra.mxu0 %v2599
    %2835 = vmatpush.bf16.msra.mxu0 %v2591
    %2836 = vmatpush.bf16.msra.mxu0 %v2583
    %2837 = vmatpush.bf16.msra.mxu0 %v2575
    %2838 = vmatmul.bf16.gmra.mxu0 %v1996
    %v2839 = vpop.f32.mrf.mxu0
    %v2840 = vadd.f32 %v2827, %v2839
    %v2841 = vpop.f32.mrf.mxu0
    %2842 = vdwg.mxu0
    %2843 = vmatpush.bf16.msra.mxu0 %v2568
    %2844 = vmatpush.bf16.msra.mxu0 %v2560
    %2845 = vmatpush.bf16.msra.mxu0 %v2552
    %2846 = vmatpush.bf16.msra.mxu0 %v2544
    %2847 = vmatpush.bf16.msra.mxu0 %v2536
    %2848 = vmatpush.bf16.msra.mxu0 %v2528
    %2849 = vmatpush.bf16.msra.mxu0 %v2520
    %2850 = vmatpush.bf16.msra.mxu0 %v2512
    %2851 = vmatmul.bf16.gmra.mxu0 %v1995
    %v2852 = vpop.f32.mrf.mxu0
    %v2853 = vadd.f32 0.0, %v2852
    %v2854 = vpop.f32.mrf.mxu0
    %2855 = vdwg.mxu0
    %2856 = vmatpush.bf16.msra.mxu0 %v2632
    %2857 = vmatpush.bf16.msra.mxu0 %v2624
    %2858 = vmatpush.bf16.msra.mxu0 %v2616
    %2859 = vmatpush.bf16.msra.mxu0 %v2608
    %2860 = vmatpush.bf16.msra.mxu0 %v2600
    %2861 = vmatpush.bf16.msra.mxu0 %v2592
    %2862 = vmatpush.bf16.msra.mxu0 %v2584
    %2863 = vmatpush.bf16.msra.mxu0 %v2576
    %2864 = vmatmul.bf16.gmra.mxu0 %v1996
    %v2865 = vpop.f32.mrf.mxu0
    %v2866 = vadd.f32 %v2853, %v2865
    %v2867 = vpop.f32.mrf.mxu0
    %2868 = vdwg.mxu0
    %2869 = vmatpush.bf16.msra.mxu0 %v2569
    %2870 = vmatpush.bf16.msra.mxu0 %v2561
    %2871 = vmatpush.bf16.msra.mxu0 %v2553
    %2872 = vmatpush.bf16.msra.mxu0 %v2545
    %2873 = vmatpush.bf16.msra.mxu0 %v2537
    %2874 = vmatpush.bf16.msra.mxu0 %v2529
    %2875 = vmatpush.bf16.msra.mxu0 %v2521
    %2876 = vmatpush.bf16.msra.mxu0 %v2513
    %2877 = vmatmul.bf16.gmra.mxu0 %v1995
    %v2878 = vpop.f32.mrf.mxu0
    %v2879 = vadd.f32 0.0, %v2878
    %v2880 = vpop.f32.mrf.mxu0
    %2881 = vdwg.mxu0
    %2882 = vmatpush.bf16.msra.mxu0 %v2633
    %2883 = vmatpush.bf16.msra.mxu0 %v2625
    %2884 = vmatpush.bf16.msra.mxu0 %v2617
    %2885 = vmatpush.bf16.msra.mxu0 %v2609
    %2886 = vmatpush.bf16.msra.mxu0 %v2601
    %2887 = vmatpush.bf16.msra.mxu0 %v2593
    %2888 = vmatpush.bf16.msra.mxu0 %v2585
    %2889 = vmatpush.bf16.msra.mxu0 %v2577
    %2890 = vmatmul.bf16.gmra.mxu0 %v1996
    %v2891 = vpop.f32.mrf.mxu0
    %v2892 = vadd.f32 %v2879, %v2891
    %v2893 = vpop.f32.mrf.mxu0
    %2894 = vdwg.mxu0
    %2895 = vmatpush.bf16.msra.mxu0 %v2570
    %2896 = vmatpush.bf16.msra.mxu0 %v2562
    %2897 = vmatpush.bf16.msra.mxu0 %v2554
    %2898 = vmatpush.bf16.msra.mxu0 %v2546
    %2899 = vmatpush.bf16.msra.mxu0 %v2538
    %2900 = vmatpush.bf16.msra.mxu0 %v2530
    %2901 = vmatpush.bf16.msra.mxu0 %v2522
    %2902 = vmatpush.bf16.msra.mxu0 %v2514
    %2903 = vmatmul.bf16.gmra.mxu0 %v1995
    %v2904 = vpop.f32.mrf.mxu0
    %v2905 = vadd.f32 0.0, %v2904
    %v2906 = vpop.f32.mrf.mxu0
    %2907 = vdwg.mxu0
    %2908 = vmatpush.bf16.msra.mxu0 %v2634
    %2909 = vmatpush.bf16.msra.mxu0 %v2626
    %2910 = vmatpush.bf16.msra.mxu0 %v2618
    %2911 = vmatpush.bf16.msra.mxu0 %v2610
    %2912 = vmatpush.bf16.msra.mxu0 %v2602
    %2913 = vmatpush.bf16.msra.mxu0 %v2594
    %2914 = vmatpush.bf16.msra.mxu0 %v2586
    %2915 = vmatpush.bf16.msra.mxu0 %v2578
    %2916 = vmatmul.bf16.gmra.mxu0 %v1996
    %v2917 = vpop.f32.mrf.mxu0
    %v2918 = vadd.f32 %v2905, %v2917
    %v2919 = vpop.f32.mrf.mxu0
    %2920 = vdwg.mxu0
    %2921 = vmatpush.bf16.msra.mxu0 %v2571
    %2922 = vmatpush.bf16.msra.mxu0 %v2563
    %2923 = vmatpush.bf16.msra.mxu0 %v2555
    %2924 = vmatpush.bf16.msra.mxu0 %v2547
    %2925 = vmatpush.bf16.msra.mxu0 %v2539
    %2926 = vmatpush.bf16.msra.mxu0 %v2531
    %2927 = vmatpush.bf16.msra.mxu0 %v2523
    %2928 = vmatpush.bf16.msra.mxu0 %v2515
    %2929 = vmatmul.bf16.gmra.mxu0 %v1995
    %v2930 = vpop.f32.mrf.mxu0
    %v2931 = vadd.f32 0.0, %v2930
    %v2932 = vpop.f32.mrf.mxu0
    %2933 = vdwg.mxu0
    %2934 = vmatpush.bf16.msra.mxu0 %v2635
    %2935 = vmatpush.bf16.msra.mxu0 %v2627
    %2936 = vmatpush.bf16.msra.mxu0 %v2619
    %2937 = vmatpush.bf16.msra.mxu0 %v2611
    %2938 = vmatpush.bf16.msra.mxu0 %v2603
    %2939 = vmatpush.bf16.msra.mxu0 %v2595
    %2940 = vmatpush.bf16.msra.mxu0 %v2587
    %2941 = vmatpush.bf16.msra.mxu0 %v2579
    %2942 = vmatmul.bf16.gmra.mxu0 %v1996
    %v2943 = vpop.f32.mrf.mxu0
    %v2944 = vadd.f32 %v2931, %v2943
    %v2945 = vpop.f32.mrf.mxu0
    %2946 = vdwg.mxu0
    %2947 = vmatpush.bf16.msra.mxu0 %v2572
    %2948 = vmatpush.bf16.msra.mxu0 %v2564
    %2949 = vmatpush.bf16.msra.mxu0 %v2556
    %2950 = vmatpush.bf16.msra.mxu0 %v2548
    %2951 = vmatpush.bf16.msra.mxu0 %v2540
    %2952 = vmatpush.bf16.msra.mxu0 %v2532
    %2953 = vmatpush.bf16.msra.mxu0 %v2524
    %2954 = vmatpush.bf16.msra.mxu0 %v2516
    %2955 = vmatmul.bf16.gmra.mxu0 %v1995
    %v2956 = vpop.f32.mrf.mxu0
    %v2957 = vadd.f32 0.0, %v2956
    %v2958 = vpop.f32.mrf.mxu0
    %2959 = vdwg.mxu0
    %2960 = vmatpush.bf16.msra.mxu0 %v2636
    %2961 = vmatpush.bf16.msra.mxu0 %v2628
    %2962 = vmatpush.bf16.msra.mxu0 %v2620
    %2963 = vmatpush.bf16.msra.mxu0 %v2612
    %2964 = vmatpush.bf16.msra.mxu0 %v2604
    %2965 = vmatpush.bf16.msra.mxu0 %v2596
    %2966 = vmatpush.bf16.msra.mxu0 %v2588
    %2967 = vmatpush.bf16.msra.mxu0 %v2580
    %2968 = vmatmul.bf16.gmra.mxu0 %v1996
    %v2969 = vpop.f32.mrf.mxu0
    %v2970 = vadd.f32 %v2957, %v2969
    %v2971 = vpop.f32.mrf.mxu0
    %2972 = vdwg.mxu0
    %v2973 = vadd.f32 %v1987, %v2788
    %v2974 = vadd.f32 %v1988, %v2814
    %v2975 = vadd.f32 %v1989, %v2840
    %v2976 = vadd.f32 %v1990, %v2866
    %v2977 = vadd.f32 %v1991, %v2892
    %v2978 = vadd.f32 %v1992, %v2918
    %v2979 = vadd.f32 %v1993, %v2944
    %v2980 = vadd.f32 %v1994, %v2970
    %v2981 = vxor.u32 %v2973, 2147483648
    %v2982 = vxor.u32 %v2974, 2147483648
    %v2983 = vmul.f32 %v2981, 1.442695
    %v2984 = vpow.pop %v2983
    %v2985 = vmul.f32 %v2982, 1.442695
    %v2986 = vpow.pop %v2985
    %v2987 = vadd.f32 %v2984, 1.0
    %v2988 = vadd.f32 %v2986, 1.0
    %v2989 = vrcp.pop %v2987
    %v2990 = vmul.f32 %v2987, %v2989
    %v2991 = vsub.f32 1.0, %v2990
    %v2992 = vmul.f32 %v2989, %v2991
    %v2993 = vadd.f32 %v2989, %v2992
    %vm2994 = vweird.f32 %v2987
    %vm2995 = vweird.f32 %v2989
    %vm2996 = vmor %vm2994, %vm2995
    %v2997 = vsel %vm2996, %v2989, %v2993
    %v2998 = vand.u32 2147483647, %v2987
    %vm2999 = vcmp.eq.f32.partialorder %v2998, 8.507059e+37
    %v3000 = vand.u32 %v2987, 2147483648
    %v3001 = vor.u32 1.1754944e-38, %v3000
    %v3002 = vsel %vm2999, %v3001, %v2997
    %v3003 = vmul.f32 1.0, %v3002
    %v3004 = vrcp.pop %v2988
    %v3005 = vmul.f32 %v2988, %v3004
    %v3006 = vsub.f32 1.0, %v3005
    %v3007 = vmul.f32 %v3004, %v3006
    %v3008 = vadd.f32 %v3004, %v3007
    %vm3009 = vweird.f32 %v2988
    %vm3010 = vweird.f32 %v3004
    %vm3011 = vmor %vm3009, %vm3010
    %v3012 = vsel %vm3011, %v3004, %v3008
    %v3013 = vand.u32 2147483647, %v2988
    %vm3014 = vcmp.eq.f32.partialorder %v3013, 8.507059e+37
    %v3015 = vand.u32 %v2988, 2147483648
    %v3016 = vor.u32 1.1754944e-38, %v3015
    %v3017 = vsel %vm3014, %v3016, %v3012
    %v3018 = vmul.f32 1.0, %v3017
    %v3019 = vxor.u32 %v2975, 2147483648
    %v3020 = vxor.u32 %v2976, 2147483648
    %v3021 = vmul.f32 %v3019, 1.442695
    %v3022 = vpow.pop %v3021
    %v3023 = vmul.f32 %v3020, 1.442695
    %v3024 = vpow.pop %v3023
    %v3025 = vadd.f32 %v3022, 1.0
    %v3026 = vadd.f32 %v3024, 1.0
    %v3027 = vrcp.pop %v3025
    %v3028 = vmul.f32 %v3025, %v3027
    %v3029 = vsub.f32 1.0, %v3028
    %v3030 = vmul.f32 %v3027, %v3029
    %v3031 = vadd.f32 %v3027, %v3030
    %vm3032 = vweird.f32 %v3025
    %vm3033 = vweird.f32 %v3027
    %vm3034 = vmor %vm3032, %vm3033
    %v3035 = vsel %vm3034, %v3027, %v3031
    %v3036 = vand.u32 2147483647, %v3025
    %vm3037 = vcmp.eq.f32.partialorder %v3036, 8.507059e+37
    %v3038 = vand.u32 %v3025, 2147483648
    %v3039 = vor.u32 1.1754944e-38, %v3038
    %v3040 = vsel %vm3037, %v3039, %v3035
    %v3041 = vmul.f32 1.0, %v3040
    %v3042 = vrcp.pop %v3026
    %v3043 = vmul.f32 %v3026, %v3042
    %v3044 = vsub.f32 1.0, %v3043
    %v3045 = vmul.f32 %v3042, %v3044
    %v3046 = vadd.f32 %v3042, %v3045
    %vm3047 = vweird.f32 %v3026
    %vm3048 = vweird.f32 %v3042
    %vm3049 = vmor %vm3047, %vm3048
    %v3050 = vsel %vm3049, %v3042, %v3046
    %v3051 = vand.u32 2147483647, %v3026
    %vm3052 = vcmp.eq.f32.partialorder %v3051, 8.507059e+37
    %v3053 = vand.u32 %v3026, 2147483648
    %v3054 = vor.u32 1.1754944e-38, %v3053
    %v3055 = vsel %vm3052, %v3054, %v3050
    %v3056 = vmul.f32 1.0, %v3055
    %v3057 = vtanh.pop %v2977
    %v3058 = vtanh.pop %v2978
    %v3059 = vxor.u32 %v2979, 2147483648
    %v3060 = vxor.u32 %v2980, 2147483648
    %v3061 = vmul.f32 %v3059, 1.442695
    %v3062 = vpow.pop %v3061
    %v3063 = vmul.f32 %v3060, 1.442695
    %v3064 = vpow.pop %v3063
    %v3065 = vadd.f32 %v3062, 1.0
    %v3066 = vadd.f32 %v3064, 1.0
    %v3067 = vrcp.pop %v3065
    %v3068 = vmul.f32 %v3065, %v3067
    %v3069 = vsub.f32 1.0, %v3068
    %v3070 = vmul.f32 %v3067, %v3069
    %v3071 = vadd.f32 %v3067, %v3070
    %vm3072 = vweird.f32 %v3065
    %vm3073 = vweird.f32 %v3067
    %vm3074 = vmor %vm3072, %vm3073
    %v3075 = vsel %vm3074, %v3067, %v3071
    %v3076 = vand.u32 2147483647, %v3065
    %vm3077 = vcmp.eq.f32.partialorder %v3076, 8.507059e+37
    %v3078 = vand.u32 %v3065, 2147483648
    %v3079 = vor.u32 1.1754944e-38, %v3078
    %v3080 = vsel %vm3077, %v3079, %v3075
    %v3081 = vmul.f32 1.0, %v3080
    %v3082 = vrcp.pop %v3066
    %v3083 = vmul.f32 %v3066, %v3082
    %v3084 = vsub.f32 1.0, %v3083
    %v3085 = vmul.f32 %v3082, %v3084
    %v3086 = vadd.f32 %v3082, %v3085
    %vm3087 = vweird.f32 %v3066
    %vm3088 = vweird.f32 %v3082
    %vm3089 = vmor %vm3087, %vm3088
    %v3090 = vsel %vm3089, %v3082, %v3086
    %v3091 = vand.u32 2147483647, %v3066
    %vm3092 = vcmp.eq.f32.partialorder %v3091, 8.507059e+37
    %v3093 = vand.u32 %v3066, 2147483648
    %v3094 = vor.u32 1.1754944e-38, %v3093
    %v3095 = vsel %vm3092, %v3094, %v3090
    %v3096 = vmul.f32 1.0, %v3095
    %v3097 = vmul.f32 %v3041, %v1978
    %v3098 = vmul.f32 %v3056, %v1979
    %v3099 = vmul.f32 %v3003, %v3057
    %v3100 = vmul.f32 %v3018, %v3058
    %v3101 = vadd.f32 %v3097, %v3099
    %v3102 = vadd.f32 %v3098, %v3100
    %v3103 = vtanh.pop %v3101
    %v3104 = vtanh.pop %v3102
    %v3105 = vmul.f32 %v3081, %v3103
    %v3106 = vmul.f32 %v3096, %v3104
    %s3107 = sadd.s32 %s829, 1
    %v3108 = vstv %s3107
    %vm3109 = vcmp.lt.s32.totalorder %v3108, %v828
    %v3110 = vsel %vm3109, 1, 0
    %3111 = vset.pattern.permute.xlu0 0
    %3112 = vperm.xlu0 %3111, %v3110
    %v3113 = vpop.permute.xlu0 %3112
    %vm3114 = vcmp.eq.s32.totalorder %v3113, 1
    %v3115 = vsel %vm3114, %v3105, %v1976
    %v3116 = vsel %vm3114, %v3106, %v1977
    %3117 = vst [vmem:[#allocation3] sm:$0xff] %v3115
    %3118 = vst [vmem:[#allocation3 + $0x8] sm:$0xff] %v3116
    %v3119 = vsel %vm3114, %v3101, %v1978
    %v3120 = vsel %vm3114, %v3102, %v1979
    %3121 = vst [vmem:[#allocation4] sm:$0xff] %v3119
    %3122 = vst [vmem:[#allocation4 + $0x8] sm:$0xff] %v3120
    %v3123 = vld [vmem:[#allocation3] sm:$0xff]
    %v3124 = vld [vmem:[#allocation3 + $0x8] sm:$0xff]
    %v3125 = vld [vmem:[#allocation4] sm:$0xff]
    %v3126 = vld [vmem:[#allocation4 + $0x8] sm:$0xff]
    %s3127 = smul.u32 2, 8
    %s3128 = smul.addr %s3127, 4
    %s3129 = scalar_lea.vmem [#allocation2], %s3128
    %v3130 = vld [vmem:[%s3129] sm:$0xff]
    %v3131 = vld [vmem:[%s3129 + $0x8] sm:$0xff]
    %v3132 = vld [vmem:[%s3129 + $0x10] sm:$0xff]
    %v3133 = vld [vmem:[%s3129 + $0x18] sm:$0xff]
    %v3134 = vunpack.c.l.bf16 %v3130
    %v3135 = vunpack.c.h.bf16 %v3130
    %v3136 = vunpack.c.l.bf16 %v3131
    %v3137 = vunpack.c.h.bf16 %v3131
    %v3138 = vunpack.c.l.bf16 %v3132
    %v3139 = vunpack.c.h.bf16 %v3132
    %v3140 = vunpack.c.l.bf16 %v3133
    %v3141 = vunpack.c.h.bf16 %v3133
    %v3142 = vpack.c.bf16 %v3123, %v3123
    %v3143 = vpack.c.bf16 %v3124, %v3124
    %v3144 = vld [vmem:[#allocation10] sm:$0xff]
    %v3145 = vld [vmem:[#allocation10 + $0x8] sm:$0xff]
    %v3146 = vld [vmem:[#allocation10 + $0x10] sm:$0xff]
    %v3147 = vld [vmem:[#allocation10 + $0x18] sm:$0xff]
    %v3148 = vld [vmem:[#allocation10 + $0x20] sm:$0xff]
    %v3149 = vld [vmem:[#allocation10 + $0x28] sm:$0xff]
    %v3150 = vld [vmem:[#allocation10 + $0x30] sm:$0xff]
    %v3151 = vld [vmem:[#allocation10 + $0x38] sm:$0xff]
    %v3152 = vld [vmem:[#allocation10 + $0x40] sm:$0xff]
    %v3153 = vld [vmem:[#allocation10 + $0x48] sm:$0xff]
    %v3154 = vld [vmem:[#allocation10 + $0x50] sm:$0xff]
    %v3155 = vld [vmem:[#allocation10 + $0x58] sm:$0xff]
    %v3156 = vld [vmem:[#allocation10 + $0x60] sm:$0xff]
    %v3157 = vld [vmem:[#allocation10 + $0x68] sm:$0xff]
    %v3158 = vld [vmem:[#allocation10 + $0x70] sm:$0xff]
    %v3159 = vld [vmem:[#allocation10 + $0x78] sm:$0xff]
    %v3160 = vld [vmem:[#allocation10 + $0x80] sm:$0xff]
    %v3161 = vld [vmem:[#allocation10 + $0x88] sm:$0xff]
    %v3162 = vld [vmem:[#allocation10 + $0x90] sm:$0xff]
    %v3163 = vld [vmem:[#allocation10 + $0x98] sm:$0xff]
    %v3164 = vld [vmem:[#allocation10 + $0xa0] sm:$0xff]
    %v3165 = vld [vmem:[#allocation10 + $0xa8] sm:$0xff]
    %v3166 = vld [vmem:[#allocation10 + $0xb0] sm:$0xff]
    %v3167 = vld [vmem:[#allocation10 + $0xb8] sm:$0xff]
    %v3168 = vld [vmem:[#allocation10 + $0xc0] sm:$0xff]
    %v3169 = vld [vmem:[#allocation10 + $0xc8] sm:$0xff]
    %v3170 = vld [vmem:[#allocation10 + $0xd0] sm:$0xff]
    %v3171 = vld [vmem:[#allocation10 + $0xd8] sm:$0xff]
    %v3172 = vld [vmem:[#allocation10 + $0xe0] sm:$0xff]
    %v3173 = vld [vmem:[#allocation10 + $0xe8] sm:$0xff]
    %v3174 = vld [vmem:[#allocation10 + $0xf0] sm:$0xff]
    %v3175 = vld [vmem:[#allocation10 + $0xf8] sm:$0xff]
    %v3176 = vld [vmem:[#allocation10 + $0x100] sm:$0xff]
    %v3177 = vld [vmem:[#allocation10 + $0x108] sm:$0xff]
    %v3178 = vld [vmem:[#allocation10 + $0x110] sm:$0xff]
    %v3179 = vld [vmem:[#allocation10 + $0x118] sm:$0xff]
    %v3180 = vld [vmem:[#allocation10 + $0x120] sm:$0xff]
    %v3181 = vld [vmem:[#allocation10 + $0x128] sm:$0xff]
    %v3182 = vld [vmem:[#allocation10 + $0x130] sm:$0xff]
    %v3183 = vld [vmem:[#allocation10 + $0x138] sm:$0xff]
    %v3184 = vld [vmem:[#allocation10 + $0x140] sm:$0xff]
    %v3185 = vld [vmem:[#allocation10 + $0x148] sm:$0xff]
    %v3186 = vld [vmem:[#allocation10 + $0x150] sm:$0xff]
    %v3187 = vld [vmem:[#allocation10 + $0x158] sm:$0xff]
    %v3188 = vld [vmem:[#allocation10 + $0x160] sm:$0xff]
    %v3189 = vld [vmem:[#allocation10 + $0x168] sm:$0xff]
    %v3190 = vld [vmem:[#allocation10 + $0x170] sm:$0xff]
    %v3191 = vld [vmem:[#allocation10 + $0x178] sm:$0xff]
    %v3192 = vld [vmem:[#allocation10 + $0x180] sm:$0xff]
    %v3193 = vld [vmem:[#allocation10 + $0x188] sm:$0xff]
    %v3194 = vld [vmem:[#allocation10 + $0x190] sm:$0xff]
    %v3195 = vld [vmem:[#allocation10 + $0x198] sm:$0xff]
    %v3196 = vld [vmem:[#allocation10 + $0x1a0] sm:$0xff]
    %v3197 = vld [vmem:[#allocation10 + $0x1a8] sm:$0xff]
    %v3198 = vld [vmem:[#allocation10 + $0x1b0] sm:$0xff]
    %v3199 = vld [vmem:[#allocation10 + $0x1b8] sm:$0xff]
    %v3200 = vld [vmem:[#allocation10 + $0x1c0] sm:$0xff]
    %v3201 = vld [vmem:[#allocation10 + $0x1c8] sm:$0xff]
    %v3202 = vld [vmem:[#allocation10 + $0x1d0] sm:$0xff]
    %v3203 = vld [vmem:[#allocation10 + $0x1d8] sm:$0xff]
    %v3204 = vld [vmem:[#allocation10 + $0x1e0] sm:$0xff]
    %v3205 = vld [vmem:[#allocation10 + $0x1e8] sm:$0xff]
    %v3206 = vld [vmem:[#allocation10 + $0x1f0] sm:$0xff]
    %v3207 = vld [vmem:[#allocation10 + $0x1f8] sm:$0xff]
    %v3208 = vld [vmem:[#allocation10 + $0x200] sm:$0xff]
    %v3209 = vld [vmem:[#allocation10 + $0x208] sm:$0xff]
    %v3210 = vld [vmem:[#allocation10 + $0x210] sm:$0xff]
    %v3211 = vld [vmem:[#allocation10 + $0x218] sm:$0xff]
    %v3212 = vld [vmem:[#allocation10 + $0x220] sm:$0xff]
    %v3213 = vld [vmem:[#allocation10 + $0x228] sm:$0xff]
    %v3214 = vld [vmem:[#allocation10 + $0x230] sm:$0xff]
    %v3215 = vld [vmem:[#allocation10 + $0x238] sm:$0xff]
    %v3216 = vld [vmem:[#allocation10 + $0x240] sm:$0xff]
    %v3217 = vld [vmem:[#allocation10 + $0x248] sm:$0xff]
    %v3218 = vld [vmem:[#allocation10 + $0x250] sm:$0xff]
    %v3219 = vld [vmem:[#allocation10 + $0x258] sm:$0xff]
    %v3220 = vld [vmem:[#allocation10 + $0x260] sm:$0xff]
    %v3221 = vld [vmem:[#allocation10 + $0x268] sm:$0xff]
    %v3222 = vld [vmem:[#allocation10 + $0x270] sm:$0xff]
    %v3223 = vld [vmem:[#allocation10 + $0x278] sm:$0xff]
    %v3224 = vld [vmem:[#allocation10 + $0x280] sm:$0xff]
    %v3225 = vld [vmem:[#allocation10 + $0x288] sm:$0xff]
    %v3226 = vld [vmem:[#allocation10 + $0x290] sm:$0xff]
    %v3227 = vld [vmem:[#allocation10 + $0x298] sm:$0xff]
    %v3228 = vld [vmem:[#allocation10 + $0x2a0] sm:$0xff]
    %v3229 = vld [vmem:[#allocation10 + $0x2a8] sm:$0xff]
    %v3230 = vld [vmem:[#allocation10 + $0x2b0] sm:$0xff]
    %v3231 = vld [vmem:[#allocation10 + $0x2b8] sm:$0xff]
    %v3232 = vld [vmem:[#allocation10 + $0x2c0] sm:$0xff]
    %v3233 = vld [vmem:[#allocation10 + $0x2c8] sm:$0xff]
    %v3234 = vld [vmem:[#allocation10 + $0x2d0] sm:$0xff]
    %v3235 = vld [vmem:[#allocation10 + $0x2d8] sm:$0xff]
    %v3236 = vld [vmem:[#allocation10 + $0x2e0] sm:$0xff]
    %v3237 = vld [vmem:[#allocation10 + $0x2e8] sm:$0xff]
    %v3238 = vld [vmem:[#allocation10 + $0x2f0] sm:$0xff]
    %v3239 = vld [vmem:[#allocation10 + $0x2f8] sm:$0xff]
    %v3240 = vld [vmem:[#allocation10 + $0x300] sm:$0xff]
    %v3241 = vld [vmem:[#allocation10 + $0x308] sm:$0xff]
    %v3242 = vld [vmem:[#allocation10 + $0x310] sm:$0xff]
    %v3243 = vld [vmem:[#allocation10 + $0x318] sm:$0xff]
    %v3244 = vld [vmem:[#allocation10 + $0x320] sm:$0xff]
    %v3245 = vld [vmem:[#allocation10 + $0x328] sm:$0xff]
    %v3246 = vld [vmem:[#allocation10 + $0x330] sm:$0xff]
    %v3247 = vld [vmem:[#allocation10 + $0x338] sm:$0xff]
    %v3248 = vld [vmem:[#allocation10 + $0x340] sm:$0xff]
    %v3249 = vld [vmem:[#allocation10 + $0x348] sm:$0xff]
    %v3250 = vld [vmem:[#allocation10 + $0x350] sm:$0xff]
    %v3251 = vld [vmem:[#allocation10 + $0x358] sm:$0xff]
    %v3252 = vld [vmem:[#allocation10 + $0x360] sm:$0xff]
    %v3253 = vld [vmem:[#allocation10 + $0x368] sm:$0xff]
    %v3254 = vld [vmem:[#allocation10 + $0x370] sm:$0xff]
    %v3255 = vld [vmem:[#allocation10 + $0x378] sm:$0xff]
    %v3256 = vld [vmem:[#allocation10 + $0x380] sm:$0xff]
    %v3257 = vld [vmem:[#allocation10 + $0x388] sm:$0xff]
    %v3258 = vld [vmem:[#allocation10 + $0x390] sm:$0xff]
    %v3259 = vld [vmem:[#allocation10 + $0x398] sm:$0xff]
    %v3260 = vld [vmem:[#allocation10 + $0x3a0] sm:$0xff]
    %v3261 = vld [vmem:[#allocation10 + $0x3a8] sm:$0xff]
    %v3262 = vld [vmem:[#allocation10 + $0x3b0] sm:$0xff]
    %v3263 = vld [vmem:[#allocation10 + $0x3b8] sm:$0xff]
    %v3264 = vld [vmem:[#allocation10 + $0x3c0] sm:$0xff]
    %v3265 = vld [vmem:[#allocation10 + $0x3c8] sm:$0xff]
    %v3266 = vld [vmem:[#allocation10 + $0x3d0] sm:$0xff]
    %v3267 = vld [vmem:[#allocation10 + $0x3d8] sm:$0xff]
    %v3268 = vld [vmem:[#allocation10 + $0x3e0] sm:$0xff]
    %v3269 = vld [vmem:[#allocation10 + $0x3e8] sm:$0xff]
    %v3270 = vld [vmem:[#allocation10 + $0x3f0] sm:$0xff]
    %v3271 = vld [vmem:[#allocation10 + $0x3f8] sm:$0xff]
    %v3400 = vunpack.c.l.b16 %v3144
    %v3401 = vunpack.c.h.b16 %v3144
    %v3402 = vunpack.c.l.b16 %v3145
    %v3403 = vunpack.c.h.b16 %v3145
    %v3404 = vunpack.c.l.b16 %v3146
    %v3405 = vunpack.c.h.b16 %v3146
    %v3406 = vunpack.c.l.b16 %v3147
    %v3407 = vunpack.c.h.b16 %v3147
    %v3408 = vunpack.c.l.b16 %v3148
    %v3409 = vunpack.c.h.b16 %v3148
    %v3410 = vunpack.c.l.b16 %v3149
    %v3411 = vunpack.c.h.b16 %v3149
    %v3412 = vunpack.c.l.b16 %v3150
    %v3413 = vunpack.c.h.b16 %v3150
    %v3414 = vunpack.c.l.b16 %v3151
    %v3415 = vunpack.c.h.b16 %v3151
    %v3416 = vunpack.c.l.b16 %v3152
    %v3417 = vunpack.c.h.b16 %v3152
    %v3418 = vunpack.c.l.b16 %v3153
    %v3419 = vunpack.c.h.b16 %v3153
    %v3420 = vunpack.c.l.b16 %v3154
    %v3421 = vunpack.c.h.b16 %v3154
    %v3422 = vunpack.c.l.b16 %v3155
    %v3423 = vunpack.c.h.b16 %v3155
    %v3424 = vunpack.c.l.b16 %v3156
    %v3425 = vunpack.c.h.b16 %v3156
    %v3426 = vunpack.c.l.b16 %v3157
    %v3427 = vunpack.c.h.b16 %v3157
    %v3428 = vunpack.c.l.b16 %v3158
    %v3429 = vunpack.c.h.b16 %v3158
    %v3430 = vunpack.c.l.b16 %v3159
    %v3431 = vunpack.c.h.b16 %v3159
    %v3432 = vunpack.c.l.b16 %v3160
    %v3433 = vunpack.c.h.b16 %v3160
    %v3434 = vunpack.c.l.b16 %v3161
    %v3435 = vunpack.c.h.b16 %v3161
    %v3436 = vunpack.c.l.b16 %v3162
    %v3437 = vunpack.c.h.b16 %v3162
    %v3438 = vunpack.c.l.b16 %v3163
    %v3439 = vunpack.c.h.b16 %v3163
    %v3440 = vunpack.c.l.b16 %v3164
    %v3441 = vunpack.c.h.b16 %v3164
    %v3442 = vunpack.c.l.b16 %v3165
    %v3443 = vunpack.c.h.b16 %v3165
    %v3444 = vunpack.c.l.b16 %v3166
    %v3445 = vunpack.c.h.b16 %v3166
    %v3446 = vunpack.c.l.b16 %v3167
    %v3447 = vunpack.c.h.b16 %v3167
    %v3448 = vunpack.c.l.b16 %v3168
    %v3449 = vunpack.c.h.b16 %v3168
    %v3450 = vunpack.c.l.b16 %v3169
    %v3451 = vunpack.c.h.b16 %v3169
    %v3452 = vunpack.c.l.b16 %v3170
    %v3453 = vunpack.c.h.b16 %v3170
    %v3454 = vunpack.c.l.b16 %v3171
    %v3455 = vunpack.c.h.b16 %v3171
    %v3456 = vunpack.c.l.b16 %v3172
    %v3457 = vunpack.c.h.b16 %v3172
    %v3458 = vunpack.c.l.b16 %v3173
    %v3459 = vunpack.c.h.b16 %v3173
    %v3460 = vunpack.c.l.b16 %v3174
    %v3461 = vunpack.c.h.b16 %v3174
    %v3462 = vunpack.c.l.b16 %v3175
    %v3463 = vunpack.c.h.b16 %v3175
    %v3464 = vunpack.c.l.b16 %v3176
    %v3465 = vunpack.c.h.b16 %v3176
    %v3466 = vunpack.c.l.b16 %v3177
    %v3467 = vunpack.c.h.b16 %v3177
    %v3468 = vunpack.c.l.b16 %v3178
    %v3469 = vunpack.c.h.b16 %v3178
    %v3470 = vunpack.c.l.b16 %v3179
    %v3471 = vunpack.c.h.b16 %v3179
    %v3472 = vunpack.c.l.b16 %v3180
    %v3473 = vunpack.c.h.b16 %v3180
    %v3474 = vunpack.c.l.b16 %v3181
    %v3475 = vunpack.c.h.b16 %v3181
    %v3476 = vunpack.c.l.b16 %v3182
    %v3477 = vunpack.c.h.b16 %v3182
    %v3478 = vunpack.c.l.b16 %v3183
    %v3479 = vunpack.c.h.b16 %v3183
    %v3480 = vunpack.c.l.b16 %v3184
    %v3481 = vunpack.c.h.b16 %v3184
    %v3482 = vunpack.c.l.b16 %v3185
    %v3483 = vunpack.c.h.b16 %v3185
    %v3484 = vunpack.c.l.b16 %v3186
    %v3485 = vunpack.c.h.b16 %v3186
    %v3486 = vunpack.c.l.b16 %v3187
    %v3487 = vunpack.c.h.b16 %v3187
    %v3488 = vunpack.c.l.b16 %v3188
    %v3489 = vunpack.c.h.b16 %v3188
    %v3490 = vunpack.c.l.b16 %v3189
    %v3491 = vunpack.c.h.b16 %v3189
    %v3492 = vunpack.c.l.b16 %v3190
    %v3493 = vunpack.c.h.b16 %v3190
    %v3494 = vunpack.c.l.b16 %v3191
    %v3495 = vunpack.c.h.b16 %v3191
    %v3496 = vunpack.c.l.b16 %v3192
    %v3497 = vunpack.c.h.b16 %v3192
    %v3498 = vunpack.c.l.b16 %v3193
    %v3499 = vunpack.c.h.b16 %v3193
    %v3500 = vunpack.c.l.b16 %v3194
    %v3501 = vunpack.c.h.b16 %v3194
    %v3502 = vunpack.c.l.b16 %v3195
    %v3503 = vunpack.c.h.b16 %v3195
    %v3504 = vunpack.c.l.b16 %v3196
    %v3505 = vunpack.c.h.b16 %v3196
    %v3506 = vunpack.c.l.b16 %v3197
    %v3507 = vunpack.c.h.b16 %v3197
    %v3508 = vunpack.c.l.b16 %v3198
    %v3509 = vunpack.c.h.b16 %v3198
    %v3510 = vunpack.c.l.b16 %v3199
    %v3511 = vunpack.c.h.b16 %v3199
    %v3512 = vunpack.c.l.b16 %v3200
    %v3513 = vunpack.c.h.b16 %v3200
    %v3514 = vunpack.c.l.b16 %v3201
    %v3515 = vunpack.c.h.b16 %v3201
    %v3516 = vunpack.c.l.b16 %v3202
    %v3517 = vunpack.c.h.b16 %v3202
    %v3518 = vunpack.c.l.b16 %v3203
    %v3519 = vunpack.c.h.b16 %v3203
    %v3520 = vunpack.c.l.b16 %v3204
    %v3521 = vunpack.c.h.b16 %v3204
    %v3522 = vunpack.c.l.b16 %v3205
    %v3523 = vunpack.c.h.b16 %v3205
    %v3524 = vunpack.c.l.b16 %v3206
    %v3525 = vunpack.c.h.b16 %v3206
    %v3526 = vunpack.c.l.b16 %v3207
    %v3527 = vunpack.c.h.b16 %v3207
    %v3528 = vunpack.c.l.b16 %v3208
    %v3529 = vunpack.c.h.b16 %v3208
    %v3530 = vunpack.c.l.b16 %v3209
    %v3531 = vunpack.c.h.b16 %v3209
    %v3532 = vunpack.c.l.b16 %v3210
    %v3533 = vunpack.c.h.b16 %v3210
    %v3534 = vunpack.c.l.b16 %v3211
    %v3535 = vunpack.c.h.b16 %v3211
    %v3536 = vunpack.c.l.b16 %v3212
    %v3537 = vunpack.c.h.b16 %v3212
    %v3538 = vunpack.c.l.b16 %v3213
    %v3539 = vunpack.c.h.b16 %v3213
    %v3540 = vunpack.c.l.b16 %v3214
    %v3541 = vunpack.c.h.b16 %v3214
    %v3542 = vunpack.c.l.b16 %v3215
    %v3543 = vunpack.c.h.b16 %v3215
    %v3544 = vunpack.c.l.b16 %v3216
    %v3545 = vunpack.c.h.b16 %v3216
    %v3546 = vunpack.c.l.b16 %v3217
    %v3547 = vunpack.c.h.b16 %v3217
    %v3548 = vunpack.c.l.b16 %v3218
    %v3549 = vunpack.c.h.b16 %v3218
    %v3550 = vunpack.c.l.b16 %v3219
    %v3551 = vunpack.c.h.b16 %v3219
    %v3552 = vunpack.c.l.b16 %v3220
    %v3553 = vunpack.c.h.b16 %v3220
    %v3554 = vunpack.c.l.b16 %v3221
    %v3555 = vunpack.c.h.b16 %v3221
    %v3556 = vunpack.c.l.b16 %v3222
    %v3557 = vunpack.c.h.b16 %v3222
    %v3558 = vunpack.c.l.b16 %v3223
    %v3559 = vunpack.c.h.b16 %v3223
    %v3560 = vunpack.c.l.b16 %v3224
    %v3561 = vunpack.c.h.b16 %v3224
    %v3562 = vunpack.c.l.b16 %v3225
    %v3563 = vunpack.c.h.b16 %v3225
    %v3564 = vunpack.c.l.b16 %v3226
    %v3565 = vunpack.c.h.b16 %v3226
    %v3566 = vunpack.c.l.b16 %v3227
    %v3567 = vunpack.c.h.b16 %v3227
    %v3568 = vunpack.c.l.b16 %v3228
    %v3569 = vunpack.c.h.b16 %v3228
    %v3570 = vunpack.c.l.b16 %v3229
    %v3571 = vunpack.c.h.b16 %v3229
    %v3572 = vunpack.c.l.b16 %v3230
    %v3573 = vunpack.c.h.b16 %v3230
    %v3574 = vunpack.c.l.b16 %v3231
    %v3575 = vunpack.c.h.b16 %v3231
    %v3576 = vunpack.c.l.b16 %v3232
    %v3577 = vunpack.c.h.b16 %v3232
    %v3578 = vunpack.c.l.b16 %v3233
    %v3579 = vunpack.c.h.b16 %v3233
    %v3580 = vunpack.c.l.b16 %v3234
    %v3581 = vunpack.c.h.b16 %v3234
    %v3582 = vunpack.c.l.b16 %v3235
    %v3583 = vunpack.c.h.b16 %v3235
    %v3584 = vunpack.c.l.b16 %v3236
    %v3585 = vunpack.c.h.b16 %v3236
    %v3586 = vunpack.c.l.b16 %v3237
    %v3587 = vunpack.c.h.b16 %v3237
    %v3588 = vunpack.c.l.b16 %v3238
    %v3589 = vunpack.c.h.b16 %v3238
    %v3590 = vunpack.c.l.b16 %v3239
    %v3591 = vunpack.c.h.b16 %v3239
    %v3592 = vunpack.c.l.b16 %v3240
    %v3593 = vunpack.c.h.b16 %v3240
    %v3594 = vunpack.c.l.b16 %v3241
    %v3595 = vunpack.c.h.b16 %v3241
    %v3596 = vunpack.c.l.b16 %v3242
    %v3597 = vunpack.c.h.b16 %v3242
    %v3598 = vunpack.c.l.b16 %v3243
    %v3599 = vunpack.c.h.b16 %v3243
    %v3600 = vunpack.c.l.b16 %v3244
    %v3601 = vunpack.c.h.b16 %v3244
    %v3602 = vunpack.c.l.b16 %v3245
    %v3603 = vunpack.c.h.b16 %v3245
    %v3604 = vunpack.c.l.b16 %v3246
    %v3605 = vunpack.c.h.b16 %v3246
    %v3606 = vunpack.c.l.b16 %v3247
    %v3607 = vunpack.c.h.b16 %v3247
    %v3608 = vunpack.c.l.b16 %v3248
    %v3609 = vunpack.c.h.b16 %v3248
    %v3610 = vunpack.c.l.b16 %v3249
    %v3611 = vunpack.c.h.b16 %v3249
    %v3612 = vunpack.c.l.b16 %v3250
    %v3613 = vunpack.c.h.b16 %v3250
    %v3614 = vunpack.c.l.b16 %v3251
    %v3615 = vunpack.c.h.b16 %v3251
    %v3616 = vunpack.c.l.b16 %v3252
    %v3617 = vunpack.c.h.b16 %v3252
    %v3618 = vunpack.c.l.b16 %v3253
    %v3619 = vunpack.c.h.b16 %v3253
    %v3620 = vunpack.c.l.b16 %v3254
    %v3621 = vunpack.c.h.b16 %v3254
    %v3622 = vunpack.c.l.b16 %v3255
    %v3623 = vunpack.c.h.b16 %v3255
    %v3624 = vunpack.c.l.b16 %v3256
    %v3625 = vunpack.c.h.b16 %v3256
    %v3626 = vunpack.c.l.b16 %v3257
    %v3627 = vunpack.c.h.b16 %v3257
    %v3628 = vunpack.c.l.b16 %v3258
    %v3629 = vunpack.c.h.b16 %v3258
    %v3630 = vunpack.c.l.b16 %v3259
    %v3631 = vunpack.c.h.b16 %v3259
    %v3632 = vunpack.c.l.b16 %v3260
    %v3633 = vunpack.c.h.b16 %v3260
    %v3634 = vunpack.c.l.b16 %v3261
    %v3635 = vunpack.c.h.b16 %v3261
    %v3636 = vunpack.c.l.b16 %v3262
    %v3637 = vunpack.c.h.b16 %v3262
    %v3638 = vunpack.c.l.b16 %v3263
    %v3639 = vunpack.c.h.b16 %v3263
    %v3640 = vunpack.c.l.b16 %v3264
    %v3641 = vunpack.c.h.b16 %v3264
    %v3642 = vunpack.c.l.b16 %v3265
    %v3643 = vunpack.c.h.b16 %v3265
    %v3644 = vunpack.c.l.b16 %v3266
    %v3645 = vunpack.c.h.b16 %v3266
    %v3646 = vunpack.c.l.b16 %v3267
    %v3647 = vunpack.c.h.b16 %v3267
    %v3648 = vunpack.c.l.b16 %v3268
    %v3649 = vunpack.c.h.b16 %v3268
    %v3650 = vunpack.c.l.b16 %v3269
    %v3651 = vunpack.c.h.b16 %v3269
    %v3652 = vunpack.c.l.b16 %v3270
    %v3653 = vunpack.c.h.b16 %v3270
    %v3654 = vunpack.c.l.b16 %v3271
    %v3655 = vunpack.c.h.b16 %v3271
    %v3656 = vpack.c.b16 %v3408, %v3400
    %v3657 = vpack.c.b16 %v3409, %v3401
    %v3658 = vpack.c.b16 %v3410, %v3402
    %v3659 = vpack.c.b16 %v3411, %v3403
    %v3660 = vpack.c.b16 %v3412, %v3404
    %v3661 = vpack.c.b16 %v3413, %v3405
    %v3662 = vpack.c.b16 %v3414, %v3406
    %v3663 = vpack.c.b16 %v3415, %v3407
    %v3664 = vpack.c.b16 %v3424, %v3416
    %v3665 = vpack.c.b16 %v3425, %v3417
    %v3666 = vpack.c.b16 %v3426, %v3418
    %v3667 = vpack.c.b16 %v3427, %v3419
    %v3668 = vpack.c.b16 %v3428, %v3420
    %v3669 = vpack.c.b16 %v3429, %v3421
    %v3670 = vpack.c.b16 %v3430, %v3422
    %v3671 = vpack.c.b16 %v3431, %v3423
    %v3672 = vpack.c.b16 %v3440, %v3432
    %v3673 = vpack.c.b16 %v3441, %v3433
    %v3674 = vpack.c.b16 %v3442, %v3434
    %v3675 = vpack.c.b16 %v3443, %v3435
    %v3676 = vpack.c.b16 %v3444, %v3436
    %v3677 = vpack.c.b16 %v3445, %v3437
    %v3678 = vpack.c.b16 %v3446, %v3438
    %v3679 = vpack.c.b16 %v3447, %v3439
    %v3680 = vpack.c.b16 %v3456, %v3448
    %v3681 = vpack.c.b16 %v3457, %v3449
    %v3682 = vpack.c.b16 %v3458, %v3450
    %v3683 = vpack.c.b16 %v3459, %v3451
    %v3684 = vpack.c.b16 %v3460, %v3452
    %v3685 = vpack.c.b16 %v3461, %v3453
    %v3686 = vpack.c.b16 %v3462, %v3454
    %v3687 = vpack.c.b16 %v3463, %v3455
    %v3688 = vpack.c.b16 %v3472, %v3464
    %v3689 = vpack.c.b16 %v3473, %v3465
    %v3690 = vpack.c.b16 %v3474, %v3466
    %v3691 = vpack.c.b16 %v3475, %v3467
    %v3692 = vpack.c.b16 %v3476, %v3468
    %v3693 = vpack.c.b16 %v3477, %v3469
    %v3694 = vpack.c.b16 %v3478, %v3470
    %v3695 = vpack.c.b16 %v3479, %v3471
    %v3696 = vpack.c.b16 %v3488, %v3480
    %v3697 = vpack.c.b16 %v3489, %v3481
    %v3698 = vpack.c.b16 %v3490, %v3482
    %v3699 = vpack.c.b16 %v3491, %v3483
    %v3700 = vpack.c.b16 %v3492, %v3484
    %v3701 = vpack.c.b16 %v3493, %v3485
    %v3702 = vpack.c.b16 %v3494, %v3486
    %v3703 = vpack.c.b16 %v3495, %v3487
    %v3704 = vpack.c.b16 %v3504, %v3496
    %v3705 = vpack.c.b16 %v3505, %v3497
    %v3706 = vpack.c.b16 %v3506, %v3498
    %v3707 = vpack.c.b16 %v3507, %v3499
    %v3708 = vpack.c.b16 %v3508, %v3500
    %v3709 = vpack.c.b16 %v3509, %v3501
    %v3710 = vpack.c.b16 %v3510, %v3502
    %v3711 = vpack.c.b16 %v3511, %v3503
    %v3712 = vpack.c.b16 %v3520, %v3512
    %v3713 = vpack.c.b16 %v3521, %v3513
    %v3714 = vpack.c.b16 %v3522, %v3514
    %v3715 = vpack.c.b16 %v3523, %v3515
    %v3716 = vpack.c.b16 %v3524, %v3516
    %v3717 = vpack.c.b16 %v3525, %v3517
    %v3718 = vpack.c.b16 %v3526, %v3518
    %v3719 = vpack.c.b16 %v3527, %v3519
    %v3720 = vpack.c.b16 %v3536, %v3528
    %v3721 = vpack.c.b16 %v3537, %v3529
    %v3722 = vpack.c.b16 %v3538, %v3530
    %v3723 = vpack.c.b16 %v3539, %v3531
    %v3724 = vpack.c.b16 %v3540, %v3532
    %v3725 = vpack.c.b16 %v3541, %v3533
    %v3726 = vpack.c.b16 %v3542, %v3534
    %v3727 = vpack.c.b16 %v3543, %v3535
    %v3728 = vpack.c.b16 %v3552, %v3544
    %v3729 = vpack.c.b16 %v3553, %v3545
    %v3730 = vpack.c.b16 %v3554, %v3546
    %v3731 = vpack.c.b16 %v3555, %v3547
    %v3732 = vpack.c.b16 %v3556, %v3548
    %v3733 = vpack.c.b16 %v3557, %v3549
    %v3734 = vpack.c.b16 %v3558, %v3550
    %v3735 = vpack.c.b16 %v3559, %v3551
    %v3736 = vpack.c.b16 %v3568, %v3560
    %v3737 = vpack.c.b16 %v3569, %v3561
    %v3738 = vpack.c.b16 %v3570, %v3562
    %v3739 = vpack.c.b16 %v3571, %v3563
    %v3740 = vpack.c.b16 %v3572, %v3564
    %v3741 = vpack.c.b16 %v3573, %v3565
    %v3742 = vpack.c.b16 %v3574, %v3566
    %v3743 = vpack.c.b16 %v3575, %v3567
    %v3744 = vpack.c.b16 %v3584, %v3576
    %v3745 = vpack.c.b16 %v3585, %v3577
    %v3746 = vpack.c.b16 %v3586, %v3578
    %v3747 = vpack.c.b16 %v3587, %v3579
    %v3748 = vpack.c.b16 %v3588, %v3580
    %v3749 = vpack.c.b16 %v3589, %v3581
    %v3750 = vpack.c.b16 %v3590, %v3582
    %v3751 = vpack.c.b16 %v3591, %v3583
    %v3752 = vpack.c.b16 %v3600, %v3592
    %v3753 = vpack.c.b16 %v3601, %v3593
    %v3754 = vpack.c.b16 %v3602, %v3594
    %v3755 = vpack.c.b16 %v3603, %v3595
    %v3756 = vpack.c.b16 %v3604, %v3596
    %v3757 = vpack.c.b16 %v3605, %v3597
    %v3758 = vpack.c.b16 %v3606, %v3598
    %v3759 = vpack.c.b16 %v3607, %v3599
    %v3760 = vpack.c.b16 %v3616, %v3608
    %v3761 = vpack.c.b16 %v3617, %v3609
    %v3762 = vpack.c.b16 %v3618, %v3610
    %v3763 = vpack.c.b16 %v3619, %v3611
    %v3764 = vpack.c.b16 %v3620, %v3612
    %v3765 = vpack.c.b16 %v3621, %v3613
    %v3766 = vpack.c.b16 %v3622, %v3614
    %v3767 = vpack.c.b16 %v3623, %v3615
    %v3768 = vpack.c.b16 %v3632, %v3624
    %v3769 = vpack.c.b16 %v3633, %v3625
    %v3770 = vpack.c.b16 %v3634, %v3626
    %v3771 = vpack.c.b16 %v3635, %v3627
    %v3772 = vpack.c.b16 %v3636, %v3628
    %v3773 = vpack.c.b16 %v3637, %v3629
    %v3774 = vpack.c.b16 %v3638, %v3630
    %v3775 = vpack.c.b16 %v3639, %v3631
    %v3776 = vpack.c.b16 %v3648, %v3640
    %v3777 = vpack.c.b16 %v3649, %v3641
    %v3778 = vpack.c.b16 %v3650, %v3642
    %v3779 = vpack.c.b16 %v3651, %v3643
    %v3780 = vpack.c.b16 %v3652, %v3644
    %v3781 = vpack.c.b16 %v3653, %v3645
    %v3782 = vpack.c.b16 %v3654, %v3646
    %v3783 = vpack.c.b16 %v3655, %v3647
    %3912 = vmatpush.bf16.msra.mxu0 %v3712
    %3913 = vmatpush.bf16.msra.mxu0 %v3704
    %3914 = vmatpush.bf16.msra.mxu0 %v3696
    %3915 = vmatpush.bf16.msra.mxu0 %v3688
    %3916 = vmatpush.bf16.msra.mxu0 %v3680
    %3917 = vmatpush.bf16.msra.mxu0 %v3672
    %3918 = vmatpush.bf16.msra.mxu0 %v3664
    %3919 = vmatpush.bf16.msra.mxu0 %v3656
    %3920 = vmatmul.bf16.gmra.mxu0 %v3142
    %v3921 = vpop.f32.mrf.mxu0
    %v3922 = vadd.f32 0.0, %v3921
    %v3923 = vpop.f32.mrf.mxu0
    %3924 = vdwg.mxu0
    %3925 = vmatpush.bf16.msra.mxu0 %v3776
    %3926 = vmatpush.bf16.msra.mxu0 %v3768
    %3927 = vmatpush.bf16.msra.mxu0 %v3760
    %3928 = vmatpush.bf16.msra.mxu0 %v3752
    %3929 = vmatpush.bf16.msra.mxu0 %v3744
    %3930 = vmatpush.bf16.msra.mxu0 %v3736
    %3931 = vmatpush.bf16.msra.mxu0 %v3728
    %3932 = vmatpush.bf16.msra.mxu0 %v3720
    %3933 = vmatmul.bf16.gmra.mxu0 %v3143
    %v3934 = vpop.f32.mrf.mxu0
    %v3935 = vadd.f32 %v3922, %v3934
    %v3936 = vpop.f32.mrf.mxu0
    %3937 = vdwg.mxu0
    %3938 = vmatpush.bf16.msra.mxu0 %v3713
    %3939 = vmatpush.bf16.msra.mxu0 %v3705
    %3940 = vmatpush.bf16.msra.mxu0 %v3697
    %3941 = vmatpush.bf16.msra.mxu0 %v3689
    %3942 = vmatpush.bf16.msra.mxu0 %v3681
    %3943 = vmatpush.bf16.msra.mxu0 %v3673
    %3944 = vmatpush.bf16.msra.mxu0 %v3665
    %3945 = vmatpush.bf16.msra.mxu0 %v3657
    %3946 = vmatmul.bf16.gmra.mxu0 %v3142
    %v3947 = vpop.f32.mrf.mxu0
    %v3948 = vadd.f32 0.0, %v3947
    %v3949 = vpop.f32.mrf.mxu0
    %3950 = vdwg.mxu0
    %3951 = vmatpush.bf16.msra.mxu0 %v3777
    %3952 = vmatpush.bf16.msra.mxu0 %v3769
    %3953 = vmatpush.bf16.msra.mxu0 %v3761
    %3954 = vmatpush.bf16.msra.mxu0 %v3753
    %3955 = vmatpush.bf16.msra.mxu0 %v3745
    %3956 = vmatpush.bf16.msra.mxu0 %v3737
    %3957 = vmatpush.bf16.msra.mxu0 %v3729
    %3958 = vmatpush.bf16.msra.mxu0 %v3721
    %3959 = vmatmul.bf16.gmra.mxu0 %v3143
    %v3960 = vpop.f32.mrf.mxu0
    %v3961 = vadd.f32 %v3948, %v3960
    %v3962 = vpop.f32.mrf.mxu0
    %3963 = vdwg.mxu0
    %3964 = vmatpush.bf16.msra.mxu0 %v3714
    %3965 = vmatpush.bf16.msra.mxu0 %v3706
    %3966 = vmatpush.bf16.msra.mxu0 %v3698
    %3967 = vmatpush.bf16.msra.mxu0 %v3690
    %3968 = vmatpush.bf16.msra.mxu0 %v3682
    %3969 = vmatpush.bf16.msra.mxu0 %v3674
    %3970 = vmatpush.bf16.msra.mxu0 %v3666
    %3971 = vmatpush.bf16.msra.mxu0 %v3658
    %3972 = vmatmul.bf16.gmra.mxu0 %v3142
    %v3973 = vpop.f32.mrf.mxu0
    %v3974 = vadd.f32 0.0, %v3973
    %v3975 = vpop.f32.mrf.mxu0
    %3976 = vdwg.mxu0
    %3977 = vmatpush.bf16.msra.mxu0 %v3778
    %3978 = vmatpush.bf16.msra.mxu0 %v3770
    %3979 = vmatpush.bf16.msra.mxu0 %v3762
    %3980 = vmatpush.bf16.msra.mxu0 %v3754
    %3981 = vmatpush.bf16.msra.mxu0 %v3746
    %3982 = vmatpush.bf16.msra.mxu0 %v3738
    %3983 = vmatpush.bf16.msra.mxu0 %v3730
    %3984 = vmatpush.bf16.msra.mxu0 %v3722
    %3985 = vmatmul.bf16.gmra.mxu0 %v3143
    %v3986 = vpop.f32.mrf.mxu0
    %v3987 = vadd.f32 %v3974, %v3986
    %v3988 = vpop.f32.mrf.mxu0
    %3989 = vdwg.mxu0
    %3990 = vmatpush.bf16.msra.mxu0 %v3715
    %3991 = vmatpush.bf16.msra.mxu0 %v3707
    %3992 = vmatpush.bf16.msra.mxu0 %v3699
    %3993 = vmatpush.bf16.msra.mxu0 %v3691
    %3994 = vmatpush.bf16.msra.mxu0 %v3683
    %3995 = vmatpush.bf16.msra.mxu0 %v3675
    %3996 = vmatpush.bf16.msra.mxu0 %v3667
    %3997 = vmatpush.bf16.msra.mxu0 %v3659
    %3998 = vmatmul.bf16.gmra.mxu0 %v3142
    %v3999 = vpop.f32.mrf.mxu0
    %v4000 = vadd.f32 0.0, %v3999
    %v4001 = vpop.f32.mrf.mxu0
    %4002 = vdwg.mxu0
    %4003 = vmatpush.bf16.msra.mxu0 %v3779
    %4004 = vmatpush.bf16.msra.mxu0 %v3771
    %4005 = vmatpush.bf16.msra.mxu0 %v3763
    %4006 = vmatpush.bf16.msra.mxu0 %v3755
    %4007 = vmatpush.bf16.msra.mxu0 %v3747
    %4008 = vmatpush.bf16.msra.mxu0 %v3739
    %4009 = vmatpush.bf16.msra.mxu0 %v3731
    %4010 = vmatpush.bf16.msra.mxu0 %v3723
    %4011 = vmatmul.bf16.gmra.mxu0 %v3143
    %v4012 = vpop.f32.mrf.mxu0
    %v4013 = vadd.f32 %v4000, %v4012
    %v4014 = vpop.f32.mrf.mxu0
    %4015 = vdwg.mxu0
    %4016 = vmatpush.bf16.msra.mxu0 %v3716
    %4017 = vmatpush.bf16.msra.mxu0 %v3708
    %4018 = vmatpush.bf16.msra.mxu0 %v3700
    %4019 = vmatpush.bf16.msra.mxu0 %v3692
    %4020 = vmatpush.bf16.msra.mxu0 %v3684
    %4021 = vmatpush.bf16.msra.mxu0 %v3676
    %4022 = vmatpush.bf16.msra.mxu0 %v3668
    %4023 = vmatpush.bf16.msra.mxu0 %v3660
    %4024 = vmatmul.bf16.gmra.mxu0 %v3142
    %v4025 = vpop.f32.mrf.mxu0
    %v4026 = vadd.f32 0.0, %v4025
    %v4027 = vpop.f32.mrf.mxu0
    %4028 = vdwg.mxu0
    %4029 = vmatpush.bf16.msra.mxu0 %v3780
    %4030 = vmatpush.bf16.msra.mxu0 %v3772
    %4031 = vmatpush.bf16.msra.mxu0 %v3764
    %4032 = vmatpush.bf16.msra.mxu0 %v3756
    %4033 = vmatpush.bf16.msra.mxu0 %v3748
    %4034 = vmatpush.bf16.msra.mxu0 %v3740
    %4035 = vmatpush.bf16.msra.mxu0 %v3732
    %4036 = vmatpush.bf16.msra.mxu0 %v3724
    %4037 = vmatmul.bf16.gmra.mxu0 %v3143
    %v4038 = vpop.f32.mrf.mxu0
    %v4039 = vadd.f32 %v4026, %v4038
    %v4040 = vpop.f32.mrf.mxu0
    %4041 = vdwg.mxu0
    %4042 = vmatpush.bf16.msra.mxu0 %v3717
    %4043 = vmatpush.bf16.msra.mxu0 %v3709
    %4044 = vmatpush.bf16.msra.mxu0 %v3701
    %4045 = vmatpush.bf16.msra.mxu0 %v3693
    %4046 = vmatpush.bf16.msra.mxu0 %v3685
    %4047 = vmatpush.bf16.msra.mxu0 %v3677
    %4048 = vmatpush.bf16.msra.mxu0 %v3669
    %4049 = vmatpush.bf16.msra.mxu0 %v3661
    %4050 = vmatmul.bf16.gmra.mxu0 %v3142
    %v4051 = vpop.f32.mrf.mxu0
    %v4052 = vadd.f32 0.0, %v4051
    %v4053 = vpop.f32.mrf.mxu0
    %4054 = vdwg.mxu0
    %4055 = vmatpush.bf16.msra.mxu0 %v3781
    %4056 = vmatpush.bf16.msra.mxu0 %v3773
    %4057 = vmatpush.bf16.msra.mxu0 %v3765
    %4058 = vmatpush.bf16.msra.mxu0 %v3757
    %4059 = vmatpush.bf16.msra.mxu0 %v3749
    %4060 = vmatpush.bf16.msra.mxu0 %v3741
    %4061 = vmatpush.bf16.msra.mxu0 %v3733
    %4062 = vmatpush.bf16.msra.mxu0 %v3725
    %4063 = vmatmul.bf16.gmra.mxu0 %v3143
    %v4064 = vpop.f32.mrf.mxu0
    %v4065 = vadd.f32 %v4052, %v4064
    %v4066 = vpop.f32.mrf.mxu0
    %4067 = vdwg.mxu0
    %4068 = vmatpush.bf16.msra.mxu0 %v3718
    %4069 = vmatpush.bf16.msra.mxu0 %v3710
    %4070 = vmatpush.bf16.msra.mxu0 %v3702
    %4071 = vmatpush.bf16.msra.mxu0 %v3694
    %4072 = vmatpush.bf16.msra.mxu0 %v3686
    %4073 = vmatpush.bf16.msra.mxu0 %v3678
    %4074 = vmatpush.bf16.msra.mxu0 %v3670
    %4075 = vmatpush.bf16.msra.mxu0 %v3662
    %4076 = vmatmul.bf16.gmra.mxu0 %v3142
    %v4077 = vpop.f32.mrf.mxu0
    %v4078 = vadd.f32 0.0, %v4077
    %v4079 = vpop.f32.mrf.mxu0
    %4080 = vdwg.mxu0
    %4081 = vmatpush.bf16.msra.mxu0 %v3782
    %4082 = vmatpush.bf16.msra.mxu0 %v3774
    %4083 = vmatpush.bf16.msra.mxu0 %v3766
    %4084 = vmatpush.bf16.msra.mxu0 %v3758
    %4085 = vmatpush.bf16.msra.mxu0 %v3750
    %4086 = vmatpush.bf16.msra.mxu0 %v3742
    %4087 = vmatpush.bf16.msra.mxu0 %v3734
    %4088 = vmatpush.bf16.msra.mxu0 %v3726
    %4089 = vmatmul.bf16.gmra.mxu0 %v3143
    %v4090 = vpop.f32.mrf.mxu0
    %v4091 = vadd.f32 %v4078, %v4090
    %v4092 = vpop.f32.mrf.mxu0
    %4093 = vdwg.mxu0
    %4094 = vmatpush.bf16.msra.mxu0 %v3719
    %4095 = vmatpush.bf16.msra.mxu0 %v3711
    %4096 = vmatpush.bf16.msra.mxu0 %v3703
    %4097 = vmatpush.bf16.msra.mxu0 %v3695
    %4098 = vmatpush.bf16.msra.mxu0 %v3687
    %4099 = vmatpush.bf16.msra.mxu0 %v3679
    %4100 = vmatpush.bf16.msra.mxu0 %v3671
    %4101 = vmatpush.bf16.msra.mxu0 %v3663
    %4102 = vmatmul.bf16.gmra.mxu0 %v3142
    %v4103 = vpop.f32.mrf.mxu0
    %v4104 = vadd.f32 0.0, %v4103
    %v4105 = vpop.f32.mrf.mxu0
    %4106 = vdwg.mxu0
    %4107 = vmatpush.bf16.msra.mxu0 %v3783
    %4108 = vmatpush.bf16.msra.mxu0 %v3775
    %4109 = vmatpush.bf16.msra.mxu0 %v3767
    %4110 = vmatpush.bf16.msra.mxu0 %v3759
    %4111 = vmatpush.bf16.msra.mxu0 %v3751
    %4112 = vmatpush.bf16.msra.mxu0 %v3743
    %4113 = vmatpush.bf16.msra.mxu0 %v3735
    %4114 = vmatpush.bf16.msra.mxu0 %v3727
    %4115 = vmatmul.bf16.gmra.mxu0 %v3143
    %v4116 = vpop.f32.mrf.mxu0
    %v4117 = vadd.f32 %v4104, %v4116
    %v4118 = vpop.f32.mrf.mxu0
    %4119 = vdwg.mxu0
    %v4120 = vadd.f32 %v3134, %v3935
    %v4121 = vadd.f32 %v3135, %v3961
    %v4122 = vadd.f32 %v3136, %v3987
    %v4123 = vadd.f32 %v3137, %v4013
    %v4124 = vadd.f32 %v3138, %v4039
    %v4125 = vadd.f32 %v3139, %v4065
    %v4126 = vadd.f32 %v3140, %v4091
    %v4127 = vadd.f32 %v3141, %v4117
    %v4128 = vxor.u32 %v4120, 2147483648
    %v4129 = vxor.u32 %v4121, 2147483648
    %v4130 = vmul.f32 %v4128, 1.442695
    %v4131 = vpow.pop %v4130
    %v4132 = vmul.f32 %v4129, 1.442695
    %v4133 = vpow.pop %v4132
    %v4134 = vadd.f32 %v4131, 1.0
    %v4135 = vadd.f32 %v4133, 1.0
    %v4136 = vrcp.pop %v4134
    %v4137 = vmul.f32 %v4134, %v4136
    %v4138 = vsub.f32 1.0, %v4137
    %v4139 = vmul.f32 %v4136, %v4138
    %v4140 = vadd.f32 %v4136, %v4139
    %vm4141 = vweird.f32 %v4134
    %vm4142 = vweird.f32 %v4136
    %vm4143 = vmor %vm4141, %vm4142
    %v4144 = vsel %vm4143, %v4136, %v4140
    %v4145 = vand.u32 2147483647, %v4134
    %vm4146 = vcmp.eq.f32.partialorder %v4145, 8.507059e+37
    %v4147 = vand.u32 %v4134, 2147483648
    %v4148 = vor.u32 1.1754944e-38, %v4147
    %v4149 = vsel %vm4146, %v4148, %v4144
    %v4150 = vmul.f32 1.0, %v4149
    %v4151 = vrcp.pop %v4135
    %v4152 = vmul.f32 %v4135, %v4151
    %v4153 = vsub.f32 1.0, %v4152
    %v4154 = vmul.f32 %v4151, %v4153
    %v4155 = vadd.f32 %v4151, %v4154
    %vm4156 = vweird.f32 %v4135
    %vm4157 = vweird.f32 %v4151
    %vm4158 = vmor %vm4156, %vm4157
    %v4159 = vsel %vm4158, %v4151, %v4155
    %v4160 = vand.u32 2147483647, %v4135
    %vm4161 = vcmp.eq.f32.partialorder %v4160, 8.507059e+37
    %v4162 = vand.u32 %v4135, 2147483648
    %v4163 = vor.u32 1.1754944e-38, %v4162
    %v4164 = vsel %vm4161, %v4163, %v4159
    %v4165 = vmul.f32 1.0, %v4164
    %v4166 = vxor.u32 %v4122, 2147483648
    %v4167 = vxor.u32 %v4123, 2147483648
    %v4168 = vmul.f32 %v4166, 1.442695
    %v4169 = vpow.pop %v4168
    %v4170 = vmul.f32 %v4167, 1.442695
    %v4171 = vpow.pop %v4170
    %v4172 = vadd.f32 %v4169, 1.0
    %v4173 = vadd.f32 %v4171, 1.0
    %v4174 = vrcp.pop %v4172
    %v4175 = vmul.f32 %v4172, %v4174
    %v4176 = vsub.f32 1.0, %v4175
    %v4177 = vmul.f32 %v4174, %v4176
    %v4178 = vadd.f32 %v4174, %v4177
    %vm4179 = vweird.f32 %v4172
    %vm4180 = vweird.f32 %v4174
    %vm4181 = vmor %vm4179, %vm4180
    %v4182 = vsel %vm4181, %v4174, %v4178
    %v4183 = vand.u32 2147483647, %v4172
    %vm4184 = vcmp.eq.f32.partialorder %v4183, 8.507059e+37
    %v4185 = vand.u32 %v4172, 2147483648
    %v4186 = vor.u32 1.1754944e-38, %v4185
    %v4187 = vsel %vm4184, %v4186, %v4182
    %v4188 = vmul.f32 1.0, %v4187
    %v4189 = vrcp.pop %v4173
    %v4190 = vmul.f32 %v4173, %v4189
    %v4191 = vsub.f32 1.0, %v4190
    %v4192 = vmul.f32 %v4189, %v4191
    %v4193 = vadd.f32 %v4189, %v4192
    %vm4194 = vweird.f32 %v4173
    %vm4195 = vweird.f32 %v4189
    %vm4196 = vmor %vm4194, %vm4195
    %v4197 = vsel %vm4196, %v4189, %v4193
    %v4198 = vand.u32 2147483647, %v4173
    %vm4199 = vcmp.eq.f32.partialorder %v4198, 8.507059e+37
    %v4200 = vand.u32 %v4173, 2147483648
    %v4201 = vor.u32 1.1754944e-38, %v4200
    %v4202 = vsel %vm4199, %v4201, %v4197
    %v4203 = vmul.f32 1.0, %v4202
    %v4204 = vtanh.pop %v4124
    %v4205 = vtanh.pop %v4125
    %v4206 = vxor.u32 %v4126, 2147483648
    %v4207 = vxor.u32 %v4127, 2147483648
    %v4208 = vmul.f32 %v4206, 1.442695
    %v4209 = vpow.pop %v4208
    %v4210 = vmul.f32 %v4207, 1.442695
    %v4211 = vpow.pop %v4210
    %v4212 = vadd.f32 %v4209, 1.0
    %v4213 = vadd.f32 %v4211, 1.0
    %v4214 = vrcp.pop %v4212
    %v4215 = vmul.f32 %v4212, %v4214
    %v4216 = vsub.f32 1.0, %v4215
    %v4217 = vmul.f32 %v4214, %v4216
    %v4218 = vadd.f32 %v4214, %v4217
    %vm4219 = vweird.f32 %v4212
    %vm4220 = vweird.f32 %v4214
    %vm4221 = vmor %vm4219, %vm4220
    %v4222 = vsel %vm4221, %v4214, %v4218
    %v4223 = vand.u32 2147483647, %v4212
    %vm4224 = vcmp.eq.f32.partialorder %v4223, 8.507059e+37
    %v4225 = vand.u32 %v4212, 2147483648
    %v4226 = vor.u32 1.1754944e-38, %v4225
    %v4227 = vsel %vm4224, %v4226, %v4222
    %v4228 = vmul.f32 1.0, %v4227
    %v4229 = vrcp.pop %v4213
    %v4230 = vmul.f32 %v4213, %v4229
    %v4231 = vsub.f32 1.0, %v4230
    %v4232 = vmul.f32 %v4229, %v4231
    %v4233 = vadd.f32 %v4229, %v4232
    %vm4234 = vweird.f32 %v4213
    %vm4235 = vweird.f32 %v4229
    %vm4236 = vmor %vm4234, %vm4235
    %v4237 = vsel %vm4236, %v4229, %v4233
    %v4238 = vand.u32 2147483647, %v4213
    %vm4239 = vcmp.eq.f32.partialorder %v4238, 8.507059e+37
    %v4240 = vand.u32 %v4213, 2147483648
    %v4241 = vor.u32 1.1754944e-38, %v4240
    %v4242 = vsel %vm4239, %v4241, %v4237
    %v4243 = vmul.f32 1.0, %v4242
    %v4244 = vmul.f32 %v4188, %v3125
    %v4245 = vmul.f32 %v4203, %v3126
    %v4246 = vmul.f32 %v4150, %v4204
    %v4247 = vmul.f32 %v4165, %v4205
    %v4248 = vadd.f32 %v4244, %v4246
    %v4249 = vadd.f32 %v4245, %v4247
    %v4250 = vtanh.pop %v4248
    %v4251 = vtanh.pop %v4249
    %v4252 = vmul.f32 %v4228, %v4250
    %v4253 = vmul.f32 %v4243, %v4251
    %s4254 = sadd.s32 %s829, 2
    %v4255 = vstv %s4254
    %vm4256 = vcmp.lt.s32.totalorder %v4255, %v828
    %v4257 = vsel %vm4256, 1, 0
    %4258 = vset.pattern.permute.xlu0 0
    %4259 = vperm.xlu0 %4258, %v4257
    %v4260 = vpop.permute.xlu0 %4259
    %vm4261 = vcmp.eq.s32.totalorder %v4260, 1
    %v4262 = vsel %vm4261, %v4252, %v3123
    %v4263 = vsel %vm4261, %v4253, %v3124
    %4264 = vst [vmem:[#allocation3] sm:$0xff] %v4262
    %4265 = vst [vmem:[#allocation3 + $0x8] sm:$0xff] %v4263
    %v4266 = vsel %vm4261, %v4248, %v3125
    %v4267 = vsel %vm4261, %v4249, %v3126
    %4268 = vst [vmem:[#allocation4] sm:$0xff] %v4266
    %4269 = vst [vmem:[#allocation4 + $0x8] sm:$0xff] %v4267
    %v4270 = vld [vmem:[#allocation3] sm:$0xff]
    %v4271 = vld [vmem:[#allocation3 + $0x8] sm:$0xff]
    %v4272 = vld [vmem:[#allocation4] sm:$0xff]
    %v4273 = vld [vmem:[#allocation4 + $0x8] sm:$0xff]
    %s4274 = smul.u32 3, 8
    %s4275 = smul.addr %s4274, 4
    %s4276 = scalar_lea.vmem [#allocation2], %s4275
    %v4277 = vld [vmem:[%s4276] sm:$0xff]
    %v4278 = vld [vmem:[%s4276 + $0x8] sm:$0xff]
    %v4279 = vld [vmem:[%s4276 + $0x10] sm:$0xff]
    %v4280 = vld [vmem:[%s4276 + $0x18] sm:$0xff]
    %v4281 = vunpack.c.l.bf16 %v4277
    %v4282 = vunpack.c.h.bf16 %v4277
    %v4283 = vunpack.c.l.bf16 %v4278
    %v4284 = vunpack.c.h.bf16 %v4278
    %v4285 = vunpack.c.l.bf16 %v4279
    %v4286 = vunpack.c.h.bf16 %v4279
    %v4287 = vunpack.c.l.bf16 %v4280
    %v4288 = vunpack.c.h.bf16 %v4280
    %v4289 = vpack.c.bf16 %v4270, %v4270
    %v4290 = vpack.c.bf16 %v4271, %v4271
    %v4291 = vld [vmem:[#allocation10] sm:$0xff]
    %v4292 = vld [vmem:[#allocation10 + $0x8] sm:$0xff]
    %v4293 = vld [vmem:[#allocation10 + $0x10] sm:$0xff]
    %v4294 = vld [vmem:[#allocation10 + $0x18] sm:$0xff]
    %v4295 = vld [vmem:[#allocation10 + $0x20] sm:$0xff]
    %v4296 = vld [vmem:[#allocation10 + $0x28] sm:$0xff]
    %v4297 = vld [vmem:[#allocation10 + $0x30] sm:$0xff]
    %v4298 = vld [vmem:[#allocation10 + $0x38] sm:$0xff]
    %v4299 = vld [vmem:[#allocation10 + $0x40] sm:$0xff]
    %v4300 = vld [vmem:[#allocation10 + $0x48] sm:$0xff]
    %v4301 = vld [vmem:[#allocation10 + $0x50] sm:$0xff]
    %v4302 = vld [vmem:[#allocation10 + $0x58] sm:$0xff]
    %v4303 = vld [vmem:[#allocation10 + $0x60] sm:$0xff]
    %v4304 = vld [vmem:[#allocation10 + $0x68] sm:$0xff]
    %v4305 = vld [vmem:[#allocation10 + $0x70] sm:$0xff]
    %v4306 = vld [vmem:[#allocation10 + $0x78] sm:$0xff]
    %v4307 = vld [vmem:[#allocation10 + $0x80] sm:$0xff]
    %v4308 = vld [vmem:[#allocation10 + $0x88] sm:$0xff]
    %v4309 = vld [vmem:[#allocation10 + $0x90] sm:$0xff]
    %v4310 = vld [vmem:[#allocation10 + $0x98] sm:$0xff]
    %v4311 = vld [vmem:[#allocation10 + $0xa0] sm:$0xff]
    %v4312 = vld [vmem:[#allocation10 + $0xa8] sm:$0xff]
    %v4313 = vld [vmem:[#allocation10 + $0xb0] sm:$0xff]
    %v4314 = vld [vmem:[#allocation10 + $0xb8] sm:$0xff]
    %v4315 = vld [vmem:[#allocation10 + $0xc0] sm:$0xff]
    %v4316 = vld [vmem:[#allocation10 + $0xc8] sm:$0xff]
    %v4317 = vld [vmem:[#allocation10 + $0xd0] sm:$0xff]
    %v4318 = vld [vmem:[#allocation10 + $0xd8] sm:$0xff]
    %v4319 = vld [vmem:[#allocation10 + $0xe0] sm:$0xff]
    %v4320 = vld [vmem:[#allocation10 + $0xe8] sm:$0xff]
    %v4321 = vld [vmem:[#allocation10 + $0xf0] sm:$0xff]
    %v4322 = vld [vmem:[#allocation10 + $0xf8] sm:$0xff]
    %v4323 = vld [vmem:[#allocation10 + $0x100] sm:$0xff]
    %v4324 = vld [vmem:[#allocation10 + $0x108] sm:$0xff]
    %v4325 = vld [vmem:[#allocation10 + $0x110] sm:$0xff]
    %v4326 = vld [vmem:[#allocation10 + $0x118] sm:$0xff]
    %v4327 = vld [vmem:[#allocation10 + $0x120] sm:$0xff]
    %v4328 = vld [vmem:[#allocation10 + $0x128] sm:$0xff]
    %v4329 = vld [vmem:[#allocation10 + $0x130] sm:$0xff]
    %v4330 = vld [vmem:[#allocation10 + $0x138] sm:$0xff]
    %v4331 = vld [vmem:[#allocation10 + $0x140] sm:$0xff]
    %v4332 = vld [vmem:[#allocation10 + $0x148] sm:$0xff]
    %v4333 = vld [vmem:[#allocation10 + $0x150] sm:$0xff]
    %v4334 = vld [vmem:[#allocation10 + $0x158] sm:$0xff]
    %v4335 = vld [vmem:[#allocation10 + $0x160] sm:$0xff]
    %v4336 = vld [vmem:[#allocation10 + $0x168] sm:$0xff]
    %v4337 = vld [vmem:[#allocation10 + $0x170] sm:$0xff]
    %v4338 = vld [vmem:[#allocation10 + $0x178] sm:$0xff]
    %v4339 = vld [vmem:[#allocation10 + $0x180] sm:$0xff]
    %v4340 = vld [vmem:[#allocation10 + $0x188] sm:$0xff]
    %v4341 = vld [vmem:[#allocation10 + $0x190] sm:$0xff]
    %v4342 = vld [vmem:[#allocation10 + $0x198] sm:$0xff]
    %v4343 = vld [vmem:[#allocation10 + $0x1a0] sm:$0xff]
    %v4344 = vld [vmem:[#allocation10 + $0x1a8] sm:$0xff]
    %v4345 = vld [vmem:[#allocation10 + $0x1b0] sm:$0xff]
    %v4346 = vld [vmem:[#allocation10 + $0x1b8] sm:$0xff]
    %v4347 = vld [vmem:[#allocation10 + $0x1c0] sm:$0xff]
    %v4348 = vld [vmem:[#allocation10 + $0x1c8] sm:$0xff]
    %v4349 = vld [vmem:[#allocation10 + $0x1d0] sm:$0xff]
    %v4350 = vld [vmem:[#allocation10 + $0x1d8] sm:$0xff]
    %v4351 = vld [vmem:[#allocation10 + $0x1e0] sm:$0xff]
    %v4352 = vld [vmem:[#allocation10 + $0x1e8] sm:$0xff]
    %v4353 = vld [vmem:[#allocation10 + $0x1f0] sm:$0xff]
    %v4354 = vld [vmem:[#allocation10 + $0x1f8] sm:$0xff]
    %v4355 = vld [vmem:[#allocation10 + $0x200] sm:$0xff]
    %v4356 = vld [vmem:[#allocation10 + $0x208] sm:$0xff]
    %v4357 = vld [vmem:[#allocation10 + $0x210] sm:$0xff]
    %v4358 = vld [vmem:[#allocation10 + $0x218] sm:$0xff]
    %v4359 = vld [vmem:[#allocation10 + $0x220] sm:$0xff]
    %v4360 = vld [vmem:[#allocation10 + $0x228] sm:$0xff]
    %v4361 = vld [vmem:[#allocation10 + $0x230] sm:$0xff]
    %v4362 = vld [vmem:[#allocation10 + $0x238] sm:$0xff]
    %v4363 = vld [vmem:[#allocation10 + $0x240] sm:$0xff]
    %v4364 = vld [vmem:[#allocation10 + $0x248] sm:$0xff]
    %v4365 = vld [vmem:[#allocation10 + $0x250] sm:$0xff]
    %v4366 = vld [vmem:[#allocation10 + $0x258] sm:$0xff]
    %v4367 = vld [vmem:[#allocation10 + $0x260] sm:$0xff]
    %v4368 = vld [vmem:[#allocation10 + $0x268] sm:$0xff]
    %v4369 = vld [vmem:[#allocation10 + $0x270] sm:$0xff]
    %v4370 = vld [vmem:[#allocation10 + $0x278] sm:$0xff]
    %v4371 = vld [vmem:[#allocation10 + $0x280] sm:$0xff]
    %v4372 = vld [vmem:[#allocation10 + $0x288] sm:$0xff]
    %v4373 = vld [vmem:[#allocation10 + $0x290] sm:$0xff]
    %v4374 = vld [vmem:[#allocation10 + $0x298] sm:$0xff]
    %v4375 = vld [vmem:[#allocation10 + $0x2a0] sm:$0xff]
    %v4376 = vld [vmem:[#allocation10 + $0x2a8] sm:$0xff]
    %v4377 = vld [vmem:[#allocation10 + $0x2b0] sm:$0xff]
    %v4378 = vld [vmem:[#allocation10 + $0x2b8] sm:$0xff]
    %v4379 = vld [vmem:[#allocation10 + $0x2c0] sm:$0xff]
    %v4380 = vld [vmem:[#allocation10 + $0x2c8] sm:$0xff]
    %v4381 = vld [vmem:[#allocation10 + $0x2d0] sm:$0xff]
    %v4382 = vld [vmem:[#allocation10 + $0x2d8] sm:$0xff]
    %v4383 = vld [vmem:[#allocation10 + $0x2e0] sm:$0xff]
    %v4384 = vld [vmem:[#allocation10 + $0x2e8] sm:$0xff]
    %v4385 = vld [vmem:[#allocation10 + $0x2f0] sm:$0xff]
    %v4386 = vld [vmem:[#allocation10 + $0x2f8] sm:$0xff]
    %v4387 = vld [vmem:[#allocation10 + $0x300] sm:$0xff]
    %v4388 = vld [vmem:[#allocation10 + $0x308] sm:$0xff]
    %v4389 = vld [vmem:[#allocation10 + $0x310] sm:$0xff]
    %v4390 = vld [vmem:[#allocation10 + $0x318] sm:$0xff]
    %v4391 = vld [vmem:[#allocation10 + $0x320] sm:$0xff]
    %v4392 = vld [vmem:[#allocation10 + $0x328] sm:$0xff]
    %v4393 = vld [vmem:[#allocation10 + $0x330] sm:$0xff]
    %v4394 = vld [vmem:[#allocation10 + $0x338] sm:$0xff]
    %v4395 = vld [vmem:[#allocation10 + $0x340] sm:$0xff]
    %v4396 = vld [vmem:[#allocation10 + $0x348] sm:$0xff]
    %v4397 = vld [vmem:[#allocation10 + $0x350] sm:$0xff]
    %v4398 = vld [vmem:[#allocation10 + $0x358] sm:$0xff]
    %v4399 = vld [vmem:[#allocation10 + $0x360] sm:$0xff]
    %v4400 = vld [vmem:[#allocation10 + $0x368] sm:$0xff]
    %v4401 = vld [vmem:[#allocation10 + $0x370] sm:$0xff]
    %v4402 = vld [vmem:[#allocation10 + $0x378] sm:$0xff]
    %v4403 = vld [vmem:[#allocation10 + $0x380] sm:$0xff]
    %v4404 = vld [vmem:[#allocation10 + $0x388] sm:$0xff]
    %v4405 = vld [vmem:[#allocation10 + $0x390] sm:$0xff]
    %v4406 = vld [vmem:[#allocation10 + $0x398] sm:$0xff]
    %v4407 = vld [vmem:[#allocation10 + $0x3a0] sm:$0xff]
    %v4408 = vld [vmem:[#allocation10 + $0x3a8] sm:$0xff]
    %v4409 = vld [vmem:[#allocation10 + $0x3b0] sm:$0xff]
    %v4410 = vld [vmem:[#allocation10 + $0x3b8] sm:$0xff]
    %v4411 = vld [vmem:[#allocation10 + $0x3c0] sm:$0xff]
    %v4412 = vld [vmem:[#allocation10 + $0x3c8] sm:$0xff]
    %v4413 = vld [vmem:[#allocation10 + $0x3d0] sm:$0xff]
    %v4414 = vld [vmem:[#allocation10 + $0x3d8] sm:$0xff]
    %v4415 = vld [vmem:[#allocation10 + $0x3e0] sm:$0xff]
    %v4416 = vld [vmem:[#allocation10 + $0x3e8] sm:$0xff]
    %v4417 = vld [vmem:[#allocation10 + $0x3f0] sm:$0xff]
    %v4418 = vld [vmem:[#allocation10 + $0x3f8] sm:$0xff]
    %v4547 = vunpack.c.l.b16 %v4291
    %v4548 = vunpack.c.h.b16 %v4291
    %v4549 = vunpack.c.l.b16 %v4292
    %v4550 = vunpack.c.h.b16 %v4292
    %v4551 = vunpack.c.l.b16 %v4293
    %v4552 = vunpack.c.h.b16 %v4293
    %v4553 = vunpack.c.l.b16 %v4294
    %v4554 = vunpack.c.h.b16 %v4294
    %v4555 = vunpack.c.l.b16 %v4295
    %v4556 = vunpack.c.h.b16 %v4295
    %v4557 = vunpack.c.l.b16 %v4296
    %v4558 = vunpack.c.h.b16 %v4296
    %v4559 = vunpack.c.l.b16 %v4297
    %v4560 = vunpack.c.h.b16 %v4297
    %v4561 = vunpack.c.l.b16 %v4298
    %v4562 = vunpack.c.h.b16 %v4298
    %v4563 = vunpack.c.l.b16 %v4299
    %v4564 = vunpack.c.h.b16 %v4299
    %v4565 = vunpack.c.l.b16 %v4300
    %v4566 = vunpack.c.h.b16 %v4300
    %v4567 = vunpack.c.l.b16 %v4301
    %v4568 = vunpack.c.h.b16 %v4301
    %v4569 = vunpack.c.l.b16 %v4302
    %v4570 = vunpack.c.h.b16 %v4302
    %v4571 = vunpack.c.l.b16 %v4303
    %v4572 = vunpack.c.h.b16 %v4303
    %v4573 = vunpack.c.l.b16 %v4304
    %v4574 = vunpack.c.h.b16 %v4304
    %v4575 = vunpack.c.l.b16 %v4305
    %v4576 = vunpack.c.h.b16 %v4305
    %v4577 = vunpack.c.l.b16 %v4306
    %v4578 = vunpack.c.h.b16 %v4306
    %v4579 = vunpack.c.l.b16 %v4307
    %v4580 = vunpack.c.h.b16 %v4307
    %v4581 = vunpack.c.l.b16 %v4308
    %v4582 = vunpack.c.h.b16 %v4308
    %v4583 = vunpack.c.l.b16 %v4309
    %v4584 = vunpack.c.h.b16 %v4309
    %v4585 = vunpack.c.l.b16 %v4310
    %v4586 = vunpack.c.h.b16 %v4310
    %v4587 = vunpack.c.l.b16 %v4311
    %v4588 = vunpack.c.h.b16 %v4311
    %v4589 = vunpack.c.l.b16 %v4312
    %v4590 = vunpack.c.h.b16 %v4312
    %v4591 = vunpack.c.l.b16 %v4313
    %v4592 = vunpack.c.h.b16 %v4313
    %v4593 = vunpack.c.l.b16 %v4314
    %v4594 = vunpack.c.h.b16 %v4314
    %v4595 = vunpack.c.l.b16 %v4315
    %v4596 = vunpack.c.h.b16 %v4315
    %v4597 = vunpack.c.l.b16 %v4316
    %v4598 = vunpack.c.h.b16 %v4316
    %v4599 = vunpack.c.l.b16 %v4317
    %v4600 = vunpack.c.h.b16 %v4317
    %v4601 = vunpack.c.l.b16 %v4318
    %v4602 = vunpack.c.h.b16 %v4318
    %v4603 = vunpack.c.l.b16 %v4319
    %v4604 = vunpack.c.h.b16 %v4319
    %v4605 = vunpack.c.l.b16 %v4320
    %v4606 = vunpack.c.h.b16 %v4320
    %v4607 = vunpack.c.l.b16 %v4321
    %v4608 = vunpack.c.h.b16 %v4321
    %v4609 = vunpack.c.l.b16 %v4322
    %v4610 = vunpack.c.h.b16 %v4322
    %v4611 = vunpack.c.l.b16 %v4323
    %v4612 = vunpack.c.h.b16 %v4323
    %v4613 = vunpack.c.l.b16 %v4324
    %v4614 = vunpack.c.h.b16 %v4324
    %v4615 = vunpack.c.l.b16 %v4325
    %v4616 = vunpack.c.h.b16 %v4325
    %v4617 = vunpack.c.l.b16 %v4326
    %v4618 = vunpack.c.h.b16 %v4326
    %v4619 = vunpack.c.l.b16 %v4327
    %v4620 = vunpack.c.h.b16 %v4327
    %v4621 = vunpack.c.l.b16 %v4328
    %v4622 = vunpack.c.h.b16 %v4328
    %v4623 = vunpack.c.l.b16 %v4329
    %v4624 = vunpack.c.h.b16 %v4329
    %v4625 = vunpack.c.l.b16 %v4330
    %v4626 = vunpack.c.h.b16 %v4330
    %v4627 = vunpack.c.l.b16 %v4331
    %v4628 = vunpack.c.h.b16 %v4331
    %v4629 = vunpack.c.l.b16 %v4332
    %v4630 = vunpack.c.h.b16 %v4332
    %v4631 = vunpack.c.l.b16 %v4333
    %v4632 = vunpack.c.h.b16 %v4333
    %v4633 = vunpack.c.l.b16 %v4334
    %v4634 = vunpack.c.h.b16 %v4334
    %v4635 = vunpack.c.l.b16 %v4335
    %v4636 = vunpack.c.h.b16 %v4335
    %v4637 = vunpack.c.l.b16 %v4336
    %v4638 = vunpack.c.h.b16 %v4336
    %v4639 = vunpack.c.l.b16 %v4337
    %v4640 = vunpack.c.h.b16 %v4337
    %v4641 = vunpack.c.l.b16 %v4338
    %v4642 = vunpack.c.h.b16 %v4338
    %v4643 = vunpack.c.l.b16 %v4339
    %v4644 = vunpack.c.h.b16 %v4339
    %v4645 = vunpack.c.l.b16 %v4340
    %v4646 = vunpack.c.h.b16 %v4340
    %v4647 = vunpack.c.l.b16 %v4341
    %v4648 = vunpack.c.h.b16 %v4341
    %v4649 = vunpack.c.l.b16 %v4342
    %v4650 = vunpack.c.h.b16 %v4342
    %v4651 = vunpack.c.l.b16 %v4343
    %v4652 = vunpack.c.h.b16 %v4343
    %v4653 = vunpack.c.l.b16 %v4344
    %v4654 = vunpack.c.h.b16 %v4344
    %v4655 = vunpack.c.l.b16 %v4345
    %v4656 = vunpack.c.h.b16 %v4345
    %v4657 = vunpack.c.l.b16 %v4346
    %v4658 = vunpack.c.h.b16 %v4346
    %v4659 = vunpack.c.l.b16 %v4347
    %v4660 = vunpack.c.h.b16 %v4347
    %v4661 = vunpack.c.l.b16 %v4348
    %v4662 = vunpack.c.h.b16 %v4348
    %v4663 = vunpack.c.l.b16 %v4349
    %v4664 = vunpack.c.h.b16 %v4349
    %v4665 = vunpack.c.l.b16 %v4350
    %v4666 = vunpack.c.h.b16 %v4350
    %v4667 = vunpack.c.l.b16 %v4351
    %v4668 = vunpack.c.h.b16 %v4351
    %v4669 = vunpack.c.l.b16 %v4352
    %v4670 = vunpack.c.h.b16 %v4352
    %v4671 = vunpack.c.l.b16 %v4353
    %v4672 = vunpack.c.h.b16 %v4353
    %v4673 = vunpack.c.l.b16 %v4354
    %v4674 = vunpack.c.h.b16 %v4354
    %v4675 = vunpack.c.l.b16 %v4355
    %v4676 = vunpack.c.h.b16 %v4355
    %v4677 = vunpack.c.l.b16 %v4356
    %v4678 = vunpack.c.h.b16 %v4356
    %v4679 = vunpack.c.l.b16 %v4357
    %v4680 = vunpack.c.h.b16 %v4357
    %v4681 = vunpack.c.l.b16 %v4358
    %v4682 = vunpack.c.h.b16 %v4358
    %v4683 = vunpack.c.l.b16 %v4359
    %v4684 = vunpack.c.h.b16 %v4359
    %v4685 = vunpack.c.l.b16 %v4360
    %v4686 = vunpack.c.h.b16 %v4360
    %v4687 = vunpack.c.l.b16 %v4361
    %v4688 = vunpack.c.h.b16 %v4361
    %v4689 = vunpack.c.l.b16 %v4362
    %v4690 = vunpack.c.h.b16 %v4362
    %v4691 = vunpack.c.l.b16 %v4363
    %v4692 = vunpack.c.h.b16 %v4363
    %v4693 = vunpack.c.l.b16 %v4364
    %v4694 = vunpack.c.h.b16 %v4364
    %v4695 = vunpack.c.l.b16 %v4365
    %v4696 = vunpack.c.h.b16 %v4365
    %v4697 = vunpack.c.l.b16 %v4366
    %v4698 = vunpack.c.h.b16 %v4366
    %v4699 = vunpack.c.l.b16 %v4367
    %v4700 = vunpack.c.h.b16 %v4367
    %v4701 = vunpack.c.l.b16 %v4368
    %v4702 = vunpack.c.h.b16 %v4368
    %v4703 = vunpack.c.l.b16 %v4369
    %v4704 = vunpack.c.h.b16 %v4369
    %v4705 = vunpack.c.l.b16 %v4370
    %v4706 = vunpack.c.h.b16 %v4370
    %v4707 = vunpack.c.l.b16 %v4371
    %v4708 = vunpack.c.h.b16 %v4371
    %v4709 = vunpack.c.l.b16 %v4372
    %v4710 = vunpack.c.h.b16 %v4372
    %v4711 = vunpack.c.l.b16 %v4373
    %v4712 = vunpack.c.h.b16 %v4373
    %v4713 = vunpack.c.l.b16 %v4374
    %v4714 = vunpack.c.h.b16 %v4374
    %v4715 = vunpack.c.l.b16 %v4375
    %v4716 = vunpack.c.h.b16 %v4375
    %v4717 = vunpack.c.l.b16 %v4376
    %v4718 = vunpack.c.h.b16 %v4376
    %v4719 = vunpack.c.l.b16 %v4377
    %v4720 = vunpack.c.h.b16 %v4377
    %v4721 = vunpack.c.l.b16 %v4378
    %v4722 = vunpack.c.h.b16 %v4378
    %v4723 = vunpack.c.l.b16 %v4379
    %v4724 = vunpack.c.h.b16 %v4379
    %v4725 = vunpack.c.l.b16 %v4380
    %v4726 = vunpack.c.h.b16 %v4380
    %v4727 = vunpack.c.l.b16 %v4381
    %v4728 = vunpack.c.h.b16 %v4381
    %v4729 = vunpack.c.l.b16 %v4382
    %v4730 = vunpack.c.h.b16 %v4382
    %v4731 = vunpack.c.l.b16 %v4383
    %v4732 = vunpack.c.h.b16 %v4383
    %v4733 = vunpack.c.l.b16 %v4384
    %v4734 = vunpack.c.h.b16 %v4384
    %v4735 = vunpack.c.l.b16 %v4385
    %v4736 = vunpack.c.h.b16 %v4385
    %v4737 = vunpack.c.l.b16 %v4386
    %v4738 = vunpack.c.h.b16 %v4386
    %v4739 = vunpack.c.l.b16 %v4387
    %v4740 = vunpack.c.h.b16 %v4387
    %v4741 = vunpack.c.l.b16 %v4388
    %v4742 = vunpack.c.h.b16 %v4388
    %v4743 = vunpack.c.l.b16 %v4389
    %v4744 = vunpack.c.h.b16 %v4389
    %v4745 = vunpack.c.l.b16 %v4390
    %v4746 = vunpack.c.h.b16 %v4390
    %v4747 = vunpack.c.l.b16 %v4391
    %v4748 = vunpack.c.h.b16 %v4391
    %v4749 = vunpack.c.l.b16 %v4392
    %v4750 = vunpack.c.h.b16 %v4392
    %v4751 = vunpack.c.l.b16 %v4393
    %v4752 = vunpack.c.h.b16 %v4393
    %v4753 = vunpack.c.l.b16 %v4394
    %v4754 = vunpack.c.h.b16 %v4394
    %v4755 = vunpack.c.l.b16 %v4395
    %v4756 = vunpack.c.h.b16 %v4395
    %v4757 = vunpack.c.l.b16 %v4396
    %v4758 = vunpack.c.h.b16 %v4396
    %v4759 = vunpack.c.l.b16 %v4397
    %v4760 = vunpack.c.h.b16 %v4397
    %v4761 = vunpack.c.l.b16 %v4398
    %v4762 = vunpack.c.h.b16 %v4398
    %v4763 = vunpack.c.l.b16 %v4399
    %v4764 = vunpack.c.h.b16 %v4399
    %v4765 = vunpack.c.l.b16 %v4400
    %v4766 = vunpack.c.h.b16 %v4400
    %v4767 = vunpack.c.l.b16 %v4401
    %v4768 = vunpack.c.h.b16 %v4401
    %v4769 = vunpack.c.l.b16 %v4402
    %v4770 = vunpack.c.h.b16 %v4402
    %v4771 = vunpack.c.l.b16 %v4403
    %v4772 = vunpack.c.h.b16 %v4403
    %v4773 = vunpack.c.l.b16 %v4404
    %v4774 = vunpack.c.h.b16 %v4404
    %v4775 = vunpack.c.l.b16 %v4405
    %v4776 = vunpack.c.h.b16 %v4405
    %v4777 = vunpack.c.l.b16 %v4406
    %v4778 = vunpack.c.h.b16 %v4406
    %v4779 = vunpack.c.l.b16 %v4407
    %v4780 = vunpack.c.h.b16 %v4407
    %v4781 = vunpack.c.l.b16 %v4408
    %v4782 = vunpack.c.h.b16 %v4408
    %v4783 = vunpack.c.l.b16 %v4409
    %v4784 = vunpack.c.h.b16 %v4409
    %v4785 = vunpack.c.l.b16 %v4410
    %v4786 = vunpack.c.h.b16 %v4410
    %v4787 = vunpack.c.l.b16 %v4411
    %v4788 = vunpack.c.h.b16 %v4411
    %v4789 = vunpack.c.l.b16 %v4412
    %v4790 = vunpack.c.h.b16 %v4412
    %v4791 = vunpack.c.l.b16 %v4413
    %v4792 = vunpack.c.h.b16 %v4413
    %v4793 = vunpack.c.l.b16 %v4414
    %v4794 = vunpack.c.h.b16 %v4414
    %v4795 = vunpack.c.l.b16 %v4415
    %v4796 = vunpack.c.h.b16 %v4415
    %v4797 = vunpack.c.l.b16 %v4416
    %v4798 = vunpack.c.h.b16 %v4416
    %v4799 = vunpack.c.l.b16 %v4417
    %v4800 = vunpack.c.h.b16 %v4417
    %v4801 = vunpack.c.l.b16 %v4418
    %v4802 = vunpack.c.h.b16 %v4418
    %v4803 = vpack.c.b16 %v4555, %v4547
    %v4804 = vpack.c.b16 %v4556, %v4548
    %v4805 = vpack.c.b16 %v4557, %v4549
    %v4806 = vpack.c.b16 %v4558, %v4550
    %v4807 = vpack.c.b16 %v4559, %v4551
    %v4808 = vpack.c.b16 %v4560, %v4552
    %v4809 = vpack.c.b16 %v4561, %v4553
    %v4810 = vpack.c.b16 %v4562, %v4554
    %v4811 = vpack.c.b16 %v4571, %v4563
    %v4812 = vpack.c.b16 %v4572, %v4564
    %v4813 = vpack.c.b16 %v4573, %v4565
    %v4814 = vpack.c.b16 %v4574, %v4566
    %v4815 = vpack.c.b16 %v4575, %v4567
    %v4816 = vpack.c.b16 %v4576, %v4568
    %v4817 = vpack.c.b16 %v4577, %v4569
    %v4818 = vpack.c.b16 %v4578, %v4570
    %v4819 = vpack.c.b16 %v4587, %v4579
    %v4820 = vpack.c.b16 %v4588, %v4580
    %v4821 = vpack.c.b16 %v4589, %v4581
    %v4822 = vpack.c.b16 %v4590, %v4582
    %v4823 = vpack.c.b16 %v4591, %v4583
    %v4824 = vpack.c.b16 %v4592, %v4584
    %v4825 = vpack.c.b16 %v4593, %v4585
    %v4826 = vpack.c.b16 %v4594, %v4586
    %v4827 = vpack.c.b16 %v4603, %v4595
    %v4828 = vpack.c.b16 %v4604, %v4596
    %v4829 = vpack.c.b16 %v4605, %v4597
    %v4830 = vpack.c.b16 %v4606, %v4598
    %v4831 = vpack.c.b16 %v4607, %v4599
    %v4832 = vpack.c.b16 %v4608, %v4600
    %v4833 = vpack.c.b16 %v4609, %v4601
    %v4834 = vpack.c.b16 %v4610, %v4602
    %v4835 = vpack.c.b16 %v4619, %v4611
    %v4836 = vpack.c.b16 %v4620, %v4612
    %v4837 = vpack.c.b16 %v4621, %v4613
    %v4838 = vpack.c.b16 %v4622, %v4614
    %v4839 = vpack.c.b16 %v4623, %v4615
    %v4840 = vpack.c.b16 %v4624, %v4616
    %v4841 = vpack.c.b16 %v4625, %v4617
    %v4842 = vpack.c.b16 %v4626, %v4618
    %v4843 = vpack.c.b16 %v4635, %v4627
    %v4844 = vpack.c.b16 %v4636, %v4628
    %v4845 = vpack.c.b16 %v4637, %v4629
    %v4846 = vpack.c.b16 %v4638, %v4630
    %v4847 = vpack.c.b16 %v4639, %v4631
    %v4848 = vpack.c.b16 %v4640, %v4632
    %v4849 = vpack.c.b16 %v4641, %v4633
    %v4850 = vpack.c.b16 %v4642, %v4634
    %v4851 = vpack.c.b16 %v4651, %v4643
    %v4852 = vpack.c.b16 %v4652, %v4644
    %v4853 = vpack.c.b16 %v4653, %v4645
    %v4854 = vpack.c.b16 %v4654, %v4646
    %v4855 = vpack.c.b16 %v4655, %v4647
    %v4856 = vpack.c.b16 %v4656, %v4648
    %v4857 = vpack.c.b16 %v4657, %v4649
    %v4858 = vpack.c.b16 %v4658, %v4650
    %v4859 = vpack.c.b16 %v4667, %v4659
    %v4860 = vpack.c.b16 %v4668, %v4660
    %v4861 = vpack.c.b16 %v4669, %v4661
    %v4862 = vpack.c.b16 %v4670, %v4662
    %v4863 = vpack.c.b16 %v4671, %v4663
    %v4864 = vpack.c.b16 %v4672, %v4664
    %v4865 = vpack.c.b16 %v4673, %v4665
    %v4866 = vpack.c.b16 %v4674, %v4666
    %v4867 = vpack.c.b16 %v4683, %v4675
    %v4868 = vpack.c.b16 %v4684, %v4676
    %v4869 = vpack.c.b16 %v4685, %v4677
    %v4870 = vpack.c.b16 %v4686, %v4678
    %v4871 = vpack.c.b16 %v4687, %v4679
    %v4872 = vpack.c.b16 %v4688, %v4680
    %v4873 = vpack.c.b16 %v4689, %v4681
    %v4874 = vpack.c.b16 %v4690, %v4682
    %v4875 = vpack.c.b16 %v4699, %v4691
    %v4876 = vpack.c.b16 %v4700, %v4692
    %v4877 = vpack.c.b16 %v4701, %v4693
    %v4878 = vpack.c.b16 %v4702, %v4694
    %v4879 = vpack.c.b16 %v4703, %v4695
    %v4880 = vpack.c.b16 %v4704, %v4696
    %v4881 = vpack.c.b16 %v4705, %v4697
    %v4882 = vpack.c.b16 %v4706, %v4698
    %v4883 = vpack.c.b16 %v4715, %v4707
    %v4884 = vpack.c.b16 %v4716, %v4708
    %v4885 = vpack.c.b16 %v4717, %v4709
    %v4886 = vpack.c.b16 %v4718, %v4710
    %v4887 = vpack.c.b16 %v4719, %v4711
    %v4888 = vpack.c.b16 %v4720, %v4712
    %v4889 = vpack.c.b16 %v4721, %v4713
    %v4890 = vpack.c.b16 %v4722, %v4714
    %v4891 = vpack.c.b16 %v4731, %v4723
    %v4892 = vpack.c.b16 %v4732, %v4724
    %v4893 = vpack.c.b16 %v4733, %v4725
    %v4894 = vpack.c.b16 %v4734, %v4726
    %v4895 = vpack.c.b16 %v4735, %v4727
    %v4896 = vpack.c.b16 %v4736, %v4728
    %v4897 = vpack.c.b16 %v4737, %v4729
    %v4898 = vpack.c.b16 %v4738, %v4730
    %v4899 = vpack.c.b16 %v4747, %v4739
    %v4900 = vpack.c.b16 %v4748, %v4740
    %v4901 = vpack.c.b16 %v4749, %v4741
    %v4902 = vpack.c.b16 %v4750, %v4742
    %v4903 = vpack.c.b16 %v4751, %v4743
    %v4904 = vpack.c.b16 %v4752, %v4744
    %v4905 = vpack.c.b16 %v4753, %v4745
    %v4906 = vpack.c.b16 %v4754, %v4746
    %v4907 = vpack.c.b16 %v4763, %v4755
    %v4908 = vpack.c.b16 %v4764, %v4756
    %v4909 = vpack.c.b16 %v4765, %v4757
    %v4910 = vpack.c.b16 %v4766, %v4758
    %v4911 = vpack.c.b16 %v4767, %v4759
    %v4912 = vpack.c.b16 %v4768, %v4760
    %v4913 = vpack.c.b16 %v4769, %v4761
    %v4914 = vpack.c.b16 %v4770, %v4762
    %v4915 = vpack.c.b16 %v4779, %v4771
    %v4916 = vpack.c.b16 %v4780, %v4772
    %v4917 = vpack.c.b16 %v4781, %v4773
    %v4918 = vpack.c.b16 %v4782, %v4774
    %v4919 = vpack.c.b16 %v4783, %v4775
    %v4920 = vpack.c.b16 %v4784, %v4776
    %v4921 = vpack.c.b16 %v4785, %v4777
    %v4922 = vpack.c.b16 %v4786, %v4778
    %v4923 = vpack.c.b16 %v4795, %v4787
    %v4924 = vpack.c.b16 %v4796, %v4788
    %v4925 = vpack.c.b16 %v4797, %v4789
    %v4926 = vpack.c.b16 %v4798, %v4790
    %v4927 = vpack.c.b16 %v4799, %v4791
    %v4928 = vpack.c.b16 %v4800, %v4792
    %v4929 = vpack.c.b16 %v4801, %v4793
    %v4930 = vpack.c.b16 %v4802, %v4794
    %5059 = vmatpush.bf16.msra.mxu0 %v4859
    %5060 = vmatpush.bf16.msra.mxu0 %v4851
    %5061 = vmatpush.bf16.msra.mxu0 %v4843
    %5062 = vmatpush.bf16.msra.mxu0 %v4835
    %5063 = vmatpush.bf16.msra.mxu0 %v4827
    %5064 = vmatpush.bf16.msra.mxu0 %v4819
    %5065 = vmatpush.bf16.msra.mxu0 %v4811
    %5066 = vmatpush.bf16.msra.mxu0 %v4803
    %5067 = vmatmul.bf16.gmra.mxu0 %v4289
    %v5068 = vpop.f32.mrf.mxu0
    %v5069 = vadd.f32 0.0, %v5068
    %v5070 = vpop.f32.mrf.mxu0
    %5071 = vdwg.mxu0
    %5072 = vmatpush.bf16.msra.mxu0 %v4923
    %5073 = vmatpush.bf16.msra.mxu0 %v4915
    %5074 = vmatpush.bf16.msra.mxu0 %v4907
    %5075 = vmatpush.bf16.msra.mxu0 %v4899
    %5076 = vmatpush.bf16.msra.mxu0 %v4891
    %5077 = vmatpush.bf16.msra.mxu0 %v4883
    %5078 = vmatpush.bf16.msra.mxu0 %v4875
    %5079 = vmatpush.bf16.msra.mxu0 %v4867
    %5080 = vmatmul.bf16.gmra.mxu0 %v4290
    %v5081 = vpop.f32.mrf.mxu0
    %v5082 = vadd.f32 %v5069, %v5081
    %v5083 = vpop.f32.mrf.mxu0
    %5084 = vdwg.mxu0
    %5085 = vmatpush.bf16.msra.mxu0 %v4860
    %5086 = vmatpush.bf16.msra.mxu0 %v4852
    %5087 = vmatpush.bf16.msra.mxu0 %v4844
    %5088 = vmatpush.bf16.msra.mxu0 %v4836
    %5089 = vmatpush.bf16.msra.mxu0 %v4828
    %5090 = vmatpush.bf16.msra.mxu0 %v4820
    %5091 = vmatpush.bf16.msra.mxu0 %v4812
    %5092 = vmatpush.bf16.msra.mxu0 %v4804
    %5093 = vmatmul.bf16.gmra.mxu0 %v4289
    %v5094 = vpop.f32.mrf.mxu0
    %v5095 = vadd.f32 0.0, %v5094
    %v5096 = vpop.f32.mrf.mxu0
    %5097 = vdwg.mxu0
    %5098 = vmatpush.bf16.msra.mxu0 %v4924
    %5099 = vmatpush.bf16.msra.mxu0 %v4916
    %5100 = vmatpush.bf16.msra.mxu0 %v4908
    %5101 = vmatpush.bf16.msra.mxu0 %v4900
    %5102 = vmatpush.bf16.msra.mxu0 %v4892
    %5103 = vmatpush.bf16.msra.mxu0 %v4884
    %5104 = vmatpush.bf16.msra.mxu0 %v4876
    %5105 = vmatpush.bf16.msra.mxu0 %v4868
    %5106 = vmatmul.bf16.gmra.mxu0 %v4290
    %v5107 = vpop.f32.mrf.mxu0
    %v5108 = vadd.f32 %v5095, %v5107
    %v5109 = vpop.f32.mrf.mxu0
    %5110 = vdwg.mxu0
    %5111 = vmatpush.bf16.msra.mxu0 %v4861
    %5112 = vmatpush.bf16.msra.mxu0 %v4853
    %5113 = vmatpush.bf16.msra.mxu0 %v4845
    %5114 = vmatpush.bf16.msra.mxu0 %v4837
    %5115 = vmatpush.bf16.msra.mxu0 %v4829
    %5116 = vmatpush.bf16.msra.mxu0 %v4821
    %5117 = vmatpush.bf16.msra.mxu0 %v4813
    %5118 = vmatpush.bf16.msra.mxu0 %v4805
    %5119 = vmatmul.bf16.gmra.mxu0 %v4289
    %v5120 = vpop.f32.mrf.mxu0
    %v5121 = vadd.f32 0.0, %v5120
    %v5122 = vpop.f32.mrf.mxu0
    %5123 = vdwg.mxu0
    %5124 = vmatpush.bf16.msra.mxu0 %v4925
    %5125 = vmatpush.bf16.msra.mxu0 %v4917
    %5126 = vmatpush.bf16.msra.mxu0 %v4909
    %5127 = vmatpush.bf16.msra.mxu0 %v4901
    %5128 = vmatpush.bf16.msra.mxu0 %v4893
    %5129 = vmatpush.bf16.msra.mxu0 %v4885
    %5130 = vmatpush.bf16.msra.mxu0 %v4877
    %5131 = vmatpush.bf16.msra.mxu0 %v4869
    %5132 = vmatmul.bf16.gmra.mxu0 %v4290
    %v5133 = vpop.f32.mrf.mxu0
    %v5134 = vadd.f32 %v5121, %v5133
    %v5135 = vpop.f32.mrf.mxu0
    %5136 = vdwg.mxu0
    %5137 = vmatpush.bf16.msra.mxu0 %v4862
    %5138 = vmatpush.bf16.msra.mxu0 %v4854
    %5139 = vmatpush.bf16.msra.mxu0 %v4846
    %5140 = vmatpush.bf16.msra.mxu0 %v4838
    %5141 = vmatpush.bf16.msra.mxu0 %v4830
    %5142 = vmatpush.bf16.msra.mxu0 %v4822
    %5143 = vmatpush.bf16.msra.mxu0 %v4814
    %5144 = vmatpush.bf16.msra.mxu0 %v4806
    %5145 = vmatmul.bf16.gmra.mxu0 %v4289
    %v5146 = vpop.f32.mrf.mxu0
    %v5147 = vadd.f32 0.0, %v5146
    %v5148 = vpop.f32.mrf.mxu0
    %5149 = vdwg.mxu0
    %5150 = vmatpush.bf16.msra.mxu0 %v4926
    %5151 = vmatpush.bf16.msra.mxu0 %v4918
    %5152 = vmatpush.bf16.msra.mxu0 %v4910
    %5153 = vmatpush.bf16.msra.mxu0 %v4902
    %5154 = vmatpush.bf16.msra.mxu0 %v4894
    %5155 = vmatpush.bf16.msra.mxu0 %v4886
    %5156 = vmatpush.bf16.msra.mxu0 %v4878
    %5157 = vmatpush.bf16.msra.mxu0 %v4870
    %5158 = vmatmul.bf16.gmra.mxu0 %v4290
    %v5159 = vpop.f32.mrf.mxu0
    %v5160 = vadd.f32 %v5147, %v5159
    %v5161 = vpop.f32.mrf.mxu0
    %5162 = vdwg.mxu0
    %5163 = vmatpush.bf16.msra.mxu0 %v4863
    %5164 = vmatpush.bf16.msra.mxu0 %v4855
    %5165 = vmatpush.bf16.msra.mxu0 %v4847
    %5166 = vmatpush.bf16.msra.mxu0 %v4839
    %5167 = vmatpush.bf16.msra.mxu0 %v4831
    %5168 = vmatpush.bf16.msra.mxu0 %v4823
    %5169 = vmatpush.bf16.msra.mxu0 %v4815
    %5170 = vmatpush.bf16.msra.mxu0 %v4807
    %5171 = vmatmul.bf16.gmra.mxu0 %v4289
    %v5172 = vpop.f32.mrf.mxu0
    %v5173 = vadd.f32 0.0, %v5172
    %v5174 = vpop.f32.mrf.mxu0
    %5175 = vdwg.mxu0
    %5176 = vmatpush.bf16.msra.mxu0 %v4927
    %5177 = vmatpush.bf16.msra.mxu0 %v4919
    %5178 = vmatpush.bf16.msra.mxu0 %v4911
    %5179 = vmatpush.bf16.msra.mxu0 %v4903
    %5180 = vmatpush.bf16.msra.mxu0 %v4895
    %5181 = vmatpush.bf16.msra.mxu0 %v4887
    %5182 = vmatpush.bf16.msra.mxu0 %v4879
    %5183 = vmatpush.bf16.msra.mxu0 %v4871
    %5184 = vmatmul.bf16.gmra.mxu0 %v4290
    %v5185 = vpop.f32.mrf.mxu0
    %v5186 = vadd.f32 %v5173, %v5185
    %v5187 = vpop.f32.mrf.mxu0
    %5188 = vdwg.mxu0
    %5189 = vmatpush.bf16.msra.mxu0 %v4864
    %5190 = vmatpush.bf16.msra.mxu0 %v4856
    %5191 = vmatpush.bf16.msra.mxu0 %v4848
    %5192 = vmatpush.bf16.msra.mxu0 %v4840
    %5193 = vmatpush.bf16.msra.mxu0 %v4832
    %5194 = vmatpush.bf16.msra.mxu0 %v4824
    %5195 = vmatpush.bf16.msra.mxu0 %v4816
    %5196 = vmatpush.bf16.msra.mxu0 %v4808
    %5197 = vmatmul.bf16.gmra.mxu0 %v4289
    %v5198 = vpop.f32.mrf.mxu0
    %v5199 = vadd.f32 0.0, %v5198
    %v5200 = vpop.f32.mrf.mxu0
    %5201 = vdwg.mxu0
    %5202 = vmatpush.bf16.msra.mxu0 %v4928
    %5203 = vmatpush.bf16.msra.mxu0 %v4920
    %5204 = vmatpush.bf16.msra.mxu0 %v4912
    %5205 = vmatpush.bf16.msra.mxu0 %v4904
    %5206 = vmatpush.bf16.msra.mxu0 %v4896
    %5207 = vmatpush.bf16.msra.mxu0 %v4888
    %5208 = vmatpush.bf16.msra.mxu0 %v4880
    %5209 = vmatpush.bf16.msra.mxu0 %v4872
    %5210 = vmatmul.bf16.gmra.mxu0 %v4290
    %v5211 = vpop.f32.mrf.mxu0
    %v5212 = vadd.f32 %v5199, %v5211
    %v5213 = vpop.f32.mrf.mxu0
    %5214 = vdwg.mxu0
    %5215 = vmatpush.bf16.msra.mxu0 %v4865
    %5216 = vmatpush.bf16.msra.mxu0 %v4857
    %5217 = vmatpush.bf16.msra.mxu0 %v4849
    %5218 = vmatpush.bf16.msra.mxu0 %v4841
    %5219 = vmatpush.bf16.msra.mxu0 %v4833
    %5220 = vmatpush.bf16.msra.mxu0 %v4825
    %5221 = vmatpush.bf16.msra.mxu0 %v4817
    %5222 = vmatpush.bf16.msra.mxu0 %v4809
    %5223 = vmatmul.bf16.gmra.mxu0 %v4289
    %v5224 = vpop.f32.mrf.mxu0
    %v5225 = vadd.f32 0.0, %v5224
    %v5226 = vpop.f32.mrf.mxu0
    %5227 = vdwg.mxu0
    %5228 = vmatpush.bf16.msra.mxu0 %v4929
    %5229 = vmatpush.bf16.msra.mxu0 %v4921
    %5230 = vmatpush.bf16.msra.mxu0 %v4913
    %5231 = vmatpush.bf16.msra.mxu0 %v4905
    %5232 = vmatpush.bf16.msra.mxu0 %v4897
    %5233 = vmatpush.bf16.msra.mxu0 %v4889
    %5234 = vmatpush.bf16.msra.mxu0 %v4881
    %5235 = vmatpush.bf16.msra.mxu0 %v4873
    %5236 = vmatmul.bf16.gmra.mxu0 %v4290
    %v5237 = vpop.f32.mrf.mxu0
    %v5238 = vadd.f32 %v5225, %v5237
    %v5239 = vpop.f32.mrf.mxu0
    %5240 = vdwg.mxu0
    %5241 = vmatpush.bf16.msra.mxu0 %v4866
    %5242 = vmatpush.bf16.msra.mxu0 %v4858
    %5243 = vmatpush.bf16.msra.mxu0 %v4850
    %5244 = vmatpush.bf16.msra.mxu0 %v4842
    %5245 = vmatpush.bf16.msra.mxu0 %v4834
    %5246 = vmatpush.bf16.msra.mxu0 %v4826
    %5247 = vmatpush.bf16.msra.mxu0 %v4818
    %5248 = vmatpush.bf16.msra.mxu0 %v4810
    %5249 = vmatmul.bf16.gmra.mxu0 %v4289
    %v5250 = vpop.f32.mrf.mxu0
    %v5251 = vadd.f32 0.0, %v5250
    %v5252 = vpop.f32.mrf.mxu0
    %5253 = vdwg.mxu0
    %5254 = vmatpush.bf16.msra.mxu0 %v4930
    %5255 = vmatpush.bf16.msra.mxu0 %v4922
    %5256 = vmatpush.bf16.msra.mxu0 %v4914
    %5257 = vmatpush.bf16.msra.mxu0 %v4906
    %5258 = vmatpush.bf16.msra.mxu0 %v4898
    %5259 = vmatpush.bf16.msra.mxu0 %v4890
    %5260 = vmatpush.bf16.msra.mxu0 %v4882
    %5261 = vmatpush.bf16.msra.mxu0 %v4874
    %5262 = vmatmul.bf16.gmra.mxu0 %v4290
    %v5263 = vpop.f32.mrf.mxu0
    %v5264 = vadd.f32 %v5251, %v5263
    %v5265 = vpop.f32.mrf.mxu0
    %5266 = vdwg.mxu0
    %v5267 = vadd.f32 %v4281, %v5082
    %v5268 = vadd.f32 %v4282, %v5108
    %v5269 = vadd.f32 %v4283, %v5134
    %v5270 = vadd.f32 %v4284, %v5160
    %v5271 = vadd.f32 %v4285, %v5186
    %v5272 = vadd.f32 %v4286, %v5212
    %v5273 = vadd.f32 %v4287, %v5238
    %v5274 = vadd.f32 %v4288, %v5264
    %v5275 = vxor.u32 %v5267, 2147483648
    %v5276 = vxor.u32 %v5268, 2147483648
    %v5277 = vmul.f32 %v5275, 1.442695
    %v5278 = vpow.pop %v5277
    %v5279 = vmul.f32 %v5276, 1.442695
    %v5280 = vpow.pop %v5279
    %v5281 = vadd.f32 %v5278, 1.0
    %v5282 = vadd.f32 %v5280, 1.0
    %v5283 = vrcp.pop %v5281
    %v5284 = vmul.f32 %v5281, %v5283
    %v5285 = vsub.f32 1.0, %v5284
    %v5286 = vmul.f32 %v5283, %v5285
    %v5287 = vadd.f32 %v5283, %v5286
    %vm5288 = vweird.f32 %v5281
    %vm5289 = vweird.f32 %v5283
    %vm5290 = vmor %vm5288, %vm5289
    %v5291 = vsel %vm5290, %v5283, %v5287
    %v5292 = vand.u32 2147483647, %v5281
    %vm5293 = vcmp.eq.f32.partialorder %v5292, 8.507059e+37
    %v5294 = vand.u32 %v5281, 2147483648
    %v5295 = vor.u32 1.1754944e-38, %v5294
    %v5296 = vsel %vm5293, %v5295, %v5291
    %v5297 = vmul.f32 1.0, %v5296
    %v5298 = vrcp.pop %v5282
    %v5299 = vmul.f32 %v5282, %v5298
    %v5300 = vsub.f32 1.0, %v5299
    %v5301 = vmul.f32 %v5298, %v5300
    %v5302 = vadd.f32 %v5298, %v5301
    %vm5303 = vweird.f32 %v5282
    %vm5304 = vweird.f32 %v5298
    %vm5305 = vmor %vm5303, %vm5304
    %v5306 = vsel %vm5305, %v5298, %v5302
    %v5307 = vand.u32 2147483647, %v5282
    %vm5308 = vcmp.eq.f32.partialorder %v5307, 8.507059e+37
    %v5309 = vand.u32 %v5282, 2147483648
    %v5310 = vor.u32 1.1754944e-38, %v5309
    %v5311 = vsel %vm5308, %v5310, %v5306
    %v5312 = vmul.f32 1.0, %v5311
    %v5313 = vxor.u32 %v5269, 2147483648
    %v5314 = vxor.u32 %v5270, 2147483648
    %v5315 = vmul.f32 %v5313, 1.442695
    %v5316 = vpow.pop %v5315
    %v5317 = vmul.f32 %v5314, 1.442695
    %v5318 = vpow.pop %v5317
    %v5319 = vadd.f32 %v5316, 1.0
    %v5320 = vadd.f32 %v5318, 1.0
    %v5321 = vrcp.pop %v5319
    %v5322 = vmul.f32 %v5319, %v5321
    %v5323 = vsub.f32 1.0, %v5322
    %v5324 = vmul.f32 %v5321, %v5323
    %v5325 = vadd.f32 %v5321, %v5324
    %vm5326 = vweird.f32 %v5319
    %vm5327 = vweird.f32 %v5321
    %vm5328 = vmor %vm5326, %vm5327
    %v5329 = vsel %vm5328, %v5321, %v5325
    %v5330 = vand.u32 2147483647, %v5319
    %vm5331 = vcmp.eq.f32.partialorder %v5330, 8.507059e+37
    %v5332 = vand.u32 %v5319, 2147483648
    %v5333 = vor.u32 1.1754944e-38, %v5332
    %v5334 = vsel %vm5331, %v5333, %v5329
    %v5335 = vmul.f32 1.0, %v5334
    %v5336 = vrcp.pop %v5320
    %v5337 = vmul.f32 %v5320, %v5336
    %v5338 = vsub.f32 1.0, %v5337
    %v5339 = vmul.f32 %v5336, %v5338
    %v5340 = vadd.f32 %v5336, %v5339
    %vm5341 = vweird.f32 %v5320
    %vm5342 = vweird.f32 %v5336
    %vm5343 = vmor %vm5341, %vm5342
    %v5344 = vsel %vm5343, %v5336, %v5340
    %v5345 = vand.u32 2147483647, %v5320
    %vm5346 = vcmp.eq.f32.partialorder %v5345, 8.507059e+37
    %v5347 = vand.u32 %v5320, 2147483648
    %v5348 = vor.u32 1.1754944e-38, %v5347
    %v5349 = vsel %vm5346, %v5348, %v5344
    %v5350 = vmul.f32 1.0, %v5349
    %v5351 = vtanh.pop %v5271
    %v5352 = vtanh.pop %v5272
    %v5353 = vxor.u32 %v5273, 2147483648
    %v5354 = vxor.u32 %v5274, 2147483648
    %v5355 = vmul.f32 %v5353, 1.442695
    %v5356 = vpow.pop %v5355
    %v5357 = vmul.f32 %v5354, 1.442695
    %v5358 = vpow.pop %v5357
    %v5359 = vadd.f32 %v5356, 1.0
    %v5360 = vadd.f32 %v5358, 1.0
    %v5361 = vrcp.pop %v5359
    %v5362 = vmul.f32 %v5359, %v5361
    %v5363 = vsub.f32 1.0, %v5362
    %v5364 = vmul.f32 %v5361, %v5363
    %v5365 = vadd.f32 %v5361, %v5364
    %vm5366 = vweird.f32 %v5359
    %vm5367 = vweird.f32 %v5361
    %vm5368 = vmor %vm5366, %vm5367
    %v5369 = vsel %vm5368, %v5361, %v5365
    %v5370 = vand.u32 2147483647, %v5359
    %vm5371 = vcmp.eq.f32.partialorder %v5370, 8.507059e+37
    %v5372 = vand.u32 %v5359, 2147483648
    %v5373 = vor.u32 1.1754944e-38, %v5372
    %v5374 = vsel %vm5371, %v5373, %v5369
    %v5375 = vmul.f32 1.0, %v5374
    %v5376 = vrcp.pop %v5360
    %v5377 = vmul.f32 %v5360, %v5376
    %v5378 = vsub.f32 1.0, %v5377
    %v5379 = vmul.f32 %v5376, %v5378
    %v5380 = vadd.f32 %v5376, %v5379
    %vm5381 = vweird.f32 %v5360
    %vm5382 = vweird.f32 %v5376
    %vm5383 = vmor %vm5381, %vm5382
    %v5384 = vsel %vm5383, %v5376, %v5380
    %v5385 = vand.u32 2147483647, %v5360
    %vm5386 = vcmp.eq.f32.partialorder %v5385, 8.507059e+37
    %v5387 = vand.u32 %v5360, 2147483648
    %v5388 = vor.u32 1.1754944e-38, %v5387
    %v5389 = vsel %vm5386, %v5388, %v5384
    %v5390 = vmul.f32 1.0, %v5389
    %v5391 = vmul.f32 %v5335, %v4272
    %v5392 = vmul.f32 %v5350, %v4273
    %v5393 = vmul.f32 %v5297, %v5351
    %v5394 = vmul.f32 %v5312, %v5352
    %v5395 = vadd.f32 %v5391, %v5393
    %v5396 = vadd.f32 %v5392, %v5394
    %v5397 = vtanh.pop %v5395
    %v5398 = vtanh.pop %v5396
    %v5399 = vmul.f32 %v5375, %v5397
    %v5400 = vmul.f32 %v5390, %v5398
    %s5401 = sadd.s32 %s829, 3
    %v5402 = vstv %s5401
    %vm5403 = vcmp.lt.s32.totalorder %v5402, %v828
    %v5404 = vsel %vm5403, 1, 0
    %5405 = vset.pattern.permute.xlu0 0
    %5406 = vperm.xlu0 %5405, %v5404
    %v5407 = vpop.permute.xlu0 %5406
    %vm5408 = vcmp.eq.s32.totalorder %v5407, 1
    %v5409 = vsel %vm5408, %v5399, %v4270
    %v5410 = vsel %vm5408, %v5400, %v4271
    %5411 = vst [vmem:[#allocation3] sm:$0xff] %v5409
    %5412 = vst [vmem:[#allocation3 + $0x8] sm:$0xff] %v5410
    %v5413 = vsel %vm5408, %v5395, %v4272
    %v5414 = vsel %vm5408, %v5396, %v4273
    %5415 = vst [vmem:[#allocation4] sm:$0xff] %v5413
    %5416 = vst [vmem:[#allocation4 + $0x8] sm:$0xff] %v5414
    %v5417 = vld [vmem:[#allocation3] sm:$0xff]
    %v5418 = vld [vmem:[#allocation3 + $0x8] sm:$0xff]
    %v5419 = vld [vmem:[#allocation4] sm:$0xff]
    %v5420 = vld [vmem:[#allocation4 + $0x8] sm:$0xff]
    %s5421 = smul.u32 4, 8
    %s5422 = smul.addr %s5421, 4
    %s5423 = scalar_lea.vmem [#allocation2], %s5422
    %v5424 = vld [vmem:[%s5423] sm:$0xff]
    %v5425 = vld [vmem:[%s5423 + $0x8] sm:$0xff]
    %v5426 = vld [vmem:[%s5423 + $0x10] sm:$0xff]
    %v5427 = vld [vmem:[%s5423 + $0x18] sm:$0xff]
    %v5428 = vunpack.c.l.bf16 %v5424
    %v5429 = vunpack.c.h.bf16 %v5424
    %v5430 = vunpack.c.l.bf16 %v5425
    %v5431 = vunpack.c.h.bf16 %v5425
    %v5432 = vunpack.c.l.bf16 %v5426
    %v5433 = vunpack.c.h.bf16 %v5426
    %v5434 = vunpack.c.l.bf16 %v5427
    %v5435 = vunpack.c.h.bf16 %v5427
    %v5436 = vpack.c.bf16 %v5417, %v5417
    %v5437 = vpack.c.bf16 %v5418, %v5418
    %v5438 = vld [vmem:[#allocation10] sm:$0xff]
    %v5439 = vld [vmem:[#allocation10 + $0x8] sm:$0xff]
    %v5440 = vld [vmem:[#allocation10 + $0x10] sm:$0xff]
    %v5441 = vld [vmem:[#allocation10 + $0x18] sm:$0xff]
    %v5442 = vld [vmem:[#allocation10 + $0x20] sm:$0xff]
    %v5443 = vld [vmem:[#allocation10 + $0x28] sm:$0xff]
    %v5444 = vld [vmem:[#allocation10 + $0x30] sm:$0xff]
    %v5445 = vld [vmem:[#allocation10 + $0x38] sm:$0xff]
    %v5446 = vld [vmem:[#allocation10 + $0x40] sm:$0xff]
    %v5447 = vld [vmem:[#allocation10 + $0x48] sm:$0xff]
    %v5448 = vld [vmem:[#allocation10 + $0x50] sm:$0xff]
    %v5449 = vld [vmem:[#allocation10 + $0x58] sm:$0xff]
    %v5450 = vld [vmem:[#allocation10 + $0x60] sm:$0xff]
    %v5451 = vld [vmem:[#allocation10 + $0x68] sm:$0xff]
    %v5452 = vld [vmem:[#allocation10 + $0x70] sm:$0xff]
    %v5453 = vld [vmem:[#allocation10 + $0x78] sm:$0xff]
    %v5454 = vld [vmem:[#allocation10 + $0x80] sm:$0xff]
    %v5455 = vld [vmem:[#allocation10 + $0x88] sm:$0xff]
    %v5456 = vld [vmem:[#allocation10 + $0x90] sm:$0xff]
    %v5457 = vld [vmem:[#allocation10 + $0x98] sm:$0xff]
    %v5458 = vld [vmem:[#allocation10 + $0xa0] sm:$0xff]
    %v5459 = vld [vmem:[#allocation10 + $0xa8] sm:$0xff]
    %v5460 = vld [vmem:[#allocation10 + $0xb0] sm:$0xff]
    %v5461 = vld [vmem:[#allocation10 + $0xb8] sm:$0xff]
    %v5462 = vld [vmem:[#allocation10 + $0xc0] sm:$0xff]
    %v5463 = vld [vmem:[#allocation10 + $0xc8] sm:$0xff]
    %v5464 = vld [vmem:[#allocation10 + $0xd0] sm:$0xff]
    %v5465 = vld [vmem:[#allocation10 + $0xd8] sm:$0xff]
    %v5466 = vld [vmem:[#allocation10 + $0xe0] sm:$0xff]
    %v5467 = vld [vmem:[#allocation10 + $0xe8] sm:$0xff]
    %v5468 = vld [vmem:[#allocation10 + $0xf0] sm:$0xff]
    %v5469 = vld [vmem:[#allocation10 + $0xf8] sm:$0xff]
    %v5470 = vld [vmem:[#allocation10 + $0x100] sm:$0xff]
    %v5471 = vld [vmem:[#allocation10 + $0x108] sm:$0xff]
    %v5472 = vld [vmem:[#allocation10 + $0x110] sm:$0xff]
    %v5473 = vld [vmem:[#allocation10 + $0x118] sm:$0xff]
    %v5474 = vld [vmem:[#allocation10 + $0x120] sm:$0xff]
    %v5475 = vld [vmem:[#allocation10 + $0x128] sm:$0xff]
    %v5476 = vld [vmem:[#allocation10 + $0x130] sm:$0xff]
    %v5477 = vld [vmem:[#allocation10 + $0x138] sm:$0xff]
    %v5478 = vld [vmem:[#allocation10 + $0x140] sm:$0xff]
    %v5479 = vld [vmem:[#allocation10 + $0x148] sm:$0xff]
    %v5480 = vld [vmem:[#allocation10 + $0x150] sm:$0xff]
    %v5481 = vld [vmem:[#allocation10 + $0x158] sm:$0xff]
    %v5482 = vld [vmem:[#allocation10 + $0x160] sm:$0xff]
    %v5483 = vld [vmem:[#allocation10 + $0x168] sm:$0xff]
    %v5484 = vld [vmem:[#allocation10 + $0x170] sm:$0xff]
    %v5485 = vld [vmem:[#allocation10 + $0x178] sm:$0xff]
    %v5486 = vld [vmem:[#allocation10 + $0x180] sm:$0xff]
    %v5487 = vld [vmem:[#allocation10 + $0x188] sm:$0xff]
    %v5488 = vld [vmem:[#allocation10 + $0x190] sm:$0xff]
    %v5489 = vld [vmem:[#allocation10 + $0x198] sm:$0xff]
    %v5490 = vld [vmem:[#allocation10 + $0x1a0] sm:$0xff]
    %v5491 = vld [vmem:[#allocation10 + $0x1a8] sm:$0xff]
    %v5492 = vld [vmem:[#allocation10 + $0x1b0] sm:$0xff]
    %v5493 = vld [vmem:[#allocation10 + $0x1b8] sm:$0xff]
    %v5494 = vld [vmem:[#allocation10 + $0x1c0] sm:$0xff]
    %v5495 = vld [vmem:[#allocation10 + $0x1c8] sm:$0xff]
    %v5496 = vld [vmem:[#allocation10 + $0x1d0] sm:$0xff]
    %v5497 = vld [vmem:[#allocation10 + $0x1d8] sm:$0xff]
    %v5498 = vld [vmem:[#allocation10 + $0x1e0] sm:$0xff]
    %v5499 = vld [vmem:[#allocation10 + $0x1e8] sm:$0xff]
    %v5500 = vld [vmem:[#allocation10 + $0x1f0] sm:$0xff]
    %v5501 = vld [vmem:[#allocation10 + $0x1f8] sm:$0xff]
    %v5502 = vld [vmem:[#allocation10 + $0x200] sm:$0xff]
    %v5503 = vld [vmem:[#allocation10 + $0x208] sm:$0xff]
    %v5504 = vld [vmem:[#allocation10 + $0x210] sm:$0xff]
    %v5505 = vld [vmem:[#allocation10 + $0x218] sm:$0xff]
    %v5506 = vld [vmem:[#allocation10 + $0x220] sm:$0xff]
    %v5507 = vld [vmem:[#allocation10 + $0x228] sm:$0xff]
    %v5508 = vld [vmem:[#allocation10 + $0x230] sm:$0xff]
    %v5509 = vld [vmem:[#allocation10 + $0x238] sm:$0xff]
    %v5510 = vld [vmem:[#allocation10 + $0x240] sm:$0xff]
    %v5511 = vld [vmem:[#allocation10 + $0x248] sm:$0xff]
    %v5512 = vld [vmem:[#allocation10 + $0x250] sm:$0xff]
    %v5513 = vld [vmem:[#allocation10 + $0x258] sm:$0xff]
    %v5514 = vld [vmem:[#allocation10 + $0x260] sm:$0xff]
    %v5515 = vld [vmem:[#allocation10 + $0x268] sm:$0xff]
    %v5516 = vld [vmem:[#allocation10 + $0x270] sm:$0xff]
    %v5517 = vld [vmem:[#allocation10 + $0x278] sm:$0xff]
    %v5518 = vld [vmem:[#allocation10 + $0x280] sm:$0xff]
    %v5519 = vld [vmem:[#allocation10 + $0x288] sm:$0xff]
    %v5520 = vld [vmem:[#allocation10 + $0x290] sm:$0xff]
    %v5521 = vld [vmem:[#allocation10 + $0x298] sm:$0xff]
    %v5522 = vld [vmem:[#allocation10 + $0x2a0] sm:$0xff]
    %v5523 = vld [vmem:[#allocation10 + $0x2a8] sm:$0xff]
    %v5524 = vld [vmem:[#allocation10 + $0x2b0] sm:$0xff]
    %v5525 = vld [vmem:[#allocation10 + $0x2b8] sm:$0xff]
    %v5526 = vld [vmem:[#allocation10 + $0x2c0] sm:$0xff]
    %v5527 = vld [vmem:[#allocation10 + $0x2c8] sm:$0xff]
    %v5528 = vld [vmem:[#allocation10 + $0x2d0] sm:$0xff]
    %v5529 = vld [vmem:[#allocation10 + $0x2d8] sm:$0xff]
    %v5530 = vld [vmem:[#allocation10 + $0x2e0] sm:$0xff]
    %v5531 = vld [vmem:[#allocation10 + $0x2e8] sm:$0xff]
    %v5532 = vld [vmem:[#allocation10 + $0x2f0] sm:$0xff]
    %v5533 = vld [vmem:[#allocation10 + $0x2f8] sm:$0xff]
    %v5534 = vld [vmem:[#allocation10 + $0x300] sm:$0xff]
    %v5535 = vld [vmem:[#allocation10 + $0x308] sm:$0xff]
    %v5536 = vld [vmem:[#allocation10 + $0x310] sm:$0xff]
    %v5537 = vld [vmem:[#allocation10 + $0x318] sm:$0xff]
    %v5538 = vld [vmem:[#allocation10 + $0x320] sm:$0xff]
    %v5539 = vld [vmem:[#allocation10 + $0x328] sm:$0xff]
    %v5540 = vld [vmem:[#allocation10 + $0x330] sm:$0xff]
    %v5541 = vld [vmem:[#allocation10 + $0x338] sm:$0xff]
    %v5542 = vld [vmem:[#allocation10 + $0x340] sm:$0xff]
    %v5543 = vld [vmem:[#allocation10 + $0x348] sm:$0xff]
    %v5544 = vld [vmem:[#allocation10 + $0x350] sm:$0xff]
    %v5545 = vld [vmem:[#allocation10 + $0x358] sm:$0xff]
    %v5546 = vld [vmem:[#allocation10 + $0x360] sm:$0xff]
    %v5547 = vld [vmem:[#allocation10 + $0x368] sm:$0xff]
    %v5548 = vld [vmem:[#allocation10 + $0x370] sm:$0xff]
    %v5549 = vld [vmem:[#allocation10 + $0x378] sm:$0xff]
    %v5550 = vld [vmem:[#allocation10 + $0x380] sm:$0xff]
    %v5551 = vld [vmem:[#allocation10 + $0x388] sm:$0xff]
    %v5552 = vld [vmem:[#allocation10 + $0x390] sm:$0xff]
    %v5553 = vld [vmem:[#allocation10 + $0x398] sm:$0xff]
    %v5554 = vld [vmem:[#allocation10 + $0x3a0] sm:$0xff]
    %v5555 = vld [vmem:[#allocation10 + $0x3a8] sm:$0xff]
    %v5556 = vld [vmem:[#allocation10 + $0x3b0] sm:$0xff]
    %v5557 = vld [vmem:[#allocation10 + $0x3b8] sm:$0xff]
    %v5558 = vld [vmem:[#allocation10 + $0x3c0] sm:$0xff]
    %v5559 = vld [vmem:[#allocation10 + $0x3c8] sm:$0xff]
    %v5560 = vld [vmem:[#allocation10 + $0x3d0] sm:$0xff]
    %v5561 = vld [vmem:[#allocation10 + $0x3d8] sm:$0xff]
    %v5562 = vld [vmem:[#allocation10 + $0x3e0] sm:$0xff]
    %v5563 = vld [vmem:[#allocation10 + $0x3e8] sm:$0xff]
    %v5564 = vld [vmem:[#allocation10 + $0x3f0] sm:$0xff]
    %v5565 = vld [vmem:[#allocation10 + $0x3f8] sm:$0xff]
    %v5694 = vunpack.c.l.b16 %v5438
    %v5695 = vunpack.c.h.b16 %v5438
    %v5696 = vunpack.c.l.b16 %v5439
    %v5697 = vunpack.c.h.b16 %v5439
    %v5698 = vunpack.c.l.b16 %v5440
    %v5699 = vunpack.c.h.b16 %v5440
    %v5700 = vunpack.c.l.b16 %v5441
    %v5701 = vunpack.c.h.b16 %v5441
    %v5702 = vunpack.c.l.b16 %v5442
    %v5703 = vunpack.c.h.b16 %v5442
    %v5704 = vunpack.c.l.b16 %v5443
    %v5705 = vunpack.c.h.b16 %v5443
    %v5706 = vunpack.c.l.b16 %v5444
    %v5707 = vunpack.c.h.b16 %v5444
    %v5708 = vunpack.c.l.b16 %v5445
    %v5709 = vunpack.c.h.b16 %v5445
    %v5710 = vunpack.c.l.b16 %v5446
    %v5711 = vunpack.c.h.b16 %v5446
    %v5712 = vunpack.c.l.b16 %v5447
    %v5713 = vunpack.c.h.b16 %v5447
    %v5714 = vunpack.c.l.b16 %v5448
    %v5715 = vunpack.c.h.b16 %v5448
    %v5716 = vunpack.c.l.b16 %v5449
    %v5717 = vunpack.c.h.b16 %v5449
    %v5718 = vunpack.c.l.b16 %v5450
    %v5719 = vunpack.c.h.b16 %v5450
    %v5720 = vunpack.c.l.b16 %v5451
    %v5721 = vunpack.c.h.b16 %v5451
    %v5722 = vunpack.c.l.b16 %v5452
    %v5723 = vunpack.c.h.b16 %v5452
    %v5724 = vunpack.c.l.b16 %v5453
    %v5725 = vunpack.c.h.b16 %v5453
    %v5726 = vunpack.c.l.b16 %v5454
    %v5727 = vunpack.c.h.b16 %v5454
    %v5728 = vunpack.c.l.b16 %v5455
    %v5729 = vunpack.c.h.b16 %v5455
    %v5730 = vunpack.c.l.b16 %v5456
    %v5731 = vunpack.c.h.b16 %v5456
    %v5732 = vunpack.c.l.b16 %v5457
    %v5733 = vunpack.c.h.b16 %v5457
    %v5734 = vunpack.c.l.b16 %v5458
    %v5735 = vunpack.c.h.b16 %v5458
    %v5736 = vunpack.c.l.b16 %v5459
    %v5737 = vunpack.c.h.b16 %v5459
    %v5738 = vunpack.c.l.b16 %v5460
    %v5739 = vunpack.c.h.b16 %v5460
    %v5740 = vunpack.c.l.b16 %v5461
    %v5741 = vunpack.c.h.b16 %v5461
    %v5742 = vunpack.c.l.b16 %v5462
    %v5743 = vunpack.c.h.b16 %v5462
    %v5744 = vunpack.c.l.b16 %v5463
    %v5745 = vunpack.c.h.b16 %v5463
    %v5746 = vunpack.c.l.b16 %v5464
    %v5747 = vunpack.c.h.b16 %v5464
    %v5748 = vunpack.c.l.b16 %v5465
    %v5749 = vunpack.c.h.b16 %v5465
    %v5750 = vunpack.c.l.b16 %v5466
    %v5751 = vunpack.c.h.b16 %v5466
    %v5752 = vunpack.c.l.b16 %v5467
    %v5753 = vunpack.c.h.b16 %v5467
    %v5754 = vunpack.c.l.b16 %v5468
    %v5755 = vunpack.c.h.b16 %v5468
    %v5756 = vunpack.c.l.b16 %v5469
    %v5757 = vunpack.c.h.b16 %v5469
    %v5758 = vunpack.c.l.b16 %v5470
    %v5759 = vunpack.c.h.b16 %v5470
    %v5760 = vunpack.c.l.b16 %v5471
    %v5761 = vunpack.c.h.b16 %v5471
    %v5762 = vunpack.c.l.b16 %v5472
    %v5763 = vunpack.c.h.b16 %v5472
    %v5764 = vunpack.c.l.b16 %v5473
    %v5765 = vunpack.c.h.b16 %v5473
    %v5766 = vunpack.c.l.b16 %v5474
    %v5767 = vunpack.c.h.b16 %v5474
    %v5768 = vunpack.c.l.b16 %v5475
    %v5769 = vunpack.c.h.b16 %v5475
    %v5770 = vunpack.c.l.b16 %v5476
    %v5771 = vunpack.c.h.b16 %v5476
    %v5772 = vunpack.c.l.b16 %v5477
    %v5773 = vunpack.c.h.b16 %v5477
    %v5774 = vunpack.c.l.b16 %v5478
    %v5775 = vunpack.c.h.b16 %v5478
    %v5776 = vunpack.c.l.b16 %v5479
    %v5777 = vunpack.c.h.b16 %v5479
    %v5778 = vunpack.c.l.b16 %v5480
    %v5779 = vunpack.c.h.b16 %v5480
    %v5780 = vunpack.c.l.b16 %v5481
    %v5781 = vunpack.c.h.b16 %v5481
    %v5782 = vunpack.c.l.b16 %v5482
    %v5783 = vunpack.c.h.b16 %v5482
    %v5784 = vunpack.c.l.b16 %v5483
    %v5785 = vunpack.c.h.b16 %v5483
    %v5786 = vunpack.c.l.b16 %v5484
    %v5787 = vunpack.c.h.b16 %v5484
    %v5788 = vunpack.c.l.b16 %v5485
    %v5789 = vunpack.c.h.b16 %v5485
    %v5790 = vunpack.c.l.b16 %v5486
    %v5791 = vunpack.c.h.b16 %v5486
    %v5792 = vunpack.c.l.b16 %v5487
    %v5793 = vunpack.c.h.b16 %v5487
    %v5794 = vunpack.c.l.b16 %v5488
    %v5795 = vunpack.c.h.b16 %v5488
    %v5796 = vunpack.c.l.b16 %v5489
    %v5797 = vunpack.c.h.b16 %v5489
    %v5798 = vunpack.c.l.b16 %v5490
    %v5799 = vunpack.c.h.b16 %v5490
    %v5800 = vunpack.c.l.b16 %v5491
    %v5801 = vunpack.c.h.b16 %v5491
    %v5802 = vunpack.c.l.b16 %v5492
    %v5803 = vunpack.c.h.b16 %v5492
    %v5804 = vunpack.c.l.b16 %v5493
    %v5805 = vunpack.c.h.b16 %v5493
    %v5806 = vunpack.c.l.b16 %v5494
    %v5807 = vunpack.c.h.b16 %v5494
    %v5808 = vunpack.c.l.b16 %v5495
    %v5809 = vunpack.c.h.b16 %v5495
    %v5810 = vunpack.c.l.b16 %v5496
    %v5811 = vunpack.c.h.b16 %v5496
    %v5812 = vunpack.c.l.b16 %v5497
    %v5813 = vunpack.c.h.b16 %v5497
    %v5814 = vunpack.c.l.b16 %v5498
    %v5815 = vunpack.c.h.b16 %v5498
    %v5816 = vunpack.c.l.b16 %v5499
    %v5817 = vunpack.c.h.b16 %v5499
    %v5818 = vunpack.c.l.b16 %v5500
    %v5819 = vunpack.c.h.b16 %v5500
    %v5820 = vunpack.c.l.b16 %v5501
    %v5821 = vunpack.c.h.b16 %v5501
    %v5822 = vunpack.c.l.b16 %v5502
    %v5823 = vunpack.c.h.b16 %v5502
    %v5824 = vunpack.c.l.b16 %v5503
    %v5825 = vunpack.c.h.b16 %v5503
    %v5826 = vunpack.c.l.b16 %v5504
    %v5827 = vunpack.c.h.b16 %v5504
    %v5828 = vunpack.c.l.b16 %v5505
    %v5829 = vunpack.c.h.b16 %v5505
    %v5830 = vunpack.c.l.b16 %v5506
    %v5831 = vunpack.c.h.b16 %v5506
    %v5832 = vunpack.c.l.b16 %v5507
    %v5833 = vunpack.c.h.b16 %v5507
    %v5834 = vunpack.c.l.b16 %v5508
    %v5835 = vunpack.c.h.b16 %v5508
    %v5836 = vunpack.c.l.b16 %v5509
    %v5837 = vunpack.c.h.b16 %v5509
    %v5838 = vunpack.c.l.b16 %v5510
    %v5839 = vunpack.c.h.b16 %v5510
    %v5840 = vunpack.c.l.b16 %v5511
    %v5841 = vunpack.c.h.b16 %v5511
    %v5842 = vunpack.c.l.b16 %v5512
    %v5843 = vunpack.c.h.b16 %v5512
    %v5844 = vunpack.c.l.b16 %v5513
    %v5845 = vunpack.c.h.b16 %v5513
    %v5846 = vunpack.c.l.b16 %v5514
    %v5847 = vunpack.c.h.b16 %v5514
    %v5848 = vunpack.c.l.b16 %v5515
    %v5849 = vunpack.c.h.b16 %v5515
    %v5850 = vunpack.c.l.b16 %v5516
    %v5851 = vunpack.c.h.b16 %v5516
    %v5852 = vunpack.c.l.b16 %v5517
    %v5853 = vunpack.c.h.b16 %v5517
    %v5854 = vunpack.c.l.b16 %v5518
    %v5855 = vunpack.c.h.b16 %v5518
    %v5856 = vunpack.c.l.b16 %v5519
    %v5857 = vunpack.c.h.b16 %v5519
    %v5858 = vunpack.c.l.b16 %v5520
    %v5859 = vunpack.c.h.b16 %v5520
    %v5860 = vunpack.c.l.b16 %v5521
    %v5861 = vunpack.c.h.b16 %v5521
    %v5862 = vunpack.c.l.b16 %v5522
    %v5863 = vunpack.c.h.b16 %v5522
    %v5864 = vunpack.c.l.b16 %v5523
    %v5865 = vunpack.c.h.b16 %v5523
    %v5866 = vunpack.c.l.b16 %v5524
    %v5867 = vunpack.c.h.b16 %v5524
    %v5868 = vunpack.c.l.b16 %v5525
    %v5869 = vunpack.c.h.b16 %v5525
    %v5870 = vunpack.c.l.b16 %v5526
    %v5871 = vunpack.c.h.b16 %v5526
    %v5872 = vunpack.c.l.b16 %v5527
    %v5873 = vunpack.c.h.b16 %v5527
    %v5874 = vunpack.c.l.b16 %v5528
    %v5875 = vunpack.c.h.b16 %v5528
    %v5876 = vunpack.c.l.b16 %v5529
    %v5877 = vunpack.c.h.b16 %v5529
    %v5878 = vunpack.c.l.b16 %v5530
    %v5879 = vunpack.c.h.b16 %v5530
    %v5880 = vunpack.c.l.b16 %v5531
    %v5881 = vunpack.c.h.b16 %v5531
    %v5882 = vunpack.c.l.b16 %v5532
    %v5883 = vunpack.c.h.b16 %v5532
    %v5884 = vunpack.c.l.b16 %v5533
    %v5885 = vunpack.c.h.b16 %v5533
    %v5886 = vunpack.c.l.b16 %v5534
    %v5887 = vunpack.c.h.b16 %v5534
    %v5888 = vunpack.c.l.b16 %v5535
    %v5889 = vunpack.c.h.b16 %v5535
    %v5890 = vunpack.c.l.b16 %v5536
    %v5891 = vunpack.c.h.b16 %v5536
    %v5892 = vunpack.c.l.b16 %v5537
    %v5893 = vunpack.c.h.b16 %v5537
    %v5894 = vunpack.c.l.b16 %v5538
    %v5895 = vunpack.c.h.b16 %v5538
    %v5896 = vunpack.c.l.b16 %v5539
    %v5897 = vunpack.c.h.b16 %v5539
    %v5898 = vunpack.c.l.b16 %v5540
    %v5899 = vunpack.c.h.b16 %v5540
    %v5900 = vunpack.c.l.b16 %v5541
    %v5901 = vunpack.c.h.b16 %v5541
    %v5902 = vunpack.c.l.b16 %v5542
    %v5903 = vunpack.c.h.b16 %v5542
    %v5904 = vunpack.c.l.b16 %v5543
    %v5905 = vunpack.c.h.b16 %v5543
    %v5906 = vunpack.c.l.b16 %v5544
    %v5907 = vunpack.c.h.b16 %v5544
    %v5908 = vunpack.c.l.b16 %v5545
    %v5909 = vunpack.c.h.b16 %v5545
    %v5910 = vunpack.c.l.b16 %v5546
    %v5911 = vunpack.c.h.b16 %v5546
    %v5912 = vunpack.c.l.b16 %v5547
    %v5913 = vunpack.c.h.b16 %v5547
    %v5914 = vunpack.c.l.b16 %v5548
    %v5915 = vunpack.c.h.b16 %v5548
    %v5916 = vunpack.c.l.b16 %v5549
    %v5917 = vunpack.c.h.b16 %v5549
    %v5918 = vunpack.c.l.b16 %v5550
    %v5919 = vunpack.c.h.b16 %v5550
    %v5920 = vunpack.c.l.b16 %v5551
    %v5921 = vunpack.c.h.b16 %v5551
    %v5922 = vunpack.c.l.b16 %v5552
    %v5923 = vunpack.c.h.b16 %v5552
    %v5924 = vunpack.c.l.b16 %v5553
    %v5925 = vunpack.c.h.b16 %v5553
    %v5926 = vunpack.c.l.b16 %v5554
    %v5927 = vunpack.c.h.b16 %v5554
    %v5928 = vunpack.c.l.b16 %v5555
    %v5929 = vunpack.c.h.b16 %v5555
    %v5930 = vunpack.c.l.b16 %v5556
    %v5931 = vunpack.c.h.b16 %v5556
    %v5932 = vunpack.c.l.b16 %v5557
    %v5933 = vunpack.c.h.b16 %v5557
    %v5934 = vunpack.c.l.b16 %v5558
    %v5935 = vunpack.c.h.b16 %v5558
    %v5936 = vunpack.c.l.b16 %v5559
    %v5937 = vunpack.c.h.b16 %v5559
    %v5938 = vunpack.c.l.b16 %v5560
    %v5939 = vunpack.c.h.b16 %v5560
    %v5940 = vunpack.c.l.b16 %v5561
    %v5941 = vunpack.c.h.b16 %v5561
    %v5942 = vunpack.c.l.b16 %v5562
    %v5943 = vunpack.c.h.b16 %v5562
    %v5944 = vunpack.c.l.b16 %v5563
    %v5945 = vunpack.c.h.b16 %v5563
    %v5946 = vunpack.c.l.b16 %v5564
    %v5947 = vunpack.c.h.b16 %v5564
    %v5948 = vunpack.c.l.b16 %v5565
    %v5949 = vunpack.c.h.b16 %v5565
    %v5950 = vpack.c.b16 %v5702, %v5694
    %v5951 = vpack.c.b16 %v5703, %v5695
    %v5952 = vpack.c.b16 %v5704, %v5696
    %v5953 = vpack.c.b16 %v5705, %v5697
    %v5954 = vpack.c.b16 %v5706, %v5698
    %v5955 = vpack.c.b16 %v5707, %v5699
    %v5956 = vpack.c.b16 %v5708, %v5700
    %v5957 = vpack.c.b16 %v5709, %v5701
    %v5958 = vpack.c.b16 %v5718, %v5710
    %v5959 = vpack.c.b16 %v5719, %v5711
    %v5960 = vpack.c.b16 %v5720, %v5712
    %v5961 = vpack.c.b16 %v5721, %v5713
    %v5962 = vpack.c.b16 %v5722, %v5714
    %v5963 = vpack.c.b16 %v5723, %v5715
    %v5964 = vpack.c.b16 %v5724, %v5716
    %v5965 = vpack.c.b16 %v5725, %v5717
    %v5966 = vpack.c.b16 %v5734, %v5726
    %v5967 = vpack.c.b16 %v5735, %v5727
    %v5968 = vpack.c.b16 %v5736, %v5728
    %v5969 = vpack.c.b16 %v5737, %v5729
    %v5970 = vpack.c.b16 %v5738, %v5730
    %v5971 = vpack.c.b16 %v5739, %v5731
    %v5972 = vpack.c.b16 %v5740, %v5732
    %v5973 = vpack.c.b16 %v5741, %v5733
    %v5974 = vpack.c.b16 %v5750, %v5742
    %v5975 = vpack.c.b16 %v5751, %v5743
    %v5976 = vpack.c.b16 %v5752, %v5744
    %v5977 = vpack.c.b16 %v5753, %v5745
    %v5978 = vpack.c.b16 %v5754, %v5746
    %v5979 = vpack.c.b16 %v5755, %v5747
    %v5980 = vpack.c.b16 %v5756, %v5748
    %v5981 = vpack.c.b16 %v5757, %v5749
    %v5982 = vpack.c.b16 %v5766, %v5758
    %v5983 = vpack.c.b16 %v5767, %v5759
    %v5984 = vpack.c.b16 %v5768, %v5760
    %v5985 = vpack.c.b16 %v5769, %v5761
    %v5986 = vpack.c.b16 %v5770, %v5762
    %v5987 = vpack.c.b16 %v5771, %v5763
    %v5988 = vpack.c.b16 %v5772, %v5764
    %v5989 = vpack.c.b16 %v5773, %v5765
    %v5990 = vpack.c.b16 %v5782, %v5774
    %v5991 = vpack.c.b16 %v5783, %v5775
    %v5992 = vpack.c.b16 %v5784, %v5776
    %v5993 = vpack.c.b16 %v5785, %v5777
    %v5994 = vpack.c.b16 %v5786, %v5778
    %v5995 = vpack.c.b16 %v5787, %v5779
    %v5996 = vpack.c.b16 %v5788, %v5780
    %v5997 = vpack.c.b16 %v5789, %v5781
    %v5998 = vpack.c.b16 %v5798, %v5790
    %v5999 = vpack.c.b16 %v5799, %v5791
    %v6000 = vpack.c.b16 %v5800, %v5792
    %v6001 = vpack.c.b16 %v5801, %v5793
    %v6002 = vpack.c.b16 %v5802, %v5794
    %v6003 = vpack.c.b16 %v5803, %v5795
    %v6004 = vpack.c.b16 %v5804, %v5796
    %v6005 = vpack.c.b16 %v5805, %v5797
    %v6006 = vpack.c.b16 %v5814, %v5806
    %v6007 = vpack.c.b16 %v5815, %v5807
    %v6008 = vpack.c.b16 %v5816, %v5808
    %v6009 = vpack.c.b16 %v5817, %v5809
    %v6010 = vpack.c.b16 %v5818, %v5810
    %v6011 = vpack.c.b16 %v5819, %v5811
    %v6012 = vpack.c.b16 %v5820, %v5812
    %v6013 = vpack.c.b16 %v5821, %v5813
    %v6014 = vpack.c.b16 %v5830, %v5822
    %v6015 = vpack.c.b16 %v5831, %v5823
    %v6016 = vpack.c.b16 %v5832, %v5824
    %v6017 = vpack.c.b16 %v5833, %v5825
    %v6018 = vpack.c.b16 %v5834, %v5826
    %v6019 = vpack.c.b16 %v5835, %v5827
    %v6020 = vpack.c.b16 %v5836, %v5828
    %v6021 = vpack.c.b16 %v5837, %v5829
    %v6022 = vpack.c.b16 %v5846, %v5838
    %v6023 = vpack.c.b16 %v5847, %v5839
    %v6024 = vpack.c.b16 %v5848, %v5840
    %v6025 = vpack.c.b16 %v5849, %v5841
    %v6026 = vpack.c.b16 %v5850, %v5842
    %v6027 = vpack.c.b16 %v5851, %v5843
    %v6028 = vpack.c.b16 %v5852, %v5844
    %v6029 = vpack.c.b16 %v5853, %v5845
    %v6030 = vpack.c.b16 %v5862, %v5854
    %v6031 = vpack.c.b16 %v5863, %v5855
    %v6032 = vpack.c.b16 %v5864, %v5856
    %v6033 = vpack.c.b16 %v5865, %v5857
    %v6034 = vpack.c.b16 %v5866, %v5858
    %v6035 = vpack.c.b16 %v5867, %v5859
    %v6036 = vpack.c.b16 %v5868, %v5860
    %v6037 = vpack.c.b16 %v5869, %v5861
    %v6038 = vpack.c.b16 %v5878, %v5870
    %v6039 = vpack.c.b16 %v5879, %v5871
    %v6040 = vpack.c.b16 %v5880, %v5872
    %v6041 = vpack.c.b16 %v5881, %v5873
    %v6042 = vpack.c.b16 %v5882, %v5874
    %v6043 = vpack.c.b16 %v5883, %v5875
    %v6044 = vpack.c.b16 %v5884, %v5876
    %v6045 = vpack.c.b16 %v5885, %v5877
    %v6046 = vpack.c.b16 %v5894, %v5886
    %v6047 = vpack.c.b16 %v5895, %v5887
    %v6048 = vpack.c.b16 %v5896, %v5888
    %v6049 = vpack.c.b16 %v5897, %v5889
    %v6050 = vpack.c.b16 %v5898, %v5890
    %v6051 = vpack.c.b16 %v5899, %v5891
    %v6052 = vpack.c.b16 %v5900, %v5892
    %v6053 = vpack.c.b16 %v5901, %v5893
    %v6054 = vpack.c.b16 %v5910, %v5902
    %v6055 = vpack.c.b16 %v5911, %v5903
    %v6056 = vpack.c.b16 %v5912, %v5904
    %v6057 = vpack.c.b16 %v5913, %v5905
    %v6058 = vpack.c.b16 %v5914, %v5906
    %v6059 = vpack.c.b16 %v5915, %v5907
    %v6060 = vpack.c.b16 %v5916, %v5908
    %v6061 = vpack.c.b16 %v5917, %v5909
    %v6062 = vpack.c.b16 %v5926, %v5918
    %v6063 = vpack.c.b16 %v5927, %v5919
    %v6064 = vpack.c.b16 %v5928, %v5920
    %v6065 = vpack.c.b16 %v5929, %v5921
    %v6066 = vpack.c.b16 %v5930, %v5922
    %v6067 = vpack.c.b16 %v5931, %v5923
    %v6068 = vpack.c.b16 %v5932, %v5924
    %v6069 = vpack.c.b16 %v5933, %v5925
    %v6070 = vpack.c.b16 %v5942, %v5934
    %v6071 = vpack.c.b16 %v5943, %v5935
    %v6072 = vpack.c.b16 %v5944, %v5936
    %v6073 = vpack.c.b16 %v5945, %v5937
    %v6074 = vpack.c.b16 %v5946, %v5938
    %v6075 = vpack.c.b16 %v5947, %v5939
    %v6076 = vpack.c.b16 %v5948, %v5940
    %v6077 = vpack.c.b16 %v5949, %v5941
    %6206 = vmatpush.bf16.msra.mxu0 %v6006
    %6207 = vmatpush.bf16.msra.mxu0 %v5998
    %6208 = vmatpush.bf16.msra.mxu0 %v5990
    %6209 = vmatpush.bf16.msra.mxu0 %v5982
    %6210 = vmatpush.bf16.msra.mxu0 %v5974
    %6211 = vmatpush.bf16.msra.mxu0 %v5966
    %6212 = vmatpush.bf16.msra.mxu0 %v5958
    %6213 = vmatpush.bf16.msra.mxu0 %v5950
    %6214 = vmatmul.bf16.gmra.mxu0 %v5436
    %v6215 = vpop.f32.mrf.mxu0
    %v6216 = vadd.f32 0.0, %v6215
    %v6217 = vpop.f32.mrf.mxu0
    %6218 = vdwg.mxu0
    %6219 = vmatpush.bf16.msra.mxu0 %v6070
    %6220 = vmatpush.bf16.msra.mxu0 %v6062
    %6221 = vmatpush.bf16.msra.mxu0 %v6054
    %6222 = vmatpush.bf16.msra.mxu0 %v6046
    %6223 = vmatpush.bf16.msra.mxu0 %v6038
    %6224 = vmatpush.bf16.msra.mxu0 %v6030
    %6225 = vmatpush.bf16.msra.mxu0 %v6022
    %6226 = vmatpush.bf16.msra.mxu0 %v6014
    %6227 = vmatmul.bf16.gmra.mxu0 %v5437
    %v6228 = vpop.f32.mrf.mxu0
    %v6229 = vadd.f32 %v6216, %v6228
    %v6230 = vpop.f32.mrf.mxu0
    %6231 = vdwg.mxu0
    %6232 = vmatpush.bf16.msra.mxu0 %v6007
    %6233 = vmatpush.bf16.msra.mxu0 %v5999
    %6234 = vmatpush.bf16.msra.mxu0 %v5991
    %6235 = vmatpush.bf16.msra.mxu0 %v5983
    %6236 = vmatpush.bf16.msra.mxu0 %v5975
    %6237 = vmatpush.bf16.msra.mxu0 %v5967
    %6238 = vmatpush.bf16.msra.mxu0 %v5959
    %6239 = vmatpush.bf16.msra.mxu0 %v5951
    %6240 = vmatmul.bf16.gmra.mxu0 %v5436
    %v6241 = vpop.f32.mrf.mxu0
    %v6242 = vadd.f32 0.0, %v6241
    %v6243 = vpop.f32.mrf.mxu0
    %6244 = vdwg.mxu0
    %6245 = vmatpush.bf16.msra.mxu0 %v6071
    %6246 = vmatpush.bf16.msra.mxu0 %v6063
    %6247 = vmatpush.bf16.msra.mxu0 %v6055
    %6248 = vmatpush.bf16.msra.mxu0 %v6047
    %6249 = vmatpush.bf16.msra.mxu0 %v6039
    %6250 = vmatpush.bf16.msra.mxu0 %v6031
    %6251 = vmatpush.bf16.msra.mxu0 %v6023
    %6252 = vmatpush.bf16.msra.mxu0 %v6015
    %6253 = vmatmul.bf16.gmra.mxu0 %v5437
    %v6254 = vpop.f32.mrf.mxu0
    %v6255 = vadd.f32 %v6242, %v6254
    %v6256 = vpop.f32.mrf.mxu0
    %6257 = vdwg.mxu0
    %6258 = vmatpush.bf16.msra.mxu0 %v6008
    %6259 = vmatpush.bf16.msra.mxu0 %v6000
    %6260 = vmatpush.bf16.msra.mxu0 %v5992
    %6261 = vmatpush.bf16.msra.mxu0 %v5984
    %6262 = vmatpush.bf16.msra.mxu0 %v5976
    %6263 = vmatpush.bf16.msra.mxu0 %v5968
    %6264 = vmatpush.bf16.msra.mxu0 %v5960
    %6265 = vmatpush.bf16.msra.mxu0 %v5952
    %6266 = vmatmul.bf16.gmra.mxu0 %v5436
    %v6267 = vpop.f32.mrf.mxu0
    %v6268 = vadd.f32 0.0, %v6267
    %v6269 = vpop.f32.mrf.mxu0
    %6270 = vdwg.mxu0
    %6271 = vmatpush.bf16.msra.mxu0 %v6072
    %6272 = vmatpush.bf16.msra.mxu0 %v6064
    %6273 = vmatpush.bf16.msra.mxu0 %v6056
    %6274 = vmatpush.bf16.msra.mxu0 %v6048
    %6275 = vmatpush.bf16.msra.mxu0 %v6040
    %6276 = vmatpush.bf16.msra.mxu0 %v6032
    %6277 = vmatpush.bf16.msra.mxu0 %v6024
    %6278 = vmatpush.bf16.msra.mxu0 %v6016
    %6279 = vmatmul.bf16.gmra.mxu0 %v5437
    %v6280 = vpop.f32.mrf.mxu0
    %v6281 = vadd.f32 %v6268, %v6280
    %v6282 = vpop.f32.mrf.mxu0
    %6283 = vdwg.mxu0
    %6284 = vmatpush.bf16.msra.mxu0 %v6009
    %6285 = vmatpush.bf16.msra.mxu0 %v6001
    %6286 = vmatpush.bf16.msra.mxu0 %v5993
    %6287 = vmatpush.bf16.msra.mxu0 %v5985
    %6288 = vmatpush.bf16.msra.mxu0 %v5977
    %6289 = vmatpush.bf16.msra.mxu0 %v5969
    %6290 = vmatpush.bf16.msra.mxu0 %v5961
    %6291 = vmatpush.bf16.msra.mxu0 %v5953
    %6292 = vmatmul.bf16.gmra.mxu0 %v5436
    %v6293 = vpop.f32.mrf.mxu0
    %v6294 = vadd.f32 0.0, %v6293
    %v6295 = vpop.f32.mrf.mxu0
    %6296 = vdwg.mxu0
    %6297 = vmatpush.bf16.msra.mxu0 %v6073
    %6298 = vmatpush.bf16.msra.mxu0 %v6065
    %6299 = vmatpush.bf16.msra.mxu0 %v6057
    %6300 = vmatpush.bf16.msra.mxu0 %v6049
    %6301 = vmatpush.bf16.msra.mxu0 %v6041
    %6302 = vmatpush.bf16.msra.mxu0 %v6033
    %6303 = vmatpush.bf16.msra.mxu0 %v6025
    %6304 = vmatpush.bf16.msra.mxu0 %v6017
    %6305 = vmatmul.bf16.gmra.mxu0 %v5437
    %v6306 = vpop.f32.mrf.mxu0
    %v6307 = vadd.f32 %v6294, %v6306
    %v6308 = vpop.f32.mrf.mxu0
    %6309 = vdwg.mxu0
    %6310 = vmatpush.bf16.msra.mxu0 %v6010
    %6311 = vmatpush.bf16.msra.mxu0 %v6002
    %6312 = vmatpush.bf16.msra.mxu0 %v5994
    %6313 = vmatpush.bf16.msra.mxu0 %v5986
    %6314 = vmatpush.bf16.msra.mxu0 %v5978
    %6315 = vmatpush.bf16.msra.mxu0 %v5970
    %6316 = vmatpush.bf16.msra.mxu0 %v5962
    %6317 = vmatpush.bf16.msra.mxu0 %v5954
    %6318 = vmatmul.bf16.gmra.mxu0 %v5436
    %v6319 = vpop.f32.mrf.mxu0
    %v6320 = vadd.f32 0.0, %v6319
    %v6321 = vpop.f32.mrf.mxu0
    %6322 = vdwg.mxu0
    %6323 = vmatpush.bf16.msra.mxu0 %v6074
    %6324 = vmatpush.bf16.msra.mxu0 %v6066
    %6325 = vmatpush.bf16.msra.mxu0 %v6058
    %6326 = vmatpush.bf16.msra.mxu0 %v6050
    %6327 = vmatpush.bf16.msra.mxu0 %v6042
    %6328 = vmatpush.bf16.msra.mxu0 %v6034
    %6329 = vmatpush.bf16.msra.mxu0 %v6026
    %6330 = vmatpush.bf16.msra.mxu0 %v6018
    %6331 = vmatmul.bf16.gmra.mxu0 %v5437
    %v6332 = vpop.f32.mrf.mxu0
    %v6333 = vadd.f32 %v6320, %v6332
    %v6334 = vpop.f32.mrf.mxu0
    %6335 = vdwg.mxu0
    %6336 = vmatpush.bf16.msra.mxu0 %v6011
    %6337 = vmatpush.bf16.msra.mxu0 %v6003
    %6338 = vmatpush.bf16.msra.mxu0 %v5995
    %6339 = vmatpush.bf16.msra.mxu0 %v5987
    %6340 = vmatpush.bf16.msra.mxu0 %v5979
    %6341 = vmatpush.bf16.msra.mxu0 %v5971
    %6342 = vmatpush.bf16.msra.mxu0 %v5963
    %6343 = vmatpush.bf16.msra.mxu0 %v5955
    %6344 = vmatmul.bf16.gmra.mxu0 %v5436
    %v6345 = vpop.f32.mrf.mxu0
    %v6346 = vadd.f32 0.0, %v6345
    %v6347 = vpop.f32.mrf.mxu0
    %6348 = vdwg.mxu0
    %6349 = vmatpush.bf16.msra.mxu0 %v6075
    %6350 = vmatpush.bf16.msra.mxu0 %v6067
    %6351 = vmatpush.bf16.msra.mxu0 %v6059
    %6352 = vmatpush.bf16.msra.mxu0 %v6051
    %6353 = vmatpush.bf16.msra.mxu0 %v6043
    %6354 = vmatpush.bf16.msra.mxu0 %v6035
    %6355 = vmatpush.bf16.msra.mxu0 %v6027
    %6356 = vmatpush.bf16.msra.mxu0 %v6019
    %6357 = vmatmul.bf16.gmra.mxu0 %v5437
    %v6358 = vpop.f32.mrf.mxu0
    %v6359 = vadd.f32 %v6346, %v6358
    %v6360 = vpop.f32.mrf.mxu0
    %6361 = vdwg.mxu0
    %6362 = vmatpush.bf16.msra.mxu0 %v6012
    %6363 = vmatpush.bf16.msra.mxu0 %v6004
    %6364 = vmatpush.bf16.msra.mxu0 %v5996
    %6365 = vmatpush.bf16.msra.mxu0 %v5988
    %6366 = vmatpush.bf16.msra.mxu0 %v5980
    %6367 = vmatpush.bf16.msra.mxu0 %v5972
    %6368 = vmatpush.bf16.msra.mxu0 %v5964
    %6369 = vmatpush.bf16.msra.mxu0 %v5956
    %6370 = vmatmul.bf16.gmra.mxu0 %v5436
    %v6371 = vpop.f32.mrf.mxu0
    %v6372 = vadd.f32 0.0, %v6371
    %v6373 = vpop.f32.mrf.mxu0
    %6374 = vdwg.mxu0
    %6375 = vmatpush.bf16.msra.mxu0 %v6076
    %6376 = vmatpush.bf16.msra.mxu0 %v6068
    %6377 = vmatpush.bf16.msra.mxu0 %v6060
    %6378 = vmatpush.bf16.msra.mxu0 %v6052
    %6379 = vmatpush.bf16.msra.mxu0 %v6044
    %6380 = vmatpush.bf16.msra.mxu0 %v6036
    %6381 = vmatpush.bf16.msra.mxu0 %v6028
    %6382 = vmatpush.bf16.msra.mxu0 %v6020
    %6383 = vmatmul.bf16.gmra.mxu0 %v5437
    %v6384 = vpop.f32.mrf.mxu0
    %v6385 = vadd.f32 %v6372, %v6384
    %v6386 = vpop.f32.mrf.mxu0
    %6387 = vdwg.mxu0
    %6388 = vmatpush.bf16.msra.mxu0 %v6013
    %6389 = vmatpush.bf16.msra.mxu0 %v6005
    %6390 = vmatpush.bf16.msra.mxu0 %v5997
    %6391 = vmatpush.bf16.msra.mxu0 %v5989
    %6392 = vmatpush.bf16.msra.mxu0 %v5981
    %6393 = vmatpush.bf16.msra.mxu0 %v5973
    %6394 = vmatpush.bf16.msra.mxu0 %v5965
    %6395 = vmatpush.bf16.msra.mxu0 %v5957
    %6396 = vmatmul.bf16.gmra.mxu0 %v5436
    %v6397 = vpop.f32.mrf.mxu0
    %v6398 = vadd.f32 0.0, %v6397
    %v6399 = vpop.f32.mrf.mxu0
    %6400 = vdwg.mxu0
    %6401 = vmatpush.bf16.msra.mxu0 %v6077
    %6402 = vmatpush.bf16.msra.mxu0 %v6069
    %6403 = vmatpush.bf16.msra.mxu0 %v6061
    %6404 = vmatpush.bf16.msra.mxu0 %v6053
    %6405 = vmatpush.bf16.msra.mxu0 %v6045
    %6406 = vmatpush.bf16.msra.mxu0 %v6037
    %6407 = vmatpush.bf16.msra.mxu0 %v6029
    %6408 = vmatpush.bf16.msra.mxu0 %v6021
    %6409 = vmatmul.bf16.gmra.mxu0 %v5437
    %v6410 = vpop.f32.mrf.mxu0
    %v6411 = vadd.f32 %v6398, %v6410
    %v6412 = vpop.f32.mrf.mxu0
    %6413 = vdwg.mxu0
    %v6414 = vadd.f32 %v5428, %v6229
    %v6415 = vadd.f32 %v5429, %v6255
    %v6416 = vadd.f32 %v5430, %v6281
    %v6417 = vadd.f32 %v5431, %v6307
    %v6418 = vadd.f32 %v5432, %v6333
    %v6419 = vadd.f32 %v5433, %v6359
    %v6420 = vadd.f32 %v5434, %v6385
    %v6421 = vadd.f32 %v5435, %v6411
    %v6422 = vxor.u32 %v6414, 2147483648
    %v6423 = vxor.u32 %v6415, 2147483648
    %v6424 = vmul.f32 %v6422, 1.442695
    %v6425 = vpow.pop %v6424
    %v6426 = vmul.f32 %v6423, 1.442695
    %v6427 = vpow.pop %v6426
    %v6428 = vadd.f32 %v6425, 1.0
    %v6429 = vadd.f32 %v6427, 1.0
    %v6430 = vrcp.pop %v6428
    %v6431 = vmul.f32 %v6428, %v6430
    %v6432 = vsub.f32 1.0, %v6431
    %v6433 = vmul.f32 %v6430, %v6432
    %v6434 = vadd.f32 %v6430, %v6433
    %vm6435 = vweird.f32 %v6428
    %vm6436 = vweird.f32 %v6430
    %vm6437 = vmor %vm6435, %vm6436
    %v6438 = vsel %vm6437, %v6430, %v6434
    %v6439 = vand.u32 2147483647, %v6428
    %vm6440 = vcmp.eq.f32.partialorder %v6439, 8.507059e+37
    %v6441 = vand.u32 %v6428, 2147483648
    %v6442 = vor.u32 1.1754944e-38, %v6441
    %v6443 = vsel %vm6440, %v6442, %v6438
    %v6444 = vmul.f32 1.0, %v6443
    %v6445 = vrcp.pop %v6429
    %v6446 = vmul.f32 %v6429, %v6445
    %v6447 = vsub.f32 1.0, %v6446
    %v6448 = vmul.f32 %v6445, %v6447
    %v6449 = vadd.f32 %v6445, %v6448
    %vm6450 = vweird.f32 %v6429
    %vm6451 = vweird.f32 %v6445
    %vm6452 = vmor %vm6450, %vm6451
    %v6453 = vsel %vm6452, %v6445, %v6449
    %v6454 = vand.u32 2147483647, %v6429
    %vm6455 = vcmp.eq.f32.partialorder %v6454, 8.507059e+37
    %v6456 = vand.u32 %v6429, 2147483648
    %v6457 = vor.u32 1.1754944e-38, %v6456
    %v6458 = vsel %vm6455, %v6457, %v6453
    %v6459 = vmul.f32 1.0, %v6458
    %v6460 = vxor.u32 %v6416, 2147483648
    %v6461 = vxor.u32 %v6417, 2147483648
    %v6462 = vmul.f32 %v6460, 1.442695
    %v6463 = vpow.pop %v6462
    %v6464 = vmul.f32 %v6461, 1.442695
    %v6465 = vpow.pop %v6464
    %v6466 = vadd.f32 %v6463, 1.0
    %v6467 = vadd.f32 %v6465, 1.0
    %v6468 = vrcp.pop %v6466
    %v6469 = vmul.f32 %v6466, %v6468
    %v6470 = vsub.f32 1.0, %v6469
    %v6471 = vmul.f32 %v6468, %v6470
    %v6472 = vadd.f32 %v6468, %v6471
    %vm6473 = vweird.f32 %v6466
    %vm6474 = vweird.f32 %v6468
    %vm6475 = vmor %vm6473, %vm6474
    %v6476 = vsel %vm6475, %v6468, %v6472
    %v6477 = vand.u32 2147483647, %v6466
    %vm6478 = vcmp.eq.f32.partialorder %v6477, 8.507059e+37
    %v6479 = vand.u32 %v6466, 2147483648
    %v6480 = vor.u32 1.1754944e-38, %v6479
    %v6481 = vsel %vm6478, %v6480, %v6476
    %v6482 = vmul.f32 1.0, %v6481
    %v6483 = vrcp.pop %v6467
    %v6484 = vmul.f32 %v6467, %v6483
    %v6485 = vsub.f32 1.0, %v6484
    %v6486 = vmul.f32 %v6483, %v6485
    %v6487 = vadd.f32 %v6483, %v6486
    %vm6488 = vweird.f32 %v6467
    %vm6489 = vweird.f32 %v6483
    %vm6490 = vmor %vm6488, %vm6489
    %v6491 = vsel %vm6490, %v6483, %v6487
    %v6492 = vand.u32 2147483647, %v6467
    %vm6493 = vcmp.eq.f32.partialorder %v6492, 8.507059e+37
    %v6494 = vand.u32 %v6467, 2147483648
    %v6495 = vor.u32 1.1754944e-38, %v6494
    %v6496 = vsel %vm6493, %v6495, %v6491
    %v6497 = vmul.f32 1.0, %v6496
    %v6498 = vtanh.pop %v6418
    %v6499 = vtanh.pop %v6419
    %v6500 = vxor.u32 %v6420, 2147483648
    %v6501 = vxor.u32 %v6421, 2147483648
    %v6502 = vmul.f32 %v6500, 1.442695
    %v6503 = vpow.pop %v6502
    %v6504 = vmul.f32 %v6501, 1.442695
    %v6505 = vpow.pop %v6504
    %v6506 = vadd.f32 %v6503, 1.0
    %v6507 = vadd.f32 %v6505, 1.0
    %v6508 = vrcp.pop %v6506
    %v6509 = vmul.f32 %v6506, %v6508
    %v6510 = vsub.f32 1.0, %v6509
    %v6511 = vmul.f32 %v6508, %v6510
    %v6512 = vadd.f32 %v6508, %v6511
    %vm6513 = vweird.f32 %v6506
    %vm6514 = vweird.f32 %v6508
    %vm6515 = vmor %vm6513, %vm6514
    %v6516 = vsel %vm6515, %v6508, %v6512
    %v6517 = vand.u32 2147483647, %v6506
    %vm6518 = vcmp.eq.f32.partialorder %v6517, 8.507059e+37
    %v6519 = vand.u32 %v6506, 2147483648
    %v6520 = vor.u32 1.1754944e-38, %v6519
    %v6521 = vsel %vm6518, %v6520, %v6516
    %v6522 = vmul.f32 1.0, %v6521
    %v6523 = vrcp.pop %v6507
    %v6524 = vmul.f32 %v6507, %v6523
    %v6525 = vsub.f32 1.0, %v6524
    %v6526 = vmul.f32 %v6523, %v6525
    %v6527 = vadd.f32 %v6523, %v6526
    %vm6528 = vweird.f32 %v6507
    %vm6529 = vweird.f32 %v6523
    %vm6530 = vmor %vm6528, %vm6529
    %v6531 = vsel %vm6530, %v6523, %v6527
    %v6532 = vand.u32 2147483647, %v6507
    %vm6533 = vcmp.eq.f32.partialorder %v6532, 8.507059e+37
    %v6534 = vand.u32 %v6507, 2147483648
    %v6535 = vor.u32 1.1754944e-38, %v6534
    %v6536 = vsel %vm6533, %v6535, %v6531
    %v6537 = vmul.f32 1.0, %v6536
    %v6538 = vmul.f32 %v6482, %v5419
    %v6539 = vmul.f32 %v6497, %v5420
    %v6540 = vmul.f32 %v6444, %v6498
    %v6541 = vmul.f32 %v6459, %v6499
    %v6542 = vadd.f32 %v6538, %v6540
    %v6543 = vadd.f32 %v6539, %v6541
    %v6544 = vtanh.pop %v6542
    %v6545 = vtanh.pop %v6543
    %v6546 = vmul.f32 %v6522, %v6544
    %v6547 = vmul.f32 %v6537, %v6545
    %s6548 = sadd.s32 %s829, 4
    %v6549 = vstv %s6548
    %vm6550 = vcmp.lt.s32.totalorder %v6549, %v828
    %v6551 = vsel %vm6550, 1, 0
    %6552 = vset.pattern.permute.xlu0 0
    %6553 = vperm.xlu0 %6552, %v6551
    %v6554 = vpop.permute.xlu0 %6553
    %vm6555 = vcmp.eq.s32.totalorder %v6554, 1
    %v6556 = vsel %vm6555, %v6546, %v5417
    %v6557 = vsel %vm6555, %v6547, %v5418
    %6558 = vst [vmem:[#allocation3] sm:$0xff] %v6556
    %6559 = vst [vmem:[#allocation3 + $0x8] sm:$0xff] %v6557
    %v6560 = vsel %vm6555, %v6542, %v5419
    %v6561 = vsel %vm6555, %v6543, %v5420
    %6562 = vst [vmem:[#allocation4] sm:$0xff] %v6560
    %6563 = vst [vmem:[#allocation4 + $0x8] sm:$0xff] %v6561
    %v6564 = vld [vmem:[#allocation3] sm:$0xff]
    %v6565 = vld [vmem:[#allocation3 + $0x8] sm:$0xff]
    %v6566 = vld [vmem:[#allocation4] sm:$0xff]
    %v6567 = vld [vmem:[#allocation4 + $0x8] sm:$0xff]
    %s6568 = smul.u32 5, 8
    %s6569 = smul.addr %s6568, 4
    %s6570 = scalar_lea.vmem [#allocation2], %s6569
    %v6571 = vld [vmem:[%s6570] sm:$0xff]
    %v6572 = vld [vmem:[%s6570 + $0x8] sm:$0xff]
    %v6573 = vld [vmem:[%s6570 + $0x10] sm:$0xff]
    %v6574 = vld [vmem:[%s6570 + $0x18] sm:$0xff]
    %v6575 = vunpack.c.l.bf16 %v6571
    %v6576 = vunpack.c.h.bf16 %v6571
    %v6577 = vunpack.c.l.bf16 %v6572
    %v6578 = vunpack.c.h.bf16 %v6572
    %v6579 = vunpack.c.l.bf16 %v6573
    %v6580 = vunpack.c.h.bf16 %v6573
    %v6581 = vunpack.c.l.bf16 %v6574
    %v6582 = vunpack.c.h.bf16 %v6574
    %v6583 = vpack.c.bf16 %v6564, %v6564
    %v6584 = vpack.c.bf16 %v6565, %v6565
    %v6585 = vld [vmem:[#allocation10] sm:$0xff]
    %v6586 = vld [vmem:[#allocation10 + $0x8] sm:$0xff]
    %v6587 = vld [vmem:[#allocation10 + $0x10] sm:$0xff]
    %v6588 = vld [vmem:[#allocation10 + $0x18] sm:$0xff]
    %v6589 = vld [vmem:[#allocation10 + $0x20] sm:$0xff]
    %v6590 = vld [vmem:[#allocation10 + $0x28] sm:$0xff]
    %v6591 = vld [vmem:[#allocation10 + $0x30] sm:$0xff]
    %v6592 = vld [vmem:[#allocation10 + $0x38] sm:$0xff]
    %v6593 = vld [vmem:[#allocation10 + $0x40] sm:$0xff]
    %v6594 = vld [vmem:[#allocation10 + $0x48] sm:$0xff]
    %v6595 = vld [vmem:[#allocation10 + $0x50] sm:$0xff]
    %v6596 = vld [vmem:[#allocation10 + $0x58] sm:$0xff]
    %v6597 = vld [vmem:[#allocation10 + $0x60] sm:$0xff]
    %v6598 = vld [vmem:[#allocation10 + $0x68] sm:$0xff]
    %v6599 = vld [vmem:[#allocation10 + $0x70] sm:$0xff]
    %v6600 = vld [vmem:[#allocation10 + $0x78] sm:$0xff]
    %v6601 = vld [vmem:[#allocation10 + $0x80] sm:$0xff]
    %v6602 = vld [vmem:[#allocation10 + $0x88] sm:$0xff]
    %v6603 = vld [vmem:[#allocation10 + $0x90] sm:$0xff]
    %v6604 = vld [vmem:[#allocation10 + $0x98] sm:$0xff]
    %v6605 = vld [vmem:[#allocation10 + $0xa0] sm:$0xff]
    %v6606 = vld [vmem:[#allocation10 + $0xa8] sm:$0xff]
    %v6607 = vld [vmem:[#allocation10 + $0xb0] sm:$0xff]
    %v6608 = vld [vmem:[#allocation10 + $0xb8] sm:$0xff]
    %v6609 = vld [vmem:[#allocation10 + $0xc0] sm:$0xff]
    %v6610 = vld [vmem:[#allocation10 + $0xc8] sm:$0xff]
    %v6611 = vld [vmem:[#allocation10 + $0xd0] sm:$0xff]
    %v6612 = vld [vmem:[#allocation10 + $0xd8] sm:$0xff]
    %v6613 = vld [vmem:[#allocation10 + $0xe0] sm:$0xff]
    %v6614 = vld [vmem:[#allocation10 + $0xe8] sm:$0xff]
    %v6615 = vld [vmem:[#allocation10 + $0xf0] sm:$0xff]
    %v6616 = vld [vmem:[#allocation10 + $0xf8] sm:$0xff]
    %v6617 = vld [vmem:[#allocation10 + $0x100] sm:$0xff]
    %v6618 = vld [vmem:[#allocation10 + $0x108] sm:$0xff]
    %v6619 = vld [vmem:[#allocation10 + $0x110] sm:$0xff]
    %v6620 = vld [vmem:[#allocation10 + $0x118] sm:$0xff]
    %v6621 = vld [vmem:[#allocation10 + $0x120] sm:$0xff]
    %v6622 = vld [vmem:[#allocation10 + $0x128] sm:$0xff]
    %v6623 = vld [vmem:[#allocation10 + $0x130] sm:$0xff]
    %v6624 = vld [vmem:[#allocation10 + $0x138] sm:$0xff]
    %v6625 = vld [vmem:[#allocation10 + $0x140] sm:$0xff]
    %v6626 = vld [vmem:[#allocation10 + $0x148] sm:$0xff]
    %v6627 = vld [vmem:[#allocation10 + $0x150] sm:$0xff]
    %v6628 = vld [vmem:[#allocation10 + $0x158] sm:$0xff]
    %v6629 = vld [vmem:[#allocation10 + $0x160] sm:$0xff]
    %v6630 = vld [vmem:[#allocation10 + $0x168] sm:$0xff]
    %v6631 = vld [vmem:[#allocation10 + $0x170] sm:$0xff]
    %v6632 = vld [vmem:[#allocation10 + $0x178] sm:$0xff]
    %v6633 = vld [vmem:[#allocation10 + $0x180] sm:$0xff]
    %v6634 = vld [vmem:[#allocation10 + $0x188] sm:$0xff]
    %v6635 = vld [vmem:[#allocation10 + $0x190] sm:$0xff]
    %v6636 = vld [vmem:[#allocation10 + $0x198] sm:$0xff]
    %v6637 = vld [vmem:[#allocation10 + $0x1a0] sm:$0xff]
    %v6638 = vld [vmem:[#allocation10 + $0x1a8] sm:$0xff]
    %v6639 = vld [vmem:[#allocation10 + $0x1b0] sm:$0xff]
    %v6640 = vld [vmem:[#allocation10 + $0x1b8] sm:$0xff]
    %v6641 = vld [vmem:[#allocation10 + $0x1c0] sm:$0xff]
    %v6642 = vld [vmem:[#allocation10 + $0x1c8] sm:$0xff]
    %v6643 = vld [vmem:[#allocation10 + $0x1d0] sm:$0xff]
    %v6644 = vld [vmem:[#allocation10 + $0x1d8] sm:$0xff]
    %v6645 = vld [vmem:[#allocation10 + $0x1e0] sm:$0xff]
    %v6646 = vld [vmem:[#allocation10 + $0x1e8] sm:$0xff]
    %v6647 = vld [vmem:[#allocation10 + $0x1f0] sm:$0xff]
    %v6648 = vld [vmem:[#allocation10 + $0x1f8] sm:$0xff]
    %v6649 = vld [vmem:[#allocation10 + $0x200] sm:$0xff]
    %v6650 = vld [vmem:[#allocation10 + $0x208] sm:$0xff]
    %v6651 = vld [vmem:[#allocation10 + $0x210] sm:$0xff]
    %v6652 = vld [vmem:[#allocation10 + $0x218] sm:$0xff]
    %v6653 = vld [vmem:[#allocation10 + $0x220] sm:$0xff]
    %v6654 = vld [vmem:[#allocation10 + $0x228] sm:$0xff]
    %v6655 = vld [vmem:[#allocation10 + $0x230] sm:$0xff]
    %v6656 = vld [vmem:[#allocation10 + $0x238] sm:$0xff]
    %v6657 = vld [vmem:[#allocation10 + $0x240] sm:$0xff]
    %v6658 = vld [vmem:[#allocation10 + $0x248] sm:$0xff]
    %v6659 = vld [vmem:[#allocation10 + $0x250] sm:$0xff]
    %v6660 = vld [vmem:[#allocation10 + $0x258] sm:$0xff]
    %v6661 = vld [vmem:[#allocation10 + $0x260] sm:$0xff]
    %v6662 = vld [vmem:[#allocation10 + $0x268] sm:$0xff]
    %v6663 = vld [vmem:[#allocation10 + $0x270] sm:$0xff]
    %v6664 = vld [vmem:[#allocation10 + $0x278] sm:$0xff]
    %v6665 = vld [vmem:[#allocation10 + $0x280] sm:$0xff]
    %v6666 = vld [vmem:[#allocation10 + $0x288] sm:$0xff]
    %v6667 = vld [vmem:[#allocation10 + $0x290] sm:$0xff]
    %v6668 = vld [vmem:[#allocation10 + $0x298] sm:$0xff]
    %v6669 = vld [vmem:[#allocation10 + $0x2a0] sm:$0xff]
    %v6670 = vld [vmem:[#allocation10 + $0x2a8] sm:$0xff]
    %v6671 = vld [vmem:[#allocation10 + $0x2b0] sm:$0xff]
    %v6672 = vld [vmem:[#allocation10 + $0x2b8] sm:$0xff]
    %v6673 = vld [vmem:[#allocation10 + $0x2c0] sm:$0xff]
    %v6674 = vld [vmem:[#allocation10 + $0x2c8] sm:$0xff]
    %v6675 = vld [vmem:[#allocation10 + $0x2d0] sm:$0xff]
    %v6676 = vld [vmem:[#allocation10 + $0x2d8] sm:$0xff]
    %v6677 = vld [vmem:[#allocation10 + $0x2e0] sm:$0xff]
    %v6678 = vld [vmem:[#allocation10 + $0x2e8] sm:$0xff]
    %v6679 = vld [vmem:[#allocation10 + $0x2f0] sm:$0xff]
    %v6680 = vld [vmem:[#allocation10 + $0x2f8] sm:$0xff]
    %v6681 = vld [vmem:[#allocation10 + $0x300] sm:$0xff]
    %v6682 = vld [vmem:[#allocation10 + $0x308] sm:$0xff]
    %v6683 = vld [vmem:[#allocation10 + $0x310] sm:$0xff]
    %v6684 = vld [vmem:[#allocation10 + $0x318] sm:$0xff]
    %v6685 = vld [vmem:[#allocation10 + $0x320] sm:$0xff]
    %v6686 = vld [vmem:[#allocation10 + $0x328] sm:$0xff]
    %v6687 = vld [vmem:[#allocation10 + $0x330] sm:$0xff]
    %v6688 = vld [vmem:[#allocation10 + $0x338] sm:$0xff]
    %v6689 = vld [vmem:[#allocation10 + $0x340] sm:$0xff]
    %v6690 = vld [vmem:[#allocation10 + $0x348] sm:$0xff]
    %v6691 = vld [vmem:[#allocation10 + $0x350] sm:$0xff]
    %v6692 = vld [vmem:[#allocation10 + $0x358] sm:$0xff]
    %v6693 = vld [vmem:[#allocation10 + $0x360] sm:$0xff]
    %v6694 = vld [vmem:[#allocation10 + $0x368] sm:$0xff]
    %v6695 = vld [vmem:[#allocation10 + $0x370] sm:$0xff]
    %v6696 = vld [vmem:[#allocation10 + $0x378] sm:$0xff]
    %v6697 = vld [vmem:[#allocation10 + $0x380] sm:$0xff]
    %v6698 = vld [vmem:[#allocation10 + $0x388] sm:$0xff]
    %v6699 = vld [vmem:[#allocation10 + $0x390] sm:$0xff]
    %v6700 = vld [vmem:[#allocation10 + $0x398] sm:$0xff]
    %v6701 = vld [vmem:[#allocation10 + $0x3a0] sm:$0xff]
    %v6702 = vld [vmem:[#allocation10 + $0x3a8] sm:$0xff]
    %v6703 = vld [vmem:[#allocation10 + $0x3b0] sm:$0xff]
    %v6704 = vld [vmem:[#allocation10 + $0x3b8] sm:$0xff]
    %v6705 = vld [vmem:[#allocation10 + $0x3c0] sm:$0xff]
    %v6706 = vld [vmem:[#allocation10 + $0x3c8] sm:$0xff]
    %v6707 = vld [vmem:[#allocation10 + $0x3d0] sm:$0xff]
    %v6708 = vld [vmem:[#allocation10 + $0x3d8] sm:$0xff]
    %v6709 = vld [vmem:[#allocation10 + $0x3e0] sm:$0xff]
    %v6710 = vld [vmem:[#allocation10 + $0x3e8] sm:$0xff]
    %v6711 = vld [vmem:[#allocation10 + $0x3f0] sm:$0xff]
    %v6712 = vld [vmem:[#allocation10 + $0x3f8] sm:$0xff]
    %v6841 = vunpack.c.l.b16 %v6585
    %v6842 = vunpack.c.h.b16 %v6585
    %v6843 = vunpack.c.l.b16 %v6586
    %v6844 = vunpack.c.h.b16 %v6586
    %v6845 = vunpack.c.l.b16 %v6587
    %v6846 = vunpack.c.h.b16 %v6587
    %v6847 = vunpack.c.l.b16 %v6588
    %v6848 = vunpack.c.h.b16 %v6588
    %v6849 = vunpack.c.l.b16 %v6589
    %v6850 = vunpack.c.h.b16 %v6589
    %v6851 = vunpack.c.l.b16 %v6590
    %v6852 = vunpack.c.h.b16 %v6590
    %v6853 = vunpack.c.l.b16 %v6591
    %v6854 = vunpack.c.h.b16 %v6591
    %v6855 = vunpack.c.l.b16 %v6592
    %v6856 = vunpack.c.h.b16 %v6592
    %v6857 = vunpack.c.l.b16 %v6593
    %v6858 = vunpack.c.h.b16 %v6593
    %v6859 = vunpack.c.l.b16 %v6594
    %v6860 = vunpack.c.h.b16 %v6594
    %v6861 = vunpack.c.l.b16 %v6595
    %v6862 = vunpack.c.h.b16 %v6595
    %v6863 = vunpack.c.l.b16 %v6596
    %v6864 = vunpack.c.h.b16 %v6596
    %v6865 = vunpack.c.l.b16 %v6597
    %v6866 = vunpack.c.h.b16 %v6597
    %v6867 = vunpack.c.l.b16 %v6598
    %v6868 = vunpack.c.h.b16 %v6598
    %v6869 = vunpack.c.l.b16 %v6599
    %v6870 = vunpack.c.h.b16 %v6599
    %v6871 = vunpack.c.l.b16 %v6600
    %v6872 = vunpack.c.h.b16 %v6600
    %v6873 = vunpack.c.l.b16 %v6601
    %v6874 = vunpack.c.h.b16 %v6601
    %v6875 = vunpack.c.l.b16 %v6602
    %v6876 = vunpack.c.h.b16 %v6602
    %v6877 = vunpack.c.l.b16 %v6603
    %v6878 = vunpack.c.h.b16 %v6603
    %v6879 = vunpack.c.l.b16 %v6604
    %v6880 = vunpack.c.h.b16 %v6604
    %v6881 = vunpack.c.l.b16 %v6605
    %v6882 = vunpack.c.h.b16 %v6605
    %v6883 = vunpack.c.l.b16 %v6606
    %v6884 = vunpack.c.h.b16 %v6606
    %v6885 = vunpack.c.l.b16 %v6607
    %v6886 = vunpack.c.h.b16 %v6607
    %v6887 = vunpack.c.l.b16 %v6608
    %v6888 = vunpack.c.h.b16 %v6608
    %v6889 = vunpack.c.l.b16 %v6609
    %v6890 = vunpack.c.h.b16 %v6609
    %v6891 = vunpack.c.l.b16 %v6610
    %v6892 = vunpack.c.h.b16 %v6610
    %v6893 = vunpack.c.l.b16 %v6611
    %v6894 = vunpack.c.h.b16 %v6611
    %v6895 = vunpack.c.l.b16 %v6612
    %v6896 = vunpack.c.h.b16 %v6612
    %v6897 = vunpack.c.l.b16 %v6613
    %v6898 = vunpack.c.h.b16 %v6613
    %v6899 = vunpack.c.l.b16 %v6614
    %v6900 = vunpack.c.h.b16 %v6614
    %v6901 = vunpack.c.l.b16 %v6615
    %v6902 = vunpack.c.h.b16 %v6615
    %v6903 = vunpack.c.l.b16 %v6616
    %v6904 = vunpack.c.h.b16 %v6616
    %v6905 = vunpack.c.l.b16 %v6617
    %v6906 = vunpack.c.h.b16 %v6617
    %v6907 = vunpack.c.l.b16 %v6618
    %v6908 = vunpack.c.h.b16 %v6618
    %v6909 = vunpack.c.l.b16 %v6619
    %v6910 = vunpack.c.h.b16 %v6619
    %v6911 = vunpack.c.l.b16 %v6620
    %v6912 = vunpack.c.h.b16 %v6620
    %v6913 = vunpack.c.l.b16 %v6621
    %v6914 = vunpack.c.h.b16 %v6621
    %v6915 = vunpack.c.l.b16 %v6622
    %v6916 = vunpack.c.h.b16 %v6622
    %v6917 = vunpack.c.l.b16 %v6623
    %v6918 = vunpack.c.h.b16 %v6623
    %v6919 = vunpack.c.l.b16 %v6624
    %v6920 = vunpack.c.h.b16 %v6624
    %v6921 = vunpack.c.l.b16 %v6625
    %v6922 = vunpack.c.h.b16 %v6625
    %v6923 = vunpack.c.l.b16 %v6626
    %v6924 = vunpack.c.h.b16 %v6626
    %v6925 = vunpack.c.l.b16 %v6627
    %v6926 = vunpack.c.h.b16 %v6627
    %v6927 = vunpack.c.l.b16 %v6628
    %v6928 = vunpack.c.h.b16 %v6628
    %v6929 = vunpack.c.l.b16 %v6629
    %v6930 = vunpack.c.h.b16 %v6629
    %v6931 = vunpack.c.l.b16 %v6630
    %v6932 = vunpack.c.h.b16 %v6630
    %v6933 = vunpack.c.l.b16 %v6631
    %v6934 = vunpack.c.h.b16 %v6631
    %v6935 = vunpack.c.l.b16 %v6632
    %v6936 = vunpack.c.h.b16 %v6632
    %v6937 = vunpack.c.l.b16 %v6633
    %v6938 = vunpack.c.h.b16 %v6633
    %v6939 = vunpack.c.l.b16 %v6634
    %v6940 = vunpack.c.h.b16 %v6634
    %v6941 = vunpack.c.l.b16 %v6635
    %v6942 = vunpack.c.h.b16 %v6635
    %v6943 = vunpack.c.l.b16 %v6636
    %v6944 = vunpack.c.h.b16 %v6636
    %v6945 = vunpack.c.l.b16 %v6637
    %v6946 = vunpack.c.h.b16 %v6637
    %v6947 = vunpack.c.l.b16 %v6638
    %v6948 = vunpack.c.h.b16 %v6638
    %v6949 = vunpack.c.l.b16 %v6639
    %v6950 = vunpack.c.h.b16 %v6639
    %v6951 = vunpack.c.l.b16 %v6640
    %v6952 = vunpack.c.h.b16 %v6640
    %v6953 = vunpack.c.l.b16 %v6641
    %v6954 = vunpack.c.h.b16 %v6641
    %v6955 = vunpack.c.l.b16 %v6642
    %v6956 = vunpack.c.h.b16 %v6642
    %v6957 = vunpack.c.l.b16 %v6643
    %v6958 = vunpack.c.h.b16 %v6643
    %v6959 = vunpack.c.l.b16 %v6644
    %v6960 = vunpack.c.h.b16 %v6644
    %v6961 = vunpack.c.l.b16 %v6645
    %v6962 = vunpack.c.h.b16 %v6645
    %v6963 = vunpack.c.l.b16 %v6646
    %v6964 = vunpack.c.h.b16 %v6646
    %v6965 = vunpack.c.l.b16 %v6647
    %v6966 = vunpack.c.h.b16 %v6647
    %v6967 = vunpack.c.l.b16 %v6648
    %v6968 = vunpack.c.h.b16 %v6648
    %v6969 = vunpack.c.l.b16 %v6649
    %v6970 = vunpack.c.h.b16 %v6649
    %v6971 = vunpack.c.l.b16 %v6650
    %v6972 = vunpack.c.h.b16 %v6650
    %v6973 = vunpack.c.l.b16 %v6651
    %v6974 = vunpack.c.h.b16 %v6651
    %v6975 = vunpack.c.l.b16 %v6652
    %v6976 = vunpack.c.h.b16 %v6652
    %v6977 = vunpack.c.l.b16 %v6653
    %v6978 = vunpack.c.h.b16 %v6653
    %v6979 = vunpack.c.l.b16 %v6654
    %v6980 = vunpack.c.h.b16 %v6654
    %v6981 = vunpack.c.l.b16 %v6655
    %v6982 = vunpack.c.h.b16 %v6655
    %v6983 = vunpack.c.l.b16 %v6656
    %v6984 = vunpack.c.h.b16 %v6656
    %v6985 = vunpack.c.l.b16 %v6657
    %v6986 = vunpack.c.h.b16 %v6657
    %v6987 = vunpack.c.l.b16 %v6658
    %v6988 = vunpack.c.h.b16 %v6658
    %v6989 = vunpack.c.l.b16 %v6659
    %v6990 = vunpack.c.h.b16 %v6659
    %v6991 = vunpack.c.l.b16 %v6660
    %v6992 = vunpack.c.h.b16 %v6660
    %v6993 = vunpack.c.l.b16 %v6661
    %v6994 = vunpack.c.h.b16 %v6661
    %v6995 = vunpack.c.l.b16 %v6662
    %v6996 = vunpack.c.h.b16 %v6662
    %v6997 = vunpack.c.l.b16 %v6663
    %v6998 = vunpack.c.h.b16 %v6663
    %v6999 = vunpack.c.l.b16 %v6664
    %v7000 = vunpack.c.h.b16 %v6664
    %v7001 = vunpack.c.l.b16 %v6665
    %v7002 = vunpack.c.h.b16 %v6665
    %v7003 = vunpack.c.l.b16 %v6666
    %v7004 = vunpack.c.h.b16 %v6666
    %v7005 = vunpack.c.l.b16 %v6667
    %v7006 = vunpack.c.h.b16 %v6667
    %v7007 = vunpack.c.l.b16 %v6668
    %v7008 = vunpack.c.h.b16 %v6668
    %v7009 = vunpack.c.l.b16 %v6669
    %v7010 = vunpack.c.h.b16 %v6669
    %v7011 = vunpack.c.l.b16 %v6670
    %v7012 = vunpack.c.h.b16 %v6670
    %v7013 = vunpack.c.l.b16 %v6671
    %v7014 = vunpack.c.h.b16 %v6671
    %v7015 = vunpack.c.l.b16 %v6672
    %v7016 = vunpack.c.h.b16 %v6672
    %v7017 = vunpack.c.l.b16 %v6673
    %v7018 = vunpack.c.h.b16 %v6673
    %v7019 = vunpack.c.l.b16 %v6674
    %v7020 = vunpack.c.h.b16 %v6674
    %v7021 = vunpack.c.l.b16 %v6675
    %v7022 = vunpack.c.h.b16 %v6675
    %v7023 = vunpack.c.l.b16 %v6676
    %v7024 = vunpack.c.h.b16 %v6676
    %v7025 = vunpack.c.l.b16 %v6677
    %v7026 = vunpack.c.h.b16 %v6677
    %v7027 = vunpack.c.l.b16 %v6678
    %v7028 = vunpack.c.h.b16 %v6678
    %v7029 = vunpack.c.l.b16 %v6679
    %v7030 = vunpack.c.h.b16 %v6679
    %v7031 = vunpack.c.l.b16 %v6680
    %v7032 = vunpack.c.h.b16 %v6680
    %v7033 = vunpack.c.l.b16 %v6681
    %v7034 = vunpack.c.h.b16 %v6681
    %v7035 = vunpack.c.l.b16 %v6682
    %v7036 = vunpack.c.h.b16 %v6682
    %v7037 = vunpack.c.l.b16 %v6683
    %v7038 = vunpack.c.h.b16 %v6683
    %v7039 = vunpack.c.l.b16 %v6684
    %v7040 = vunpack.c.h.b16 %v6684
    %v7041 = vunpack.c.l.b16 %v6685
    %v7042 = vunpack.c.h.b16 %v6685
    %v7043 = vunpack.c.l.b16 %v6686
    %v7044 = vunpack.c.h.b16 %v6686
    %v7045 = vunpack.c.l.b16 %v6687
    %v7046 = vunpack.c.h.b16 %v6687
    %v7047 = vunpack.c.l.b16 %v6688
    %v7048 = vunpack.c.h.b16 %v6688
    %v7049 = vunpack.c.l.b16 %v6689
    %v7050 = vunpack.c.h.b16 %v6689
    %v7051 = vunpack.c.l.b16 %v6690
    %v7052 = vunpack.c.h.b16 %v6690
    %v7053 = vunpack.c.l.b16 %v6691
    %v7054 = vunpack.c.h.b16 %v6691
    %v7055 = vunpack.c.l.b16 %v6692
    %v7056 = vunpack.c.h.b16 %v6692
    %v7057 = vunpack.c.l.b16 %v6693
    %v7058 = vunpack.c.h.b16 %v6693
    %v7059 = vunpack.c.l.b16 %v6694
    %v7060 = vunpack.c.h.b16 %v6694
    %v7061 = vunpack.c.l.b16 %v6695
    %v7062 = vunpack.c.h.b16 %v6695
    %v7063 = vunpack.c.l.b16 %v6696
    %v7064 = vunpack.c.h.b16 %v6696
    %v7065 = vunpack.c.l.b16 %v6697
    %v7066 = vunpack.c.h.b16 %v6697
    %v7067 = vunpack.c.l.b16 %v6698
    %v7068 = vunpack.c.h.b16 %v6698
    %v7069 = vunpack.c.l.b16 %v6699
    %v7070 = vunpack.c.h.b16 %v6699
    %v7071 = vunpack.c.l.b16 %v6700
    %v7072 = vunpack.c.h.b16 %v6700
    %v7073 = vunpack.c.l.b16 %v6701
    %v7074 = vunpack.c.h.b16 %v6701
    %v7075 = vunpack.c.l.b16 %v6702
    %v7076 = vunpack.c.h.b16 %v6702
    %v7077 = vunpack.c.l.b16 %v6703
    %v7078 = vunpack.c.h.b16 %v6703
    %v7079 = vunpack.c.l.b16 %v6704
    %v7080 = vunpack.c.h.b16 %v6704
    %v7081 = vunpack.c.l.b16 %v6705
    %v7082 = vunpack.c.h.b16 %v6705
    %v7083 = vunpack.c.l.b16 %v6706
    %v7084 = vunpack.c.h.b16 %v6706
    %v7085 = vunpack.c.l.b16 %v6707
    %v7086 = vunpack.c.h.b16 %v6707
    %v7087 = vunpack.c.l.b16 %v6708
    %v7088 = vunpack.c.h.b16 %v6708
    %v7089 = vunpack.c.l.b16 %v6709
    %v7090 = vunpack.c.h.b16 %v6709
    %v7091 = vunpack.c.l.b16 %v6710
    %v7092 = vunpack.c.h.b16 %v6710
    %v7093 = vunpack.c.l.b16 %v6711
    %v7094 = vunpack.c.h.b16 %v6711
    %v7095 = vunpack.c.l.b16 %v6712
    %v7096 = vunpack.c.h.b16 %v6712
    %v7097 = vpack.c.b16 %v6849, %v6841
    %v7098 = vpack.c.b16 %v6850, %v6842
    %v7099 = vpack.c.b16 %v6851, %v6843
    %v7100 = vpack.c.b16 %v6852, %v6844
    %v7101 = vpack.c.b16 %v6853, %v6845
    %v7102 = vpack.c.b16 %v6854, %v6846
    %v7103 = vpack.c.b16 %v6855, %v6847
    %v7104 = vpack.c.b16 %v6856, %v6848
    %v7105 = vpack.c.b16 %v6865, %v6857
    %v7106 = vpack.c.b16 %v6866, %v6858
    %v7107 = vpack.c.b16 %v6867, %v6859
    %v7108 = vpack.c.b16 %v6868, %v6860
    %v7109 = vpack.c.b16 %v6869, %v6861
    %v7110 = vpack.c.b16 %v6870, %v6862
    %v7111 = vpack.c.b16 %v6871, %v6863
    %v7112 = vpack.c.b16 %v6872, %v6864
    %v7113 = vpack.c.b16 %v6881, %v6873
    %v7114 = vpack.c.b16 %v6882, %v6874
    %v7115 = vpack.c.b16 %v6883, %v6875
    %v7116 = vpack.c.b16 %v6884, %v6876
    %v7117 = vpack.c.b16 %v6885, %v6877
    %v7118 = vpack.c.b16 %v6886, %v6878
    %v7119 = vpack.c.b16 %v6887, %v6879
    %v7120 = vpack.c.b16 %v6888, %v6880
    %v7121 = vpack.c.b16 %v6897, %v6889
    %v7122 = vpack.c.b16 %v6898, %v6890
    %v7123 = vpack.c.b16 %v6899, %v6891
    %v7124 = vpack.c.b16 %v6900, %v6892
    %v7125 = vpack.c.b16 %v6901, %v6893
    %v7126 = vpack.c.b16 %v6902, %v6894
    %v7127 = vpack.c.b16 %v6903, %v6895
    %v7128 = vpack.c.b16 %v6904, %v6896
    %v7129 = vpack.c.b16 %v6913, %v6905
    %v7130 = vpack.c.b16 %v6914, %v6906
    %v7131 = vpack.c.b16 %v6915, %v6907
    %v7132 = vpack.c.b16 %v6916, %v6908
    %v7133 = vpack.c.b16 %v6917, %v6909
    %v7134 = vpack.c.b16 %v6918, %v6910
    %v7135 = vpack.c.b16 %v6919, %v6911
    %v7136 = vpack.c.b16 %v6920, %v6912
    %v7137 = vpack.c.b16 %v6929, %v6921
    %v7138 = vpack.c.b16 %v6930, %v6922
    %v7139 = vpack.c.b16 %v6931, %v6923
    %v7140 = vpack.c.b16 %v6932, %v6924
    %v7141 = vpack.c.b16 %v6933, %v6925
    %v7142 = vpack.c.b16 %v6934, %v6926
    %v7143 = vpack.c.b16 %v6935, %v6927
    %v7144 = vpack.c.b16 %v6936, %v6928
    %v7145 = vpack.c.b16 %v6945, %v6937
    %v7146 = vpack.c.b16 %v6946, %v6938
    %v7147 = vpack.c.b16 %v6947, %v6939
    %v7148 = vpack.c.b16 %v6948, %v6940
    %v7149 = vpack.c.b16 %v6949, %v6941
    %v7150 = vpack.c.b16 %v6950, %v6942
    %v7151 = vpack.c.b16 %v6951, %v6943
    %v7152 = vpack.c.b16 %v6952, %v6944
    %v7153 = vpack.c.b16 %v6961, %v6953
    %v7154 = vpack.c.b16 %v6962, %v6954
    %v7155 = vpack.c.b16 %v6963, %v6955
    %v7156 = vpack.c.b16 %v6964, %v6956
    %v7157 = vpack.c.b16 %v6965, %v6957
    %v7158 = vpack.c.b16 %v6966, %v6958
    %v7159 = vpack.c.b16 %v6967, %v6959
    %v7160 = vpack.c.b16 %v6968, %v6960
    %v7161 = vpack.c.b16 %v6977, %v6969
    %v7162 = vpack.c.b16 %v6978, %v6970
    %v7163 = vpack.c.b16 %v6979, %v6971
    %v7164 = vpack.c.b16 %v6980, %v6972
    %v7165 = vpack.c.b16 %v6981, %v6973
    %v7166 = vpack.c.b16 %v6982, %v6974
    %v7167 = vpack.c.b16 %v6983, %v6975
    %v7168 = vpack.c.b16 %v6984, %v6976
    %v7169 = vpack.c.b16 %v6993, %v6985
    %v7170 = vpack.c.b16 %v6994, %v6986
    %v7171 = vpack.c.b16 %v6995, %v6987
    %v7172 = vpack.c.b16 %v6996, %v6988
    %v7173 = vpack.c.b16 %v6997, %v6989
    %v7174 = vpack.c.b16 %v6998, %v6990
    %v7175 = vpack.c.b16 %v6999, %v6991
    %v7176 = vpack.c.b16 %v7000, %v6992
    %v7177 = vpack.c.b16 %v7009, %v7001
    %v7178 = vpack.c.b16 %v7010, %v7002
    %v7179 = vpack.c.b16 %v7011, %v7003
    %v7180 = vpack.c.b16 %v7012, %v7004
    %v7181 = vpack.c.b16 %v7013, %v7005
    %v7182 = vpack.c.b16 %v7014, %v7006
    %v7183 = vpack.c.b16 %v7015, %v7007
    %v7184 = vpack.c.b16 %v7016, %v7008
    %v7185 = vpack.c.b16 %v7025, %v7017
    %v7186 = vpack.c.b16 %v7026, %v7018
    %v7187 = vpack.c.b16 %v7027, %v7019
    %v7188 = vpack.c.b16 %v7028, %v7020
    %v7189 = vpack.c.b16 %v7029, %v7021
    %v7190 = vpack.c.b16 %v7030, %v7022
    %v7191 = vpack.c.b16 %v7031, %v7023
    %v7192 = vpack.c.b16 %v7032, %v7024
    %v7193 = vpack.c.b16 %v7041, %v7033
    %v7194 = vpack.c.b16 %v7042, %v7034
    %v7195 = vpack.c.b16 %v7043, %v7035
    %v7196 = vpack.c.b16 %v7044, %v7036
    %v7197 = vpack.c.b16 %v7045, %v7037
    %v7198 = vpack.c.b16 %v7046, %v7038
    %v7199 = vpack.c.b16 %v7047, %v7039
    %v7200 = vpack.c.b16 %v7048, %v7040
    %v7201 = vpack.c.b16 %v7057, %v7049
    %v7202 = vpack.c.b16 %v7058, %v7050
    %v7203 = vpack.c.b16 %v7059, %v7051
    %v7204 = vpack.c.b16 %v7060, %v7052
    %v7205 = vpack.c.b16 %v7061, %v7053
    %v7206 = vpack.c.b16 %v7062, %v7054
    %v7207 = vpack.c.b16 %v7063, %v7055
    %v7208 = vpack.c.b16 %v7064, %v7056
    %v7209 = vpack.c.b16 %v7073, %v7065
    %v7210 = vpack.c.b16 %v7074, %v7066
    %v7211 = vpack.c.b16 %v7075, %v7067
    %v7212 = vpack.c.b16 %v7076, %v7068
    %v7213 = vpack.c.b16 %v7077, %v7069
    %v7214 = vpack.c.b16 %v7078, %v7070
    %v7215 = vpack.c.b16 %v7079, %v7071
    %v7216 = vpack.c.b16 %v7080, %v7072
    %v7217 = vpack.c.b16 %v7089, %v7081
    %v7218 = vpack.c.b16 %v7090, %v7082
    %v7219 = vpack.c.b16 %v7091, %v7083
    %v7220 = vpack.c.b16 %v7092, %v7084
    %v7221 = vpack.c.b16 %v7093, %v7085
    %v7222 = vpack.c.b16 %v7094, %v7086
    %v7223 = vpack.c.b16 %v7095, %v7087
    %v7224 = vpack.c.b16 %v7096, %v7088
    %7353 = vmatpush.bf16.msra.mxu0 %v7153
    %7354 = vmatpush.bf16.msra.mxu0 %v7145
    %7355 = vmatpush.bf16.msra.mxu0 %v7137
    %7356 = vmatpush.bf16.msra.mxu0 %v7129
    %7357 = vmatpush.bf16.msra.mxu0 %v7121
    %7358 = vmatpush.bf16.msra.mxu0 %v7113
    %7359 = vmatpush.bf16.msra.mxu0 %v7105
    %7360 = vmatpush.bf16.msra.mxu0 %v7097
    %7361 = vmatmul.bf16.gmra.mxu0 %v6583
    %v7362 = vpop.f32.mrf.mxu0
    %v7363 = vadd.f32 0.0, %v7362
    %v7364 = vpop.f32.mrf.mxu0
    %7365 = vdwg.mxu0
    %7366 = vmatpush.bf16.msra.mxu0 %v7217
    %7367 = vmatpush.bf16.msra.mxu0 %v7209
    %7368 = vmatpush.bf16.msra.mxu0 %v7201
    %7369 = vmatpush.bf16.msra.mxu0 %v7193
    %7370 = vmatpush.bf16.msra.mxu0 %v7185
    %7371 = vmatpush.bf16.msra.mxu0 %v7177
    %7372 = vmatpush.bf16.msra.mxu0 %v7169
    %7373 = vmatpush.bf16.msra.mxu0 %v7161
    %7374 = vmatmul.bf16.gmra.mxu0 %v6584
    %v7375 = vpop.f32.mrf.mxu0
    %v7376 = vadd.f32 %v7363, %v7375
    %v7377 = vpop.f32.mrf.mxu0
    %7378 = vdwg.mxu0
    %7379 = vmatpush.bf16.msra.mxu0 %v7154
    %7380 = vmatpush.bf16.msra.mxu0 %v7146
    %7381 = vmatpush.bf16.msra.mxu0 %v7138
    %7382 = vmatpush.bf16.msra.mxu0 %v7130
    %7383 = vmatpush.bf16.msra.mxu0 %v7122
    %7384 = vmatpush.bf16.msra.mxu0 %v7114
    %7385 = vmatpush.bf16.msra.mxu0 %v7106
    %7386 = vmatpush.bf16.msra.mxu0 %v7098
    %7387 = vmatmul.bf16.gmra.mxu0 %v6583
    %v7388 = vpop.f32.mrf.mxu0
    %v7389 = vadd.f32 0.0, %v7388
    %v7390 = vpop.f32.mrf.mxu0
    %7391 = vdwg.mxu0
    %7392 = vmatpush.bf16.msra.mxu0 %v7218
    %7393 = vmatpush.bf16.msra.mxu0 %v7210
    %7394 = vmatpush.bf16.msra.mxu0 %v7202
    %7395 = vmatpush.bf16.msra.mxu0 %v7194
    %7396 = vmatpush.bf16.msra.mxu0 %v7186
    %7397 = vmatpush.bf16.msra.mxu0 %v7178
    %7398 = vmatpush.bf16.msra.mxu0 %v7170
    %7399 = vmatpush.bf16.msra.mxu0 %v7162
    %7400 = vmatmul.bf16.gmra.mxu0 %v6584
    %v7401 = vpop.f32.mrf.mxu0
    %v7402 = vadd.f32 %v7389, %v7401
    %v7403 = vpop.f32.mrf.mxu0
    %7404 = vdwg.mxu0
    %7405 = vmatpush.bf16.msra.mxu0 %v7155
    %7406 = vmatpush.bf16.msra.mxu0 %v7147
    %7407 = vmatpush.bf16.msra.mxu0 %v7139
    %7408 = vmatpush.bf16.msra.mxu0 %v7131
    %7409 = vmatpush.bf16.msra.mxu0 %v7123
    %7410 = vmatpush.bf16.msra.mxu0 %v7115
    %7411 = vmatpush.bf16.msra.mxu0 %v7107
    %7412 = vmatpush.bf16.msra.mxu0 %v7099
    %7413 = vmatmul.bf16.gmra.mxu0 %v6583
    %v7414 = vpop.f32.mrf.mxu0
    %v7415 = vadd.f32 0.0, %v7414
    %v7416 = vpop.f32.mrf.mxu0
    %7417 = vdwg.mxu0
    %7418 = vmatpush.bf16.msra.mxu0 %v7219
    %7419 = vmatpush.bf16.msra.mxu0 %v7211
    %7420 = vmatpush.bf16.msra.mxu0 %v7203
    %7421 = vmatpush.bf16.msra.mxu0 %v7195
    %7422 = vmatpush.bf16.msra.mxu0 %v7187
    %7423 = vmatpush.bf16.msra.mxu0 %v7179
    %7424 = vmatpush.bf16.msra.mxu0 %v7171
    %7425 = vmatpush.bf16.msra.mxu0 %v7163
    %7426 = vmatmul.bf16.gmra.mxu0 %v6584
    %v7427 = vpop.f32.mrf.mxu0
    %v7428 = vadd.f32 %v7415, %v7427
    %v7429 = vpop.f32.mrf.mxu0
    %7430 = vdwg.mxu0
    %7431 = vmatpush.bf16.msra.mxu0 %v7156
    %7432 = vmatpush.bf16.msra.mxu0 %v7148
    %7433 = vmatpush.bf16.msra.mxu0 %v7140
    %7434 = vmatpush.bf16.msra.mxu0 %v7132
    %7435 = vmatpush.bf16.msra.mxu0 %v7124
    %7436 = vmatpush.bf16.msra.mxu0 %v7116
    %7437 = vmatpush.bf16.msra.mxu0 %v7108
    %7438 = vmatpush.bf16.msra.mxu0 %v7100
    %7439 = vmatmul.bf16.gmra.mxu0 %v6583
    %v7440 = vpop.f32.mrf.mxu0
    %v7441 = vadd.f32 0.0, %v7440
    %v7442 = vpop.f32.mrf.mxu0
    %7443 = vdwg.mxu0
    %7444 = vmatpush.bf16.msra.mxu0 %v7220
    %7445 = vmatpush.bf16.msra.mxu0 %v7212
    %7446 = vmatpush.bf16.msra.mxu0 %v7204
    %7447 = vmatpush.bf16.msra.mxu0 %v7196
    %7448 = vmatpush.bf16.msra.mxu0 %v7188
    %7449 = vmatpush.bf16.msra.mxu0 %v7180
    %7450 = vmatpush.bf16.msra.mxu0 %v7172
    %7451 = vmatpush.bf16.msra.mxu0 %v7164
    %7452 = vmatmul.bf16.gmra.mxu0 %v6584
    %v7453 = vpop.f32.mrf.mxu0
    %v7454 = vadd.f32 %v7441, %v7453
    %v7455 = vpop.f32.mrf.mxu0
    %7456 = vdwg.mxu0
    %7457 = vmatpush.bf16.msra.mxu0 %v7157
    %7458 = vmatpush.bf16.msra.mxu0 %v7149
    %7459 = vmatpush.bf16.msra.mxu0 %v7141
    %7460 = vmatpush.bf16.msra.mxu0 %v7133
    %7461 = vmatpush.bf16.msra.mxu0 %v7125
    %7462 = vmatpush.bf16.msra.mxu0 %v7117
    %7463 = vmatpush.bf16.msra.mxu0 %v7109
    %7464 = vmatpush.bf16.msra.mxu0 %v7101
    %7465 = vmatmul.bf16.gmra.mxu0 %v6583
    %v7466 = vpop.f32.mrf.mxu0
    %v7467 = vadd.f32 0.0, %v7466
    %v7468 = vpop.f32.mrf.mxu0
    %7469 = vdwg.mxu0
    %7470 = vmatpush.bf16.msra.mxu0 %v7221
    %7471 = vmatpush.bf16.msra.mxu0 %v7213
    %7472 = vmatpush.bf16.msra.mxu0 %v7205
    %7473 = vmatpush.bf16.msra.mxu0 %v7197
    %7474 = vmatpush.bf16.msra.mxu0 %v7189
    %7475 = vmatpush.bf16.msra.mxu0 %v7181
    %7476 = vmatpush.bf16.msra.mxu0 %v7173
    %7477 = vmatpush.bf16.msra.mxu0 %v7165
    %7478 = vmatmul.bf16.gmra.mxu0 %v6584
    %v7479 = vpop.f32.mrf.mxu0
    %v7480 = vadd.f32 %v7467, %v7479
    %v7481 = vpop.f32.mrf.mxu0
    %7482 = vdwg.mxu0
    %7483 = vmatpush.bf16.msra.mxu0 %v7158
    %7484 = vmatpush.bf16.msra.mxu0 %v7150
    %7485 = vmatpush.bf16.msra.mxu0 %v7142
    %7486 = vmatpush.bf16.msra.mxu0 %v7134
    %7487 = vmatpush.bf16.msra.mxu0 %v7126
    %7488 = vmatpush.bf16.msra.mxu0 %v7118
    %7489 = vmatpush.bf16.msra.mxu0 %v7110
    %7490 = vmatpush.bf16.msra.mxu0 %v7102
    %7491 = vmatmul.bf16.gmra.mxu0 %v6583
    %v7492 = vpop.f32.mrf.mxu0
    %v7493 = vadd.f32 0.0, %v7492
    %v7494 = vpop.f32.mrf.mxu0
    %7495 = vdwg.mxu0
    %7496 = vmatpush.bf16.msra.mxu0 %v7222
    %7497 = vmatpush.bf16.msra.mxu0 %v7214
    %7498 = vmatpush.bf16.msra.mxu0 %v7206
    %7499 = vmatpush.bf16.msra.mxu0 %v7198
    %7500 = vmatpush.bf16.msra.mxu0 %v7190
    %7501 = vmatpush.bf16.msra.mxu0 %v7182
    %7502 = vmatpush.bf16.msra.mxu0 %v7174
    %7503 = vmatpush.bf16.msra.mxu0 %v7166
    %7504 = vmatmul.bf16.gmra.mxu0 %v6584
    %v7505 = vpop.f32.mrf.mxu0
    %v7506 = vadd.f32 %v7493, %v7505
    %v7507 = vpop.f32.mrf.mxu0
    %7508 = vdwg.mxu0
    %7509 = vmatpush.bf16.msra.mxu0 %v7159
    %7510 = vmatpush.bf16.msra.mxu0 %v7151
    %7511 = vmatpush.bf16.msra.mxu0 %v7143
    %7512 = vmatpush.bf16.msra.mxu0 %v7135
    %7513 = vmatpush.bf16.msra.mxu0 %v7127
    %7514 = vmatpush.bf16.msra.mxu0 %v7119
    %7515 = vmatpush.bf16.msra.mxu0 %v7111
    %7516 = vmatpush.bf16.msra.mxu0 %v7103
    %7517 = vmatmul.bf16.gmra.mxu0 %v6583
    %v7518 = vpop.f32.mrf.mxu0
    %v7519 = vadd.f32 0.0, %v7518
    %v7520 = vpop.f32.mrf.mxu0
    %7521 = vdwg.mxu0
    %7522 = vmatpush.bf16.msra.mxu0 %v7223
    %7523 = vmatpush.bf16.msra.mxu0 %v7215
    %7524 = vmatpush.bf16.msra.mxu0 %v7207
    %7525 = vmatpush.bf16.msra.mxu0 %v7199
    %7526 = vmatpush.bf16.msra.mxu0 %v7191
    %7527 = vmatpush.bf16.msra.mxu0 %v7183
    %7528 = vmatpush.bf16.msra.mxu0 %v7175
    %7529 = vmatpush.bf16.msra.mxu0 %v7167
    %7530 = vmatmul.bf16.gmra.mxu0 %v6584
    %v7531 = vpop.f32.mrf.mxu0
    %v7532 = vadd.f32 %v7519, %v7531
    %v7533 = vpop.f32.mrf.mxu0
    %7534 = vdwg.mxu0
    %7535 = vmatpush.bf16.msra.mxu0 %v7160
    %7536 = vmatpush.bf16.msra.mxu0 %v7152
    %7537 = vmatpush.bf16.msra.mxu0 %v7144
    %7538 = vmatpush.bf16.msra.mxu0 %v7136
    %7539 = vmatpush.bf16.msra.mxu0 %v7128
    %7540 = vmatpush.bf16.msra.mxu0 %v7120
    %7541 = vmatpush.bf16.msra.mxu0 %v7112
    %7542 = vmatpush.bf16.msra.mxu0 %v7104
    %7543 = vmatmul.bf16.gmra.mxu0 %v6583
    %v7544 = vpop.f32.mrf.mxu0
    %v7545 = vadd.f32 0.0, %v7544
    %v7546 = vpop.f32.mrf.mxu0
    %7547 = vdwg.mxu0
    %7548 = vmatpush.bf16.msra.mxu0 %v7224
    %7549 = vmatpush.bf16.msra.mxu0 %v7216
    %7550 = vmatpush.bf16.msra.mxu0 %v7208
    %7551 = vmatpush.bf16.msra.mxu0 %v7200
    %7552 = vmatpush.bf16.msra.mxu0 %v7192
    %7553 = vmatpush.bf16.msra.mxu0 %v7184
    %7554 = vmatpush.bf16.msra.mxu0 %v7176
    %7555 = vmatpush.bf16.msra.mxu0 %v7168
    %7556 = vmatmul.bf16.gmra.mxu0 %v6584
    %v7557 = vpop.f32.mrf.mxu0
    %v7558 = vadd.f32 %v7545, %v7557
    %v7559 = vpop.f32.mrf.mxu0
    %7560 = vdwg.mxu0
    %v7561 = vadd.f32 %v6575, %v7376
    %v7562 = vadd.f32 %v6576, %v7402
    %v7563 = vadd.f32 %v6577, %v7428
    %v7564 = vadd.f32 %v6578, %v7454
    %v7565 = vadd.f32 %v6579, %v7480
    %v7566 = vadd.f32 %v6580, %v7506
    %v7567 = vadd.f32 %v6581, %v7532
    %v7568 = vadd.f32 %v6582, %v7558
    %v7569 = vxor.u32 %v7561, 2147483648
    %v7570 = vxor.u32 %v7562, 2147483648
    %v7571 = vmul.f32 %v7569, 1.442695
    %v7572 = vpow.pop %v7571
    %v7573 = vmul.f32 %v7570, 1.442695
    %v7574 = vpow.pop %v7573
    %v7575 = vadd.f32 %v7572, 1.0
    %v7576 = vadd.f32 %v7574, 1.0
    %v7577 = vrcp.pop %v7575
    %v7578 = vmul.f32 %v7575, %v7577
    %v7579 = vsub.f32 1.0, %v7578
    %v7580 = vmul.f32 %v7577, %v7579
    %v7581 = vadd.f32 %v7577, %v7580
    %vm7582 = vweird.f32 %v7575
    %vm7583 = vweird.f32 %v7577
    %vm7584 = vmor %vm7582, %vm7583
    %v7585 = vsel %vm7584, %v7577, %v7581
    %v7586 = vand.u32 2147483647, %v7575
    %vm7587 = vcmp.eq.f32.partialorder %v7586, 8.507059e+37
    %v7588 = vand.u32 %v7575, 2147483648
    %v7589 = vor.u32 1.1754944e-38, %v7588
    %v7590 = vsel %vm7587, %v7589, %v7585
    %v7591 = vmul.f32 1.0, %v7590
    %v7592 = vrcp.pop %v7576
    %v7593 = vmul.f32 %v7576, %v7592
    %v7594 = vsub.f32 1.0, %v7593
    %v7595 = vmul.f32 %v7592, %v7594
    %v7596 = vadd.f32 %v7592, %v7595
    %vm7597 = vweird.f32 %v7576
    %vm7598 = vweird.f32 %v7592
    %vm7599 = vmor %vm7597, %vm7598
    %v7600 = vsel %vm7599, %v7592, %v7596
    %v7601 = vand.u32 2147483647, %v7576
    %vm7602 = vcmp.eq.f32.partialorder %v7601, 8.507059e+37
    %v7603 = vand.u32 %v7576, 2147483648
    %v7604 = vor.u32 1.1754944e-38, %v7603
    %v7605 = vsel %vm7602, %v7604, %v7600
    %v7606 = vmul.f32 1.0, %v7605
    %v7607 = vxor.u32 %v7563, 2147483648
    %v7608 = vxor.u32 %v7564, 2147483648
    %v7609 = vmul.f32 %v7607, 1.442695
    %v7610 = vpow.pop %v7609
    %v7611 = vmul.f32 %v7608, 1.442695
    %v7612 = vpow.pop %v7611
    %v7613 = vadd.f32 %v7610, 1.0
    %v7614 = vadd.f32 %v7612, 1.0
    %v7615 = vrcp.pop %v7613
    %v7616 = vmul.f32 %v7613, %v7615
    %v7617 = vsub.f32 1.0, %v7616
    %v7618 = vmul.f32 %v7615, %v7617
    %v7619 = vadd.f32 %v7615, %v7618
    %vm7620 = vweird.f32 %v7613
    %vm7621 = vweird.f32 %v7615
    %vm7622 = vmor %vm7620, %vm7621
    %v7623 = vsel %vm7622, %v7615, %v7619
    %v7624 = vand.u32 2147483647, %v7613
    %vm7625 = vcmp.eq.f32.partialorder %v7624, 8.507059e+37
    %v7626 = vand.u32 %v7613, 2147483648
    %v7627 = vor.u32 1.1754944e-38, %v7626
    %v7628 = vsel %vm7625, %v7627, %v7623
    %v7629 = vmul.f32 1.0, %v7628
    %v7630 = vrcp.pop %v7614
    %v7631 = vmul.f32 %v7614, %v7630
    %v7632 = vsub.f32 1.0, %v7631
    %v7633 = vmul.f32 %v7630, %v7632
    %v7634 = vadd.f32 %v7630, %v7633
    %vm7635 = vweird.f32 %v7614
    %vm7636 = vweird.f32 %v7630
    %vm7637 = vmor %vm7635, %vm7636
    %v7638 = vsel %vm7637, %v7630, %v7634
    %v7639 = vand.u32 2147483647, %v7614
    %vm7640 = vcmp.eq.f32.partialorder %v7639, 8.507059e+37
    %v7641 = vand.u32 %v7614, 2147483648
    %v7642 = vor.u32 1.1754944e-38, %v7641
    %v7643 = vsel %vm7640, %v7642, %v7638
    %v7644 = vmul.f32 1.0, %v7643
    %v7645 = vtanh.pop %v7565
    %v7646 = vtanh.pop %v7566
    %v7647 = vxor.u32 %v7567, 2147483648
    %v7648 = vxor.u32 %v7568, 2147483648
    %v7649 = vmul.f32 %v7647, 1.442695
    %v7650 = vpow.pop %v7649
    %v7651 = vmul.f32 %v7648, 1.442695
    %v7652 = vpow.pop %v7651
    %v7653 = vadd.f32 %v7650, 1.0
    %v7654 = vadd.f32 %v7652, 1.0
    %v7655 = vrcp.pop %v7653
    %v7656 = vmul.f32 %v7653, %v7655
    %v7657 = vsub.f32 1.0, %v7656
    %v7658 = vmul.f32 %v7655, %v7657
    %v7659 = vadd.f32 %v7655, %v7658
    %vm7660 = vweird.f32 %v7653
    %vm7661 = vweird.f32 %v7655
    %vm7662 = vmor %vm7660, %vm7661
    %v7663 = vsel %vm7662, %v7655, %v7659
    %v7664 = vand.u32 2147483647, %v7653
    %vm7665 = vcmp.eq.f32.partialorder %v7664, 8.507059e+37
    %v7666 = vand.u32 %v7653, 2147483648
    %v7667 = vor.u32 1.1754944e-38, %v7666
    %v7668 = vsel %vm7665, %v7667, %v7663
    %v7669 = vmul.f32 1.0, %v7668
    %v7670 = vrcp.pop %v7654
    %v7671 = vmul.f32 %v7654, %v7670
    %v7672 = vsub.f32 1.0, %v7671
    %v7673 = vmul.f32 %v7670, %v7672
    %v7674 = vadd.f32 %v7670, %v7673
    %vm7675 = vweird.f32 %v7654
    %vm7676 = vweird.f32 %v7670
    %vm7677 = vmor %vm7675, %vm7676
    %v7678 = vsel %vm7677, %v7670, %v7674
    %v7679 = vand.u32 2147483647, %v7654
    %vm7680 = vcmp.eq.f32.partialorder %v7679, 8.507059e+37
    %v7681 = vand.u32 %v7654, 2147483648
    %v7682 = vor.u32 1.1754944e-38, %v7681
    %v7683 = vsel %vm7680, %v7682, %v7678
    %v7684 = vmul.f32 1.0, %v7683
    %v7685 = vmul.f32 %v7629, %v6566
    %v7686 = vmul.f32 %v7644, %v6567
    %v7687 = vmul.f32 %v7591, %v7645
    %v7688 = vmul.f32 %v7606, %v7646
    %v7689 = vadd.f32 %v7685, %v7687
    %v7690 = vadd.f32 %v7686, %v7688
    %v7691 = vtanh.pop %v7689
    %v7692 = vtanh.pop %v7690
    %v7693 = vmul.f32 %v7669, %v7691
    %v7694 = vmul.f32 %v7684, %v7692
    %s7695 = sadd.s32 %s829, 5
    %v7696 = vstv %s7695
    %vm7697 = vcmp.lt.s32.totalorder %v7696, %v828
    %v7698 = vsel %vm7697, 1, 0
    %7699 = vset.pattern.permute.xlu0 0
    %7700 = vperm.xlu0 %7699, %v7698
    %v7701 = vpop.permute.xlu0 %7700
    %vm7702 = vcmp.eq.s32.totalorder %v7701, 1
    %v7703 = vsel %vm7702, %v7693, %v6564
    %v7704 = vsel %vm7702, %v7694, %v6565
    %7705 = vst [vmem:[#allocation3] sm:$0xff] %v7703
    %7706 = vst [vmem:[#allocation3 + $0x8] sm:$0xff] %v7704
    %v7707 = vsel %vm7702, %v7689, %v6566
    %v7708 = vsel %vm7702, %v7690, %v6567
    %7709 = vst [vmem:[#allocation4] sm:$0xff] %v7707
    %7710 = vst [vmem:[#allocation4 + $0x8] sm:$0xff] %v7708
    %v7711 = vld [vmem:[#allocation3] sm:$0xff]
    %v7712 = vld [vmem:[#allocation3 + $0x8] sm:$0xff]
    %v7713 = vld [vmem:[#allocation4] sm:$0xff]
    %v7714 = vld [vmem:[#allocation4 + $0x8] sm:$0xff]
    %s7715 = smul.u32 6, 8
    %s7716 = smul.addr %s7715, 4
    %s7717 = scalar_lea.vmem [#allocation2], %s7716
    %v7718 = vld [vmem:[%s7717] sm:$0xff]
    %v7719 = vld [vmem:[%s7717 + $0x8] sm:$0xff]
    %v7720 = vld [vmem:[%s7717 + $0x10] sm:$0xff]
    %v7721 = vld [vmem:[%s7717 + $0x18] sm:$0xff]
    %v7722 = vunpack.c.l.bf16 %v7718
    %v7723 = vunpack.c.h.bf16 %v7718
    %v7724 = vunpack.c.l.bf16 %v7719
    %v7725 = vunpack.c.h.bf16 %v7719
    %v7726 = vunpack.c.l.bf16 %v7720
    %v7727 = vunpack.c.h.bf16 %v7720
    %v7728 = vunpack.c.l.bf16 %v7721
    %v7729 = vunpack.c.h.bf16 %v7721
    %v7730 = vpack.c.bf16 %v7711, %v7711
    %v7731 = vpack.c.bf16 %v7712, %v7712
    %v7732 = vld [vmem:[#allocation10] sm:$0xff]
    %v7733 = vld [vmem:[#allocation10 + $0x8] sm:$0xff]
    %v7734 = vld [vmem:[#allocation10 + $0x10] sm:$0xff]
    %v7735 = vld [vmem:[#allocation10 + $0x18] sm:$0xff]
    %v7736 = vld [vmem:[#allocation10 + $0x20] sm:$0xff]
    %v7737 = vld [vmem:[#allocation10 + $0x28] sm:$0xff]
    %v7738 = vld [vmem:[#allocation10 + $0x30] sm:$0xff]
    %v7739 = vld [vmem:[#allocation10 + $0x38] sm:$0xff]
    %v7740 = vld [vmem:[#allocation10 + $0x40] sm:$0xff]
    %v7741 = vld [vmem:[#allocation10 + $0x48] sm:$0xff]
    %v7742 = vld [vmem:[#allocation10 + $0x50] sm:$0xff]
    %v7743 = vld [vmem:[#allocation10 + $0x58] sm:$0xff]
    %v7744 = vld [vmem:[#allocation10 + $0x60] sm:$0xff]
    %v7745 = vld [vmem:[#allocation10 + $0x68] sm:$0xff]
    %v7746 = vld [vmem:[#allocation10 + $0x70] sm:$0xff]
    %v7747 = vld [vmem:[#allocation10 + $0x78] sm:$0xff]
    %v7748 = vld [vmem:[#allocation10 + $0x80] sm:$0xff]
    %v7749 = vld [vmem:[#allocation10 + $0x88] sm:$0xff]
    %v7750 = vld [vmem:[#allocation10 + $0x90] sm:$0xff]
    %v7751 = vld [vmem:[#allocation10 + $0x98] sm:$0xff]
    %v7752 = vld [vmem:[#allocation10 + $0xa0] sm:$0xff]
    %v7753 = vld [vmem:[#allocation10 + $0xa8] sm:$0xff]
    %v7754 = vld [vmem:[#allocation10 + $0xb0] sm:$0xff]
    %v7755 = vld [vmem:[#allocation10 + $0xb8] sm:$0xff]
    %v7756 = vld [vmem:[#allocation10 + $0xc0] sm:$0xff]
    %v7757 = vld [vmem:[#allocation10 + $0xc8] sm:$0xff]
    %v7758 = vld [vmem:[#allocation10 + $0xd0] sm:$0xff]
    %v7759 = vld [vmem:[#allocation10 + $0xd8] sm:$0xff]
    %v7760 = vld [vmem:[#allocation10 + $0xe0] sm:$0xff]
    %v7761 = vld [vmem:[#allocation10 + $0xe8] sm:$0xff]
    %v7762 = vld [vmem:[#allocation10 + $0xf0] sm:$0xff]
    %v7763 = vld [vmem:[#allocation10 + $0xf8] sm:$0xff]
    %v7764 = vld [vmem:[#allocation10 + $0x100] sm:$0xff]
    %v7765 = vld [vmem:[#allocation10 + $0x108] sm:$0xff]
    %v7766 = vld [vmem:[#allocation10 + $0x110] sm:$0xff]
    %v7767 = vld [vmem:[#allocation10 + $0x118] sm:$0xff]
    %v7768 = vld [vmem:[#allocation10 + $0x120] sm:$0xff]
    %v7769 = vld [vmem:[#allocation10 + $0x128] sm:$0xff]
    %v7770 = vld [vmem:[#allocation10 + $0x130] sm:$0xff]
    %v7771 = vld [vmem:[#allocation10 + $0x138] sm:$0xff]
    %v7772 = vld [vmem:[#allocation10 + $0x140] sm:$0xff]
    %v7773 = vld [vmem:[#allocation10 + $0x148] sm:$0xff]
    %v7774 = vld [vmem:[#allocation10 + $0x150] sm:$0xff]
    %v7775 = vld [vmem:[#allocation10 + $0x158] sm:$0xff]
    %v7776 = vld [vmem:[#allocation10 + $0x160] sm:$0xff]
    %v7777 = vld [vmem:[#allocation10 + $0x168] sm:$0xff]
    %v7778 = vld [vmem:[#allocation10 + $0x170] sm:$0xff]
    %v7779 = vld [vmem:[#allocation10 + $0x178] sm:$0xff]
    %v7780 = vld [vmem:[#allocation10 + $0x180] sm:$0xff]
    %v7781 = vld [vmem:[#allocation10 + $0x188] sm:$0xff]
    %v7782 = vld [vmem:[#allocation10 + $0x190] sm:$0xff]
    %v7783 = vld [vmem:[#allocation10 + $0x198] sm:$0xff]
    %v7784 = vld [vmem:[#allocation10 + $0x1a0] sm:$0xff]
    %v7785 = vld [vmem:[#allocation10 + $0x1a8] sm:$0xff]
    %v7786 = vld [vmem:[#allocation10 + $0x1b0] sm:$0xff]
    %v7787 = vld [vmem:[#allocation10 + $0x1b8] sm:$0xff]
    %v7788 = vld [vmem:[#allocation10 + $0x1c0] sm:$0xff]
    %v7789 = vld [vmem:[#allocation10 + $0x1c8] sm:$0xff]
    %v7790 = vld [vmem:[#allocation10 + $0x1d0] sm:$0xff]
    %v7791 = vld [vmem:[#allocation10 + $0x1d8] sm:$0xff]
    %v7792 = vld [vmem:[#allocation10 + $0x1e0] sm:$0xff]
    %v7793 = vld [vmem:[#allocation10 + $0x1e8] sm:$0xff]
    %v7794 = vld [vmem:[#allocation10 + $0x1f0] sm:$0xff]
    %v7795 = vld [vmem:[#allocation10 + $0x1f8] sm:$0xff]
    %v7796 = vld [vmem:[#allocation10 + $0x200] sm:$0xff]
    %v7797 = vld [vmem:[#allocation10 + $0x208] sm:$0xff]
    %v7798 = vld [vmem:[#allocation10 + $0x210] sm:$0xff]
    %v7799 = vld [vmem:[#allocation10 + $0x218] sm:$0xff]
    %v7800 = vld [vmem:[#allocation10 + $0x220] sm:$0xff]
    %v7801 = vld [vmem:[#allocation10 + $0x228] sm:$0xff]
    %v7802 = vld [vmem:[#allocation10 + $0x230] sm:$0xff]
    %v7803 = vld [vmem:[#allocation10 + $0x238] sm:$0xff]
    %v7804 = vld [vmem:[#allocation10 + $0x240] sm:$0xff]
    %v7805 = vld [vmem:[#allocation10 + $0x248] sm:$0xff]
    %v7806 = vld [vmem:[#allocation10 + $0x250] sm:$0xff]
    %v7807 = vld [vmem:[#allocation10 + $0x258] sm:$0xff]
    %v7808 = vld [vmem:[#allocation10 + $0x260] sm:$0xff]
    %v7809 = vld [vmem:[#allocation10 + $0x268] sm:$0xff]
    %v7810 = vld [vmem:[#allocation10 + $0x270] sm:$0xff]
    %v7811 = vld [vmem:[#allocation10 + $0x278] sm:$0xff]
    %v7812 = vld [vmem:[#allocation10 + $0x280] sm:$0xff]
    %v7813 = vld [vmem:[#allocation10 + $0x288] sm:$0xff]
    %v7814 = vld [vmem:[#allocation10 + $0x290] sm:$0xff]
    %v7815 = vld [vmem:[#allocation10 + $0x298] sm:$0xff]
    %v7816 = vld [vmem:[#allocation10 + $0x2a0] sm:$0xff]
    %v7817 = vld [vmem:[#allocation10 + $0x2a8] sm:$0xff]
    %v7818 = vld [vmem:[#allocation10 + $0x2b0] sm:$0xff]
    %v7819 = vld [vmem:[#allocation10 + $0x2b8] sm:$0xff]
    %v7820 = vld [vmem:[#allocation10 + $0x2c0] sm:$0xff]
    %v7821 = vld [vmem:[#allocation10 + $0x2c8] sm:$0xff]
    %v7822 = vld [vmem:[#allocation10 + $0x2d0] sm:$0xff]
    %v7823 = vld [vmem:[#allocation10 + $0x2d8] sm:$0xff]
    %v7824 = vld [vmem:[#allocation10 + $0x2e0] sm:$0xff]
    %v7825 = vld [vmem:[#allocation10 + $0x2e8] sm:$0xff]
    %v7826 = vld [vmem:[#allocation10 + $0x2f0] sm:$0xff]
    %v7827 = vld [vmem:[#allocation10 + $0x2f8] sm:$0xff]
    %v7828 = vld [vmem:[#allocation10 + $0x300] sm:$0xff]
    %v7829 = vld [vmem:[#allocation10 + $0x308] sm:$0xff]
    %v7830 = vld [vmem:[#allocation10 + $0x310] sm:$0xff]
    %v7831 = vld [vmem:[#allocation10 + $0x318] sm:$0xff]
    %v7832 = vld [vmem:[#allocation10 + $0x320] sm:$0xff]
    %v7833 = vld [vmem:[#allocation10 + $0x328] sm:$0xff]
    %v7834 = vld [vmem:[#allocation10 + $0x330] sm:$0xff]
    %v7835 = vld [vmem:[#allocation10 + $0x338] sm:$0xff]
    %v7836 = vld [vmem:[#allocation10 + $0x340] sm:$0xff]
    %v7837 = vld [vmem:[#allocation10 + $0x348] sm:$0xff]
    %v7838 = vld [vmem:[#allocation10 + $0x350] sm:$0xff]
    %v7839 = vld [vmem:[#allocation10 + $0x358] sm:$0xff]
    %v7840 = vld [vmem:[#allocation10 + $0x360] sm:$0xff]
    %v7841 = vld [vmem:[#allocation10 + $0x368] sm:$0xff]
    %v7842 = vld [vmem:[#allocation10 + $0x370] sm:$0xff]
    %v7843 = vld [vmem:[#allocation10 + $0x378] sm:$0xff]
    %v7844 = vld [vmem:[#allocation10 + $0x380] sm:$0xff]
    %v7845 = vld [vmem:[#allocation10 + $0x388] sm:$0xff]
    %v7846 = vld [vmem:[#allocation10 + $0x390] sm:$0xff]
    %v7847 = vld [vmem:[#allocation10 + $0x398] sm:$0xff]
    %v7848 = vld [vmem:[#allocation10 + $0x3a0] sm:$0xff]
    %v7849 = vld [vmem:[#allocation10 + $0x3a8] sm:$0xff]
    %v7850 = vld [vmem:[#allocation10 + $0x3b0] sm:$0xff]
    %v7851 = vld [vmem:[#allocation10 + $0x3b8] sm:$0xff]
    %v7852 = vld [vmem:[#allocation10 + $0x3c0] sm:$0xff]
    %v7853 = vld [vmem:[#allocation10 + $0x3c8] sm:$0xff]
    %v7854 = vld [vmem:[#allocation10 + $0x3d0] sm:$0xff]
    %v7855 = vld [vmem:[#allocation10 + $0x3d8] sm:$0xff]
    %v7856 = vld [vmem:[#allocation10 + $0x3e0] sm:$0xff]
    %v7857 = vld [vmem:[#allocation10 + $0x3e8] sm:$0xff]
    %v7858 = vld [vmem:[#allocation10 + $0x3f0] sm:$0xff]
    %v7859 = vld [vmem:[#allocation10 + $0x3f8] sm:$0xff]
    %v7988 = vunpack.c.l.b16 %v7732
    %v7989 = vunpack.c.h.b16 %v7732
    %v7990 = vunpack.c.l.b16 %v7733
    %v7991 = vunpack.c.h.b16 %v7733
    %v7992 = vunpack.c.l.b16 %v7734
    %v7993 = vunpack.c.h.b16 %v7734
    %v7994 = vunpack.c.l.b16 %v7735
    %v7995 = vunpack.c.h.b16 %v7735
    %v7996 = vunpack.c.l.b16 %v7736
    %v7997 = vunpack.c.h.b16 %v7736
    %v7998 = vunpack.c.l.b16 %v7737
    %v7999 = vunpack.c.h.b16 %v7737
    %v8000 = vunpack.c.l.b16 %v7738
    %v8001 = vunpack.c.h.b16 %v7738
    %v8002 = vunpack.c.l.b16 %v7739
    %v8003 = vunpack.c.h.b16 %v7739
    %v8004 = vunpack.c.l.b16 %v7740
    %v8005 = vunpack.c.h.b16 %v7740
    %v8006 = vunpack.c.l.b16 %v7741
    %v8007 = vunpack.c.h.b16 %v7741
    %v8008 = vunpack.c.l.b16 %v7742
    %v8009 = vunpack.c.h.b16 %v7742
    %v8010 = vunpack.c.l.b16 %v7743
    %v8011 = vunpack.c.h.b16 %v7743
    %v8012 = vunpack.c.l.b16 %v7744
    %v8013 = vunpack.c.h.b16 %v7744
    %v8014 = vunpack.c.l.b16 %v7745
    %v8015 = vunpack.c.h.b16 %v7745
    %v8016 = vunpack.c.l.b16 %v7746
    %v8017 = vunpack.c.h.b16 %v7746
    %v8018 = vunpack.c.l.b16 %v7747
    %v8019 = vunpack.c.h.b16 %v7747
    %v8020 = vunpack.c.l.b16 %v7748
    %v8021 = vunpack.c.h.b16 %v7748
    %v8022 = vunpack.c.l.b16 %v7749
    %v8023 = vunpack.c.h.b16 %v7749
    %v8024 = vunpack.c.l.b16 %v7750
    %v8025 = vunpack.c.h.b16 %v7750
    %v8026 = vunpack.c.l.b16 %v7751
    %v8027 = vunpack.c.h.b16 %v7751
    %v8028 = vunpack.c.l.b16 %v7752
    %v8029 = vunpack.c.h.b16 %v7752
    %v8030 = vunpack.c.l.b16 %v7753
    %v8031 = vunpack.c.h.b16 %v7753
    %v8032 = vunpack.c.l.b16 %v7754
    %v8033 = vunpack.c.h.b16 %v7754
    %v8034 = vunpack.c.l.b16 %v7755
    %v8035 = vunpack.c.h.b16 %v7755
    %v8036 = vunpack.c.l.b16 %v7756
    %v8037 = vunpack.c.h.b16 %v7756
    %v8038 = vunpack.c.l.b16 %v7757
    %v8039 = vunpack.c.h.b16 %v7757
    %v8040 = vunpack.c.l.b16 %v7758
    %v8041 = vunpack.c.h.b16 %v7758
    %v8042 = vunpack.c.l.b16 %v7759
    %v8043 = vunpack.c.h.b16 %v7759
    %v8044 = vunpack.c.l.b16 %v7760
    %v8045 = vunpack.c.h.b16 %v7760
    %v8046 = vunpack.c.l.b16 %v7761
    %v8047 = vunpack.c.h.b16 %v7761
    %v8048 = vunpack.c.l.b16 %v7762
    %v8049 = vunpack.c.h.b16 %v7762
    %v8050 = vunpack.c.l.b16 %v7763
    %v8051 = vunpack.c.h.b16 %v7763
    %v8052 = vunpack.c.l.b16 %v7764
    %v8053 = vunpack.c.h.b16 %v7764
    %v8054 = vunpack.c.l.b16 %v7765
    %v8055 = vunpack.c.h.b16 %v7765
    %v8056 = vunpack.c.l.b16 %v7766
    %v8057 = vunpack.c.h.b16 %v7766
    %v8058 = vunpack.c.l.b16 %v7767
    %v8059 = vunpack.c.h.b16 %v7767
    %v8060 = vunpack.c.l.b16 %v7768
    %v8061 = vunpack.c.h.b16 %v7768
    %v8062 = vunpack.c.l.b16 %v7769
    %v8063 = vunpack.c.h.b16 %v7769
    %v8064 = vunpack.c.l.b16 %v7770
    %v8065 = vunpack.c.h.b16 %v7770
    %v8066 = vunpack.c.l.b16 %v7771
    %v8067 = vunpack.c.h.b16 %v7771
    %v8068 = vunpack.c.l.b16 %v7772
    %v8069 = vunpack.c.h.b16 %v7772
    %v8070 = vunpack.c.l.b16 %v7773
    %v8071 = vunpack.c.h.b16 %v7773
    %v8072 = vunpack.c.l.b16 %v7774
    %v8073 = vunpack.c.h.b16 %v7774
    %v8074 = vunpack.c.l.b16 %v7775
    %v8075 = vunpack.c.h.b16 %v7775
    %v8076 = vunpack.c.l.b16 %v7776
    %v8077 = vunpack.c.h.b16 %v7776
    %v8078 = vunpack.c.l.b16 %v7777
    %v8079 = vunpack.c.h.b16 %v7777
    %v8080 = vunpack.c.l.b16 %v7778
    %v8081 = vunpack.c.h.b16 %v7778
    %v8082 = vunpack.c.l.b16 %v7779
    %v8083 = vunpack.c.h.b16 %v7779
    %v8084 = vunpack.c.l.b16 %v7780
    %v8085 = vunpack.c.h.b16 %v7780
    %v8086 = vunpack.c.l.b16 %v7781
    %v8087 = vunpack.c.h.b16 %v7781
    %v8088 = vunpack.c.l.b16 %v7782
    %v8089 = vunpack.c.h.b16 %v7782
    %v8090 = vunpack.c.l.b16 %v7783
    %v8091 = vunpack.c.h.b16 %v7783
    %v8092 = vunpack.c.l.b16 %v7784
    %v8093 = vunpack.c.h.b16 %v7784
    %v8094 = vunpack.c.l.b16 %v7785
    %v8095 = vunpack.c.h.b16 %v7785
    %v8096 = vunpack.c.l.b16 %v7786
    %v8097 = vunpack.c.h.b16 %v7786
    %v8098 = vunpack.c.l.b16 %v7787
    %v8099 = vunpack.c.h.b16 %v7787
    %v8100 = vunpack.c.l.b16 %v7788
    %v8101 = vunpack.c.h.b16 %v7788
    %v8102 = vunpack.c.l.b16 %v7789
    %v8103 = vunpack.c.h.b16 %v7789
    %v8104 = vunpack.c.l.b16 %v7790
    %v8105 = vunpack.c.h.b16 %v7790
    %v8106 = vunpack.c.l.b16 %v7791
    %v8107 = vunpack.c.h.b16 %v7791
    %v8108 = vunpack.c.l.b16 %v7792
    %v8109 = vunpack.c.h.b16 %v7792
    %v8110 = vunpack.c.l.b16 %v7793
    %v8111 = vunpack.c.h.b16 %v7793
    %v8112 = vunpack.c.l.b16 %v7794
    %v8113 = vunpack.c.h.b16 %v7794
    %v8114 = vunpack.c.l.b16 %v7795
    %v8115 = vunpack.c.h.b16 %v7795
    %v8116 = vunpack.c.l.b16 %v7796
    %v8117 = vunpack.c.h.b16 %v7796
    %v8118 = vunpack.c.l.b16 %v7797
    %v8119 = vunpack.c.h.b16 %v7797
    %v8120 = vunpack.c.l.b16 %v7798
    %v8121 = vunpack.c.h.b16 %v7798
    %v8122 = vunpack.c.l.b16 %v7799
    %v8123 = vunpack.c.h.b16 %v7799
    %v8124 = vunpack.c.l.b16 %v7800
    %v8125 = vunpack.c.h.b16 %v7800
    %v8126 = vunpack.c.l.b16 %v7801
    %v8127 = vunpack.c.h.b16 %v7801
    %v8128 = vunpack.c.l.b16 %v7802
    %v8129 = vunpack.c.h.b16 %v7802
    %v8130 = vunpack.c.l.b16 %v7803
    %v8131 = vunpack.c.h.b16 %v7803
    %v8132 = vunpack.c.l.b16 %v7804
    %v8133 = vunpack.c.h.b16 %v7804
    %v8134 = vunpack.c.l.b16 %v7805
    %v8135 = vunpack.c.h.b16 %v7805
    %v8136 = vunpack.c.l.b16 %v7806
    %v8137 = vunpack.c.h.b16 %v7806
    %v8138 = vunpack.c.l.b16 %v7807
    %v8139 = vunpack.c.h.b16 %v7807
    %v8140 = vunpack.c.l.b16 %v7808
    %v8141 = vunpack.c.h.b16 %v7808
    %v8142 = vunpack.c.l.b16 %v7809
    %v8143 = vunpack.c.h.b16 %v7809
    %v8144 = vunpack.c.l.b16 %v7810
    %v8145 = vunpack.c.h.b16 %v7810
    %v8146 = vunpack.c.l.b16 %v7811
    %v8147 = vunpack.c.h.b16 %v7811
    %v8148 = vunpack.c.l.b16 %v7812
    %v8149 = vunpack.c.h.b16 %v7812
    %v8150 = vunpack.c.l.b16 %v7813
    %v8151 = vunpack.c.h.b16 %v7813
    %v8152 = vunpack.c.l.b16 %v7814
    %v8153 = vunpack.c.h.b16 %v7814
    %v8154 = vunpack.c.l.b16 %v7815
    %v8155 = vunpack.c.h.b16 %v7815
    %v8156 = vunpack.c.l.b16 %v7816
    %v8157 = vunpack.c.h.b16 %v7816
    %v8158 = vunpack.c.l.b16 %v7817
    %v8159 = vunpack.c.h.b16 %v7817
    %v8160 = vunpack.c.l.b16 %v7818
    %v8161 = vunpack.c.h.b16 %v7818
    %v8162 = vunpack.c.l.b16 %v7819
    %v8163 = vunpack.c.h.b16 %v7819
    %v8164 = vunpack.c.l.b16 %v7820
    %v8165 = vunpack.c.h.b16 %v7820
    %v8166 = vunpack.c.l.b16 %v7821
    %v8167 = vunpack.c.h.b16 %v7821
    %v8168 = vunpack.c.l.b16 %v7822
    %v8169 = vunpack.c.h.b16 %v7822
    %v8170 = vunpack.c.l.b16 %v7823
    %v8171 = vunpack.c.h.b16 %v7823
    %v8172 = vunpack.c.l.b16 %v7824
    %v8173 = vunpack.c.h.b16 %v7824
    %v8174 = vunpack.c.l.b16 %v7825
    %v8175 = vunpack.c.h.b16 %v7825
    %v8176 = vunpack.c.l.b16 %v7826
    %v8177 = vunpack.c.h.b16 %v7826
    %v8178 = vunpack.c.l.b16 %v7827
    %v8179 = vunpack.c.h.b16 %v7827
    %v8180 = vunpack.c.l.b16 %v7828
    %v8181 = vunpack.c.h.b16 %v7828
    %v8182 = vunpack.c.l.b16 %v7829
    %v8183 = vunpack.c.h.b16 %v7829
    %v8184 = vunpack.c.l.b16 %v7830
    %v8185 = vunpack.c.h.b16 %v7830
    %v8186 = vunpack.c.l.b16 %v7831
    %v8187 = vunpack.c.h.b16 %v7831
    %v8188 = vunpack.c.l.b16 %v7832
    %v8189 = vunpack.c.h.b16 %v7832
    %v8190 = vunpack.c.l.b16 %v7833
    %v8191 = vunpack.c.h.b16 %v7833
    %v8192 = vunpack.c.l.b16 %v7834
    %v8193 = vunpack.c.h.b16 %v7834
    %v8194 = vunpack.c.l.b16 %v7835
    %v8195 = vunpack.c.h.b16 %v7835
    %v8196 = vunpack.c.l.b16 %v7836
    %v8197 = vunpack.c.h.b16 %v7836
    %v8198 = vunpack.c.l.b16 %v7837
    %v8199 = vunpack.c.h.b16 %v7837
    %v8200 = vunpack.c.l.b16 %v7838
    %v8201 = vunpack.c.h.b16 %v7838
    %v8202 = vunpack.c.l.b16 %v7839
    %v8203 = vunpack.c.h.b16 %v7839
    %v8204 = vunpack.c.l.b16 %v7840
    %v8205 = vunpack.c.h.b16 %v7840
    %v8206 = vunpack.c.l.b16 %v7841
    %v8207 = vunpack.c.h.b16 %v7841
    %v8208 = vunpack.c.l.b16 %v7842
    %v8209 = vunpack.c.h.b16 %v7842
    %v8210 = vunpack.c.l.b16 %v7843
    %v8211 = vunpack.c.h.b16 %v7843
    %v8212 = vunpack.c.l.b16 %v7844
    %v8213 = vunpack.c.h.b16 %v7844
    %v8214 = vunpack.c.l.b16 %v7845
    %v8215 = vunpack.c.h.b16 %v7845
    %v8216 = vunpack.c.l.b16 %v7846
    %v8217 = vunpack.c.h.b16 %v7846
    %v8218 = vunpack.c.l.b16 %v7847
    %v8219 = vunpack.c.h.b16 %v7847
    %v8220 = vunpack.c.l.b16 %v7848
    %v8221 = vunpack.c.h.b16 %v7848
    %v8222 = vunpack.c.l.b16 %v7849
    %v8223 = vunpack.c.h.b16 %v7849
    %v8224 = vunpack.c.l.b16 %v7850
    %v8225 = vunpack.c.h.b16 %v7850
    %v8226 = vunpack.c.l.b16 %v7851
    %v8227 = vunpack.c.h.b16 %v7851
    %v8228 = vunpack.c.l.b16 %v7852
    %v8229 = vunpack.c.h.b16 %v7852
    %v8230 = vunpack.c.l.b16 %v7853
    %v8231 = vunpack.c.h.b16 %v7853
    %v8232 = vunpack.c.l.b16 %v7854
    %v8233 = vunpack.c.h.b16 %v7854
    %v8234 = vunpack.c.l.b16 %v7855
    %v8235 = vunpack.c.h.b16 %v7855
    %v8236 = vunpack.c.l.b16 %v7856
    %v8237 = vunpack.c.h.b16 %v7856
    %v8238 = vunpack.c.l.b16 %v7857
    %v8239 = vunpack.c.h.b16 %v7857
    %v8240 = vunpack.c.l.b16 %v7858
    %v8241 = vunpack.c.h.b16 %v7858
    %v8242 = vunpack.c.l.b16 %v7859
    %v8243 = vunpack.c.h.b16 %v7859
    %v8244 = vpack.c.b16 %v7996, %v7988
    %v8245 = vpack.c.b16 %v7997, %v7989
    %v8246 = vpack.c.b16 %v7998, %v7990
    %v8247 = vpack.c.b16 %v7999, %v7991
    %v8248 = vpack.c.b16 %v8000, %v7992
    %v8249 = vpack.c.b16 %v8001, %v7993
    %v8250 = vpack.c.b16 %v8002, %v7994
    %v8251 = vpack.c.b16 %v8003, %v7995
    %v8252 = vpack.c.b16 %v8012, %v8004
    %v8253 = vpack.c.b16 %v8013, %v8005
    %v8254 = vpack.c.b16 %v8014, %v8006
    %v8255 = vpack.c.b16 %v8015, %v8007
    %v8256 = vpack.c.b16 %v8016, %v8008
    %v8257 = vpack.c.b16 %v8017, %v8009
    %v8258 = vpack.c.b16 %v8018, %v8010
    %v8259 = vpack.c.b16 %v8019, %v8011
    %v8260 = vpack.c.b16 %v8028, %v8020
    %v8261 = vpack.c.b16 %v8029, %v8021
    %v8262 = vpack.c.b16 %v8030, %v8022
    %v8263 = vpack.c.b16 %v8031, %v8023
    %v8264 = vpack.c.b16 %v8032, %v8024
    %v8265 = vpack.c.b16 %v8033, %v8025
    %v8266 = vpack.c.b16 %v8034, %v8026
    %v8267 = vpack.c.b16 %v8035, %v8027
    %v8268 = vpack.c.b16 %v8044, %v8036
    %v8269 = vpack.c.b16 %v8045, %v8037
    %v8270 = vpack.c.b16 %v8046, %v8038
    %v8271 = vpack.c.b16 %v8047, %v8039
    %v8272 = vpack.c.b16 %v8048, %v8040
    %v8273 = vpack.c.b16 %v8049, %v8041
    %v8274 = vpack.c.b16 %v8050, %v8042
    %v8275 = vpack.c.b16 %v8051, %v8043
    %v8276 = vpack.c.b16 %v8060, %v8052
    %v8277 = vpack.c.b16 %v8061, %v8053
    %v8278 = vpack.c.b16 %v8062, %v8054
    %v8279 = vpack.c.b16 %v8063, %v8055
    %v8280 = vpack.c.b16 %v8064, %v8056
    %v8281 = vpack.c.b16 %v8065, %v8057
    %v8282 = vpack.c.b16 %v8066, %v8058
    %v8283 = vpack.c.b16 %v8067, %v8059
    %v8284 = vpack.c.b16 %v8076, %v8068
    %v8285 = vpack.c.b16 %v8077, %v8069
    %v8286 = vpack.c.b16 %v8078, %v8070
    %v8287 = vpack.c.b16 %v8079, %v8071
    %v8288 = vpack.c.b16 %v8080, %v8072
    %v8289 = vpack.c.b16 %v8081, %v8073
    %v8290 = vpack.c.b16 %v8082, %v8074
    %v8291 = vpack.c.b16 %v8083, %v8075
    %v8292 = vpack.c.b16 %v8092, %v8084
    %v8293 = vpack.c.b16 %v8093, %v8085
    %v8294 = vpack.c.b16 %v8094, %v8086
    %v8295 = vpack.c.b16 %v8095, %v8087
    %v8296 = vpack.c.b16 %v8096, %v8088
    %v8297 = vpack.c.b16 %v8097, %v8089
    %v8298 = vpack.c.b16 %v8098, %v8090
    %v8299 = vpack.c.b16 %v8099, %v8091
    %v8300 = vpack.c.b16 %v8108, %v8100
    %v8301 = vpack.c.b16 %v8109, %v8101
    %v8302 = vpack.c.b16 %v8110, %v8102
    %v8303 = vpack.c.b16 %v8111, %v8103
    %v8304 = vpack.c.b16 %v8112, %v8104
    %v8305 = vpack.c.b16 %v8113, %v8105
    %v8306 = vpack.c.b16 %v8114, %v8106
    %v8307 = vpack.c.b16 %v8115, %v8107
    %v8308 = vpack.c.b16 %v8124, %v8116
    %v8309 = vpack.c.b16 %v8125, %v8117
    %v8310 = vpack.c.b16 %v8126, %v8118
    %v8311 = vpack.c.b16 %v8127, %v8119
    %v8312 = vpack.c.b16 %v8128, %v8120
    %v8313 = vpack.c.b16 %v8129, %v8121
    %v8314 = vpack.c.b16 %v8130, %v8122
    %v8315 = vpack.c.b16 %v8131, %v8123
    %v8316 = vpack.c.b16 %v8140, %v8132
    %v8317 = vpack.c.b16 %v8141, %v8133
    %v8318 = vpack.c.b16 %v8142, %v8134
    %v8319 = vpack.c.b16 %v8143, %v8135
    %v8320 = vpack.c.b16 %v8144, %v8136
    %v8321 = vpack.c.b16 %v8145, %v8137
    %v8322 = vpack.c.b16 %v8146, %v8138
    %v8323 = vpack.c.b16 %v8147, %v8139
    %v8324 = vpack.c.b16 %v8156, %v8148
    %v8325 = vpack.c.b16 %v8157, %v8149
    %v8326 = vpack.c.b16 %v8158, %v8150
    %v8327 = vpack.c.b16 %v8159, %v8151
    %v8328 = vpack.c.b16 %v8160, %v8152
    %v8329 = vpack.c.b16 %v8161, %v8153
    %v8330 = vpack.c.b16 %v8162, %v8154
    %v8331 = vpack.c.b16 %v8163, %v8155
    %v8332 = vpack.c.b16 %v8172, %v8164
    %v8333 = vpack.c.b16 %v8173, %v8165
    %v8334 = vpack.c.b16 %v8174, %v8166
    %v8335 = vpack.c.b16 %v8175, %v8167
    %v8336 = vpack.c.b16 %v8176, %v8168
    %v8337 = vpack.c.b16 %v8177, %v8169
    %v8338 = vpack.c.b16 %v8178, %v8170
    %v8339 = vpack.c.b16 %v8179, %v8171
    %v8340 = vpack.c.b16 %v8188, %v8180
    %v8341 = vpack.c.b16 %v8189, %v8181
    %v8342 = vpack.c.b16 %v8190, %v8182
    %v8343 = vpack.c.b16 %v8191, %v8183
    %v8344 = vpack.c.b16 %v8192, %v8184
    %v8345 = vpack.c.b16 %v8193, %v8185
    %v8346 = vpack.c.b16 %v8194, %v8186
    %v8347 = vpack.c.b16 %v8195, %v8187
    %v8348 = vpack.c.b16 %v8204, %v8196
    %v8349 = vpack.c.b16 %v8205, %v8197
    %v8350 = vpack.c.b16 %v8206, %v8198
    %v8351 = vpack.c.b16 %v8207, %v8199
    %v8352 = vpack.c.b16 %v8208, %v8200
    %v8353 = vpack.c.b16 %v8209, %v8201
    %v8354 = vpack.c.b16 %v8210, %v8202
    %v8355 = vpack.c.b16 %v8211, %v8203
    %v8356 = vpack.c.b16 %v8220, %v8212
    %v8357 = vpack.c.b16 %v8221, %v8213
    %v8358 = vpack.c.b16 %v8222, %v8214
    %v8359 = vpack.c.b16 %v8223, %v8215
    %v8360 = vpack.c.b16 %v8224, %v8216
    %v8361 = vpack.c.b16 %v8225, %v8217
    %v8362 = vpack.c.b16 %v8226, %v8218
    %v8363 = vpack.c.b16 %v8227, %v8219
    %v8364 = vpack.c.b16 %v8236, %v8228
    %v8365 = vpack.c.b16 %v8237, %v8229
    %v8366 = vpack.c.b16 %v8238, %v8230
    %v8367 = vpack.c.b16 %v8239, %v8231
    %v8368 = vpack.c.b16 %v8240, %v8232
    %v8369 = vpack.c.b16 %v8241, %v8233
    %v8370 = vpack.c.b16 %v8242, %v8234
    %v8371 = vpack.c.b16 %v8243, %v8235
    %8500 = vmatpush.bf16.msra.mxu0 %v8300
    %8501 = vmatpush.bf16.msra.mxu0 %v8292
    %8502 = vmatpush.bf16.msra.mxu0 %v8284
    %8503 = vmatpush.bf16.msra.mxu0 %v8276
    %8504 = vmatpush.bf16.msra.mxu0 %v8268
    %8505 = vmatpush.bf16.msra.mxu0 %v8260
    %8506 = vmatpush.bf16.msra.mxu0 %v8252
    %8507 = vmatpush.bf16.msra.mxu0 %v8244
    %8508 = vmatmul.bf16.gmra.mxu0 %v7730
    %v8509 = vpop.f32.mrf.mxu0
    %v8510 = vadd.f32 0.0, %v8509
    %v8511 = vpop.f32.mrf.mxu0
    %8512 = vdwg.mxu0
    %8513 = vmatpush.bf16.msra.mxu0 %v8364
    %8514 = vmatpush.bf16.msra.mxu0 %v8356
    %8515 = vmatpush.bf16.msra.mxu0 %v8348
    %8516 = vmatpush.bf16.msra.mxu0 %v8340
    %8517 = vmatpush.bf16.msra.mxu0 %v8332
    %8518 = vmatpush.bf16.msra.mxu0 %v8324
    %8519 = vmatpush.bf16.msra.mxu0 %v8316
    %8520 = vmatpush.bf16.msra.mxu0 %v8308
    %8521 = vmatmul.bf16.gmra.mxu0 %v7731
    %v8522 = vpop.f32.mrf.mxu0
    %v8523 = vadd.f32 %v8510, %v8522
    %v8524 = vpop.f32.mrf.mxu0
    %8525 = vdwg.mxu0
    %8526 = vmatpush.bf16.msra.mxu0 %v8301
    %8527 = vmatpush.bf16.msra.mxu0 %v8293
    %8528 = vmatpush.bf16.msra.mxu0 %v8285
    %8529 = vmatpush.bf16.msra.mxu0 %v8277
    %8530 = vmatpush.bf16.msra.mxu0 %v8269
    %8531 = vmatpush.bf16.msra.mxu0 %v8261
    %8532 = vmatpush.bf16.msra.mxu0 %v8253
    %8533 = vmatpush.bf16.msra.mxu0 %v8245
    %8534 = vmatmul.bf16.gmra.mxu0 %v7730
    %v8535 = vpop.f32.mrf.mxu0
    %v8536 = vadd.f32 0.0, %v8535
    %v8537 = vpop.f32.mrf.mxu0
    %8538 = vdwg.mxu0
    %8539 = vmatpush.bf16.msra.mxu0 %v8365
    %8540 = vmatpush.bf16.msra.mxu0 %v8357
    %8541 = vmatpush.bf16.msra.mxu0 %v8349
    %8542 = vmatpush.bf16.msra.mxu0 %v8341
    %8543 = vmatpush.bf16.msra.mxu0 %v8333
    %8544 = vmatpush.bf16.msra.mxu0 %v8325
    %8545 = vmatpush.bf16.msra.mxu0 %v8317
    %8546 = vmatpush.bf16.msra.mxu0 %v8309
    %8547 = vmatmul.bf16.gmra.mxu0 %v7731
    %v8548 = vpop.f32.mrf.mxu0
    %v8549 = vadd.f32 %v8536, %v8548
    %v8550 = vpop.f32.mrf.mxu0
    %8551 = vdwg.mxu0
    %8552 = vmatpush.bf16.msra.mxu0 %v8302
    %8553 = vmatpush.bf16.msra.mxu0 %v8294
    %8554 = vmatpush.bf16.msra.mxu0 %v8286
    %8555 = vmatpush.bf16.msra.mxu0 %v8278
    %8556 = vmatpush.bf16.msra.mxu0 %v8270
    %8557 = vmatpush.bf16.msra.mxu0 %v8262
    %8558 = vmatpush.bf16.msra.mxu0 %v8254
    %8559 = vmatpush.bf16.msra.mxu0 %v8246
    %8560 = vmatmul.bf16.gmra.mxu0 %v7730
    %v8561 = vpop.f32.mrf.mxu0
    %v8562 = vadd.f32 0.0, %v8561
    %v8563 = vpop.f32.mrf.mxu0
    %8564 = vdwg.mxu0
    %8565 = vmatpush.bf16.msra.mxu0 %v8366
    %8566 = vmatpush.bf16.msra.mxu0 %v8358
    %8567 = vmatpush.bf16.msra.mxu0 %v8350
    %8568 = vmatpush.bf16.msra.mxu0 %v8342
    %8569 = vmatpush.bf16.msra.mxu0 %v8334
    %8570 = vmatpush.bf16.msra.mxu0 %v8326
    %8571 = vmatpush.bf16.msra.mxu0 %v8318
    %8572 = vmatpush.bf16.msra.mxu0 %v8310
    %8573 = vmatmul.bf16.gmra.mxu0 %v7731
    %v8574 = vpop.f32.mrf.mxu0
    %v8575 = vadd.f32 %v8562, %v8574
    %v8576 = vpop.f32.mrf.mxu0
    %8577 = vdwg.mxu0
    %8578 = vmatpush.bf16.msra.mxu0 %v8303
    %8579 = vmatpush.bf16.msra.mxu0 %v8295
    %8580 = vmatpush.bf16.msra.mxu0 %v8287
    %8581 = vmatpush.bf16.msra.mxu0 %v8279
    %8582 = vmatpush.bf16.msra.mxu0 %v8271
    %8583 = vmatpush.bf16.msra.mxu0 %v8263
    %8584 = vmatpush.bf16.msra.mxu0 %v8255
    %8585 = vmatpush.bf16.msra.mxu0 %v8247
    %8586 = vmatmul.bf16.gmra.mxu0 %v7730
    %v8587 = vpop.f32.mrf.mxu0
    %v8588 = vadd.f32 0.0, %v8587
    %v8589 = vpop.f32.mrf.mxu0
    %8590 = vdwg.mxu0
    %8591 = vmatpush.bf16.msra.mxu0 %v8367
    %8592 = vmatpush.bf16.msra.mxu0 %v8359
    %8593 = vmatpush.bf16.msra.mxu0 %v8351
    %8594 = vmatpush.bf16.msra.mxu0 %v8343
    %8595 = vmatpush.bf16.msra.mxu0 %v8335
    %8596 = vmatpush.bf16.msra.mxu0 %v8327
    %8597 = vmatpush.bf16.msra.mxu0 %v8319
    %8598 = vmatpush.bf16.msra.mxu0 %v8311
    %8599 = vmatmul.bf16.gmra.mxu0 %v7731
    %v8600 = vpop.f32.mrf.mxu0
    %v8601 = vadd.f32 %v8588, %v8600
    %v8602 = vpop.f32.mrf.mxu0
    %8603 = vdwg.mxu0
    %8604 = vmatpush.bf16.msra.mxu0 %v8304
    %8605 = vmatpush.bf16.msra.mxu0 %v8296
    %8606 = vmatpush.bf16.msra.mxu0 %v8288
    %8607 = vmatpush.bf16.msra.mxu0 %v8280
    %8608 = vmatpush.bf16.msra.mxu0 %v8272
    %8609 = vmatpush.bf16.msra.mxu0 %v8264
    %8610 = vmatpush.bf16.msra.mxu0 %v8256
    %8611 = vmatpush.bf16.msra.mxu0 %v8248
    %8612 = vmatmul.bf16.gmra.mxu0 %v7730
    %v8613 = vpop.f32.mrf.mxu0
    %v8614 = vadd.f32 0.0, %v8613
    %v8615 = vpop.f32.mrf.mxu0
    %8616 = vdwg.mxu0
    %8617 = vmatpush.bf16.msra.mxu0 %v8368
    %8618 = vmatpush.bf16.msra.mxu0 %v8360
    %8619 = vmatpush.bf16.msra.mxu0 %v8352
    %8620 = vmatpush.bf16.msra.mxu0 %v8344
    %8621 = vmatpush.bf16.msra.mxu0 %v8336
    %8622 = vmatpush.bf16.msra.mxu0 %v8328
    %8623 = vmatpush.bf16.msra.mxu0 %v8320
    %8624 = vmatpush.bf16.msra.mxu0 %v8312
    %8625 = vmatmul.bf16.gmra.mxu0 %v7731
    %v8626 = vpop.f32.mrf.mxu0
    %v8627 = vadd.f32 %v8614, %v8626
    %v8628 = vpop.f32.mrf.mxu0
    %8629 = vdwg.mxu0
    %8630 = vmatpush.bf16.msra.mxu0 %v8305
    %8631 = vmatpush.bf16.msra.mxu0 %v8297
    %8632 = vmatpush.bf16.msra.mxu0 %v8289
    %8633 = vmatpush.bf16.msra.mxu0 %v8281
    %8634 = vmatpush.bf16.msra.mxu0 %v8273
    %8635 = vmatpush.bf16.msra.mxu0 %v8265
    %8636 = vmatpush.bf16.msra.mxu0 %v8257
    %8637 = vmatpush.bf16.msra.mxu0 %v8249
    %8638 = vmatmul.bf16.gmra.mxu0 %v7730
    %v8639 = vpop.f32.mrf.mxu0
    %v8640 = vadd.f32 0.0, %v8639
    %v8641 = vpop.f32.mrf.mxu0
    %8642 = vdwg.mxu0
    %8643 = vmatpush.bf16.msra.mxu0 %v8369
    %8644 = vmatpush.bf16.msra.mxu0 %v8361
    %8645 = vmatpush.bf16.msra.mxu0 %v8353
    %8646 = vmatpush.bf16.msra.mxu0 %v8345
    %8647 = vmatpush.bf16.msra.mxu0 %v8337
    %8648 = vmatpush.bf16.msra.mxu0 %v8329
    %8649 = vmatpush.bf16.msra.mxu0 %v8321
    %8650 = vmatpush.bf16.msra.mxu0 %v8313
    %8651 = vmatmul.bf16.gmra.mxu0 %v7731
    %v8652 = vpop.f32.mrf.mxu0
    %v8653 = vadd.f32 %v8640, %v8652
    %v8654 = vpop.f32.mrf.mxu0
    %8655 = vdwg.mxu0
    %8656 = vmatpush.bf16.msra.mxu0 %v8306
    %8657 = vmatpush.bf16.msra.mxu0 %v8298
    %8658 = vmatpush.bf16.msra.mxu0 %v8290
    %8659 = vmatpush.bf16.msra.mxu0 %v8282
    %8660 = vmatpush.bf16.msra.mxu0 %v8274
    %8661 = vmatpush.bf16.msra.mxu0 %v8266
    %8662 = vmatpush.bf16.msra.mxu0 %v8258
    %8663 = vmatpush.bf16.msra.mxu0 %v8250
    %8664 = vmatmul.bf16.gmra.mxu0 %v7730
    %v8665 = vpop.f32.mrf.mxu0
    %v8666 = vadd.f32 0.0, %v8665
    %v8667 = vpop.f32.mrf.mxu0
    %8668 = vdwg.mxu0
    %8669 = vmatpush.bf16.msra.mxu0 %v8370
    %8670 = vmatpush.bf16.msra.mxu0 %v8362
    %8671 = vmatpush.bf16.msra.mxu0 %v8354
    %8672 = vmatpush.bf16.msra.mxu0 %v8346
    %8673 = vmatpush.bf16.msra.mxu0 %v8338
    %8674 = vmatpush.bf16.msra.mxu0 %v8330
    %8675 = vmatpush.bf16.msra.mxu0 %v8322
    %8676 = vmatpush.bf16.msra.mxu0 %v8314
    %8677 = vmatmul.bf16.gmra.mxu0 %v7731
    %v8678 = vpop.f32.mrf.mxu0
    %v8679 = vadd.f32 %v8666, %v8678
    %v8680 = vpop.f32.mrf.mxu0
    %8681 = vdwg.mxu0
    %8682 = vmatpush.bf16.msra.mxu0 %v8307
    %8683 = vmatpush.bf16.msra.mxu0 %v8299
    %8684 = vmatpush.bf16.msra.mxu0 %v8291
    %8685 = vmatpush.bf16.msra.mxu0 %v8283
    %8686 = vmatpush.bf16.msra.mxu0 %v8275
    %8687 = vmatpush.bf16.msra.mxu0 %v8267
    %8688 = vmatpush.bf16.msra.mxu0 %v8259
    %8689 = vmatpush.bf16.msra.mxu0 %v8251
    %8690 = vmatmul.bf16.gmra.mxu0 %v7730
    %v8691 = vpop.f32.mrf.mxu0
    %v8692 = vadd.f32 0.0, %v8691
    %v8693 = vpop.f32.mrf.mxu0
    %8694 = vdwg.mxu0
    %8695 = vmatpush.bf16.msra.mxu0 %v8371
    %8696 = vmatpush.bf16.msra.mxu0 %v8363
    %8697 = vmatpush.bf16.msra.mxu0 %v8355
    %8698 = vmatpush.bf16.msra.mxu0 %v8347
    %8699 = vmatpush.bf16.msra.mxu0 %v8339
    %8700 = vmatpush.bf16.msra.mxu0 %v8331
    %8701 = vmatpush.bf16.msra.mxu0 %v8323
    %8702 = vmatpush.bf16.msra.mxu0 %v8315
    %8703 = vmatmul.bf16.gmra.mxu0 %v7731
    %v8704 = vpop.f32.mrf.mxu0
    %v8705 = vadd.f32 %v8692, %v8704
    %v8706 = vpop.f32.mrf.mxu0
    %8707 = vdwg.mxu0
    %v8708 = vadd.f32 %v7722, %v8523
    %v8709 = vadd.f32 %v7723, %v8549
    %v8710 = vadd.f32 %v7724, %v8575
    %v8711 = vadd.f32 %v7725, %v8601
    %v8712 = vadd.f32 %v7726, %v8627
    %v8713 = vadd.f32 %v7727, %v8653
    %v8714 = vadd.f32 %v7728, %v8679
    %v8715 = vadd.f32 %v7729, %v8705
    %v8716 = vxor.u32 %v8708, 2147483648
    %v8717 = vxor.u32 %v8709, 2147483648
    %v8718 = vmul.f32 %v8716, 1.442695
    %v8719 = vpow.pop %v8718
    %v8720 = vmul.f32 %v8717, 1.442695
    %v8721 = vpow.pop %v8720
    %v8722 = vadd.f32 %v8719, 1.0
    %v8723 = vadd.f32 %v8721, 1.0
    %v8724 = vrcp.pop %v8722
    %v8725 = vmul.f32 %v8722, %v8724
    %v8726 = vsub.f32 1.0, %v8725
    %v8727 = vmul.f32 %v8724, %v8726
    %v8728 = vadd.f32 %v8724, %v8727
    %vm8729 = vweird.f32 %v8722
    %vm8730 = vweird.f32 %v8724
    %vm8731 = vmor %vm8729, %vm8730
    %v8732 = vsel %vm8731, %v8724, %v8728
    %v8733 = vand.u32 2147483647, %v8722
    %vm8734 = vcmp.eq.f32.partialorder %v8733, 8.507059e+37
    %v8735 = vand.u32 %v8722, 2147483648
    %v8736 = vor.u32 1.1754944e-38, %v8735
    %v8737 = vsel %vm8734, %v8736, %v8732
    %v8738 = vmul.f32 1.0, %v8737
    %v8739 = vrcp.pop %v8723
    %v8740 = vmul.f32 %v8723, %v8739
    %v8741 = vsub.f32 1.0, %v8740
    %v8742 = vmul.f32 %v8739, %v8741
    %v8743 = vadd.f32 %v8739, %v8742
    %vm8744 = vweird.f32 %v8723
    %vm8745 = vweird.f32 %v8739
    %vm8746 = vmor %vm8744, %vm8745
    %v8747 = vsel %vm8746, %v8739, %v8743
    %v8748 = vand.u32 2147483647, %v8723
    %vm8749 = vcmp.eq.f32.partialorder %v8748, 8.507059e+37
    %v8750 = vand.u32 %v8723, 2147483648
    %v8751 = vor.u32 1.1754944e-38, %v8750
    %v8752 = vsel %vm8749, %v8751, %v8747
    %v8753 = vmul.f32 1.0, %v8752
    %v8754 = vxor.u32 %v8710, 2147483648
    %v8755 = vxor.u32 %v8711, 2147483648
    %v8756 = vmul.f32 %v8754, 1.442695
    %v8757 = vpow.pop %v8756
    %v8758 = vmul.f32 %v8755, 1.442695
    %v8759 = vpow.pop %v8758
    %v8760 = vadd.f32 %v8757, 1.0
    %v8761 = vadd.f32 %v8759, 1.0
    %v8762 = vrcp.pop %v8760
    %v8763 = vmul.f32 %v8760, %v8762
    %v8764 = vsub.f32 1.0, %v8763
    %v8765 = vmul.f32 %v8762, %v8764
    %v8766 = vadd.f32 %v8762, %v8765
    %vm8767 = vweird.f32 %v8760
    %vm8768 = vweird.f32 %v8762
    %vm8769 = vmor %vm8767, %vm8768
    %v8770 = vsel %vm8769, %v8762, %v8766
    %v8771 = vand.u32 2147483647, %v8760
    %vm8772 = vcmp.eq.f32.partialorder %v8771, 8.507059e+37
    %v8773 = vand.u32 %v8760, 2147483648
    %v8774 = vor.u32 1.1754944e-38, %v8773
    %v8775 = vsel %vm8772, %v8774, %v8770
    %v8776 = vmul.f32 1.0, %v8775
    %v8777 = vrcp.pop %v8761
    %v8778 = vmul.f32 %v8761, %v8777
    %v8779 = vsub.f32 1.0, %v8778
    %v8780 = vmul.f32 %v8777, %v8779
    %v8781 = vadd.f32 %v8777, %v8780
    %vm8782 = vweird.f32 %v8761
    %vm8783 = vweird.f32 %v8777
    %vm8784 = vmor %vm8782, %vm8783
    %v8785 = vsel %vm8784, %v8777, %v8781
    %v8786 = vand.u32 2147483647, %v8761
    %vm8787 = vcmp.eq.f32.partialorder %v8786, 8.507059e+37
    %v8788 = vand.u32 %v8761, 2147483648
    %v8789 = vor.u32 1.1754944e-38, %v8788
    %v8790 = vsel %vm8787, %v8789, %v8785
    %v8791 = vmul.f32 1.0, %v8790
    %v8792 = vtanh.pop %v8712
    %v8793 = vtanh.pop %v8713
    %v8794 = vxor.u32 %v8714, 2147483648
    %v8795 = vxor.u32 %v8715, 2147483648
    %v8796 = vmul.f32 %v8794, 1.442695
    %v8797 = vpow.pop %v8796
    %v8798 = vmul.f32 %v8795, 1.442695
    %v8799 = vpow.pop %v8798
    %v8800 = vadd.f32 %v8797, 1.0
    %v8801 = vadd.f32 %v8799, 1.0
    %v8802 = vrcp.pop %v8800
    %v8803 = vmul.f32 %v8800, %v8802
    %v8804 = vsub.f32 1.0, %v8803
    %v8805 = vmul.f32 %v8802, %v8804
    %v8806 = vadd.f32 %v8802, %v8805
    %vm8807 = vweird.f32 %v8800
    %vm8808 = vweird.f32 %v8802
    %vm8809 = vmor %vm8807, %vm8808
    %v8810 = vsel %vm8809, %v8802, %v8806
    %v8811 = vand.u32 2147483647, %v8800
    %vm8812 = vcmp.eq.f32.partialorder %v8811, 8.507059e+37
    %v8813 = vand.u32 %v8800, 2147483648
    %v8814 = vor.u32 1.1754944e-38, %v8813
    %v8815 = vsel %vm8812, %v8814, %v8810
    %v8816 = vmul.f32 1.0, %v8815
    %v8817 = vrcp.pop %v8801
    %v8818 = vmul.f32 %v8801, %v8817
    %v8819 = vsub.f32 1.0, %v8818
    %v8820 = vmul.f32 %v8817, %v8819
    %v8821 = vadd.f32 %v8817, %v8820
    %vm8822 = vweird.f32 %v8801
    %vm8823 = vweird.f32 %v8817
    %vm8824 = vmor %vm8822, %vm8823
    %v8825 = vsel %vm8824, %v8817, %v8821
    %v8826 = vand.u32 2147483647, %v8801
    %vm8827 = vcmp.eq.f32.partialorder %v8826, 8.507059e+37
    %v8828 = vand.u32 %v8801, 2147483648
    %v8829 = vor.u32 1.1754944e-38, %v8828
    %v8830 = vsel %vm8827, %v8829, %v8825
    %v8831 = vmul.f32 1.0, %v8830
    %v8832 = vmul.f32 %v8776, %v7713
    %v8833 = vmul.f32 %v8791, %v7714
    %v8834 = vmul.f32 %v8738, %v8792
    %v8835 = vmul.f32 %v8753, %v8793
    %v8836 = vadd.f32 %v8832, %v8834
    %v8837 = vadd.f32 %v8833, %v8835
    %v8838 = vtanh.pop %v8836
    %v8839 = vtanh.pop %v8837
    %v8840 = vmul.f32 %v8816, %v8838
    %v8841 = vmul.f32 %v8831, %v8839
    %s8842 = sadd.s32 %s829, 6
    %v8843 = vstv %s8842
    %vm8844 = vcmp.lt.s32.totalorder %v8843, %v828
    %v8845 = vsel %vm8844, 1, 0
    %8846 = vset.pattern.permute.xlu0 0
    %8847 = vperm.xlu0 %8846, %v8845
    %v8848 = vpop.permute.xlu0 %8847
    %vm8849 = vcmp.eq.s32.totalorder %v8848, 1
    %v8850 = vsel %vm8849, %v8840, %v7711
    %v8851 = vsel %vm8849, %v8841, %v7712
    %8852 = vst [vmem:[#allocation3] sm:$0xff] %v8850
    %8853 = vst [vmem:[#allocation3 + $0x8] sm:$0xff] %v8851
    %v8854 = vsel %vm8849, %v8836, %v7713
    %v8855 = vsel %vm8849, %v8837, %v7714
    %8856 = vst [vmem:[#allocation4] sm:$0xff] %v8854
    %8857 = vst [vmem:[#allocation4 + $0x8] sm:$0xff] %v8855
    %v8858 = vld [vmem:[#allocation3] sm:$0xff]
    %v8859 = vld [vmem:[#allocation3 + $0x8] sm:$0xff]
    %v8860 = vld [vmem:[#allocation4] sm:$0xff]
    %v8861 = vld [vmem:[#allocation4 + $0x8] sm:$0xff]
    %s8862 = smul.u32 7, 8
    %s8863 = smul.addr %s8862, 4
    %s8864 = scalar_lea.vmem [#allocation2], %s8863
    %v8865 = vld [vmem:[%s8864] sm:$0xff]
    %v8866 = vld [vmem:[%s8864 + $0x8] sm:$0xff]
    %v8867 = vld [vmem:[%s8864 + $0x10] sm:$0xff]
    %v8868 = vld [vmem:[%s8864 + $0x18] sm:$0xff]
    %v8869 = vunpack.c.l.bf16 %v8865
    %v8870 = vunpack.c.h.bf16 %v8865
    %v8871 = vunpack.c.l.bf16 %v8866
    %v8872 = vunpack.c.h.bf16 %v8866
    %v8873 = vunpack.c.l.bf16 %v8867
    %v8874 = vunpack.c.h.bf16 %v8867
    %v8875 = vunpack.c.l.bf16 %v8868
    %v8876 = vunpack.c.h.bf16 %v8868
    %v8877 = vpack.c.bf16 %v8858, %v8858
    %v8878 = vpack.c.bf16 %v8859, %v8859
    %v8879 = vld [vmem:[#allocation10] sm:$0xff]
    %v8880 = vld [vmem:[#allocation10 + $0x8] sm:$0xff]
    %v8881 = vld [vmem:[#allocation10 + $0x10] sm:$0xff]
    %v8882 = vld [vmem:[#allocation10 + $0x18] sm:$0xff]
    %v8883 = vld [vmem:[#allocation10 + $0x20] sm:$0xff]
    %v8884 = vld [vmem:[#allocation10 + $0x28] sm:$0xff]
    %v8885 = vld [vmem:[#allocation10 + $0x30] sm:$0xff]
    %v8886 = vld [vmem:[#allocation10 + $0x38] sm:$0xff]
    %v8887 = vld [vmem:[#allocation10 + $0x40] sm:$0xff]
    %v8888 = vld [vmem:[#allocation10 + $0x48] sm:$0xff]
    %v8889 = vld [vmem:[#allocation10 + $0x50] sm:$0xff]
    %v8890 = vld [vmem:[#allocation10 + $0x58] sm:$0xff]
    %v8891 = vld [vmem:[#allocation10 + $0x60] sm:$0xff]
    %v8892 = vld [vmem:[#allocation10 + $0x68] sm:$0xff]
    %v8893 = vld [vmem:[#allocation10 + $0x70] sm:$0xff]
    %v8894 = vld [vmem:[#allocation10 + $0x78] sm:$0xff]
    %v8895 = vld [vmem:[#allocation10 + $0x80] sm:$0xff]
    %v8896 = vld [vmem:[#allocation10 + $0x88] sm:$0xff]
    %v8897 = vld [vmem:[#allocation10 + $0x90] sm:$0xff]
    %v8898 = vld [vmem:[#allocation10 + $0x98] sm:$0xff]
    %v8899 = vld [vmem:[#allocation10 + $0xa0] sm:$0xff]
    %v8900 = vld [vmem:[#allocation10 + $0xa8] sm:$0xff]
    %v8901 = vld [vmem:[#allocation10 + $0xb0] sm:$0xff]
    %v8902 = vld [vmem:[#allocation10 + $0xb8] sm:$0xff]
    %v8903 = vld [vmem:[#allocation10 + $0xc0] sm:$0xff]
    %v8904 = vld [vmem:[#allocation10 + $0xc8] sm:$0xff]
    %v8905 = vld [vmem:[#allocation10 + $0xd0] sm:$0xff]
    %v8906 = vld [vmem:[#allocation10 + $0xd8] sm:$0xff]
    %v8907 = vld [vmem:[#allocation10 + $0xe0] sm:$0xff]
    %v8908 = vld [vmem:[#allocation10 + $0xe8] sm:$0xff]
    %v8909 = vld [vmem:[#allocation10 + $0xf0] sm:$0xff]
    %v8910 = vld [vmem:[#allocation10 + $0xf8] sm:$0xff]
    %v8911 = vld [vmem:[#allocation10 + $0x100] sm:$0xff]
    %v8912 = vld [vmem:[#allocation10 + $0x108] sm:$0xff]
    %v8913 = vld [vmem:[#allocation10 + $0x110] sm:$0xff]
    %v8914 = vld [vmem:[#allocation10 + $0x118] sm:$0xff]
    %v8915 = vld [vmem:[#allocation10 + $0x120] sm:$0xff]
    %v8916 = vld [vmem:[#allocation10 + $0x128] sm:$0xff]
    %v8917 = vld [vmem:[#allocation10 + $0x130] sm:$0xff]
    %v8918 = vld [vmem:[#allocation10 + $0x138] sm:$0xff]
    %v8919 = vld [vmem:[#allocation10 + $0x140] sm:$0xff]
    %v8920 = vld [vmem:[#allocation10 + $0x148] sm:$0xff]
    %v8921 = vld [vmem:[#allocation10 + $0x150] sm:$0xff]
    %v8922 = vld [vmem:[#allocation10 + $0x158] sm:$0xff]
    %v8923 = vld [vmem:[#allocation10 + $0x160] sm:$0xff]
    %v8924 = vld [vmem:[#allocation10 + $0x168] sm:$0xff]
    %v8925 = vld [vmem:[#allocation10 + $0x170] sm:$0xff]
    %v8926 = vld [vmem:[#allocation10 + $0x178] sm:$0xff]
    %v8927 = vld [vmem:[#allocation10 + $0x180] sm:$0xff]
    %v8928 = vld [vmem:[#allocation10 + $0x188] sm:$0xff]
    %v8929 = vld [vmem:[#allocation10 + $0x190] sm:$0xff]
    %v8930 = vld [vmem:[#allocation10 + $0x198] sm:$0xff]
    %v8931 = vld [vmem:[#allocation10 + $0x1a0] sm:$0xff]
    %v8932 = vld [vmem:[#allocation10 + $0x1a8] sm:$0xff]
    %v8933 = vld [vmem:[#allocation10 + $0x1b0] sm:$0xff]
    %v8934 = vld [vmem:[#allocation10 + $0x1b8] sm:$0xff]
    %v8935 = vld [vmem:[#allocation10 + $0x1c0] sm:$0xff]
    %v8936 = vld [vmem:[#allocation10 + $0x1c8] sm:$0xff]
    %v8937 = vld [vmem:[#allocation10 + $0x1d0] sm:$0xff]
    %v8938 = vld [vmem:[#allocation10 + $0x1d8] sm:$0xff]
    %v8939 = vld [vmem:[#allocation10 + $0x1e0] sm:$0xff]
    %v8940 = vld [vmem:[#allocation10 + $0x1e8] sm:$0xff]
    %v8941 = vld [vmem:[#allocation10 + $0x1f0] sm:$0xff]
    %v8942 = vld [vmem:[#allocation10 + $0x1f8] sm:$0xff]
    %v8943 = vld [vmem:[#allocation10 + $0x200] sm:$0xff]
    %v8944 = vld [vmem:[#allocation10 + $0x208] sm:$0xff]
    %v8945 = vld [vmem:[#allocation10 + $0x210] sm:$0xff]
    %v8946 = vld [vmem:[#allocation10 + $0x218] sm:$0xff]
    %v8947 = vld [vmem:[#allocation10 + $0x220] sm:$0xff]
    %v8948 = vld [vmem:[#allocation10 + $0x228] sm:$0xff]
    %v8949 = vld [vmem:[#allocation10 + $0x230] sm:$0xff]
    %v8950 = vld [vmem:[#allocation10 + $0x238] sm:$0xff]
    %v8951 = vld [vmem:[#allocation10 + $0x240] sm:$0xff]
    %v8952 = vld [vmem:[#allocation10 + $0x248] sm:$0xff]
    %v8953 = vld [vmem:[#allocation10 + $0x250] sm:$0xff]
    %v8954 = vld [vmem:[#allocation10 + $0x258] sm:$0xff]
    %v8955 = vld [vmem:[#allocation10 + $0x260] sm:$0xff]
    %v8956 = vld [vmem:[#allocation10 + $0x268] sm:$0xff]
    %v8957 = vld [vmem:[#allocation10 + $0x270] sm:$0xff]
    %v8958 = vld [vmem:[#allocation10 + $0x278] sm:$0xff]
    %v8959 = vld [vmem:[#allocation10 + $0x280] sm:$0xff]
    %v8960 = vld [vmem:[#allocation10 + $0x288] sm:$0xff]
    %v8961 = vld [vmem:[#allocation10 + $0x290] sm:$0xff]
    %v8962 = vld [vmem:[#allocation10 + $0x298] sm:$0xff]
    %v8963 = vld [vmem:[#allocation10 + $0x2a0] sm:$0xff]
    %v8964 = vld [vmem:[#allocation10 + $0x2a8] sm:$0xff]
    %v8965 = vld [vmem:[#allocation10 + $0x2b0] sm:$0xff]
    %v8966 = vld [vmem:[#allocation10 + $0x2b8] sm:$0xff]
    %v8967 = vld [vmem:[#allocation10 + $0x2c0] sm:$0xff]
    %v8968 = vld [vmem:[#allocation10 + $0x2c8] sm:$0xff]
    %v8969 = vld [vmem:[#allocation10 + $0x2d0] sm:$0xff]
    %v8970 = vld [vmem:[#allocation10 + $0x2d8] sm:$0xff]
    %v8971 = vld [vmem:[#allocation10 + $0x2e0] sm:$0xff]
    %v8972 = vld [vmem:[#allocation10 + $0x2e8] sm:$0xff]
    %v8973 = vld [vmem:[#allocation10 + $0x2f0] sm:$0xff]
    %v8974 = vld [vmem:[#allocation10 + $0x2f8] sm:$0xff]
    %v8975 = vld [vmem:[#allocation10 + $0x300] sm:$0xff]
    %v8976 = vld [vmem:[#allocation10 + $0x308] sm:$0xff]
    %v8977 = vld [vmem:[#allocation10 + $0x310] sm:$0xff]
    %v8978 = vld [vmem:[#allocation10 + $0x318] sm:$0xff]
    %v8979 = vld [vmem:[#allocation10 + $0x320] sm:$0xff]
    %v8980 = vld [vmem:[#allocation10 + $0x328] sm:$0xff]
    %v8981 = vld [vmem:[#allocation10 + $0x330] sm:$0xff]
    %v8982 = vld [vmem:[#allocation10 + $0x338] sm:$0xff]
    %v8983 = vld [vmem:[#allocation10 + $0x340] sm:$0xff]
    %v8984 = vld [vmem:[#allocation10 + $0x348] sm:$0xff]
    %v8985 = vld [vmem:[#allocation10 + $0x350] sm:$0xff]
    %v8986 = vld [vmem:[#allocation10 + $0x358] sm:$0xff]
    %v8987 = vld [vmem:[#allocation10 + $0x360] sm:$0xff]
    %v8988 = vld [vmem:[#allocation10 + $0x368] sm:$0xff]
    %v8989 = vld [vmem:[#allocation10 + $0x370] sm:$0xff]
    %v8990 = vld [vmem:[#allocation10 + $0x378] sm:$0xff]
    %v8991 = vld [vmem:[#allocation10 + $0x380] sm:$0xff]
    %v8992 = vld [vmem:[#allocation10 + $0x388] sm:$0xff]
    %v8993 = vld [vmem:[#allocation10 + $0x390] sm:$0xff]
    %v8994 = vld [vmem:[#allocation10 + $0x398] sm:$0xff]
    %v8995 = vld [vmem:[#allocation10 + $0x3a0] sm:$0xff]
    %v8996 = vld [vmem:[#allocation10 + $0x3a8] sm:$0xff]
    %v8997 = vld [vmem:[#allocation10 + $0x3b0] sm:$0xff]
    %v8998 = vld [vmem:[#allocation10 + $0x3b8] sm:$0xff]
    %v8999 = vld [vmem:[#allocation10 + $0x3c0] sm:$0xff]
    %v9000 = vld [vmem:[#allocation10 + $0x3c8] sm:$0xff]
    %v9001 = vld [vmem:[#allocation10 + $0x3d0] sm:$0xff]
    %v9002 = vld [vmem:[#allocation10 + $0x3d8] sm:$0xff]
    %v9003 = vld [vmem:[#allocation10 + $0x3e0] sm:$0xff]
    %v9004 = vld [vmem:[#allocation10 + $0x3e8] sm:$0xff]
    %v9005 = vld [vmem:[#allocation10 + $0x3f0] sm:$0xff]
    %v9006 = vld [vmem:[#allocation10 + $0x3f8] sm:$0xff]
    %v9135 = vunpack.c.l.b16 %v8879
    %v9136 = vunpack.c.h.b16 %v8879
    %v9137 = vunpack.c.l.b16 %v8880
    %v9138 = vunpack.c.h.b16 %v8880
    %v9139 = vunpack.c.l.b16 %v8881
    %v9140 = vunpack.c.h.b16 %v8881
    %v9141 = vunpack.c.l.b16 %v8882
    %v9142 = vunpack.c.h.b16 %v8882
    %v9143 = vunpack.c.l.b16 %v8883
    %v9144 = vunpack.c.h.b16 %v8883
    %v9145 = vunpack.c.l.b16 %v8884
    %v9146 = vunpack.c.h.b16 %v8884
    %v9147 = vunpack.c.l.b16 %v8885
    %v9148 = vunpack.c.h.b16 %v8885
    %v9149 = vunpack.c.l.b16 %v8886
    %v9150 = vunpack.c.h.b16 %v8886
    %v9151 = vunpack.c.l.b16 %v8887
    %v9152 = vunpack.c.h.b16 %v8887
    %v9153 = vunpack.c.l.b16 %v8888
    %v9154 = vunpack.c.h.b16 %v8888
    %v9155 = vunpack.c.l.b16 %v8889
    %v9156 = vunpack.c.h.b16 %v8889
    %v9157 = vunpack.c.l.b16 %v8890
    %v9158 = vunpack.c.h.b16 %v8890
    %v9159 = vunpack.c.l.b16 %v8891
    %v9160 = vunpack.c.h.b16 %v8891
    %v9161 = vunpack.c.l.b16 %v8892
    %v9162 = vunpack.c.h.b16 %v8892
    %v9163 = vunpack.c.l.b16 %v8893
    %v9164 = vunpack.c.h.b16 %v8893
    %v9165 = vunpack.c.l.b16 %v8894
    %v9166 = vunpack.c.h.b16 %v8894
    %v9167 = vunpack.c.l.b16 %v8895
    %v9168 = vunpack.c.h.b16 %v8895
    %v9169 = vunpack.c.l.b16 %v8896
    %v9170 = vunpack.c.h.b16 %v8896
    %v9171 = vunpack.c.l.b16 %v8897
    %v9172 = vunpack.c.h.b16 %v8897
    %v9173 = vunpack.c.l.b16 %v8898
    %v9174 = vunpack.c.h.b16 %v8898
    %v9175 = vunpack.c.l.b16 %v8899
    %v9176 = vunpack.c.h.b16 %v8899
    %v9177 = vunpack.c.l.b16 %v8900
    %v9178 = vunpack.c.h.b16 %v8900
    %v9179 = vunpack.c.l.b16 %v8901
    %v9180 = vunpack.c.h.b16 %v8901
    %v9181 = vunpack.c.l.b16 %v8902
    %v9182 = vunpack.c.h.b16 %v8902
    %v9183 = vunpack.c.l.b16 %v8903
    %v9184 = vunpack.c.h.b16 %v8903
    %v9185 = vunpack.c.l.b16 %v8904
    %v9186 = vunpack.c.h.b16 %v8904
    %v9187 = vunpack.c.l.b16 %v8905
    %v9188 = vunpack.c.h.b16 %v8905
    %v9189 = vunpack.c.l.b16 %v8906
    %v9190 = vunpack.c.h.b16 %v8906
    %v9191 = vunpack.c.l.b16 %v8907
    %v9192 = vunpack.c.h.b16 %v8907
    %v9193 = vunpack.c.l.b16 %v8908
    %v9194 = vunpack.c.h.b16 %v8908
    %v9195 = vunpack.c.l.b16 %v8909
    %v9196 = vunpack.c.h.b16 %v8909
    %v9197 = vunpack.c.l.b16 %v8910
    %v9198 = vunpack.c.h.b16 %v8910
    %v9199 = vunpack.c.l.b16 %v8911
    %v9200 = vunpack.c.h.b16 %v8911
    %v9201 = vunpack.c.l.b16 %v8912
    %v9202 = vunpack.c.h.b16 %v8912
    %v9203 = vunpack.c.l.b16 %v8913
    %v9204 = vunpack.c.h.b16 %v8913
    %v9205 = vunpack.c.l.b16 %v8914
    %v9206 = vunpack.c.h.b16 %v8914
    %v9207 = vunpack.c.l.b16 %v8915
    %v9208 = vunpack.c.h.b16 %v8915
    %v9209 = vunpack.c.l.b16 %v8916
    %v9210 = vunpack.c.h.b16 %v8916
    %v9211 = vunpack.c.l.b16 %v8917
    %v9212 = vunpack.c.h.b16 %v8917
    %v9213 = vunpack.c.l.b16 %v8918
    %v9214 = vunpack.c.h.b16 %v8918
    %v9215 = vunpack.c.l.b16 %v8919
    %v9216 = vunpack.c.h.b16 %v8919
    %v9217 = vunpack.c.l.b16 %v8920
    %v9218 = vunpack.c.h.b16 %v8920
    %v9219 = vunpack.c.l.b16 %v8921
    %v9220 = vunpack.c.h.b16 %v8921
    %v9221 = vunpack.c.l.b16 %v8922
    %v9222 = vunpack.c.h.b16 %v8922
    %v9223 = vunpack.c.l.b16 %v8923
    %v9224 = vunpack.c.h.b16 %v8923
    %v9225 = vunpack.c.l.b16 %v8924
    %v9226 = vunpack.c.h.b16 %v8924
    %v9227 = vunpack.c.l.b16 %v8925
    %v9228 = vunpack.c.h.b16 %v8925
    %v9229 = vunpack.c.l.b16 %v8926
    %v9230 = vunpack.c.h.b16 %v8926
    %v9231 = vunpack.c.l.b16 %v8927
    %v9232 = vunpack.c.h.b16 %v8927
    %v9233 = vunpack.c.l.b16 %v8928
    %v9234 = vunpack.c.h.b16 %v8928
    %v9235 = vunpack.c.l.b16 %v8929
    %v9236 = vunpack.c.h.b16 %v8929
    %v9237 = vunpack.c.l.b16 %v8930
    %v9238 = vunpack.c.h.b16 %v8930
    %v9239 = vunpack.c.l.b16 %v8931
    %v9240 = vunpack.c.h.b16 %v8931
    %v9241 = vunpack.c.l.b16 %v8932
    %v9242 = vunpack.c.h.b16 %v8932
    %v9243 = vunpack.c.l.b16 %v8933
    %v9244 = vunpack.c.h.b16 %v8933
    %v9245 = vunpack.c.l.b16 %v8934
    %v9246 = vunpack.c.h.b16 %v8934
    %v9247 = vunpack.c.l.b16 %v8935
    %v9248 = vunpack.c.h.b16 %v8935
    %v9249 = vunpack.c.l.b16 %v8936
    %v9250 = vunpack.c.h.b16 %v8936
    %v9251 = vunpack.c.l.b16 %v8937
    %v9252 = vunpack.c.h.b16 %v8937
    %v9253 = vunpack.c.l.b16 %v8938
    %v9254 = vunpack.c.h.b16 %v8938
    %v9255 = vunpack.c.l.b16 %v8939
    %v9256 = vunpack.c.h.b16 %v8939
    %v9257 = vunpack.c.l.b16 %v8940
    %v9258 = vunpack.c.h.b16 %v8940
    %v9259 = vunpack.c.l.b16 %v8941
    %v9260 = vunpack.c.h.b16 %v8941
    %v9261 = vunpack.c.l.b16 %v8942
    %v9262 = vunpack.c.h.b16 %v8942
    %v9263 = vunpack.c.l.b16 %v8943
    %v9264 = vunpack.c.h.b16 %v8943
    %v9265 = vunpack.c.l.b16 %v8944
    %v9266 = vunpack.c.h.b16 %v8944
    %v9267 = vunpack.c.l.b16 %v8945
    %v9268 = vunpack.c.h.b16 %v8945
    %v9269 = vunpack.c.l.b16 %v8946
    %v9270 = vunpack.c.h.b16 %v8946
    %v9271 = vunpack.c.l.b16 %v8947
    %v9272 = vunpack.c.h.b16 %v8947
    %v9273 = vunpack.c.l.b16 %v8948
    %v9274 = vunpack.c.h.b16 %v8948
    %v9275 = vunpack.c.l.b16 %v8949
    %v9276 = vunpack.c.h.b16 %v8949
    %v9277 = vunpack.c.l.b16 %v8950
    %v9278 = vunpack.c.h.b16 %v8950
    %v9279 = vunpack.c.l.b16 %v8951
    %v9280 = vunpack.c.h.b16 %v8951
    %v9281 = vunpack.c.l.b16 %v8952
    %v9282 = vunpack.c.h.b16 %v8952
    %v9283 = vunpack.c.l.b16 %v8953
    %v9284 = vunpack.c.h.b16 %v8953
    %v9285 = vunpack.c.l.b16 %v8954
    %v9286 = vunpack.c.h.b16 %v8954
    %v9287 = vunpack.c.l.b16 %v8955
    %v9288 = vunpack.c.h.b16 %v8955
    %v9289 = vunpack.c.l.b16 %v8956
    %v9290 = vunpack.c.h.b16 %v8956
    %v9291 = vunpack.c.l.b16 %v8957
    %v9292 = vunpack.c.h.b16 %v8957
    %v9293 = vunpack.c.l.b16 %v8958
    %v9294 = vunpack.c.h.b16 %v8958
    %v9295 = vunpack.c.l.b16 %v8959
    %v9296 = vunpack.c.h.b16 %v8959
    %v9297 = vunpack.c.l.b16 %v8960
    %v9298 = vunpack.c.h.b16 %v8960
    %v9299 = vunpack.c.l.b16 %v8961
    %v9300 = vunpack.c.h.b16 %v8961
    %v9301 = vunpack.c.l.b16 %v8962
    %v9302 = vunpack.c.h.b16 %v8962
    %v9303 = vunpack.c.l.b16 %v8963
    %v9304 = vunpack.c.h.b16 %v8963
    %v9305 = vunpack.c.l.b16 %v8964
    %v9306 = vunpack.c.h.b16 %v8964
    %v9307 = vunpack.c.l.b16 %v8965
    %v9308 = vunpack.c.h.b16 %v8965
    %v9309 = vunpack.c.l.b16 %v8966
    %v9310 = vunpack.c.h.b16 %v8966
    %v9311 = vunpack.c.l.b16 %v8967
    %v9312 = vunpack.c.h.b16 %v8967
    %v9313 = vunpack.c.l.b16 %v8968
    %v9314 = vunpack.c.h.b16 %v8968
    %v9315 = vunpack.c.l.b16 %v8969
    %v9316 = vunpack.c.h.b16 %v8969
    %v9317 = vunpack.c.l.b16 %v8970
    %v9318 = vunpack.c.h.b16 %v8970
    %v9319 = vunpack.c.l.b16 %v8971
    %v9320 = vunpack.c.h.b16 %v8971
    %v9321 = vunpack.c.l.b16 %v8972
    %v9322 = vunpack.c.h.b16 %v8972
    %v9323 = vunpack.c.l.b16 %v8973
    %v9324 = vunpack.c.h.b16 %v8973
    %v9325 = vunpack.c.l.b16 %v8974
    %v9326 = vunpack.c.h.b16 %v8974
    %v9327 = vunpack.c.l.b16 %v8975
    %v9328 = vunpack.c.h.b16 %v8975
    %v9329 = vunpack.c.l.b16 %v8976
    %v9330 = vunpack.c.h.b16 %v8976
    %v9331 = vunpack.c.l.b16 %v8977
    %v9332 = vunpack.c.h.b16 %v8977
    %v9333 = vunpack.c.l.b16 %v8978
    %v9334 = vunpack.c.h.b16 %v8978
    %v9335 = vunpack.c.l.b16 %v8979
    %v9336 = vunpack.c.h.b16 %v8979
    %v9337 = vunpack.c.l.b16 %v8980
    %v9338 = vunpack.c.h.b16 %v8980
    %v9339 = vunpack.c.l.b16 %v8981
    %v9340 = vunpack.c.h.b16 %v8981
    %v9341 = vunpack.c.l.b16 %v8982
    %v9342 = vunpack.c.h.b16 %v8982
    %v9343 = vunpack.c.l.b16 %v8983
    %v9344 = vunpack.c.h.b16 %v8983
    %v9345 = vunpack.c.l.b16 %v8984
    %v9346 = vunpack.c.h.b16 %v8984
    %v9347 = vunpack.c.l.b16 %v8985
    %v9348 = vunpack.c.h.b16 %v8985
    %v9349 = vunpack.c.l.b16 %v8986
    %v9350 = vunpack.c.h.b16 %v8986
    %v9351 = vunpack.c.l.b16 %v8987
    %v9352 = vunpack.c.h.b16 %v8987
    %v9353 = vunpack.c.l.b16 %v8988
    %v9354 = vunpack.c.h.b16 %v8988
    %v9355 = vunpack.c.l.b16 %v8989
    %v9356 = vunpack.c.h.b16 %v8989
    %v9357 = vunpack.c.l.b16 %v8990
    %v9358 = vunpack.c.h.b16 %v8990
    %v9359 = vunpack.c.l.b16 %v8991
    %v9360 = vunpack.c.h.b16 %v8991
    %v9361 = vunpack.c.l.b16 %v8992
    %v9362 = vunpack.c.h.b16 %v8992
    %v9363 = vunpack.c.l.b16 %v8993
    %v9364 = vunpack.c.h.b16 %v8993
    %v9365 = vunpack.c.l.b16 %v8994
    %v9366 = vunpack.c.h.b16 %v8994
    %v9367 = vunpack.c.l.b16 %v8995
    %v9368 = vunpack.c.h.b16 %v8995
    %v9369 = vunpack.c.l.b16 %v8996
    %v9370 = vunpack.c.h.b16 %v8996
    %v9371 = vunpack.c.l.b16 %v8997
    %v9372 = vunpack.c.h.b16 %v8997
    %v9373 = vunpack.c.l.b16 %v8998
    %v9374 = vunpack.c.h.b16 %v8998
    %v9375 = vunpack.c.l.b16 %v8999
    %v9376 = vunpack.c.h.b16 %v8999
    %v9377 = vunpack.c.l.b16 %v9000
    %v9378 = vunpack.c.h.b16 %v9000
    %v9379 = vunpack.c.l.b16 %v9001
    %v9380 = vunpack.c.h.b16 %v9001
    %v9381 = vunpack.c.l.b16 %v9002
    %v9382 = vunpack.c.h.b16 %v9002
    %v9383 = vunpack.c.l.b16 %v9003
    %v9384 = vunpack.c.h.b16 %v9003
    %v9385 = vunpack.c.l.b16 %v9004
    %v9386 = vunpack.c.h.b16 %v9004
    %v9387 = vunpack.c.l.b16 %v9005
    %v9388 = vunpack.c.h.b16 %v9005
    %v9389 = vunpack.c.l.b16 %v9006
    %v9390 = vunpack.c.h.b16 %v9006
    %v9391 = vpack.c.b16 %v9143, %v9135
    %v9392 = vpack.c.b16 %v9144, %v9136
    %v9393 = vpack.c.b16 %v9145, %v9137
    %v9394 = vpack.c.b16 %v9146, %v9138
    %v9395 = vpack.c.b16 %v9147, %v9139
    %v9396 = vpack.c.b16 %v9148, %v9140
    %v9397 = vpack.c.b16 %v9149, %v9141
    %v9398 = vpack.c.b16 %v9150, %v9142
    %v9399 = vpack.c.b16 %v9159, %v9151
    %v9400 = vpack.c.b16 %v9160, %v9152
    %v9401 = vpack.c.b16 %v9161, %v9153
    %v9402 = vpack.c.b16 %v9162, %v9154
    %v9403 = vpack.c.b16 %v9163, %v9155
    %v9404 = vpack.c.b16 %v9164, %v9156
    %v9405 = vpack.c.b16 %v9165, %v9157
    %v9406 = vpack.c.b16 %v9166, %v9158
    %v9407 = vpack.c.b16 %v9175, %v9167
    %v9408 = vpack.c.b16 %v9176, %v9168
    %v9409 = vpack.c.b16 %v9177, %v9169
    %v9410 = vpack.c.b16 %v9178, %v9170
    %v9411 = vpack.c.b16 %v9179, %v9171
    %v9412 = vpack.c.b16 %v9180, %v9172
    %v9413 = vpack.c.b16 %v9181, %v9173
    %v9414 = vpack.c.b16 %v9182, %v9174
    %v9415 = vpack.c.b16 %v9191, %v9183
    %v9416 = vpack.c.b16 %v9192, %v9184
    %v9417 = vpack.c.b16 %v9193, %v9185
    %v9418 = vpack.c.b16 %v9194, %v9186
    %v9419 = vpack.c.b16 %v9195, %v9187
    %v9420 = vpack.c.b16 %v9196, %v9188
    %v9421 = vpack.c.b16 %v9197, %v9189
    %v9422 = vpack.c.b16 %v9198, %v9190
    %v9423 = vpack.c.b16 %v9207, %v9199
    %v9424 = vpack.c.b16 %v9208, %v9200
    %v9425 = vpack.c.b16 %v9209, %v9201
    %v9426 = vpack.c.b16 %v9210, %v9202
    %v9427 = vpack.c.b16 %v9211, %v9203
    %v9428 = vpack.c.b16 %v9212, %v9204
    %v9429 = vpack.c.b16 %v9213, %v9205
    %v9430 = vpack.c.b16 %v9214, %v9206
    %v9431 = vpack.c.b16 %v9223, %v9215
    %v9432 = vpack.c.b16 %v9224, %v9216
    %v9433 = vpack.c.b16 %v9225, %v9217
    %v9434 = vpack.c.b16 %v9226, %v9218
    %v9435 = vpack.c.b16 %v9227, %v9219
    %v9436 = vpack.c.b16 %v9228, %v9220
    %v9437 = vpack.c.b16 %v9229, %v9221
    %v9438 = vpack.c.b16 %v9230, %v9222
    %v9439 = vpack.c.b16 %v9239, %v9231
    %v9440 = vpack.c.b16 %v9240, %v9232
    %v9441 = vpack.c.b16 %v9241, %v9233
    %v9442 = vpack.c.b16 %v9242, %v9234
    %v9443 = vpack.c.b16 %v9243, %v9235
    %v9444 = vpack.c.b16 %v9244, %v9236
    %v9445 = vpack.c.b16 %v9245, %v9237
    %v9446 = vpack.c.b16 %v9246, %v9238
    %v9447 = vpack.c.b16 %v9255, %v9247
    %v9448 = vpack.c.b16 %v9256, %v9248
    %v9449 = vpack.c.b16 %v9257, %v9249
    %v9450 = vpack.c.b16 %v9258, %v9250
    %v9451 = vpack.c.b16 %v9259, %v9251
    %v9452 = vpack.c.b16 %v9260, %v9252
    %v9453 = vpack.c.b16 %v9261, %v9253
    %v9454 = vpack.c.b16 %v9262, %v9254
    %v9455 = vpack.c.b16 %v9271, %v9263
    %v9456 = vpack.c.b16 %v9272, %v9264
    %v9457 = vpack.c.b16 %v9273, %v9265
    %v9458 = vpack.c.b16 %v9274, %v9266
    %v9459 = vpack.c.b16 %v9275, %v9267
    %v9460 = vpack.c.b16 %v9276, %v9268
    %v9461 = vpack.c.b16 %v9277, %v9269
    %v9462 = vpack.c.b16 %v9278, %v9270
    %v9463 = vpack.c.b16 %v9287, %v9279
    %v9464 = vpack.c.b16 %v9288, %v9280
    %v9465 = vpack.c.b16 %v9289, %v9281
    %v9466 = vpack.c.b16 %v9290, %v9282
    %v9467 = vpack.c.b16 %v9291, %v9283
    %v9468 = vpack.c.b16 %v9292, %v9284
    %v9469 = vpack.c.b16 %v9293, %v9285
    %v9470 = vpack.c.b16 %v9294, %v9286
    %v9471 = vpack.c.b16 %v9303, %v9295
    %v9472 = vpack.c.b16 %v9304, %v9296
    %v9473 = vpack.c.b16 %v9305, %v9297
    %v9474 = vpack.c.b16 %v9306, %v9298
    %v9475 = vpack.c.b16 %v9307, %v9299
    %v9476 = vpack.c.b16 %v9308, %v9300
    %v9477 = vpack.c.b16 %v9309, %v9301
    %v9478 = vpack.c.b16 %v9310, %v9302
    %v9479 = vpack.c.b16 %v9319, %v9311
    %v9480 = vpack.c.b16 %v9320, %v9312
    %v9481 = vpack.c.b16 %v9321, %v9313
    %v9482 = vpack.c.b16 %v9322, %v9314
    %v9483 = vpack.c.b16 %v9323, %v9315
    %v9484 = vpack.c.b16 %v9324, %v9316
    %v9485 = vpack.c.b16 %v9325, %v9317
    %v9486 = vpack.c.b16 %v9326, %v9318
    %v9487 = vpack.c.b16 %v9335, %v9327
    %v9488 = vpack.c.b16 %v9336, %v9328
    %v9489 = vpack.c.b16 %v9337, %v9329
    %v9490 = vpack.c.b16 %v9338, %v9330
    %v9491 = vpack.c.b16 %v9339, %v9331
    %v9492 = vpack.c.b16 %v9340, %v9332
    %v9493 = vpack.c.b16 %v9341, %v9333
    %v9494 = vpack.c.b16 %v9342, %v9334
    %v9495 = vpack.c.b16 %v9351, %v9343
    %v9496 = vpack.c.b16 %v9352, %v9344
    %v9497 = vpack.c.b16 %v9353, %v9345
    %v9498 = vpack.c.b16 %v9354, %v9346
    %v9499 = vpack.c.b16 %v9355, %v9347
    %v9500 = vpack.c.b16 %v9356, %v9348
    %v9501 = vpack.c.b16 %v9357, %v9349
    %v9502 = vpack.c.b16 %v9358, %v9350
    %v9503 = vpack.c.b16 %v9367, %v9359
    %v9504 = vpack.c.b16 %v9368, %v9360
    %v9505 = vpack.c.b16 %v9369, %v9361
    %v9506 = vpack.c.b16 %v9370, %v9362
    %v9507 = vpack.c.b16 %v9371, %v9363
    %v9508 = vpack.c.b16 %v9372, %v9364
    %v9509 = vpack.c.b16 %v9373, %v9365
    %v9510 = vpack.c.b16 %v9374, %v9366
    %v9511 = vpack.c.b16 %v9383, %v9375
    %v9512 = vpack.c.b16 %v9384, %v9376
    %v9513 = vpack.c.b16 %v9385, %v9377
    %v9514 = vpack.c.b16 %v9386, %v9378
    %v9515 = vpack.c.b16 %v9387, %v9379
    %v9516 = vpack.c.b16 %v9388, %v9380
    %v9517 = vpack.c.b16 %v9389, %v9381
    %v9518 = vpack.c.b16 %v9390, %v9382
    %9647 = vmatpush.bf16.msra.mxu0 %v9447
    %9648 = vmatpush.bf16.msra.mxu0 %v9439
    %9649 = vmatpush.bf16.msra.mxu0 %v9431
    %9650 = vmatpush.bf16.msra.mxu0 %v9423
    %9651 = vmatpush.bf16.msra.mxu0 %v9415
    %9652 = vmatpush.bf16.msra.mxu0 %v9407
    %9653 = vmatpush.bf16.msra.mxu0 %v9399
    %9654 = vmatpush.bf16.msra.mxu0 %v9391
    %9655 = vmatmul.bf16.gmra.mxu0 %v8877
    %v9656 = vpop.f32.mrf.mxu0
    %v9657 = vadd.f32 0.0, %v9656
    %v9658 = vpop.f32.mrf.mxu0
    %9659 = vdwg.mxu0
    %9660 = vmatpush.bf16.msra.mxu0 %v9511
    %9661 = vmatpush.bf16.msra.mxu0 %v9503
    %9662 = vmatpush.bf16.msra.mxu0 %v9495
    %9663 = vmatpush.bf16.msra.mxu0 %v9487
    %9664 = vmatpush.bf16.msra.mxu0 %v9479
    %9665 = vmatpush.bf16.msra.mxu0 %v9471
    %9666 = vmatpush.bf16.msra.mxu0 %v9463
    %9667 = vmatpush.bf16.msra.mxu0 %v9455
    %9668 = vmatmul.bf16.gmra.mxu0 %v8878
    %v9669 = vpop.f32.mrf.mxu0
    %v9670 = vadd.f32 %v9657, %v9669
    %v9671 = vpop.f32.mrf.mxu0
    %9672 = vdwg.mxu0
    %9673 = vmatpush.bf16.msra.mxu0 %v9448
    %9674 = vmatpush.bf16.msra.mxu0 %v9440
    %9675 = vmatpush.bf16.msra.mxu0 %v9432
    %9676 = vmatpush.bf16.msra.mxu0 %v9424
    %9677 = vmatpush.bf16.msra.mxu0 %v9416
    %9678 = vmatpush.bf16.msra.mxu0 %v9408
    %9679 = vmatpush.bf16.msra.mxu0 %v9400
    %9680 = vmatpush.bf16.msra.mxu0 %v9392
    %9681 = vmatmul.bf16.gmra.mxu0 %v8877
    %v9682 = vpop.f32.mrf.mxu0
    %v9683 = vadd.f32 0.0, %v9682
    %v9684 = vpop.f32.mrf.mxu0
    %9685 = vdwg.mxu0
    %9686 = vmatpush.bf16.msra.mxu0 %v9512
    %9687 = vmatpush.bf16.msra.mxu0 %v9504
    %9688 = vmatpush.bf16.msra.mxu0 %v9496
    %9689 = vmatpush.bf16.msra.mxu0 %v9488
    %9690 = vmatpush.bf16.msra.mxu0 %v9480
    %9691 = vmatpush.bf16.msra.mxu0 %v9472
    %9692 = vmatpush.bf16.msra.mxu0 %v9464
    %9693 = vmatpush.bf16.msra.mxu0 %v9456
    %9694 = vmatmul.bf16.gmra.mxu0 %v8878
    %v9695 = vpop.f32.mrf.mxu0
    %v9696 = vadd.f32 %v9683, %v9695
    %v9697 = vpop.f32.mrf.mxu0
    %9698 = vdwg.mxu0
    %9699 = vmatpush.bf16.msra.mxu0 %v9449
    %9700 = vmatpush.bf16.msra.mxu0 %v9441
    %9701 = vmatpush.bf16.msra.mxu0 %v9433
    %9702 = vmatpush.bf16.msra.mxu0 %v9425
    %9703 = vmatpush.bf16.msra.mxu0 %v9417
    %9704 = vmatpush.bf16.msra.mxu0 %v9409
    %9705 = vmatpush.bf16.msra.mxu0 %v9401
    %9706 = vmatpush.bf16.msra.mxu0 %v9393
    %9707 = vmatmul.bf16.gmra.mxu0 %v8877
    %v9708 = vpop.f32.mrf.mxu0
    %v9709 = vadd.f32 0.0, %v9708
    %v9710 = vpop.f32.mrf.mxu0
    %9711 = vdwg.mxu0
    %9712 = vmatpush.bf16.msra.mxu0 %v9513
    %9713 = vmatpush.bf16.msra.mxu0 %v9505
    %9714 = vmatpush.bf16.msra.mxu0 %v9497
    %9715 = vmatpush.bf16.msra.mxu0 %v9489
    %9716 = vmatpush.bf16.msra.mxu0 %v9481
    %9717 = vmatpush.bf16.msra.mxu0 %v9473
    %9718 = vmatpush.bf16.msra.mxu0 %v9465
    %9719 = vmatpush.bf16.msra.mxu0 %v9457
    %9720 = vmatmul.bf16.gmra.mxu0 %v8878
    %v9721 = vpop.f32.mrf.mxu0
    %v9722 = vadd.f32 %v9709, %v9721
    %v9723 = vpop.f32.mrf.mxu0
    %9724 = vdwg.mxu0
    %9725 = vmatpush.bf16.msra.mxu0 %v9450
    %9726 = vmatpush.bf16.msra.mxu0 %v9442
    %9727 = vmatpush.bf16.msra.mxu0 %v9434
    %9728 = vmatpush.bf16.msra.mxu0 %v9426
    %9729 = vmatpush.bf16.msra.mxu0 %v9418
    %9730 = vmatpush.bf16.msra.mxu0 %v9410
    %9731 = vmatpush.bf16.msra.mxu0 %v9402
    %9732 = vmatpush.bf16.msra.mxu0 %v9394
    %9733 = vmatmul.bf16.gmra.mxu0 %v8877
    %v9734 = vpop.f32.mrf.mxu0
    %v9735 = vadd.f32 0.0, %v9734
    %v9736 = vpop.f32.mrf.mxu0
    %9737 = vdwg.mxu0
    %9738 = vmatpush.bf16.msra.mxu0 %v9514
    %9739 = vmatpush.bf16.msra.mxu0 %v9506
    %9740 = vmatpush.bf16.msra.mxu0 %v9498
    %9741 = vmatpush.bf16.msra.mxu0 %v9490
    %9742 = vmatpush.bf16.msra.mxu0 %v9482
    %9743 = vmatpush.bf16.msra.mxu0 %v9474
    %9744 = vmatpush.bf16.msra.mxu0 %v9466
    %9745 = vmatpush.bf16.msra.mxu0 %v9458
    %9746 = vmatmul.bf16.gmra.mxu0 %v8878
    %v9747 = vpop.f32.mrf.mxu0
    %v9748 = vadd.f32 %v9735, %v9747
    %v9749 = vpop.f32.mrf.mxu0
    %9750 = vdwg.mxu0
    %9751 = vmatpush.bf16.msra.mxu0 %v9451
    %9752 = vmatpush.bf16.msra.mxu0 %v9443
    %9753 = vmatpush.bf16.msra.mxu0 %v9435
    %9754 = vmatpush.bf16.msra.mxu0 %v9427
    %9755 = vmatpush.bf16.msra.mxu0 %v9419
    %9756 = vmatpush.bf16.msra.mxu0 %v9411
    %9757 = vmatpush.bf16.msra.mxu0 %v9403
    %9758 = vmatpush.bf16.msra.mxu0 %v9395
    %9759 = vmatmul.bf16.gmra.mxu0 %v8877
    %v9760 = vpop.f32.mrf.mxu0
    %v9761 = vadd.f32 0.0, %v9760
    %v9762 = vpop.f32.mrf.mxu0
    %9763 = vdwg.mxu0
    %9764 = vmatpush.bf16.msra.mxu0 %v9515
    %9765 = vmatpush.bf16.msra.mxu0 %v9507
    %9766 = vmatpush.bf16.msra.mxu0 %v9499
    %9767 = vmatpush.bf16.msra.mxu0 %v9491
    %9768 = vmatpush.bf16.msra.mxu0 %v9483
    %9769 = vmatpush.bf16.msra.mxu0 %v9475
    %9770 = vmatpush.bf16.msra.mxu0 %v9467
    %9771 = vmatpush.bf16.msra.mxu0 %v9459
    %9772 = vmatmul.bf16.gmra.mxu0 %v8878
    %v9773 = vpop.f32.mrf.mxu0
    %v9774 = vadd.f32 %v9761, %v9773
    %v9775 = vpop.f32.mrf.mxu0
    %9776 = vdwg.mxu0
    %9777 = vmatpush.bf16.msra.mxu0 %v9452
    %9778 = vmatpush.bf16.msra.mxu0 %v9444
    %9779 = vmatpush.bf16.msra.mxu0 %v9436
    %9780 = vmatpush.bf16.msra.mxu0 %v9428
    %9781 = vmatpush.bf16.msra.mxu0 %v9420
    %9782 = vmatpush.bf16.msra.mxu0 %v9412
    %9783 = vmatpush.bf16.msra.mxu0 %v9404
    %9784 = vmatpush.bf16.msra.mxu0 %v9396
    %9785 = vmatmul.bf16.gmra.mxu0 %v8877
    %v9786 = vpop.f32.mrf.mxu0
    %v9787 = vadd.f32 0.0, %v9786
    %v9788 = vpop.f32.mrf.mxu0
    %9789 = vdwg.mxu0
    %9790 = vmatpush.bf16.msra.mxu0 %v9516
    %9791 = vmatpush.bf16.msra.mxu0 %v9508
    %9792 = vmatpush.bf16.msra.mxu0 %v9500
    %9793 = vmatpush.bf16.msra.mxu0 %v9492
    %9794 = vmatpush.bf16.msra.mxu0 %v9484
    %9795 = vmatpush.bf16.msra.mxu0 %v9476
    %9796 = vmatpush.bf16.msra.mxu0 %v9468
    %9797 = vmatpush.bf16.msra.mxu0 %v9460
    %9798 = vmatmul.bf16.gmra.mxu0 %v8878
    %v9799 = vpop.f32.mrf.mxu0
    %v9800 = vadd.f32 %v9787, %v9799
    %v9801 = vpop.f32.mrf.mxu0
    %9802 = vdwg.mxu0
    %9803 = vmatpush.bf16.msra.mxu0 %v9453
    %9804 = vmatpush.bf16.msra.mxu0 %v9445
    %9805 = vmatpush.bf16.msra.mxu0 %v9437
    %9806 = vmatpush.bf16.msra.mxu0 %v9429
    %9807 = vmatpush.bf16.msra.mxu0 %v9421
    %9808 = vmatpush.bf16.msra.mxu0 %v9413
    %9809 = vmatpush.bf16.msra.mxu0 %v9405
    %9810 = vmatpush.bf16.msra.mxu0 %v9397
    %9811 = vmatmul.bf16.gmra.mxu0 %v8877
    %v9812 = vpop.f32.mrf.mxu0
    %v9813 = vadd.f32 0.0, %v9812
    %v9814 = vpop.f32.mrf.mxu0
    %9815 = vdwg.mxu0
    %9816 = vmatpush.bf16.msra.mxu0 %v9517
    %9817 = vmatpush.bf16.msra.mxu0 %v9509
    %9818 = vmatpush.bf16.msra.mxu0 %v9501
    %9819 = vmatpush.bf16.msra.mxu0 %v9493
    %9820 = vmatpush.bf16.msra.mxu0 %v9485
    %9821 = vmatpush.bf16.msra.mxu0 %v9477
    %9822 = vmatpush.bf16.msra.mxu0 %v9469
    %9823 = vmatpush.bf16.msra.mxu0 %v9461
    %9824 = vmatmul.bf16.gmra.mxu0 %v8878
    %v9825 = vpop.f32.mrf.mxu0
    %v9826 = vadd.f32 %v9813, %v9825
    %v9827 = vpop.f32.mrf.mxu0
    %9828 = vdwg.mxu0
    %9829 = vmatpush.bf16.msra.mxu0 %v9454
    %9830 = vmatpush.bf16.msra.mxu0 %v9446
    %9831 = vmatpush.bf16.msra.mxu0 %v9438
    %9832 = vmatpush.bf16.msra.mxu0 %v9430
    %9833 = vmatpush.bf16.msra.mxu0 %v9422
    %9834 = vmatpush.bf16.msra.mxu0 %v9414
    %9835 = vmatpush.bf16.msra.mxu0 %v9406
    %9836 = vmatpush.bf16.msra.mxu0 %v9398
    %9837 = vmatmul.bf16.gmra.mxu0 %v8877
    %v9838 = vpop.f32.mrf.mxu0
    %v9839 = vadd.f32 0.0, %v9838
    %v9840 = vpop.f32.mrf.mxu0
    %9841 = vdwg.mxu0
    %9842 = vmatpush.bf16.msra.mxu0 %v9518
    %9843 = vmatpush.bf16.msra.mxu0 %v9510
    %9844 = vmatpush.bf16.msra.mxu0 %v9502
    %9845 = vmatpush.bf16.msra.mxu0 %v9494
    %9846 = vmatpush.bf16.msra.mxu0 %v9486
    %9847 = vmatpush.bf16.msra.mxu0 %v9478
    %9848 = vmatpush.bf16.msra.mxu0 %v9470
    %9849 = vmatpush.bf16.msra.mxu0 %v9462
    %9850 = vmatmul.bf16.gmra.mxu0 %v8878
    %v9851 = vpop.f32.mrf.mxu0
    %v9852 = vadd.f32 %v9839, %v9851
    %v9853 = vpop.f32.mrf.mxu0
    %9854 = vdwg.mxu0
    %v9855 = vadd.f32 %v8869, %v9670
    %v9856 = vadd.f32 %v8870, %v9696
    %v9857 = vadd.f32 %v8871, %v9722
    %v9858 = vadd.f32 %v8872, %v9748
    %v9859 = vadd.f32 %v8873, %v9774
    %v9860 = vadd.f32 %v8874, %v9800
    %v9861 = vadd.f32 %v8875, %v9826
    %v9862 = vadd.f32 %v8876, %v9852
    %v9863 = vxor.u32 %v9855, 2147483648
    %v9864 = vxor.u32 %v9856, 2147483648
    %v9865 = vmul.f32 %v9863, 1.442695
    %v9866 = vpow.pop %v9865
    %v9867 = vmul.f32 %v9864, 1.442695
    %v9868 = vpow.pop %v9867
    %v9869 = vadd.f32 %v9866, 1.0
    %v9870 = vadd.f32 %v9868, 1.0
    %v9871 = vrcp.pop %v9869
    %v9872 = vmul.f32 %v9869, %v9871
    %v9873 = vsub.f32 1.0, %v9872
    %v9874 = vmul.f32 %v9871, %v9873
    %v9875 = vadd.f32 %v9871, %v9874
    %vm9876 = vweird.f32 %v9869
    %vm9877 = vweird.f32 %v9871
    %vm9878 = vmor %vm9876, %vm9877
    %v9879 = vsel %vm9878, %v9871, %v9875
    %v9880 = vand.u32 2147483647, %v9869
    %vm9881 = vcmp.eq.f32.partialorder %v9880, 8.507059e+37
    %v9882 = vand.u32 %v9869, 2147483648
    %v9883 = vor.u32 1.1754944e-38, %v9882
    %v9884 = vsel %vm9881, %v9883, %v9879
    %v9885 = vmul.f32 1.0, %v9884
    %v9886 = vrcp.pop %v9870
    %v9887 = vmul.f32 %v9870, %v9886
    %v9888 = vsub.f32 1.0, %v9887
    %v9889 = vmul.f32 %v9886, %v9888
    %v9890 = vadd.f32 %v9886, %v9889
    %vm9891 = vweird.f32 %v9870
    %vm9892 = vweird.f32 %v9886
    %vm9893 = vmor %vm9891, %vm9892
    %v9894 = vsel %vm9893, %v9886, %v9890
    %v9895 = vand.u32 2147483647, %v9870
    %vm9896 = vcmp.eq.f32.partialorder %v9895, 8.507059e+37
    %v9897 = vand.u32 %v9870, 2147483648
    %v9898 = vor.u32 1.1754944e-38, %v9897
    %v9899 = vsel %vm9896, %v9898, %v9894
    %v9900 = vmul.f32 1.0, %v9899
    %v9901 = vxor.u32 %v9857, 2147483648
    %v9902 = vxor.u32 %v9858, 2147483648
    %v9903 = vmul.f32 %v9901, 1.442695
    %v9904 = vpow.pop %v9903
    %v9905 = vmul.f32 %v9902, 1.442695
    %v9906 = vpow.pop %v9905
    %v9907 = vadd.f32 %v9904, 1.0
    %v9908 = vadd.f32 %v9906, 1.0
    %v9909 = vrcp.pop %v9907
    %v9910 = vmul.f32 %v9907, %v9909
    %v9911 = vsub.f32 1.0, %v9910
    %v9912 = vmul.f32 %v9909, %v9911
    %v9913 = vadd.f32 %v9909, %v9912
    %vm9914 = vweird.f32 %v9907
    %vm9915 = vweird.f32 %v9909
    %vm9916 = vmor %vm9914, %vm9915
    %v9917 = vsel %vm9916, %v9909, %v9913
    %v9918 = vand.u32 2147483647, %v9907
    %vm9919 = vcmp.eq.f32.partialorder %v9918, 8.507059e+37
    %v9920 = vand.u32 %v9907, 2147483648
    %v9921 = vor.u32 1.1754944e-38, %v9920
    %v9922 = vsel %vm9919, %v9921, %v9917
    %v9923 = vmul.f32 1.0, %v9922
    %v9924 = vrcp.pop %v9908
    %v9925 = vmul.f32 %v9908, %v9924
    %v9926 = vsub.f32 1.0, %v9925
    %v9927 = vmul.f32 %v9924, %v9926
    %v9928 = vadd.f32 %v9924, %v9927
    %vm9929 = vweird.f32 %v9908
    %vm9930 = vweird.f32 %v9924
    %vm9931 = vmor %vm9929, %vm9930
    %v9932 = vsel %vm9931, %v9924, %v9928
    %v9933 = vand.u32 2147483647, %v9908
    %vm9934 = vcmp.eq.f32.partialorder %v9933, 8.507059e+37
    %v9935 = vand.u32 %v9908, 2147483648
    %v9936 = vor.u32 1.1754944e-38, %v9935
    %v9937 = vsel %vm9934, %v9936, %v9932
    %v9938 = vmul.f32 1.0, %v9937
    %v9939 = vtanh.pop %v9859
    %v9940 = vtanh.pop %v9860
    %v9941 = vxor.u32 %v9861, 2147483648
    %v9942 = vxor.u32 %v9862, 2147483648
    %v9943 = vmul.f32 %v9941, 1.442695
    %v9944 = vpow.pop %v9943
    %v9945 = vmul.f32 %v9942, 1.442695
    %v9946 = vpow.pop %v9945
    %v9947 = vadd.f32 %v9944, 1.0
    %v9948 = vadd.f32 %v9946, 1.0
    %v9949 = vrcp.pop %v9947
    %v9950 = vmul.f32 %v9947, %v9949
    %v9951 = vsub.f32 1.0, %v9950
    %v9952 = vmul.f32 %v9949, %v9951
    %v9953 = vadd.f32 %v9949, %v9952
    %vm9954 = vweird.f32 %v9947
    %vm9955 = vweird.f32 %v9949
    %vm9956 = vmor %vm9954, %vm9955
    %v9957 = vsel %vm9956, %v9949, %v9953
    %v9958 = vand.u32 2147483647, %v9947
    %vm9959 = vcmp.eq.f32.partialorder %v9958, 8.507059e+37
    %v9960 = vand.u32 %v9947, 2147483648
    %v9961 = vor.u32 1.1754944e-38, %v9960
    %v9962 = vsel %vm9959, %v9961, %v9957
    %v9963 = vmul.f32 1.0, %v9962
    %v9964 = vrcp.pop %v9948
    %v9965 = vmul.f32 %v9948, %v9964
    %v9966 = vsub.f32 1.0, %v9965
    %v9967 = vmul.f32 %v9964, %v9966
    %v9968 = vadd.f32 %v9964, %v9967
    %vm9969 = vweird.f32 %v9948
    %vm9970 = vweird.f32 %v9964
    %vm9971 = vmor %vm9969, %vm9970
    %v9972 = vsel %vm9971, %v9964, %v9968
    %v9973 = vand.u32 2147483647, %v9948
    %vm9974 = vcmp.eq.f32.partialorder %v9973, 8.507059e+37
    %v9975 = vand.u32 %v9948, 2147483648
    %v9976 = vor.u32 1.1754944e-38, %v9975
    %v9977 = vsel %vm9974, %v9976, %v9972
    %v9978 = vmul.f32 1.0, %v9977
    %v9979 = vmul.f32 %v9923, %v8860
    %v9980 = vmul.f32 %v9938, %v8861
    %v9981 = vmul.f32 %v9885, %v9939
    %v9982 = vmul.f32 %v9900, %v9940
    %v9983 = vadd.f32 %v9979, %v9981
    %v9984 = vadd.f32 %v9980, %v9982
    %v9985 = vtanh.pop %v9983
    %v9986 = vtanh.pop %v9984
    %v9987 = vmul.f32 %v9963, %v9985
    %v9988 = vmul.f32 %v9978, %v9986
    %s9989 = sadd.s32 %s829, 7
    %v9990 = vstv %s9989
    %vm9991 = vcmp.lt.s32.totalorder %v9990, %v828
    %v9992 = vsel %vm9991, 1, 0
    %9993 = vset.pattern.permute.xlu0 0
    %9994 = vperm.xlu0 %9993, %v9992
    %v9995 = vpop.permute.xlu0 %9994
    %vm9996 = vcmp.eq.s32.totalorder %v9995, 1
    %v9997 = vsel %vm9996, %v9987, %v8858
    %v9998 = vsel %vm9996, %v9988, %v8859
    %9999 = vst [vmem:[#allocation3] sm:$0xff] %v9997
    %10000 = vst [vmem:[#allocation3 + $0x8] sm:$0xff] %v9998
    %v10001 = vsel %vm9996, %v9983, %v8860
    %v10002 = vsel %vm9996, %v9984, %v8861
    %10003 = vst [vmem:[#allocation4] sm:$0xff] %v10001
    %10004 = vst [vmem:[#allocation4 + $0x8] sm:$0xff] %v10002
    // Predicated region
    $region50: #{tpu_custom_call.1} parent=1 // pred_check
      %p10005 = pneg %p90
    $region51: #{tpu_custom_call.1} parent=1 // pred_check_branch
      %10007 = sbr.rel (%p10005) target = $region53
    $region52: #{tpu_custom_call.1} parent=1 // pred_region
      %v10008 = vld [vmem:[#allocation3] sm:$0xff]
      %v10009 = vld [vmem:[#allocation3 + $0x8] sm:$0xff]
      %v10010 = vpack.c.bf16 %v10008, %v10008
      %v10011 = vpack.c.bf16 %v10009, %v10009
      %v10012 = vld [vmem:[#allocation11] sm:$0xf]
      %v10013 = vld [vmem:[#allocation11 + $0x4] sm:$0xf]
      %v10014 = vld [vmem:[#allocation11 + $0x8] sm:$0xf]
      %v10015 = vld [vmem:[#allocation11 + $0xc] sm:$0xf]
      %v10016 = vld [vmem:[#allocation11 + $0x10] sm:$0xf]
      %v10017 = vld [vmem:[#allocation11 + $0x14] sm:$0xf]
      %v10018 = vld [vmem:[#allocation11 + $0x18] sm:$0xf]
      %v10019 = vld [vmem:[#allocation11 + $0x1c] sm:$0xf]
      %v10020 = vld [vmem:[#allocation11 + $0x20] sm:$0xf]
      %v10021 = vld [vmem:[#allocation11 + $0x24] sm:$0xf]
      %v10022 = vld [vmem:[#allocation11 + $0x28] sm:$0xf]
      %v10023 = vld [vmem:[#allocation11 + $0x2c] sm:$0xf]
      %v10024 = vld [vmem:[#allocation11 + $0x30] sm:$0xf]
      %v10025 = vld [vmem:[#allocation11 + $0x34] sm:$0xf]
      %v10026 = vld [vmem:[#allocation11 + $0x38] sm:$0xf]
      %v10027 = vld [vmem:[#allocation11 + $0x3c] sm:$0xf]
      %v10028 = vld [vmem:[#allocation11 + $0x40] sm:$0xf]
      %v10029 = vld [vmem:[#allocation11 + $0x44] sm:$0xf]
      %v10030 = vld [vmem:[#allocation11 + $0x48] sm:$0xf]
      %v10031 = vld [vmem:[#allocation11 + $0x4c] sm:$0xf]
      %v10032 = vld [vmem:[#allocation11 + $0x50] sm:$0xf]
      %v10033 = vld [vmem:[#allocation11 + $0x54] sm:$0xf]
      %v10034 = vld [vmem:[#allocation11 + $0x58] sm:$0xf]
      %v10035 = vld [vmem:[#allocation11 + $0x5c] sm:$0xf]
      %v10036 = vld [vmem:[#allocation11 + $0x60] sm:$0xf]
      %v10037 = vld [vmem:[#allocation11 + $0x64] sm:$0xf]
      %v10038 = vld [vmem:[#allocation11 + $0x68] sm:$0xf]
      %v10039 = vld [vmem:[#allocation11 + $0x6c] sm:$0xf]
      %v10040 = vld [vmem:[#allocation11 + $0x70] sm:$0xf]
      %v10041 = vld [vmem:[#allocation11 + $0x74] sm:$0xf]
      %v10042 = vld [vmem:[#allocation11 + $0x78] sm:$0xf]
      %v10043 = vld [vmem:[#allocation11 + $0x7c] sm:$0xf]
      %v10044 = vld [vmem:[%s6] sm:$0x1]
      %v10046 = vperm.slane %v10044, 0
      %v10080 = vunpack.c.l.b16 %v10012
      %v10081 = vunpack.c.l.b16 %v10013
      %v10082 = vunpack.c.l.b16 %v10014
      %v10083 = vunpack.c.l.b16 %v10015
      %v10084 = vunpack.c.l.b16 %v10016
      %v10085 = vunpack.c.l.b16 %v10017
      %v10086 = vunpack.c.l.b16 %v10018
      %v10087 = vunpack.c.l.b16 %v10019
      %v10088 = vunpack.c.l.b16 %v10020
      %v10089 = vunpack.c.l.b16 %v10021
      %v10090 = vunpack.c.l.b16 %v10022
      %v10091 = vunpack.c.l.b16 %v10023
      %v10092 = vunpack.c.l.b16 %v10024
      %v10093 = vunpack.c.l.b16 %v10025
      %v10094 = vunpack.c.l.b16 %v10026
      %v10095 = vunpack.c.l.b16 %v10027
      %v10096 = vunpack.c.l.b16 %v10028
      %v10097 = vunpack.c.l.b16 %v10029
      %v10098 = vunpack.c.l.b16 %v10030
      %v10099 = vunpack.c.l.b16 %v10031
      %v10100 = vunpack.c.l.b16 %v10032
      %v10101 = vunpack.c.l.b16 %v10033
      %v10102 = vunpack.c.l.b16 %v10034
      %v10103 = vunpack.c.l.b16 %v10035
      %v10104 = vunpack.c.l.b16 %v10036
      %v10105 = vunpack.c.l.b16 %v10037
      %v10106 = vunpack.c.l.b16 %v10038
      %v10107 = vunpack.c.l.b16 %v10039
      %v10108 = vunpack.c.l.b16 %v10040
      %v10109 = vunpack.c.l.b16 %v10041
      %v10110 = vunpack.c.l.b16 %v10042
      %v10111 = vunpack.c.l.b16 %v10043
      %v10112 = vpack.c.b16 %v10081, %v10080
      %v10113 = vpack.c.b16 %v10083, %v10082
      %v10114 = vpack.c.b16 %v10085, %v10084
      %v10115 = vpack.c.b16 %v10087, %v10086
      %v10116 = vpack.c.b16 %v10089, %v10088
      %v10117 = vpack.c.b16 %v10091, %v10090
      %v10118 = vpack.c.b16 %v10093, %v10092
      %v10119 = vpack.c.b16 %v10095, %v10094
      %v10120 = vpack.c.b16 %v10097, %v10096
      %v10121 = vpack.c.b16 %v10099, %v10098
      %v10122 = vpack.c.b16 %v10101, %v10100
      %v10123 = vpack.c.b16 %v10103, %v10102
      %v10124 = vpack.c.b16 %v10105, %v10104
      %v10125 = vpack.c.b16 %v10107, %v10106
      %v10126 = vpack.c.b16 %v10109, %v10108
      %v10127 = vpack.c.b16 %v10111, %v10110
      %10144 = vmatpush.bf16.msra.mxu0 %v10119
      %10145 = vmatpush.bf16.msra.mxu0 %v10118
      %10146 = vmatpush.bf16.msra.mxu0 %v10117
      %10147 = vmatpush.bf16.msra.mxu0 %v10116
      %10148 = vmatpush.bf16.msra.mxu0 %v10115
      %10149 = vmatpush.bf16.msra.mxu0 %v10114
      %10150 = vmatpush.bf16.msra.mxu0 %v10113
      %10151 = vmatpush.bf16.msra.mxu0 %v10112
      %10152 = vmatmul.bf16.gmra.mxu0 %v10010
      %v10153 = vpop.f32.mrf.mxu0
      %v10154 = vadd.f32 %v10046, %v10153
      %v10155 = vpop.f32.mrf.mxu0
      %10156 = vdwg.mxu0
      %10157 = vmatpush.bf16.msra.mxu0 %v10127
      %10158 = vmatpush.bf16.msra.mxu0 %v10126
      %10159 = vmatpush.bf16.msra.mxu0 %v10125
      %10160 = vmatpush.bf16.msra.mxu0 %v10124
      %10161 = vmatpush.bf16.msra.mxu0 %v10123
      %10162 = vmatpush.bf16.msra.mxu0 %v10122
      %10163 = vmatpush.bf16.msra.mxu0 %v10121
      %10164 = vmatpush.bf16.msra.mxu0 %v10120
      %10165 = vmatmul.bf16.gmra.mxu0 %v10011
      %v10166 = vpop.f32.mrf.mxu0
      %v10167 = vadd.f32 %v10154, %v10166
      %v10168 = vpop.f32.mrf.mxu0
      %10169 = vdwg.mxu0
      %10170 = vst [vmem:[#allocation13] sm:$0xff] %v10167
    $region53: #{tpu_custom_call.1} parent=1 // pred_fallthru
      _
    // Predicated region
    $region54: #{tpu_custom_call.1} parent=1 // pred_check
      _
    $region55: #{tpu_custom_call.1} parent=1 // pred_check_branch
      %10172 = sbr.rel (0) target = $region57
    $region56: #{tpu_custom_call.1} parent=1 // pred_region
      %10174 = vsyncadd [#allocation7], 0
      %s10176 = sshll.u32 [#allocation13], 4
      %s10177 = int_to_ptr.vmem [resolvable:$true] %s10176
      %s10178 = sshll.u32 %s7, 4
      %s10179 = int_to_ptr.hbm [resolvable:$true] %s10178
      %10181 = dma.vmem_to_hbm [thread:$0]  %s10177, 128, %s10179, [#allocation7]
    $region57: #{tpu_custom_call.1} parent=1 // pred_fallthru
      _
    // Predicated region
    $region58: #{tpu_custom_call.1} parent=1 // pred_check
      _
    $region59: #{tpu_custom_call.1} parent=1 // pred_check_branch
      %10183 = sbr.rel (0) target = $region61
    $region60: #{tpu_custom_call.1} parent=1 // pred_region
      %10185 = dma.done [#allocation7], 128
    $region61: #{tpu_custom_call.1} parent=1 // pred_fallthru
      _
    %10186 = vsyncpa [#allocation6], 1
    %10187 = vsyncpa [#allocation9], 1
    %10188 = vsyncpa [#allocation12], 1
    %10189 = vsyncpa [#allocation7], 1

</llo_original>
